<compile_context>
chip_gen: v7x
topology: tpu7x:2x2x1
jax: 0.10.0
libtpu: 0.0.40
codegen_flags: <defaults>
</compile_context>

<pallas_src>
import functools

import jax
import jax.numpy as jnp
from jax.experimental import pallas as pl
from jax.experimental.pallas import tpu as pltpu


def _leaky_relu(v):
    return jnp.where(v > 0, v, 0.2 * v)


def _bn_stats(v, gamma):
    # training-mode BatchNorm1d statistics: batch mean, biased batch variance,
    # affine scale folded into a single per-feature multiplier.
    mu = jnp.mean(v, axis=0, keepdims=True)
    var = jnp.maximum(jnp.mean(v * v, axis=0, keepdims=True) - mu * mu, 0.0)
    scale = gamma * jax.lax.rsqrt(var + 1e-5)                  # (1, N)
    return mu, scale


def _bn_fma(v, gamma, beta):
    mu, scale = _bn_stats(v, gamma)
    shift = beta - mu * scale
    return v * scale + shift                                   # single FMA per element


def dis_kernel(label_ref, x_ref, ew1_ref,
               w1x_ref, b1_ref, g1_ref, be1_ref,
               w2_ref, b2_ref, g2_ref, be2_ref,
               w3_ref, b3_ref, g3_ref, be3_ref,
               w4_ref, b4_ref,
               out_ref):
    B = x_ref.shape[0]
    C = ew1_ref.shape[0]

    # Embedding(label) @ w1e collapses to onehot @ ew1 (ew1 precomputed in the wrapper).
    labels = label_ref[...]                                            # (B, 1) int32
    onehot = (jax.lax.broadcasted_iota(jnp.int32, (B, C), 1) == labels)
    onehot = onehot.astype(jnp.float32)

    # Block 1: split-K linear (no lane-misaligned concat): onehot @ ew1 + x @ w1x + b1
    h = (jnp.dot(onehot, ew1_ref[...], preferred_element_type=jnp.float32)
         + jnp.dot(x_ref[...].astype(jnp.bfloat16), w1x_ref[...],
                   preferred_element_type=jnp.float32)
         + b1_ref[...])
    h = _bn_fma(_leaky_relu(h), g1_ref[...], be1_ref[...]).astype(jnp.bfloat16)

    # Block 2: Linear -> LeakyReLU -> BatchNorm -> Dropout(0.4)
    h = jnp.dot(h, w2_ref[...], preferred_element_type=jnp.float32) + b2_ref[...]
    h = _bn_fma(_leaky_relu(h), g2_ref[...], be2_ref[...]).astype(jnp.bfloat16)
    # TODO(synk): Dropout(0.4) is stochastic; implemented as identity (eval semantics).

    # Block 3: Linear -> LeakyReLU -> BatchNorm folded into the (512,1) head + Sigmoid.
    h = jnp.dot(h, w3_ref[...], preferred_element_type=jnp.float32) + b3_ref[...]
    h = _leaky_relu(h)                                                  # (B, 512) f32
    mu3, scale3 = _bn_stats(h, g3_ref[...])
    w4 = w4_ref[...]                                                    # (1, 512) f32
    sw = scale3 * w4                                                    # (1, 512)
    const = jnp.sum((be3_ref[...] - mu3 * scale3) * w4) + b4_ref[0, 0]  # scalar
    logit = jnp.sum(h * sw, axis=-1, keepdims=True) + const             # (B, 1)
    out_ref[...] = jax.nn.sigmoid(logit)


@jax.jit
def dis_forward(params, x, labels):
    B, F = x.shape
    C = params["ew1"].shape[0]

    vmem = pl.BlockSpec(memory_space=pltpu.MemorySpace.VMEM)
    smem = pl.BlockSpec(memory_space=pltpu.MemorySpace.SMEM)
    in_specs = [vmem] * 16 + [smem]   # everything in VMEM except the scalar head bias

    # VMEM budget: ~3.2 MiB of weights + ~40 KiB/row of live f32/bf16 activations,
    # capped at 64 MiB so the limit never exceeds a v7x TensorCore's physical VMEM.
    vmem_limit = min(64 << 20, (8 << 20) + B * (40 << 10))

    # Advisory cost hint so XLA can overlap this small custom call with neighbors.
    flops = 2 * B * (C * 1024 + F * 1024 + 1024 * 1024 + 1024 * 512 + 512)
    bytes_accessed = (sum(int(v.size) * v.dtype.itemsize for v in params.values())
                      + int(x.size) * x.dtype.itemsize
                      + int(labels.size) * labels.dtype.itemsize
                      + B * 4)
    cost = pl.CostEstimate(flops=flops, transcendentals=B + 2560,
                           bytes_accessed=bytes_accessed)

    return pl.pallas_call(
        dis_kernel,
        out_shape=jax.ShapeDtypeStruct((B, 1), jnp.float32),
        in_specs=in_specs,
        out_specs=vmem,
        compiler_params=pltpu.CompilerParams(vmem_limit_bytes=vmem_limit),
        cost_estimate=cost,
    )(labels, x,
      params["ew1"],
      params["w1x"], params["b1"], params["g1"], params["be1"],
      params["w2"], params["b2"], params["g2"], params["be2"],
      params["w3"], params["b3"], params["g3"], params["be3"],
      params["w4"], params["b4"])


def init_params(key, n_features, n_classes):
    """Deterministic init mirroring the PyTorch module's parameter shapes.

    Large weights are stored in bfloat16 (HBM-bandwidth optimization); tiny tensors
    (biases, BN affine, head, embedding product) stay float32.  The embedding table
    and the label half of w1 are pre-multiplied into ew1 = emb @ w1[:C].
    """
    ks = jax.random.split(key, 6)
    d_in = n_classes + n_features

    def linear(k, fan_in, fan_out):
        bound = 1.0 / jnp.sqrt(jnp.float32(fan_in))
        kw, kb = jax.random.split(k)
        w = jax.random.uniform(kw, (fan_in, fan_out), jnp.float32, -bound, bound)
        b = jax.random.uniform(kb, (1, fan_out), jnp.float32, -bound, bound)
        return w, b

    emb = jax.random.normal(ks[0], (n_classes, n_classes), jnp.float32)
    w1, b1 = linear(ks[1], d_in, 1024)
    w2, b2 = linear(ks[2], 1024, 1024)
    w3, b3 = linear(ks[3], 1024, 512)
    w4, b4 = linear(ks[4], 512, 1)
    return {
        # emb @ w1e fused in the wrapper: removes a matmul + the emb-table DMA.
        "ew1": jnp.dot(emb, w1[:n_classes, :]),
        "w1x": w1[n_classes:, :].astype(jnp.bfloat16),
        "b1": b1,
        "g1": jnp.ones((1, 1024), jnp.float32), "be1": jnp.zeros((1, 1024), jnp.float32),
        "w2": w2.astype(jnp.bfloat16), "b2": b2,
        "g2": jnp.ones((1, 1024), jnp.float32), "be2": jnp.zeros((1, 1024), jnp.float32),
        "w3": w3.astype(jnp.bfloat16), "b3": b3,
        "g3": jnp.ones((1, 512), jnp.float32), "be3": jnp.zeros((1, 512), jnp.float32),
        "w4": w4.reshape(1, 512),                 # head as a (1, 512) row for VPU reduce
        "b4": b4.reshape(1, 1),                   # scalar bias, lives in SMEM
    }


if __name__ == "__main__":
    key = jax.random.PRNGKey(0)
    k_params, k_x, k_lbl = jax.random.split(key, 3)

    BATCH = 8          # small test batch; raise to 2048+ in production to amortize the
    N_FEATURES = 32    # ~3.2 MiB per-call weight DMA (kernel is shape-polymorphic in B).
    N_CLASSES = 4

    params = init_params(k_params, N_FEATURES, N_CLASSES)
    x = jax.random.normal(k_x, (BATCH, N_FEATURES), jnp.float32)
    labels = jax.random.randint(k_lbl, (BATCH, 1), 0, N_CLASSES, jnp.int32)

    out = dis_forward(params, x, labels)
    out = jax.block_until_ready(out)
    assert out.shape == (BATCH, 1)
    assert bool(jnp.all(jnp.isfinite(out)))
    assert bool(jnp.all((out >= 0.0) & (out <= 1.0)))
    print("KERNEL_OK")
</pallas_src>

<mosaic_0001>
module attributes {stable_mosaic.version = 11 : i64} {
  func.func @dis_kernel(%arg0: memref<8x1xi32, #tpu.memory_space<vmem>>, %arg1: memref<8x32xf32, #tpu.memory_space<vmem>>, %arg2: memref<4x1024xf32, #tpu.memory_space<vmem>>, %arg3: memref<32x1024xbf16, #tpu.memory_space<vmem>>, %arg4: memref<1x1024xf32, #tpu.memory_space<vmem>>, %arg5: memref<1x1024xf32, #tpu.memory_space<vmem>>, %arg6: memref<1x1024xf32, #tpu.memory_space<vmem>>, %arg7: memref<1024x1024xbf16, #tpu.memory_space<vmem>>, %arg8: memref<1x1024xf32, #tpu.memory_space<vmem>>, %arg9: memref<1x1024xf32, #tpu.memory_space<vmem>>, %arg10: memref<1x1024xf32, #tpu.memory_space<vmem>>, %arg11: memref<1024x512xbf16, #tpu.memory_space<vmem>>, %arg12: memref<1x512xf32, #tpu.memory_space<vmem>>, %arg13: memref<1x512xf32, #tpu.memory_space<vmem>>, %arg14: memref<1x512xf32, #tpu.memory_space<vmem>>, %arg15: memref<1x512xf32, #tpu.memory_space<vmem>>, %arg16: memref<1x1xf32, #tpu.memory_space<smem>>, %arg17: memref<8x1xf32, #tpu.memory_space<vmem>>) attributes {dimension_semantics = [], scalar_prefetch = 0 : i64, scratch_operands = 0 : i64, tpu.core_type = #tpu.core_type<tc>} {
    %c0 = arith.constant 0 : index
    %c0_0 = arith.constant 0 : index
    %0 = vector.load %arg0[%c0, %c0_0] : memref<8x1xi32, #tpu.memory_space<vmem>>, vector<8x1xi32>
    %1 = tpu.iota {dimensions = array<i32: 1>} : vector<8x4xi32>
    %2 = vector.broadcast %0 : vector<8x1xi32> to vector<8x4xi32>
    %3 = arith.cmpi eq, %1, %2 : vector<8x4xi32>
    %4 = arith.extui %3 : vector<8x4xi1> to vector<8x4xi32>
    %5 = arith.sitofp %4 : vector<8x4xi32> to vector<8x4xf32>
    %c0_1 = arith.constant 0 : index
    %c0_2 = arith.constant 0 : index
    %6 = vector.load %arg2[%c0_1, %c0_2] : memref<4x1024xf32, #tpu.memory_space<vmem>>, vector<4x1024xf32>
    %cst = arith.constant dense<0.000000e+00> : vector<8x1024xf32>
    %7 = tpu.matmul %5, %6, %cst {dimension_numbers = #tpu.dot_dimension_numbers<[1], [0], [0], [1], [0, 0, 1, 1], [], []>} : vector<8x4xf32>, vector<4x1024xf32>, vector<8x1024xf32> -> vector<8x1024xf32>
    %c0_3 = arith.constant 0 : index
    %c0_4 = arith.constant 0 : index
    %8 = vector.load %arg1[%c0_3, %c0_4] : memref<8x32xf32, #tpu.memory_space<vmem>>, vector<8x32xf32>
    %9 = arith.truncf %8 : vector<8x32xf32> to vector<8x32xbf16>
    %c0_5 = arith.constant 0 : index
    %c0_6 = arith.constant 0 : index
    %10 = vector.load %arg3[%c0_5, %c0_6] : memref<32x1024xbf16, #tpu.memory_space<vmem>>, vector<32x1024xbf16>
    %cst_7 = arith.constant dense<0.000000e+00> : vector<8x1024xf32>
    %11 = tpu.matmul %9, %10, %cst_7 {dimension_numbers = #tpu.dot_dimension_numbers<[1], [0], [0], [1], [0, 0, 1, 1], [], []>} : vector<8x32xbf16>, vector<32x1024xbf16>, vector<8x1024xf32> -> vector<8x1024xf32>
    %12 = arith.addf %7, %11 : vector<8x1024xf32>
    %c0_8 = arith.constant 0 : index
    %c0_9 = arith.constant 0 : index
    %13 = vector.load %arg4[%c0_8, %c0_9] : memref<1x1024xf32, #tpu.memory_space<vmem>>, vector<1x1024xf32>
    %14 = vector.broadcast %13 : vector<1x1024xf32> to vector<8x1024xf32>
    %15 = arith.addf %12, %14 : vector<8x1024xf32>
    %cst_10 = arith.constant 0.000000e+00 : f32
    %16 = vector.broadcast %cst_10 : f32 to vector<8x1024xf32>
    %17 = arith.cmpf ogt, %15, %16 : vector<8x1024xf32>
    %cst_11 = arith.constant 2.000000e-01 : f32
    %18 = vector.broadcast %cst_11 : f32 to vector<8x1024xf32>
    %19 = arith.mulf %18, %15 : vector<8x1024xf32>
    %20 = arith.select %17, %15, %19 : vector<8x1024xi1>, vector<8x1024xf32>
    %c0_12 = arith.constant 0 : index
    %c0_13 = arith.constant 0 : index
    %21 = vector.load %arg5[%c0_12, %c0_13] : memref<1x1024xf32, #tpu.memory_space<vmem>>, vector<1x1024xf32>
    %c0_14 = arith.constant 0 : index
    %c0_15 = arith.constant 0 : index
    %22 = vector.load %arg6[%c0_14, %c0_15] : memref<1x1024xf32, #tpu.memory_space<vmem>>, vector<1x1024xf32>
    %cst_16 = arith.constant dense<0.000000e+00> : vector<1024xf32>
    %23 = vector.multi_reduction <add>, %20, %cst_16 [0] : vector<8x1024xf32> to vector<1024xf32>
    %24 = vector.shape_cast %23 : vector<1024xf32> to vector<1x1024xf32>
    %cst_17 = arith.constant 8.000000e+00 : f32
    %25 = vector.broadcast %cst_17 : f32 to vector<1x1024xf32>
    %26 = arith.divf %24, %25 : vector<1x1024xf32>
    %27 = arith.mulf %20, %20 : vector<8x1024xf32>
    %cst_18 = arith.constant dense<0.000000e+00> : vector<1024xf32>
    %28 = vector.multi_reduction <add>, %27, %cst_18 [0] : vector<8x1024xf32> to vector<1024xf32>
    %29 = vector.shape_cast %28 : vector<1024xf32> to vector<1x1024xf32>
    %cst_19 = arith.constant 8.000000e+00 : f32
    %30 = vector.broadcast %cst_19 : f32 to vector<1x1024xf32>
    %31 = arith.divf %29, %30 : vector<1x1024xf32>
    %32 = arith.mulf %26, %26 : vector<1x1024xf32>
    %33 = arith.subf %31, %32 : vector<1x1024xf32>
    %cst_20 = arith.constant 0.000000e+00 : f32
    %34 = vector.broadcast %cst_20 : f32 to vector<1x1024xf32>
    %35 = arith.maximumf %33, %34 : vector<1x1024xf32>
    %cst_21 = arith.constant 9.99999974E-6 : f32
    %36 = vector.broadcast %cst_21 : f32 to vector<1x1024xf32>
    %37 = arith.addf %35, %36 : vector<1x1024xf32>
    %38 = math.rsqrt %37 : vector<1x1024xf32>
    %39 = arith.mulf %21, %38 : vector<1x1024xf32>
    %40 = arith.mulf %26, %39 : vector<1x1024xf32>
    %41 = arith.subf %22, %40 : vector<1x1024xf32>
    %42 = vector.broadcast %39 : vector<1x1024xf32> to vector<8x1024xf32>
    %43 = arith.mulf %20, %42 : vector<8x1024xf32>
    %44 = vector.broadcast %41 : vector<1x1024xf32> to vector<8x1024xf32>
    %45 = arith.addf %43, %44 : vector<8x1024xf32>
    %46 = arith.truncf %45 : vector<8x1024xf32> to vector<8x1024xbf16>
    %c0_22 = arith.constant 0 : index
    %c0_23 = arith.constant 0 : index
    %47 = vector.load %arg7[%c0_22, %c0_23] : memref<1024x1024xbf16, #tpu.memory_space<vmem>>, vector<1024x1024xbf16>
    %cst_24 = arith.constant dense<0.000000e+00> : vector<8x1024xf32>
    %48 = tpu.matmul %46, %47, %cst_24 {dimension_numbers = #tpu.dot_dimension_numbers<[1], [0], [0], [1], [0, 0, 1, 1], [], []>} : vector<8x1024xbf16>, vector<1024x1024xbf16>, vector<8x1024xf32> -> vector<8x1024xf32>
    %c0_25 = arith.constant 0 : index
    %c0_26 = arith.constant 0 : index
    %49 = vector.load %arg8[%c0_25, %c0_26] : memref<1x1024xf32, #tpu.memory_space<vmem>>, vector<1x1024xf32>
    %50 = vector.broadcast %49 : vector<1x1024xf32> to vector<8x1024xf32>
    %51 = arith.addf %48, %50 : vector<8x1024xf32>
    %cst_27 = arith.constant 0.000000e+00 : f32
    %52 = vector.broadcast %cst_27 : f32 to vector<8x1024xf32>
    %53 = arith.cmpf ogt, %51, %52 : vector<8x1024xf32>
    %cst_28 = arith.constant 2.000000e-01 : f32
    %54 = vector.broadcast %cst_28 : f32 to vector<8x1024xf32>
    %55 = arith.mulf %54, %51 : vector<8x1024xf32>
    %56 = arith.select %53, %51, %55 : vector<8x1024xi1>, vector<8x1024xf32>
    %c0_29 = arith.constant 0 : index
    %c0_30 = arith.constant 0 : index
    %57 = vector.load %arg9[%c0_29, %c0_30] : memref<1x1024xf32, #tpu.memory_space<vmem>>, vector<1x1024xf32>
    %c0_31 = arith.constant 0 : index
    %c0_32 = arith.constant 0 : index
    %58 = vector.load %arg10[%c0_31, %c0_32] : memref<1x1024xf32, #tpu.memory_space<vmem>>, vector<1x1024xf32>
    %cst_33 = arith.constant dense<0.000000e+00> : vector<1024xf32>
    %59 = vector.multi_reduction <add>, %56, %cst_33 [0] : vector<8x1024xf32> to vector<1024xf32>
    %60 = vector.shape_cast %59 : vector<1024xf32> to vector<1x1024xf32>
    %cst_34 = arith.constant 8.000000e+00 : f32
    %61 = vector.broadcast %cst_34 : f32 to vector<1x1024xf32>
    %62 = arith.divf %60, %61 : vector<1x1024xf32>
    %63 = arith.mulf %56, %56 : vector<8x1024xf32>
    %cst_35 = arith.constant dense<0.000000e+00> : vector<1024xf32>
    %64 = vector.multi_reduction <add>, %63, %cst_35 [0] : vector<8x1024xf32> to vector<1024xf32>
    %65 = vector.shape_cast %64 : vector<1024xf32> to vector<1x1024xf32>
    %cst_36 = arith.constant 8.000000e+00 : f32
    %66 = vector.broadcast %cst_36 : f32 to vector<1x1024xf32>
    %67 = arith.divf %65, %66 : vector<1x1024xf32>
    %68 = arith.mulf %62, %62 : vector<1x1024xf32>
    %69 = arith.subf %67, %68 : vector<1x1024xf32>
    %cst_37 = arith.constant 0.000000e+00 : f32
    %70 = vector.broadcast %cst_37 : f32 to vector<1x1024xf32>
    %71 = arith.maximumf %69, %70 : vector<1x1024xf32>
    %cst_38 = arith.constant 9.99999974E-6 : f32
    %72 = vector.broadcast %cst_38 : f32 to vector<1x1024xf32>
    %73 = arith.addf %71, %72 : vector<1x1024xf32>
    %74 = math.rsqrt %73 : vector<1x1024xf32>
    %75 = arith.mulf %57, %74 : vector<1x1024xf32>
    %76 = arith.mulf %62, %75 : vector<1x1024xf32>
    %77 = arith.subf %58, %76 : vector<1x1024xf32>
    %78 = vector.broadcast %75 : vector<1x1024xf32> to vector<8x1024xf32>
    %79 = arith.mulf %56, %78 : vector<8x1024xf32>
    %80 = vector.broadcast %77 : vector<1x1024xf32> to vector<8x1024xf32>
    %81 = arith.addf %79, %80 : vector<8x1024xf32>
    %82 = arith.truncf %81 : vector<8x1024xf32> to vector<8x1024xbf16>
    %c0_39 = arith.constant 0 : index
    %c0_40 = arith.constant 0 : index
    %83 = vector.load %arg11[%c0_39, %c0_40] : memref<1024x512xbf16, #tpu.memory_space<vmem>>, vector<1024x512xbf16>
    %cst_41 = arith.constant dense<0.000000e+00> : vector<8x512xf32>
    %84 = tpu.matmul %82, %83, %cst_41 {dimension_numbers = #tpu.dot_dimension_numbers<[1], [0], [0], [1], [0, 0, 1, 1], [], []>} : vector<8x1024xbf16>, vector<1024x512xbf16>, vector<8x512xf32> -> vector<8x512xf32>
    %c0_42 = arith.constant 0 : index
    %c0_43 = arith.constant 0 : index
    %85 = vector.load %arg12[%c0_42, %c0_43] : memref<1x512xf32, #tpu.memory_space<vmem>>, vector<1x512xf32>
    %86 = vector.broadcast %85 : vector<1x512xf32> to vector<8x512xf32>
    %87 = arith.addf %84, %86 : vector<8x512xf32>
    %cst_44 = arith.constant 0.000000e+00 : f32
    %88 = vector.broadcast %cst_44 : f32 to vector<8x512xf32>
    %89 = arith.cmpf ogt, %87, %88 : vector<8x512xf32>
    %cst_45 = arith.constant 2.000000e-01 : f32
    %90 = vector.broadcast %cst_45 : f32 to vector<8x512xf32>
    %91 = arith.mulf %90, %87 : vector<8x512xf32>
    %92 = arith.select %89, %87, %91 : vector<8x512xi1>, vector<8x512xf32>
    %c0_46 = arith.constant 0 : index
    %c0_47 = arith.constant 0 : index
    %93 = vector.load %arg13[%c0_46, %c0_47] : memref<1x512xf32, #tpu.memory_space<vmem>>, vector<1x512xf32>
    %cst_48 = arith.constant dense<0.000000e+00> : vector<512xf32>
    %94 = vector.multi_reduction <add>, %92, %cst_48 [0] : vector<8x512xf32> to vector<512xf32>
    %95 = vector.shape_cast %94 : vector<512xf32> to vector<1x512xf32>
    %cst_49 = arith.constant 8.000000e+00 : f32
    %96 = vector.broadcast %cst_49 : f32 to vector<1x512xf32>
    %97 = arith.divf %95, %96 : vector<1x512xf32>
    %98 = arith.mulf %92, %92 : vector<8x512xf32>
    %cst_50 = arith.constant dense<0.000000e+00> : vector<512xf32>
    %99 = vector.multi_reduction <add>, %98, %cst_50 [0] : vector<8x512xf32> to vector<512xf32>
    %100 = vector.shape_cast %99 : vector<512xf32> to vector<1x512xf32>
    %cst_51 = arith.constant 8.000000e+00 : f32
    %101 = vector.broadcast %cst_51 : f32 to vector<1x512xf32>
    %102 = arith.divf %100, %101 : vector<1x512xf32>
    %103 = arith.mulf %97, %97 : vector<1x512xf32>
    %104 = arith.subf %102, %103 : vector<1x512xf32>
    %cst_52 = arith.constant 0.000000e+00 : f32
    %105 = vector.broadcast %cst_52 : f32 to vector<1x512xf32>
    %106 = arith.maximumf %104, %105 : vector<1x512xf32>
    %cst_53 = arith.constant 9.99999974E-6 : f32
    %107 = vector.broadcast %cst_53 : f32 to vector<1x512xf32>
    %108 = arith.addf %106, %107 : vector<1x512xf32>
    %109 = math.rsqrt %108 : vector<1x512xf32>
    %110 = arith.mulf %93, %109 : vector<1x512xf32>
    %c0_54 = arith.constant 0 : index
    %c0_55 = arith.constant 0 : index
    %111 = vector.load %arg15[%c0_54, %c0_55] : memref<1x512xf32, #tpu.memory_space<vmem>>, vector<1x512xf32>
    %112 = arith.mulf %110, %111 : vector<1x512xf32>
    %c0_56 = arith.constant 0 : index
    %c0_57 = arith.constant 0 : index
    %113 = vector.load %arg14[%c0_56, %c0_57] : memref<1x512xf32, #tpu.memory_space<vmem>>, vector<1x512xf32>
    %114 = arith.mulf %97, %110 : vector<1x512xf32>
    %115 = arith.subf %113, %114 : vector<1x512xf32>
    %116 = arith.mulf %115, %111 : vector<1x512xf32>
    %117 = vector.shape_cast %116 : vector<1x512xf32> to vector<1x1x512xf32>
    %cst_58 = arith.constant dense<0.000000e+00> : vector<1xf32>
    %118 = vector.multi_reduction <add>, %117, %cst_58 [1, 2] : vector<1x1x512xf32> to vector<1xf32>
    %119 = vector.shape_cast %118 : vector<1xf32> to vector<1x1x1xf32>
    %120 = vector.extract %119[0, 0, 0] : f32 from vector<1x1x1xf32>
    %c0_59 = arith.constant 0 : index
    %c0_60 = arith.constant 0 : index
    %121 = memref.load %arg16[%c0_59, %c0_60] : memref<1x1xf32, #tpu.memory_space<smem>>
    %122 = arith.addf %120, %121 : f32
    %123 = vector.broadcast %112 : vector<1x512xf32> to vector<8x512xf32>
    %124 = arith.mulf %92, %123 : vector<8x512xf32>
    %cst_61 = arith.constant dense<0.000000e+00> : vector<8xf32>
    %125 = vector.multi_reduction <add>, %124, %cst_61 [1] : vector<8x512xf32> to vector<8xf32>
    %126 = vector.shape_cast %125 : vector<8xf32> to vector<8x1xf32>
    %127 = vector.broadcast %122 : f32 to vector<8x1xf32>
    %128 = arith.addf %126, %127 : vector<8x1xf32>
    %129 = arith.negf %128 : vector<8x1xf32>
    %130 = math.exp %129 : vector<8x1xf32>
    %cst_62 = arith.constant 1.000000e+00 : f32
    %131 = vector.broadcast %cst_62 : f32 to vector<8x1xf32>
    %132 = arith.addf %131, %130 : vector<8x1xf32>
    %133 = arith.divf %131, %132 : vector<8x1xf32>
    %c0_63 = arith.constant 0 : index
    %c0_64 = arith.constant 0 : index
    %134 = vector.load %arg17[%c0_63, %c0_64] : memref<8x1xf32, #tpu.memory_space<vmem>>, vector<8x1xf32>
    tpu.vector_store %arg17[%c0_63, %c0_64], %133 {strides = array<i32>} : memref<8x1xf32, #tpu.memory_space<vmem>>, vector<8x1xf32>,
    return
  }
}

</mosaic_0001>

<llo_original>
// kernel: dis_forward.1
$region0: #{dis_forward.1}
  #allocation0 [shape = 'u32[]', space=smem, size = 0x4, offset = 0x4, fixed_abs, tag = 'smem constant byte address 0x4 - core index']
  #allocation1 [shape = 'u32[144,128]{1,0:T(1,128)}', space=vmem, size = 0x12000, scoped, tag = 'internal scratch']
  #allocation2 [shape = 'f32[1,1]{1,0:T(1,128)S(6)}', space=smem, size = 0x200, scoped, tag = 'scoped memory for dis_forward.1']
  %s0 = inlined_call_operand.vmem [shape: s32[8,1], index: 0, kind: input, shape index: {}]
  %s1 = inlined_call_operand.hbm [shape: f32[8,32], index: 1, kind: input, shape index: {}]
  %s2 = inlined_call_operand.hbm [shape: f32[4,1024], index: 2, kind: input, shape index: {}]
  %s3 = inlined_call_operand.hbm [shape: bf16[32,1024], index: 3, kind: input, shape index: {}]
  %s4 = inlined_call_operand.hbm [shape: f32[1,1024], index: 4, kind: input, shape index: {}]
  %s5 = inlined_call_operand.hbm [shape: f32[1,1024], index: 5, kind: input, shape index: {}]
  %s6 = inlined_call_operand.hbm [shape: f32[1,1024], index: 6, kind: input, shape index: {}]
  %s7 = inlined_call_operand.hbm [shape: bf16[1024,1024], index: 7, kind: input, shape index: {}]
  %s8 = inlined_call_operand.hbm [shape: f32[1,1024], index: 8, kind: input, shape index: {}]
  %s9 = inlined_call_operand.hbm [shape: f32[1,1024], index: 9, kind: input, shape index: {}]
  %s10 = inlined_call_operand.hbm [shape: f32[1,1024], index: 10, kind: input, shape index: {}]
  %s11 = inlined_call_operand.hbm [shape: bf16[1024,512], index: 11, kind: input, shape index: {}]
  %s12 = inlined_call_operand.hbm [shape: f32[1,512], index: 12, kind: input, shape index: {}]
  %s13 = inlined_call_operand.hbm [shape: f32[1,512], index: 13, kind: input, shape index: {}]
  %s14 = inlined_call_operand.hbm [shape: f32[1,512], index: 14, kind: input, shape index: {}]
  %s15 = inlined_call_operand.hbm [shape: f32[1,512], index: 15, kind: input, shape index: {}]
  %s16 = inlined_call_operand.<no memory space> [shape: f32[1,1], index: 16, kind: input, shape index: {}]
  %s17 = inlined_call_operand.vmem [shape: f32[8,1], index: 17, kind: output, shape index: {}]
  %s18 = sld [smem:[#allocation0]]
  $region138: #{dis_forward.1} parent=0
    _
  %s20 = ssub.s32 1, %s18
  %s21 = scalar_select 0, %s20, %s18
  %22 = sst [smem:[#allocation2]] %s16
  $region1: #{dis_forward.1} parent=0
    #allocation3 [shape = 'u8[4096]{0}', space=vmem, size = 0x1000, scoped, tag = 'input window, operand 1, single buffered']
    #allocation4 [shape = 's32[1]{0}', space=sflag, size = 0x4, scoped, tag = 'scoped memory for dis_forward.1']
    #allocation5 [shape = 'u8[16384]{0}', space=vmem, size = 0x4000, scoped, tag = 'input window, operand 2, single buffered']
    #allocation6 [shape = 's32[1]{0}', space=sflag, size = 0x4, scoped, tag = 'scoped memory for dis_forward.1']
    #allocation7 [shape = 'u8[65536]{0}', space=vmem, size = 0x10000, scoped, tag = 'input window, operand 3, single buffered']
    #allocation8 [shape = 'u8[4096]{0}', space=vmem, size = 0x1000, scoped, tag = 'input window, operand 4, single buffered']
    #allocation9 [shape = 's32[1]{0}', space=sflag, size = 0x4, scoped, tag = 'scoped memory for dis_forward.1']
    #allocation10 [shape = 'u8[4096]{0}', space=vmem, size = 0x1000, scoped, tag = 'input window, operand 5, single buffered']
    #allocation11 [shape = 'u8[4096]{0}', space=vmem, size = 0x1000, scoped, tag = 'input window, operand 6, single buffered']
    #allocation12 [shape = 's32[1]{0}', space=sflag, size = 0x4, scoped, tag = 'scoped memory for dis_forward.1']
    #allocation13 [shape = 'u8[2097152]{0}', space=vmem, size = 0x200000, scoped, tag = 'input window, operand 7, single buffered']
    #allocation14 [shape = 'u8[4096]{0}', space=vmem, size = 0x1000, scoped, tag = 'input window, operand 8, single buffered']
    #allocation15 [shape = 's32[1]{0}', space=sflag, size = 0x4, scoped, tag = 'scoped memory for dis_forward.1']
    #allocation16 [shape = 'u8[4096]{0}', space=vmem, size = 0x1000, scoped, tag = 'input window, operand 9, single buffered']
    #allocation17 [shape = 'u8[4096]{0}', space=vmem, size = 0x1000, scoped, tag = 'input window, operand 10, single buffered']
    #allocation18 [shape = 's32[1]{0}', space=sflag, size = 0x4, scoped, tag = 'scoped memory for dis_forward.1']
    #allocation19 [shape = 'u8[1048576]{0}', space=vmem, size = 0x100000, scoped, tag = 'input window, operand 11, single buffered']
    #allocation20 [shape = 'u8[2048]{0}', space=vmem, size = 0x800, scoped, tag = 'input window, operand 12, single buffered']
    #allocation21 [shape = 's32[1]{0}', space=sflag, size = 0x4, scoped, tag = 'scoped memory for dis_forward.1']
    #allocation22 [shape = 'u8[2048]{0}', space=vmem, size = 0x800, scoped, tag = 'input window, operand 13, single buffered']
    #allocation23 [shape = 'u8[2048]{0}', space=vmem, size = 0x800, scoped, tag = 'input window, operand 14, single buffered']
    #allocation24 [shape = 's32[1]{0}', space=sflag, size = 0x4, scoped, tag = 'scoped memory for dis_forward.1']
    #allocation25 [shape = 'u8[2048]{0}', space=vmem, size = 0x800, scoped, tag = 'input window, operand 15, single buffered']
    %23 = vsyncpa [#allocation4], 0
    %24 = vsyncpa [#allocation6], 0
    %25 = vsyncpa [#allocation9], 0
    %26 = vsyncpa [#allocation12], 0
    %27 = vsyncpa [#allocation15], 0
    %28 = vsyncpa [#allocation18], 0
    %29 = vsyncpa [#allocation21], 0
    %30 = vsyncpa [#allocation24], 0
    // Predicated region
    $region2: #{dis_forward.1} parent=1 // pred_check
      _
    $region3: #{dis_forward.1} parent=1 // pred_check_branch
      %32 = sbr.rel (0) target = $region5
    $region4: #{dis_forward.1} parent=1 // pred_region
      _
    $region5: #{dis_forward.1} parent=1 // pred_fallthru
      _
    // Predicated region
    $region6: #{dis_forward.1} parent=1 // pred_check
      _
    $region7: #{dis_forward.1} parent=1 // pred_check_branch
      %34 = sbr.rel (0) target = $region9
    $region8: #{dis_forward.1} parent=1 // pred_region
      %s36 = ssub.s32 128, 128
      %37 = vsyncadd [#allocation4], %s36
      %s39 = sshll.u32 [#allocation3], 4
      %s40 = int_to_ptr.vmem [resolvable:$true] %s39
      %42 = dma.hbm_to_vmem [thread:$0]  %s1, 128, %s40, [#allocation4]
    $region9: #{dis_forward.1} parent=1 // pred_fallthru
      _
    // Predicated region
    $region10: #{dis_forward.1} parent=1 // pred_check
      _
    $region11: #{dis_forward.1} parent=1 // pred_check_branch
      %44 = sbr.rel (0) target = $region13
    $region12: #{dis_forward.1} parent=1 // pred_region
      %s46 = ssub.s32 512, 512
      %47 = vsyncadd [#allocation6], %s46
      %s49 = sshll.u32 [#allocation5], 4
      %s50 = int_to_ptr.vmem [resolvable:$true] %s49
      %52 = dma.hbm_to_vmem [thread:$0]  %s2, 512, %s50, [#allocation6]
    $region13: #{dis_forward.1} parent=1 // pred_fallthru
      _
    // Predicated region
    $region14: #{dis_forward.1} parent=1 // pred_check
      _
    $region15: #{dis_forward.1} parent=1 // pred_check_branch
      %54 = sbr.rel (0) target = $region17
    $region16: #{dis_forward.1} parent=1 // pred_region
      %s56 = ssub.s32 2048, 2048
      %57 = vsyncadd [#allocation6], %s56
      %s58 = sshll.u32 [#allocation7], 4
      %s59 = int_to_ptr.vmem [resolvable:$true] %s58
      %64 = dma.hbm_to_vmem [thread:$0]  %s3, 2048, %s59, [#allocation6], 512, 512, 32
    $region17: #{dis_forward.1} parent=1 // pred_fallthru
      _
    // Predicated region
    $region18: #{dis_forward.1} parent=1 // pred_check
      _
    $region19: #{dis_forward.1} parent=1 // pred_check_branch
      %66 = sbr.rel (0) target = $region21
    $region20: #{dis_forward.1} parent=1 // pred_region
      %s68 = ssub.s32 128, 128
      %69 = vsyncadd [#allocation9], %s68
      %s71 = sshll.u32 [#allocation8], 4
      %s72 = int_to_ptr.vmem [resolvable:$true] %s71
      %74 = dma.hbm_to_vmem [thread:$0]  %s4, 128, %s72, [#allocation9]
    $region21: #{dis_forward.1} parent=1 // pred_fallthru
      _
    // Predicated region
    $region22: #{dis_forward.1} parent=1 // pred_check
      _
    $region23: #{dis_forward.1} parent=1 // pred_check_branch
      %76 = sbr.rel (0) target = $region25
    $region24: #{dis_forward.1} parent=1 // pred_region
      %s78 = ssub.s32 128, 128
      %79 = vsyncadd [#allocation9], %s78
      %s81 = sshll.u32 [#allocation10], 4
      %s82 = int_to_ptr.vmem [resolvable:$true] %s81
      %84 = dma.hbm_to_vmem [thread:$0]  %s5, 128, %s82, [#allocation9]
    $region25: #{dis_forward.1} parent=1 // pred_fallthru
      _
    // Predicated region
    $region26: #{dis_forward.1} parent=1 // pred_check
      _
    $region27: #{dis_forward.1} parent=1 // pred_check_branch
      %86 = sbr.rel (0) target = $region29
    $region28: #{dis_forward.1} parent=1 // pred_region
      %s88 = ssub.s32 128, 128
      %89 = vsyncadd [#allocation12], %s88
      %s91 = sshll.u32 [#allocation11], 4
      %s92 = int_to_ptr.vmem [resolvable:$true] %s91
      %94 = dma.hbm_to_vmem [thread:$0]  %s6, 128, %s92, [#allocation12]
    $region29: #{dis_forward.1} parent=1 // pred_fallthru
      _
    // Predicated region
    $region30: #{dis_forward.1} parent=1 // pred_check
      _
    $region31: #{dis_forward.1} parent=1 // pred_check_branch
      %96 = sbr.rel (0) target = $region33
    $region32: #{dis_forward.1} parent=1 // pred_region
      %s98 = ssub.s32 65536, 65536
      %99 = vsyncadd [#allocation12], %s98
      %s100 = sshll.u32 [#allocation13], 4
      %s101 = int_to_ptr.vmem [resolvable:$true] %s100
      %106 = dma.hbm_to_vmem [thread:$0]  %s7, 65536, %s101, [#allocation12], 512, 512, 32
    $region33: #{dis_forward.1} parent=1 // pred_fallthru
      _
    // Predicated region
    $region34: #{dis_forward.1} parent=1 // pred_check
      _
    $region35: #{dis_forward.1} parent=1 // pred_check_branch
      %108 = sbr.rel (0) target = $region37
    $region36: #{dis_forward.1} parent=1 // pred_region
      %s110 = ssub.s32 128, 128
      %111 = vsyncadd [#allocation15], %s110
      %s113 = sshll.u32 [#allocation14], 4
      %s114 = int_to_ptr.vmem [resolvable:$true] %s113
      %116 = dma.hbm_to_vmem [thread:$0]  %s8, 128, %s114, [#allocation15]
    $region37: #{dis_forward.1} parent=1 // pred_fallthru
      _
    // Predicated region
    $region38: #{dis_forward.1} parent=1 // pred_check
      _
    $region39: #{dis_forward.1} parent=1 // pred_check_branch
      %118 = sbr.rel (0) target = $region41
    $region40: #{dis_forward.1} parent=1 // pred_region
      %s120 = ssub.s32 128, 128
      %121 = vsyncadd [#allocation15], %s120
      %s123 = sshll.u32 [#allocation16], 4
      %s124 = int_to_ptr.vmem [resolvable:$true] %s123
      %126 = dma.hbm_to_vmem [thread:$0]  %s9, 128, %s124, [#allocation15]
    $region41: #{dis_forward.1} parent=1 // pred_fallthru
      _
    // Predicated region
    $region42: #{dis_forward.1} parent=1 // pred_check
      _
    $region43: #{dis_forward.1} parent=1 // pred_check_branch
      %128 = sbr.rel (0) target = $region45
    $region44: #{dis_forward.1} parent=1 // pred_region
      %s130 = ssub.s32 128, 128
      %131 = vsyncadd [#allocation18], %s130
      %s133 = sshll.u32 [#allocation17], 4
      %s134 = int_to_ptr.vmem [resolvable:$true] %s133
      %136 = dma.hbm_to_vmem [thread:$0]  %s10, 128, %s134, [#allocation18]
    $region45: #{dis_forward.1} parent=1 // pred_fallthru
      _
    // Predicated region
    $region46: #{dis_forward.1} parent=1 // pred_check
      _
    $region47: #{dis_forward.1} parent=1 // pred_check_branch
      %138 = sbr.rel (0) target = $region49
    $region48: #{dis_forward.1} parent=1 // pred_region
      %s140 = ssub.s32 32768, 32768
      %141 = vsyncadd [#allocation18], %s140
      %s142 = sshll.u32 [#allocation19], 4
      %s143 = int_to_ptr.vmem [resolvable:$true] %s142
      %148 = dma.hbm_to_vmem [thread:$0]  %s11, 32768, %s143, [#allocation18], 256, 256, 16
    $region49: #{dis_forward.1} parent=1 // pred_fallthru
      _
    // Predicated region
    $region50: #{dis_forward.1} parent=1 // pred_check
      _
    $region51: #{dis_forward.1} parent=1 // pred_check_branch
      %150 = sbr.rel (0) target = $region53
    $region52: #{dis_forward.1} parent=1 // pred_region
      %s152 = ssub.s32 64, 64
      %153 = vsyncadd [#allocation21], %s152
      %s155 = sshll.u32 [#allocation20], 4
      %s156 = int_to_ptr.vmem [resolvable:$true] %s155
      %158 = dma.hbm_to_vmem [thread:$0]  %s12, 64, %s156, [#allocation21]
    $region53: #{dis_forward.1} parent=1 // pred_fallthru
      _
    // Predicated region
    $region54: #{dis_forward.1} parent=1 // pred_check
      _
    $region55: #{dis_forward.1} parent=1 // pred_check_branch
      %160 = sbr.rel (0) target = $region57
    $region56: #{dis_forward.1} parent=1 // pred_region
      %s162 = ssub.s32 64, 64
      %163 = vsyncadd [#allocation21], %s162
      %s165 = sshll.u32 [#allocation22], 4
      %s166 = int_to_ptr.vmem [resolvable:$true] %s165
      %168 = dma.hbm_to_vmem [thread:$0]  %s13, 64, %s166, [#allocation21]
    $region57: #{dis_forward.1} parent=1 // pred_fallthru
      _
    // Predicated region
    $region58: #{dis_forward.1} parent=1 // pred_check
      _
    $region59: #{dis_forward.1} parent=1 // pred_check_branch
      %170 = sbr.rel (0) target = $region61
    $region60: #{dis_forward.1} parent=1 // pred_region
      %s172 = ssub.s32 64, 64
      %173 = vsyncadd [#allocation24], %s172
      %s175 = sshll.u32 [#allocation23], 4
      %s176 = int_to_ptr.vmem [resolvable:$true] %s175
      %178 = dma.hbm_to_vmem [thread:$0]  %s14, 64, %s176, [#allocation24]
    $region61: #{dis_forward.1} parent=1 // pred_fallthru
      _
    // Predicated region
    $region62: #{dis_forward.1} parent=1 // pred_check
      _
    $region63: #{dis_forward.1} parent=1 // pred_check_branch
      %180 = sbr.rel (0) target = $region65
    $region64: #{dis_forward.1} parent=1 // pred_region
      %s182 = ssub.s32 64, 64
      %183 = vsyncadd [#allocation24], %s182
      %s185 = sshll.u32 [#allocation25], 4
      %s186 = int_to_ptr.vmem [resolvable:$true] %s185
      %188 = dma.hbm_to_vmem [thread:$0]  %s15, 64, %s186, [#allocation24]
    $region65: #{dis_forward.1} parent=1 // pred_fallthru
      _
    // Predicated region
    $region66: #{dis_forward.1} parent=1 // pred_check
      _
    $region67: #{dis_forward.1} parent=1 // pred_check_branch
      %190 = sbr.rel (0) target = $region69
    $region68: #{dis_forward.1} parent=1 // pred_region
      _
    $region69: #{dis_forward.1} parent=1 // pred_fallthru
      _
    // Predicated region
    $region70: #{dis_forward.1} parent=1 // pred_check
      _
    $region71: #{dis_forward.1} parent=1 // pred_check_branch
      %192 = sbr.rel (0) target = $region73
    $region72: #{dis_forward.1} parent=1 // pred_region
      %193 = dma.done [#allocation4], 128
    $region73: #{dis_forward.1} parent=1 // pred_fallthru
      _
    // Predicated region
    $region74: #{dis_forward.1} parent=1 // pred_check
      _
    $region75: #{dis_forward.1} parent=1 // pred_check_branch
      %195 = sbr.rel (0) target = $region77
    $region76: #{dis_forward.1} parent=1 // pred_region
      %196 = dma.done [#allocation6], 512
    $region77: #{dis_forward.1} parent=1 // pred_fallthru
      _
    // Predicated region
    $region78: #{dis_forward.1} parent=1 // pred_check
      _
    $region79: #{dis_forward.1} parent=1 // pred_check_branch
      %198 = sbr.rel (0) target = $region81
    $region80: #{dis_forward.1} parent=1 // pred_region
      %199 = dma.done [#allocation6], 2048
    $region81: #{dis_forward.1} parent=1 // pred_fallthru
      _
    // Predicated region
    $region82: #{dis_forward.1} parent=1 // pred_check
      _
    $region83: #{dis_forward.1} parent=1 // pred_check_branch
      %201 = sbr.rel (0) target = $region85
    $region84: #{dis_forward.1} parent=1 // pred_region
      %202 = dma.done [#allocation9], 128
    $region85: #{dis_forward.1} parent=1 // pred_fallthru
      _
    // Predicated region
    $region86: #{dis_forward.1} parent=1 // pred_check
      _
    $region87: #{dis_forward.1} parent=1 // pred_check_branch
      %204 = sbr.rel (0) target = $region89
    $region88: #{dis_forward.1} parent=1 // pred_region
      %205 = dma.done [#allocation9], 128
    $region89: #{dis_forward.1} parent=1 // pred_fallthru
      _
    // Predicated region
    $region90: #{dis_forward.1} parent=1 // pred_check
      _
    $region91: #{dis_forward.1} parent=1 // pred_check_branch
      %207 = sbr.rel (0) target = $region93
    $region92: #{dis_forward.1} parent=1 // pred_region
      %208 = dma.done [#allocation12], 128
    $region93: #{dis_forward.1} parent=1 // pred_fallthru
      _
    // Predicated region
    $region94: #{dis_forward.1} parent=1 // pred_check
      _
    $region95: #{dis_forward.1} parent=1 // pred_check_branch
      %210 = sbr.rel (0) target = $region97
    $region96: #{dis_forward.1} parent=1 // pred_region
      %211 = dma.done [#allocation12], 65536
    $region97: #{dis_forward.1} parent=1 // pred_fallthru
      _
    // Predicated region
    $region98: #{dis_forward.1} parent=1 // pred_check
      _
    $region99: #{dis_forward.1} parent=1 // pred_check_branch
      %213 = sbr.rel (0) target = $region101
    $region100: #{dis_forward.1} parent=1 // pred_region
      %214 = dma.done [#allocation15], 128
    $region101: #{dis_forward.1} parent=1 // pred_fallthru
      _
    // Predicated region
    $region102: #{dis_forward.1} parent=1 // pred_check
      _
    $region103: #{dis_forward.1} parent=1 // pred_check_branch
      %216 = sbr.rel (0) target = $region105
    $region104: #{dis_forward.1} parent=1 // pred_region
      %217 = dma.done [#allocation15], 128
    $region105: #{dis_forward.1} parent=1 // pred_fallthru
      _
    // Predicated region
    $region106: #{dis_forward.1} parent=1 // pred_check
      _
    $region107: #{dis_forward.1} parent=1 // pred_check_branch
      %219 = sbr.rel (0) target = $region109
    $region108: #{dis_forward.1} parent=1 // pred_region
      %220 = dma.done [#allocation18], 128
    $region109: #{dis_forward.1} parent=1 // pred_fallthru
      _
    // Predicated region
    $region110: #{dis_forward.1} parent=1 // pred_check
      _
    $region111: #{dis_forward.1} parent=1 // pred_check_branch
      %222 = sbr.rel (0) target = $region113
    $region112: #{dis_forward.1} parent=1 // pred_region
      %223 = dma.done [#allocation18], 32768
    $region113: #{dis_forward.1} parent=1 // pred_fallthru
      _
    // Predicated region
    $region114: #{dis_forward.1} parent=1 // pred_check
      _
    $region115: #{dis_forward.1} parent=1 // pred_check_branch
      %225 = sbr.rel (0) target = $region117
    $region116: #{dis_forward.1} parent=1 // pred_region
      %226 = dma.done [#allocation21], 64
    $region117: #{dis_forward.1} parent=1 // pred_fallthru
      _
    // Predicated region
    $region118: #{dis_forward.1} parent=1 // pred_check
      _
    $region119: #{dis_forward.1} parent=1 // pred_check_branch
      %228 = sbr.rel (0) target = $region121
    $region120: #{dis_forward.1} parent=1 // pred_region
      %229 = dma.done [#allocation21], 64
    $region121: #{dis_forward.1} parent=1 // pred_fallthru
      _
    // Predicated region
    $region122: #{dis_forward.1} parent=1 // pred_check
      _
    $region123: #{dis_forward.1} parent=1 // pred_check_branch
      %231 = sbr.rel (0) target = $region125
    $region124: #{dis_forward.1} parent=1 // pred_region
      %232 = dma.done [#allocation24], 64
    $region125: #{dis_forward.1} parent=1 // pred_fallthru
      _
    // Predicated region
    $region126: #{dis_forward.1} parent=1 // pred_check
      _
    $region127: #{dis_forward.1} parent=1 // pred_check_branch
      %234 = sbr.rel (0) target = $region129
    $region128: #{dis_forward.1} parent=1 // pred_region
      %235 = dma.done [#allocation24], 64
    $region129: #{dis_forward.1} parent=1 // pred_fallthru
      _
    %v237 = vld [vmem:[%s0] sm:$0xff]
    %v238 = vlaneseq
    %v239 = vand.u32 %v238, 127
    %240 = vset.pattern.permute.xlu0 0
    %241 = vperm.xlu0 %240, %v237
    %v242 = vpop.permute.xlu0 %241
    %vm243 = vcmp.eq.s32.totalorder %v239, %v242
    %v244 = vsel %vm243, 1, 0
    %v245 = vcvt.s32.f32 %v244
    %v246 = vld [vmem:[#allocation5] sm:$0xff]
    %v247 = vld [vmem:[#allocation5 + $0x8] sm:$0xff]
    %v248 = vld [vmem:[#allocation5 + $0x10] sm:$0xff]
    %v249 = vld [vmem:[#allocation5 + $0x18] sm:$0xff]
    %v250 = vld [vmem:[#allocation3] sm:$0xff]
    %v251 = vpack.c.bf16 %v250, %v250
    %v252 = vld [vmem:[#allocation7] sm:$0xff]
    %v253 = vld [vmem:[#allocation7 + $0x8] sm:$0xff]
    %v254 = vld [vmem:[#allocation7 + $0x10] sm:$0xff]
    %v255 = vld [vmem:[#allocation7 + $0x18] sm:$0xff]
    %v256 = vld [vmem:[#allocation7 + $0x20] sm:$0xff]
    %v257 = vld [vmem:[#allocation7 + $0x28] sm:$0xff]
    %v258 = vld [vmem:[#allocation7 + $0x30] sm:$0xff]
    %v259 = vld [vmem:[#allocation7 + $0x38] sm:$0xff]
    %v260 = vld [vmem:[#allocation7 + $0x40] sm:$0xff]
    %v261 = vld [vmem:[#allocation7 + $0x48] sm:$0xff]
    %v262 = vld [vmem:[#allocation7 + $0x50] sm:$0xff]
    %v263 = vld [vmem:[#allocation7 + $0x58] sm:$0xff]
    %v264 = vld [vmem:[#allocation7 + $0x60] sm:$0xff]
    %v265 = vld [vmem:[#allocation7 + $0x68] sm:$0xff]
    %v266 = vld [vmem:[#allocation7 + $0x70] sm:$0xff]
    %v267 = vld [vmem:[#allocation7 + $0x78] sm:$0xff]
    %v284 = vunpack.c.l.b16 %v252
    %v285 = vunpack.c.h.b16 %v252
    %v286 = vunpack.c.l.b16 %v253
    %v287 = vunpack.c.h.b16 %v253
    %v288 = vunpack.c.l.b16 %v254
    %v289 = vunpack.c.h.b16 %v254
    %v290 = vunpack.c.l.b16 %v255
    %v291 = vunpack.c.h.b16 %v255
    %v292 = vunpack.c.l.b16 %v256
    %v293 = vunpack.c.h.b16 %v256
    %v294 = vunpack.c.l.b16 %v257
    %v295 = vunpack.c.h.b16 %v257
    %v296 = vunpack.c.l.b16 %v258
    %v297 = vunpack.c.h.b16 %v258
    %v298 = vunpack.c.l.b16 %v259
    %v299 = vunpack.c.h.b16 %v259
    %v300 = vunpack.c.l.b16 %v260
    %v301 = vunpack.c.h.b16 %v260
    %v302 = vunpack.c.l.b16 %v261
    %v303 = vunpack.c.h.b16 %v261
    %v304 = vunpack.c.l.b16 %v262
    %v305 = vunpack.c.h.b16 %v262
    %v306 = vunpack.c.l.b16 %v263
    %v307 = vunpack.c.h.b16 %v263
    %v308 = vunpack.c.l.b16 %v264
    %v309 = vunpack.c.h.b16 %v264
    %v310 = vunpack.c.l.b16 %v265
    %v311 = vunpack.c.h.b16 %v265
    %v312 = vunpack.c.l.b16 %v266
    %v313 = vunpack.c.h.b16 %v266
    %v314 = vunpack.c.l.b16 %v267
    %v315 = vunpack.c.h.b16 %v267
    %v316 = vpack.c.b16 %v292, %v284
    %v317 = vpack.c.b16 %v293, %v285
    %v318 = vpack.c.b16 %v294, %v286
    %v319 = vpack.c.b16 %v295, %v287
    %v320 = vpack.c.b16 %v296, %v288
    %v321 = vpack.c.b16 %v297, %v289
    %v322 = vpack.c.b16 %v298, %v290
    %v323 = vpack.c.b16 %v299, %v291
    %v324 = vpack.c.b16 %v308, %v300
    %v325 = vpack.c.b16 %v309, %v301
    %v326 = vpack.c.b16 %v310, %v302
    %v327 = vpack.c.b16 %v311, %v303
    %v328 = vpack.c.b16 %v312, %v304
    %v329 = vpack.c.b16 %v313, %v305
    %v330 = vpack.c.b16 %v314, %v306
    %v331 = vpack.c.b16 %v315, %v307
    %vm348 = vcmask 261120
    %v350 = vsel %vm348, %v251, 0
    %352 = vmatprep.subr.bf16.mxu0 %v317
    %353 = vmatpush1.bf16.msra.mxu0 %v316
    %354 = vmatprep.subr.bf16.mxu0 %v325
    %355 = vmatpush1.bf16.msra.mxu0 %v324
    %356 = vmatprep.subr.bf16.mxu0 0
    %357 = vmatpush1.bf16.msra.mxu0 0
    %358 = vmatprep.subr.bf16.mxu0 0
    %359 = vmatpush1.bf16.msra.mxu0 0
    %360 = vmatprep.subr.bf16.mxu0 0
    %361 = vmatpush1.bf16.msra.mxu0 0
    %362 = vmatprep.subr.bf16.mxu0 0
    %363 = vmatpush1.bf16.msra.mxu0 0
    %364 = vmatprep.subr.bf16.mxu0 0
    %365 = vmatpush1.bf16.msra.mxu0 0
    %366 = vmatprep.subr.bf16.mxu0 0
    %367 = vmatpush1.bf16.msra.mxu0 0
    %368 = vmatprep.subr.bf16.mxu0 0
    %369 = vmatpush1.bf16.msra.mxu0 0
    %370 = vmatprep.subr.bf16.mxu0 0
    %371 = vmatpush1.bf16.msra.mxu0 0
    %372 = vmatprep.subr.bf16.mxu0 0
    %373 = vmatpush1.bf16.msra.mxu0 0
    %374 = vmatprep.subr.bf16.mxu0 0
    %375 = vmatpush1.bf16.msra.mxu0 0
    %376 = vmatprep.subr.bf16.mxu0 0
    %377 = vmatpush1.bf16.msra.mxu0 0
    %378 = vmatprep.subr.bf16.mxu0 0
    %379 = vmatpush1.bf16.msra.mxu0 0
    %380 = vmatprep.subr.bf16.mxu0 0
    %381 = vmatpush1.bf16.msra.mxu0 0
    %382 = vmatprep.subr.bf16.mxu0 0
    %383 = vmatpush1.bf16.msra.mxu0 0
    %384 = vmatprep.mubr.bf16.mxu0 0
    %385 = vmatmul.mubr.bf16.gmra.mrb[0].mxu0 %v350
    %v386 = vpop.f32.mrb[0].mxu0
    %v387 = vadd.f32 0.0, %v386
    %v388 = vpop.f32.mrb[0].mxu0
    %v389 = vadd.f32 0.0, %v388
    %v390 = vpop.f32.mrb[0].mxu0
    %v391 = vpop.f32.mrb[0].mxu0
    %392 = vdwg.mxu0
    %393 = vmatprep.subr.bf16.mxu0 %v319
    %394 = vmatpush1.bf16.msra.mxu0 %v318
    %395 = vmatprep.subr.bf16.mxu0 %v327
    %396 = vmatpush1.bf16.msra.mxu0 %v326
    %397 = vmatprep.subr.bf16.mxu0 0
    %398 = vmatpush1.bf16.msra.mxu0 0
    %399 = vmatprep.subr.bf16.mxu0 0
    %400 = vmatpush1.bf16.msra.mxu0 0
    %401 = vmatprep.subr.bf16.mxu0 0
    %402 = vmatpush1.bf16.msra.mxu0 0
    %403 = vmatprep.subr.bf16.mxu0 0
    %404 = vmatpush1.bf16.msra.mxu0 0
    %405 = vmatprep.subr.bf16.mxu0 0
    %406 = vmatpush1.bf16.msra.mxu0 0
    %407 = vmatprep.subr.bf16.mxu0 0
    %408 = vmatpush1.bf16.msra.mxu0 0
    %409 = vmatprep.subr.bf16.mxu0 0
    %410 = vmatpush1.bf16.msra.mxu0 0
    %411 = vmatprep.subr.bf16.mxu0 0
    %412 = vmatpush1.bf16.msra.mxu0 0
    %413 = vmatprep.subr.bf16.mxu0 0
    %414 = vmatpush1.bf16.msra.mxu0 0
    %415 = vmatprep.subr.bf16.mxu0 0
    %416 = vmatpush1.bf16.msra.mxu0 0
    %417 = vmatprep.subr.bf16.mxu0 0
    %418 = vmatpush1.bf16.msra.mxu0 0
    %419 = vmatprep.subr.bf16.mxu0 0
    %420 = vmatpush1.bf16.msra.mxu0 0
    %421 = vmatprep.subr.bf16.mxu0 0
    %422 = vmatpush1.bf16.msra.mxu0 0
    %423 = vmatprep.subr.bf16.mxu0 0
    %424 = vmatpush1.bf16.msra.mxu0 0
    %425 = vmatprep.mubr.bf16.mxu0 0
    %426 = vmatmul.mubr.bf16.gmra.mrb[0].mxu0 %v350
    %v427 = vpop.f32.mrb[0].mxu0
    %v428 = vadd.f32 0.0, %v427
    %v429 = vpop.f32.mrb[0].mxu0
    %v430 = vadd.f32 0.0, %v429
    %v431 = vpop.f32.mrb[0].mxu0
    %v432 = vpop.f32.mrb[0].mxu0
    %433 = vdwg.mxu0
    %434 = vmatprep.subr.bf16.mxu0 %v321
    %435 = vmatpush1.bf16.msra.mxu0 %v320
    %436 = vmatprep.subr.bf16.mxu0 %v329
    %437 = vmatpush1.bf16.msra.mxu0 %v328
    %438 = vmatprep.subr.bf16.mxu0 0
    %439 = vmatpush1.bf16.msra.mxu0 0
    %440 = vmatprep.subr.bf16.mxu0 0
    %441 = vmatpush1.bf16.msra.mxu0 0
    %442 = vmatprep.subr.bf16.mxu0 0
    %443 = vmatpush1.bf16.msra.mxu0 0
    %444 = vmatprep.subr.bf16.mxu0 0
    %445 = vmatpush1.bf16.msra.mxu0 0
    %446 = vmatprep.subr.bf16.mxu0 0
    %447 = vmatpush1.bf16.msra.mxu0 0
    %448 = vmatprep.subr.bf16.mxu0 0
    %449 = vmatpush1.bf16.msra.mxu0 0
    %450 = vmatprep.subr.bf16.mxu0 0
    %451 = vmatpush1.bf16.msra.mxu0 0
    %452 = vmatprep.subr.bf16.mxu0 0
    %453 = vmatpush1.bf16.msra.mxu0 0
    %454 = vmatprep.subr.bf16.mxu0 0
    %455 = vmatpush1.bf16.msra.mxu0 0
    %456 = vmatprep.subr.bf16.mxu0 0
    %457 = vmatpush1.bf16.msra.mxu0 0
    %458 = vmatprep.subr.bf16.mxu0 0
    %459 = vmatpush1.bf16.msra.mxu0 0
    %460 = vmatprep.subr.bf16.mxu0 0
    %461 = vmatpush1.bf16.msra.mxu0 0
    %462 = vmatprep.subr.bf16.mxu0 0
    %463 = vmatpush1.bf16.msra.mxu0 0
    %464 = vmatprep.subr.bf16.mxu0 0
    %465 = vmatpush1.bf16.msra.mxu0 0
    %466 = vmatprep.mubr.bf16.mxu0 0
    %467 = vmatmul.mubr.bf16.gmra.mrb[0].mxu0 %v350
    %v468 = vpop.f32.mrb[0].mxu0
    %v469 = vadd.f32 0.0, %v468
    %v470 = vpop.f32.mrb[0].mxu0
    %v471 = vadd.f32 0.0, %v470
    %v472 = vpop.f32.mrb[0].mxu0
    %v473 = vpop.f32.mrb[0].mxu0
    %474 = vdwg.mxu0
    %475 = vmatprep.subr.bf16.mxu0 %v323
    %476 = vmatpush1.bf16.msra.mxu0 %v322
    %477 = vmatprep.subr.bf16.mxu0 %v331
    %478 = vmatpush1.bf16.msra.mxu0 %v330
    %479 = vmatprep.subr.bf16.mxu0 0
    %480 = vmatpush1.bf16.msra.mxu0 0
    %481 = vmatprep.subr.bf16.mxu0 0
    %482 = vmatpush1.bf16.msra.mxu0 0
    %483 = vmatprep.subr.bf16.mxu0 0
    %484 = vmatpush1.bf16.msra.mxu0 0
    %485 = vmatprep.subr.bf16.mxu0 0
    %486 = vmatpush1.bf16.msra.mxu0 0
    %487 = vmatprep.subr.bf16.mxu0 0
    %488 = vmatpush1.bf16.msra.mxu0 0
    %489 = vmatprep.subr.bf16.mxu0 0
    %490 = vmatpush1.bf16.msra.mxu0 0
    %491 = vmatprep.subr.bf16.mxu0 0
    %492 = vmatpush1.bf16.msra.mxu0 0
    %493 = vmatprep.subr.bf16.mxu0 0
    %494 = vmatpush1.bf16.msra.mxu0 0
    %495 = vmatprep.subr.bf16.mxu0 0
    %496 = vmatpush1.bf16.msra.mxu0 0
    %497 = vmatprep.subr.bf16.mxu0 0
    %498 = vmatpush1.bf16.msra.mxu0 0
    %499 = vmatprep.subr.bf16.mxu0 0
    %500 = vmatpush1.bf16.msra.mxu0 0
    %501 = vmatprep.subr.bf16.mxu0 0
    %502 = vmatpush1.bf16.msra.mxu0 0
    %503 = vmatprep.subr.bf16.mxu0 0
    %504 = vmatpush1.bf16.msra.mxu0 0
    %505 = vmatprep.subr.bf16.mxu0 0
    %506 = vmatpush1.bf16.msra.mxu0 0
    %507 = vmatprep.mubr.bf16.mxu0 0
    %508 = vmatmul.mubr.bf16.gmra.mrb[0].mxu0 %v350
    %v509 = vpop.f32.mrb[0].mxu0
    %v510 = vadd.f32 0.0, %v509
    %v511 = vpop.f32.mrb[0].mxu0
    %v512 = vadd.f32 0.0, %v511
    %v513 = vpop.f32.mrb[0].mxu0
    %v514 = vpop.f32.mrb[0].mxu0
    %515 = vdwg.mxu0
    %v520 = vcombine.high %v246, %v246
    %v521 = vcombine.high %v247, %v247
    %v522 = vcombine.high %v248, %v248
    %v523 = vcombine.high %v249, %v249
    %vm524 = vcmask 31744
    %v526 = vsel %vm524, %v245, 0
    %vm528 = vcmask 1043456
    %v529 = vsel %vm528, %v246, 0
    %v531 = vsel %vm528, %v520, 0
    %v533 = vsel %vm528, %v247, 0
    %v535 = vsel %vm528, %v521, 0
    %v537 = vsel %vm528, %v248, 0
    %v539 = vsel %vm528, %v522, 0
    %v541 = vsel %vm528, %v249, 0
    %v543 = vsel %vm528, %v523, 0
    %545 = vmatprep.subr.mxu0 %v531
    %546 = vmatpush1.msra.mxu0 %v529
    %547 = vmatprep.subr.mxu0 0.0
    %548 = vmatpush1.msra.mxu0 0.0
    %549 = vmatprep.subr.mxu0 0.0
    %550 = vmatpush1.msra.mxu0 0.0
    %551 = vmatprep.subr.mxu0 0.0
    %552 = vmatpush1.msra.mxu0 0.0
    %553 = vmatprep.subr.mxu0 0.0
    %554 = vmatpush1.msra.mxu0 0.0
    %555 = vmatprep.subr.mxu0 0.0
    %556 = vmatpush1.msra.mxu0 0.0
    %557 = vmatprep.subr.mxu0 0.0
    %558 = vmatpush1.msra.mxu0 0.0
    %559 = vmatprep.subr.mxu0 0.0
    %560 = vmatpush1.msra.mxu0 0.0
    %561 = vmatprep.subr.mxu0 0.0
    %562 = vmatpush1.msra.mxu0 0.0
    %563 = vmatprep.subr.mxu0 0.0
    %564 = vmatpush1.msra.mxu0 0.0
    %565 = vmatprep.subr.mxu0 0.0
    %566 = vmatpush1.msra.mxu0 0.0
    %567 = vmatprep.subr.mxu0 0.0
    %568 = vmatpush1.msra.mxu0 0.0
    %569 = vmatprep.subr.mxu0 0.0
    %570 = vmatpush1.msra.mxu0 0.0
    %571 = vmatprep.subr.mxu0 0.0
    %572 = vmatpush1.msra.mxu0 0.0
    %573 = vmatprep.subr.mxu0 0.0
    %574 = vmatpush1.msra.mxu0 0.0
    %575 = vmatprep.subr.mxu0 0.0
    %576 = vmatpush1.msra.mxu0 0.0
    %577 = vmatprep.subr.mxu0 0.0
    %578 = vmatpush1.msra.mxu0 0.0
    %579 = vmatprep.subr.mxu0 0.0
    %580 = vmatpush1.msra.mxu0 0.0
    %581 = vmatprep.subr.mxu0 0.0
    %582 = vmatpush1.msra.mxu0 0.0
    %583 = vmatprep.subr.mxu0 0.0
    %584 = vmatpush1.msra.mxu0 0.0
    %585 = vmatprep.subr.mxu0 0.0
    %586 = vmatpush1.msra.mxu0 0.0
    %587 = vmatprep.subr.mxu0 0.0
    %588 = vmatpush1.msra.mxu0 0.0
    %589 = vmatprep.subr.mxu0 0.0
    %590 = vmatpush1.msra.mxu0 0.0
    %591 = vmatprep.subr.mxu0 0.0
    %592 = vmatpush1.msra.mxu0 0.0
    %593 = vmatprep.subr.mxu0 0.0
    %594 = vmatpush1.msra.mxu0 0.0
    %595 = vmatprep.subr.mxu0 0.0
    %596 = vmatpush1.msra.mxu0 0.0
    %597 = vmatprep.subr.mxu0 0.0
    %598 = vmatpush1.msra.mxu0 0.0
    %599 = vmatprep.subr.mxu0 0.0
    %600 = vmatpush1.msra.mxu0 0.0
    %601 = vmatprep.subr.mxu0 0.0
    %602 = vmatpush1.msra.mxu0 0.0
    %603 = vmatprep.subr.mxu0 0.0
    %604 = vmatpush1.msra.mxu0 0.0
    %605 = vmatprep.subr.mxu0 0.0
    %606 = vmatpush1.msra.mxu0 0.0
    %607 = vmatprep.subr.mxu0 0.0
    %608 = vmatpush1.msra.mxu0 0.0
    %609 = vmatprep.mubr.f32.mxu0 0.0
    %610 = vmatmul.mubr.f32.gmra.mrb[0].mxu0 %v526
    %v611 = vpop.f32.mrb[0].mxu0
    %v612 = vadd.f32 %v387, %v611
    %v613 = vpop.f32.mrb[0].mxu0
    %v614 = vadd.f32 %v389, %v613
    %615 = vdwg.mxu0
    %616 = vmatprep.subr.mxu0 %v535
    %617 = vmatpush1.msra.mxu0 %v533
    %618 = vmatprep.subr.mxu0 0.0
    %619 = vmatpush1.msra.mxu0 0.0
    %620 = vmatprep.subr.mxu0 0.0
    %621 = vmatpush1.msra.mxu0 0.0
    %622 = vmatprep.subr.mxu0 0.0
    %623 = vmatpush1.msra.mxu0 0.0
    %624 = vmatprep.subr.mxu0 0.0
    %625 = vmatpush1.msra.mxu0 0.0
    %626 = vmatprep.subr.mxu0 0.0
    %627 = vmatpush1.msra.mxu0 0.0
    %628 = vmatprep.subr.mxu0 0.0
    %629 = vmatpush1.msra.mxu0 0.0
    %630 = vmatprep.subr.mxu0 0.0
    %631 = vmatpush1.msra.mxu0 0.0
    %632 = vmatprep.subr.mxu0 0.0
    %633 = vmatpush1.msra.mxu0 0.0
    %634 = vmatprep.subr.mxu0 0.0
    %635 = vmatpush1.msra.mxu0 0.0
    %636 = vmatprep.subr.mxu0 0.0
    %637 = vmatpush1.msra.mxu0 0.0
    %638 = vmatprep.subr.mxu0 0.0
    %639 = vmatpush1.msra.mxu0 0.0
    %640 = vmatprep.subr.mxu0 0.0
    %641 = vmatpush1.msra.mxu0 0.0
    %642 = vmatprep.subr.mxu0 0.0
    %643 = vmatpush1.msra.mxu0 0.0
    %644 = vmatprep.subr.mxu0 0.0
    %645 = vmatpush1.msra.mxu0 0.0
    %646 = vmatprep.subr.mxu0 0.0
    %647 = vmatpush1.msra.mxu0 0.0
    %648 = vmatprep.subr.mxu0 0.0
    %649 = vmatpush1.msra.mxu0 0.0
    %650 = vmatprep.subr.mxu0 0.0
    %651 = vmatpush1.msra.mxu0 0.0
    %652 = vmatprep.subr.mxu0 0.0
    %653 = vmatpush1.msra.mxu0 0.0
    %654 = vmatprep.subr.mxu0 0.0
    %655 = vmatpush1.msra.mxu0 0.0
    %656 = vmatprep.subr.mxu0 0.0
    %657 = vmatpush1.msra.mxu0 0.0
    %658 = vmatprep.subr.mxu0 0.0
    %659 = vmatpush1.msra.mxu0 0.0
    %660 = vmatprep.subr.mxu0 0.0
    %661 = vmatpush1.msra.mxu0 0.0
    %662 = vmatprep.subr.mxu0 0.0
    %663 = vmatpush1.msra.mxu0 0.0
    %664 = vmatprep.subr.mxu0 0.0
    %665 = vmatpush1.msra.mxu0 0.0
    %666 = vmatprep.subr.mxu0 0.0
    %667 = vmatpush1.msra.mxu0 0.0
    %668 = vmatprep.subr.mxu0 0.0
    %669 = vmatpush1.msra.mxu0 0.0
    %670 = vmatprep.subr.mxu0 0.0
    %671 = vmatpush1.msra.mxu0 0.0
    %672 = vmatprep.subr.mxu0 0.0
    %673 = vmatpush1.msra.mxu0 0.0
    %674 = vmatprep.subr.mxu0 0.0
    %675 = vmatpush1.msra.mxu0 0.0
    %676 = vmatprep.subr.mxu0 0.0
    %677 = vmatpush1.msra.mxu0 0.0
    %678 = vmatprep.subr.mxu0 0.0
    %679 = vmatpush1.msra.mxu0 0.0
    %680 = vmatprep.mubr.f32.mxu0 0.0
    %681 = vmatmul.mubr.f32.gmra.mrb[0].mxu0 %v526
    %v682 = vpop.f32.mrb[0].mxu0
    %v683 = vadd.f32 %v428, %v682
    %v684 = vpop.f32.mrb[0].mxu0
    %v685 = vadd.f32 %v430, %v684
    %686 = vdwg.mxu0
    %687 = vmatprep.subr.mxu0 %v539
    %688 = vmatpush1.msra.mxu0 %v537
    %689 = vmatprep.subr.mxu0 0.0
    %690 = vmatpush1.msra.mxu0 0.0
    %691 = vmatprep.subr.mxu0 0.0
    %692 = vmatpush1.msra.mxu0 0.0
    %693 = vmatprep.subr.mxu0 0.0
    %694 = vmatpush1.msra.mxu0 0.0
    %695 = vmatprep.subr.mxu0 0.0
    %696 = vmatpush1.msra.mxu0 0.0
    %697 = vmatprep.subr.mxu0 0.0
    %698 = vmatpush1.msra.mxu0 0.0
    %699 = vmatprep.subr.mxu0 0.0
    %700 = vmatpush1.msra.mxu0 0.0
    %701 = vmatprep.subr.mxu0 0.0
    %702 = vmatpush1.msra.mxu0 0.0
    %703 = vmatprep.subr.mxu0 0.0
    %704 = vmatpush1.msra.mxu0 0.0
    %705 = vmatprep.subr.mxu0 0.0
    %706 = vmatpush1.msra.mxu0 0.0
    %707 = vmatprep.subr.mxu0 0.0
    %708 = vmatpush1.msra.mxu0 0.0
    %709 = vmatprep.subr.mxu0 0.0
    %710 = vmatpush1.msra.mxu0 0.0
    %711 = vmatprep.subr.mxu0 0.0
    %712 = vmatpush1.msra.mxu0 0.0
    %713 = vmatprep.subr.mxu0 0.0
    %714 = vmatpush1.msra.mxu0 0.0
    %715 = vmatprep.subr.mxu0 0.0
    %716 = vmatpush1.msra.mxu0 0.0
    %717 = vmatprep.subr.mxu0 0.0
    %718 = vmatpush1.msra.mxu0 0.0
    %719 = vmatprep.subr.mxu0 0.0
    %720 = vmatpush1.msra.mxu0 0.0
    %721 = vmatprep.subr.mxu0 0.0
    %722 = vmatpush1.msra.mxu0 0.0
    %723 = vmatprep.subr.mxu0 0.0
    %724 = vmatpush1.msra.mxu0 0.0
    %725 = vmatprep.subr.mxu0 0.0
    %726 = vmatpush1.msra.mxu0 0.0
    %727 = vmatprep.subr.mxu0 0.0
    %728 = vmatpush1.msra.mxu0 0.0
    %729 = vmatprep.subr.mxu0 0.0
    %730 = vmatpush1.msra.mxu0 0.0
    %731 = vmatprep.subr.mxu0 0.0
    %732 = vmatpush1.msra.mxu0 0.0
    %733 = vmatprep.subr.mxu0 0.0
    %734 = vmatpush1.msra.mxu0 0.0
    %735 = vmatprep.subr.mxu0 0.0
    %736 = vmatpush1.msra.mxu0 0.0
    %737 = vmatprep.subr.mxu0 0.0
    %738 = vmatpush1.msra.mxu0 0.0
    %739 = vmatprep.subr.mxu0 0.0
    %740 = vmatpush1.msra.mxu0 0.0
    %741 = vmatprep.subr.mxu0 0.0
    %742 = vmatpush1.msra.mxu0 0.0
    %743 = vmatprep.subr.mxu0 0.0
    %744 = vmatpush1.msra.mxu0 0.0
    %745 = vmatprep.subr.mxu0 0.0
    %746 = vmatpush1.msra.mxu0 0.0
    %747 = vmatprep.subr.mxu0 0.0
    %748 = vmatpush1.msra.mxu0 0.0
    %749 = vmatprep.subr.mxu0 0.0
    %750 = vmatpush1.msra.mxu0 0.0
    %751 = vmatprep.mubr.f32.mxu0 0.0
    %752 = vmatmul.mubr.f32.gmra.mrb[0].mxu0 %v526
    %v753 = vpop.f32.mrb[0].mxu0
    %v754 = vadd.f32 %v469, %v753
    %v755 = vpop.f32.mrb[0].mxu0
    %v756 = vadd.f32 %v471, %v755
    %757 = vdwg.mxu0
    %758 = vmatprep.subr.mxu0 %v543
    %759 = vmatpush1.msra.mxu0 %v541
    %760 = vmatprep.subr.mxu0 0.0
    %761 = vmatpush1.msra.mxu0 0.0
    %762 = vmatprep.subr.mxu0 0.0
    %763 = vmatpush1.msra.mxu0 0.0
    %764 = vmatprep.subr.mxu0 0.0
    %765 = vmatpush1.msra.mxu0 0.0
    %766 = vmatprep.subr.mxu0 0.0
    %767 = vmatpush1.msra.mxu0 0.0
    %768 = vmatprep.subr.mxu0 0.0
    %769 = vmatpush1.msra.mxu0 0.0
    %770 = vmatprep.subr.mxu0 0.0
    %771 = vmatpush1.msra.mxu0 0.0
    %772 = vmatprep.subr.mxu0 0.0
    %773 = vmatpush1.msra.mxu0 0.0
    %774 = vmatprep.subr.mxu0 0.0
    %775 = vmatpush1.msra.mxu0 0.0
    %776 = vmatprep.subr.mxu0 0.0
    %777 = vmatpush1.msra.mxu0 0.0
    %778 = vmatprep.subr.mxu0 0.0
    %779 = vmatpush1.msra.mxu0 0.0
    %780 = vmatprep.subr.mxu0 0.0
    %781 = vmatpush1.msra.mxu0 0.0
    %782 = vmatprep.subr.mxu0 0.0
    %783 = vmatpush1.msra.mxu0 0.0
    %784 = vmatprep.subr.mxu0 0.0
    %785 = vmatpush1.msra.mxu0 0.0
    %786 = vmatprep.subr.mxu0 0.0
    %787 = vmatpush1.msra.mxu0 0.0
    %788 = vmatprep.subr.mxu0 0.0
    %789 = vmatpush1.msra.mxu0 0.0
    %790 = vmatprep.subr.mxu0 0.0
    %791 = vmatpush1.msra.mxu0 0.0
    %792 = vmatprep.subr.mxu0 0.0
    %793 = vmatpush1.msra.mxu0 0.0
    %794 = vmatprep.subr.mxu0 0.0
    %795 = vmatpush1.msra.mxu0 0.0
    %796 = vmatprep.subr.mxu0 0.0
    %797 = vmatpush1.msra.mxu0 0.0
    %798 = vmatprep.subr.mxu0 0.0
    %799 = vmatpush1.msra.mxu0 0.0
    %800 = vmatprep.subr.mxu0 0.0
    %801 = vmatpush1.msra.mxu0 0.0
    %802 = vmatprep.subr.mxu0 0.0
    %803 = vmatpush1.msra.mxu0 0.0
    %804 = vmatprep.subr.mxu0 0.0
    %805 = vmatpush1.msra.mxu0 0.0
    %806 = vmatprep.subr.mxu0 0.0
    %807 = vmatpush1.msra.mxu0 0.0
    %808 = vmatprep.subr.mxu0 0.0
    %809 = vmatpush1.msra.mxu0 0.0
    %810 = vmatprep.subr.mxu0 0.0
    %811 = vmatpush1.msra.mxu0 0.0
    %812 = vmatprep.subr.mxu0 0.0
    %813 = vmatpush1.msra.mxu0 0.0
    %814 = vmatprep.subr.mxu0 0.0
    %815 = vmatpush1.msra.mxu0 0.0
    %816 = vmatprep.subr.mxu0 0.0
    %817 = vmatpush1.msra.mxu0 0.0
    %818 = vmatprep.subr.mxu0 0.0
    %819 = vmatpush1.msra.mxu0 0.0
    %820 = vmatprep.subr.mxu0 0.0
    %821 = vmatpush1.msra.mxu0 0.0
    %822 = vmatprep.mubr.f32.mxu0 0.0
    %823 = vmatmul.mubr.f32.gmra.mrb[0].mxu0 %v526
    %v824 = vpop.f32.mrb[0].mxu0
    %v825 = vadd.f32 %v510, %v824
    %v826 = vpop.f32.mrb[0].mxu0
    %v827 = vadd.f32 %v512, %v826
    %828 = vdwg.mxu0
    %v829 = vld [vmem:[#allocation8] sm:$0xff]
    %v831 = vlaneseq
    %v832 = vshrl.u32 %v831, 7
    %v833 = vsub.s32 0, %v832
    %v834 = vrot.slane %v829, %v833
    %v835 = vlaneseq
    %v836 = vshrl.u32 %v835, 7
    %v837 = vsub.s32 1, %v836
    %v838 = vrot.slane %v829, %v837
    %v839 = vlaneseq
    %v840 = vshrl.u32 %v839, 7
    %v841 = vsub.s32 2, %v840
    %v842 = vrot.slane %v829, %v841
    %v843 = vlaneseq
    %v844 = vshrl.u32 %v843, 7
    %v845 = vsub.s32 3, %v844
    %v846 = vrot.slane %v829, %v845
    %v847 = vlaneseq
    %v848 = vshrl.u32 %v847, 7
    %v849 = vsub.s32 4, %v848
    %v850 = vrot.slane %v829, %v849
    %v851 = vlaneseq
    %v852 = vshrl.u32 %v851, 7
    %v853 = vsub.s32 5, %v852
    %v854 = vrot.slane %v829, %v853
    %v855 = vlaneseq
    %v856 = vshrl.u32 %v855, 7
    %v857 = vsub.s32 6, %v856
    %v858 = vrot.slane %v829, %v857
    %v859 = vlaneseq
    %v860 = vshrl.u32 %v859, 7
    %v861 = vsub.s32 7, %v860
    %v862 = vrot.slane %v829, %v861
    %v871 = vadd.f32 %v612, %v834
    %v872 = vadd.f32 %v614, %v838
    %v873 = vadd.f32 %v683, %v842
    %v874 = vadd.f32 %v685, %v846
    %v875 = vadd.f32 %v754, %v850
    %v876 = vadd.f32 %v756, %v854
    %v877 = vadd.f32 %v825, %v858
    %v878 = vadd.f32 %v827, %v862
    %vm879 = vcmp.gt.f32.partialorder %v871, 0.0
    %vm880 = vcmp.gt.f32.partialorder %v872, 0.0
    %vm881 = vcmp.gt.f32.partialorder %v873, 0.0
    %vm882 = vcmp.gt.f32.partialorder %v874, 0.0
    %vm883 = vcmp.gt.f32.partialorder %v875, 0.0
    %vm884 = vcmp.gt.f32.partialorder %v876, 0.0
    %vm885 = vcmp.gt.f32.partialorder %v877, 0.0
    %vm886 = vcmp.gt.f32.partialorder %v878, 0.0
    %v887 = vmul.f32 %v871, 0.2
    %v888 = vmul.f32 %v872, 0.2
    %v889 = vmul.f32 %v873, 0.2
    %v890 = vmul.f32 %v874, 0.2
    %v891 = vmul.f32 %v875, 0.2
    %v892 = vmul.f32 %v876, 0.2
    %v893 = vmul.f32 %v877, 0.2
    %v894 = vmul.f32 %v878, 0.2
    %v895 = vsel %vm879, %v871, %v887
    %v896 = vsel %vm880, %v872, %v888
    %v897 = vsel %vm881, %v873, %v889
    %v898 = vsel %vm882, %v874, %v890
    %v899 = vsel %vm883, %v875, %v891
    %v900 = vsel %vm884, %v876, %v892
    %v901 = vsel %vm885, %v877, %v893
    %v902 = vsel %vm886, %v878, %v894
    %v903 = vld [vmem:[#allocation10] sm:$0xff]
    %v904 = vld [vmem:[#allocation11] sm:$0xff]
    %v905 = vrot.slane %v895, 4
    %v906 = vadd.f32 %v895, %v905
    %v907 = vrot.slane %v906, 2
    %v908 = vadd.f32 %v906, %v907
    %v909 = vrot.slane %v908, 1
    %v910 = vadd.f32 %v908, %v909
    %v911 = vrot.slane %v896, 4
    %v912 = vadd.f32 %v896, %v911
    %v913 = vrot.slane %v912, 2
    %v914 = vadd.f32 %v912, %v913
    %v915 = vrot.slane %v914, 1
    %v916 = vadd.f32 %v914, %v915
    %v917 = vrot.slane %v897, 4
    %v918 = vadd.f32 %v897, %v917
    %v919 = vrot.slane %v918, 2
    %v920 = vadd.f32 %v918, %v919
    %v921 = vrot.slane %v920, 1
    %v922 = vadd.f32 %v920, %v921
    %v923 = vrot.slane %v898, 4
    %v924 = vadd.f32 %v898, %v923
    %v925 = vrot.slane %v924, 2
    %v926 = vadd.f32 %v924, %v925
    %v927 = vrot.slane %v926, 1
    %v928 = vadd.f32 %v926, %v927
    %v929 = vrot.slane %v899, 4
    %v930 = vadd.f32 %v899, %v929
    %v931 = vrot.slane %v930, 2
    %v932 = vadd.f32 %v930, %v931
    %v933 = vrot.slane %v932, 1
    %v934 = vadd.f32 %v932, %v933
    %v935 = vrot.slane %v900, 4
    %v936 = vadd.f32 %v900, %v935
    %v937 = vrot.slane %v936, 2
    %v938 = vadd.f32 %v936, %v937
    %v939 = vrot.slane %v938, 1
    %v940 = vadd.f32 %v938, %v939
    %v941 = vrot.slane %v901, 4
    %v942 = vadd.f32 %v901, %v941
    %v943 = vrot.slane %v942, 2
    %v944 = vadd.f32 %v942, %v943
    %v945 = vrot.slane %v944, 1
    %v946 = vadd.f32 %v944, %v945
    %v947 = vrot.slane %v902, 4
    %v948 = vadd.f32 %v902, %v947
    %v949 = vrot.slane %v948, 2
    %v950 = vadd.f32 %v948, %v949
    %v951 = vrot.slane %v950, 1
    %v952 = vadd.f32 %v950, %v951
    %v953 = vrcp.pop 8.0
    %v954 = vmul.f32 %v910, %v953
    %v955 = vmul.f32 %v916, %v953
    %v956 = vmul.f32 %v922, %v953
    %v957 = vmul.f32 %v928, %v953
    %v958 = vmul.f32 %v934, %v953
    %v959 = vmul.f32 %v940, %v953
    %v960 = vmul.f32 %v946, %v953
    %v961 = vmul.f32 %v952, %v953
    %v962 = vmul.f32 %v895, %v895
    %v963 = vmul.f32 %v896, %v896
    %v964 = vmul.f32 %v897, %v897
    %v965 = vmul.f32 %v898, %v898
    %v966 = vmul.f32 %v899, %v899
    %v967 = vmul.f32 %v900, %v900
    %v968 = vmul.f32 %v901, %v901
    %v969 = vmul.f32 %v902, %v902
    %v970 = vrot.slane %v962, 4
    %v971 = vadd.f32 %v962, %v970
    %v972 = vrot.slane %v971, 2
    %v973 = vadd.f32 %v971, %v972
    %v974 = vrot.slane %v973, 1
    %v975 = vadd.f32 %v973, %v974
    %v976 = vrot.slane %v963, 4
    %v977 = vadd.f32 %v963, %v976
    %v978 = vrot.slane %v977, 2
    %v979 = vadd.f32 %v977, %v978
    %v980 = vrot.slane %v979, 1
    %v981 = vadd.f32 %v979, %v980
    %v982 = vrot.slane %v964, 4
    %v983 = vadd.f32 %v964, %v982
    %v984 = vrot.slane %v983, 2
    %v985 = vadd.f32 %v983, %v984
    %v986 = vrot.slane %v985, 1
    %v987 = vadd.f32 %v985, %v986
    %v988 = vrot.slane %v965, 4
    %v989 = vadd.f32 %v965, %v988
    %v990 = vrot.slane %v989, 2
    %v991 = vadd.f32 %v989, %v990
    %v992 = vrot.slane %v991, 1
    %v993 = vadd.f32 %v991, %v992
    %v994 = vrot.slane %v966, 4
    %v995 = vadd.f32 %v966, %v994
    %v996 = vrot.slane %v995, 2
    %v997 = vadd.f32 %v995, %v996
    %v998 = vrot.slane %v997, 1
    %v999 = vadd.f32 %v997, %v998
    %v1000 = vrot.slane %v967, 4
    %v1001 = vadd.f32 %v967, %v1000
    %v1002 = vrot.slane %v1001, 2
    %v1003 = vadd.f32 %v1001, %v1002
    %v1004 = vrot.slane %v1003, 1
    %v1005 = vadd.f32 %v1003, %v1004
    %v1006 = vrot.slane %v968, 4
    %v1007 = vadd.f32 %v968, %v1006
    %v1008 = vrot.slane %v1007, 2
    %v1009 = vadd.f32 %v1007, %v1008
    %v1010 = vrot.slane %v1009, 1
    %v1011 = vadd.f32 %v1009, %v1010
    %v1012 = vrot.slane %v969, 4
    %v1013 = vadd.f32 %v969, %v1012
    %v1014 = vrot.slane %v1013, 2
    %v1015 = vadd.f32 %v1013, %v1014
    %v1016 = vrot.slane %v1015, 1
    %v1017 = vadd.f32 %v1015, %v1016
    %v1018 = vmul.f32 %v975, %v953
    %v1019 = vmul.f32 %v981, %v953
    %v1020 = vmul.f32 %v987, %v953
    %v1021 = vmul.f32 %v993, %v953
    %v1022 = vmul.f32 %v999, %v953
    %v1023 = vmul.f32 %v1005, %v953
    %v1024 = vmul.f32 %v1011, %v953
    %v1025 = vmul.f32 %v1017, %v953
    %v1026 = vmul.f32 %v954, %v954
    %v1027 = vmul.f32 %v955, %v955
    %v1028 = vmul.f32 %v956, %v956
    %v1029 = vmul.f32 %v957, %v957
    %v1030 = vmul.f32 %v958, %v958
    %v1031 = vmul.f32 %v959, %v959
    %v1032 = vmul.f32 %v960, %v960
    %v1033 = vmul.f32 %v961, %v961
    %v1034 = vsub.f32 %v1018, %v1026
    %v1035 = vsub.f32 %v1019, %v1027
    %v1036 = vsub.f32 %v1020, %v1028
    %v1037 = vsub.f32 %v1021, %v1029
    %v1038 = vsub.f32 %v1022, %v1030
    %v1039 = vsub.f32 %v1023, %v1031
    %v1040 = vsub.f32 %v1024, %v1032
    %v1041 = vsub.f32 %v1025, %v1033
    %v1042 = vmax.f32 %v1034, 0.0
    %v1043 = vmax.f32 %v1035, 0.0
    %v1044 = vmax.f32 %v1036, 0.0
    %v1045 = vmax.f32 %v1037, 0.0
    %v1046 = vmax.f32 %v1038, 0.0
    %v1047 = vmax.f32 %v1039, 0.0
    %v1048 = vmax.f32 %v1040, 0.0
    %v1049 = vmax.f32 %v1041, 0.0
    %v1050 = vadd.f32 %v1042, 1e-05
    %v1051 = vadd.f32 %v1043, 1e-05
    %v1052 = vadd.f32 %v1044, 1e-05
    %v1053 = vadd.f32 %v1045, 1e-05
    %v1054 = vadd.f32 %v1046, 1e-05
    %v1055 = vadd.f32 %v1047, 1e-05
    %v1056 = vadd.f32 %v1048, 1e-05
    %v1057 = vadd.f32 %v1049, 1e-05
    %v1058 = vrsqrt.pop %v1050
    %v1059 = vrsqrt.pop %v1051
    %v1060 = vrsqrt.pop %v1052
    %v1061 = vrsqrt.pop %v1053
    %v1062 = vrsqrt.pop %v1054
    %v1063 = vrsqrt.pop %v1055
    %v1064 = vrsqrt.pop %v1056
    %v1065 = vrsqrt.pop %v1057
    %v1074 = vcombine.low %v1058, %v1059
    %v1075 = vcombine.low %v1060, %v1061
    %v1076 = vcombine.low %v1062, %v1063
    %v1077 = vcombine.low %v1064, %v1065
    %v1079 = vunpack.c.l.s4 1966171168
    %v1080 = vunpack.c.0.s8 %v1079
    %v1081 = vlaneseq
    %v1082 = vshrl.u32 %v1081, 7
    %v1083 = vsub.s32 %v1080, %v1082
    %v1084 = vrot.slane %v1074, %v1083
    %v1086 = vunpack.c.l.s4 1966171168
    %v1087 = vunpack.c.0.s8 %v1086
    %v1088 = vlaneseq
    %v1089 = vshrl.u32 %v1088, 7
    %v1090 = vsub.s32 %v1087, %v1089
    %v1091 = vrot.slane %v1075, %v1090
    %v1093 = vunpack.c.l.s4 1966171168
    %v1094 = vunpack.c.0.s8 %v1093
    %v1095 = vlaneseq
    %v1096 = vshrl.u32 %v1095, 7
    %v1097 = vsub.s32 %v1094, %v1096
    %v1098 = vrot.slane %v1076, %v1097
    %v1100 = vunpack.c.l.s4 1966171168
    %v1101 = vunpack.c.0.s8 %v1100
    %v1102 = vlaneseq
    %v1103 = vshrl.u32 %v1102, 7
    %v1104 = vsub.s32 %v1101, %v1103
    %v1105 = vrot.slane %v1077, %v1104
    %v1106 = vcombine.low %v1084, %v1091
    %v1107 = vcombine.low %v1098, %v1105
    %v1109 = vunpack.c.l.s4 1966171168
    %v1110 = vunpack.c.0.s8 %v1109
    %v1111 = vlaneseq
    %v1112 = vshrl.u32 %v1111, 7
    %v1113 = vsub.s32 %v1110, %v1112
    %v1114 = vrot.slane %v1106, %v1113
    %v1116 = vunpack.c.l.s4 1966171168
    %v1117 = vunpack.c.0.s8 %v1116
    %v1118 = vlaneseq
    %v1119 = vshrl.u32 %v1118, 7
    %v1120 = vsub.s32 %v1117, %v1119
    %v1121 = vrot.slane %v1107, %v1120
    %v1122 = vcombine.low %v1114, %v1121
    %v1124 = vmul.f32 %v903, %v1122
    %v1126 = vlaneseq
    %v1127 = vshrl.u32 %v1126, 7
    %v1128 = vsub.s32 0, %v1127
    %v1129 = vrot.slane %v1124, %v1128
    %v1130 = vlaneseq
    %v1131 = vshrl.u32 %v1130, 7
    %v1132 = vsub.s32 1, %v1131
    %v1133 = vrot.slane %v1124, %v1132
    %v1134 = vlaneseq
    %v1135 = vshrl.u32 %v1134, 7
    %v1136 = vsub.s32 2, %v1135
    %v1137 = vrot.slane %v1124, %v1136
    %v1138 = vlaneseq
    %v1139 = vshrl.u32 %v1138, 7
    %v1140 = vsub.s32 3, %v1139
    %v1141 = vrot.slane %v1124, %v1140
    %v1142 = vlaneseq
    %v1143 = vshrl.u32 %v1142, 7
    %v1144 = vsub.s32 4, %v1143
    %v1145 = vrot.slane %v1124, %v1144
    %v1146 = vlaneseq
    %v1147 = vshrl.u32 %v1146, 7
    %v1148 = vsub.s32 5, %v1147
    %v1149 = vrot.slane %v1124, %v1148
    %v1150 = vlaneseq
    %v1151 = vshrl.u32 %v1150, 7
    %v1152 = vsub.s32 6, %v1151
    %v1153 = vrot.slane %v1124, %v1152
    %v1154 = vlaneseq
    %v1155 = vshrl.u32 %v1154, 7
    %v1156 = vsub.s32 7, %v1155
    %v1157 = vrot.slane %v1124, %v1156
    %v1166 = vmul.f32 %v954, %v1129
    %v1167 = vmul.f32 %v955, %v1133
    %v1168 = vmul.f32 %v956, %v1137
    %v1169 = vmul.f32 %v957, %v1141
    %v1170 = vmul.f32 %v958, %v1145
    %v1171 = vmul.f32 %v959, %v1149
    %v1172 = vmul.f32 %v960, %v1153
    %v1173 = vmul.f32 %v961, %v1157
    %v1182 = vcombine.low %v1166, %v1167
    %v1183 = vcombine.low %v1168, %v1169
    %v1184 = vcombine.low %v1170, %v1171
    %v1185 = vcombine.low %v1172, %v1173
    %v1187 = vunpack.c.l.s4 1966171168
    %v1188 = vunpack.c.0.s8 %v1187
    %v1189 = vlaneseq
    %v1190 = vshrl.u32 %v1189, 7
    %v1191 = vsub.s32 %v1188, %v1190
    %v1192 = vrot.slane %v1182, %v1191
    %v1194 = vunpack.c.l.s4 1966171168
    %v1195 = vunpack.c.0.s8 %v1194
    %v1196 = vlaneseq
    %v1197 = vshrl.u32 %v1196, 7
    %v1198 = vsub.s32 %v1195, %v1197
    %v1199 = vrot.slane %v1183, %v1198
    %v1201 = vunpack.c.l.s4 1966171168
    %v1202 = vunpack.c.0.s8 %v1201
    %v1203 = vlaneseq
    %v1204 = vshrl.u32 %v1203, 7
    %v1205 = vsub.s32 %v1202, %v1204
    %v1206 = vrot.slane %v1184, %v1205
    %v1208 = vunpack.c.l.s4 1966171168
    %v1209 = vunpack.c.0.s8 %v1208
    %v1210 = vlaneseq
    %v1211 = vshrl.u32 %v1210, 7
    %v1212 = vsub.s32 %v1209, %v1211
    %v1213 = vrot.slane %v1185, %v1212
    %v1214 = vcombine.low %v1192, %v1199
    %v1215 = vcombine.low %v1206, %v1213
    %v1217 = vunpack.c.l.s4 1966171168
    %v1218 = vunpack.c.0.s8 %v1217
    %v1219 = vlaneseq
    %v1220 = vshrl.u32 %v1219, 7
    %v1221 = vsub.s32 %v1218, %v1220
    %v1222 = vrot.slane %v1214, %v1221
    %v1224 = vunpack.c.l.s4 1966171168
    %v1225 = vunpack.c.0.s8 %v1224
    %v1226 = vlaneseq
    %v1227 = vshrl.u32 %v1226, 7
    %v1228 = vsub.s32 %v1225, %v1227
    %v1229 = vrot.slane %v1215, %v1228
    %v1230 = vcombine.low %v1222, %v1229
    %v1232 = vsub.f32 %v904, %v1230
    %v1233 = vmul.f32 %v895, %v1129
    %v1234 = vmul.f32 %v896, %v1133
    %v1235 = vmul.f32 %v897, %v1137
    %v1236 = vmul.f32 %v898, %v1141
    %v1237 = vmul.f32 %v899, %v1145
    %v1238 = vmul.f32 %v900, %v1149
    %v1239 = vmul.f32 %v901, %v1153
    %v1240 = vmul.f32 %v902, %v1157
    %v1242 = vlaneseq
    %v1243 = vshrl.u32 %v1242, 7
    %v1244 = vsub.s32 0, %v1243
    %v1245 = vrot.slane %v1232, %v1244
    %v1246 = vlaneseq
    %v1247 = vshrl.u32 %v1246, 7
    %v1248 = vsub.s32 1, %v1247
    %v1249 = vrot.slane %v1232, %v1248
    %v1250 = vlaneseq
    %v1251 = vshrl.u32 %v1250, 7
    %v1252 = vsub.s32 2, %v1251
    %v1253 = vrot.slane %v1232, %v1252
    %v1254 = vlaneseq
    %v1255 = vshrl.u32 %v1254, 7
    %v1256 = vsub.s32 3, %v1255
    %v1257 = vrot.slane %v1232, %v1256
    %v1258 = vlaneseq
    %v1259 = vshrl.u32 %v1258, 7
    %v1260 = vsub.s32 4, %v1259
    %v1261 = vrot.slane %v1232, %v1260
    %v1262 = vlaneseq
    %v1263 = vshrl.u32 %v1262, 7
    %v1264 = vsub.s32 5, %v1263
    %v1265 = vrot.slane %v1232, %v1264
    %v1266 = vlaneseq
    %v1267 = vshrl.u32 %v1266, 7
    %v1268 = vsub.s32 6, %v1267
    %v1269 = vrot.slane %v1232, %v1268
    %v1270 = vlaneseq
    %v1271 = vshrl.u32 %v1270, 7
    %v1272 = vsub.s32 7, %v1271
    %v1273 = vrot.slane %v1232, %v1272
    %v1282 = vadd.f32 %v1233, %v1245
    %v1283 = vadd.f32 %v1234, %v1249
    %v1284 = vadd.f32 %v1235, %v1253
    %v1285 = vadd.f32 %v1236, %v1257
    %v1286 = vadd.f32 %v1237, %v1261
    %v1287 = vadd.f32 %v1238, %v1265
    %v1288 = vadd.f32 %v1239, %v1269
    %v1289 = vadd.f32 %v1240, %v1273
    %v1290 = vpack.c.bf16 %v1282, %v1282
    %v1291 = vpack.c.bf16 %v1283, %v1283
    %v1292 = vpack.c.bf16 %v1284, %v1284
    %v1293 = vpack.c.bf16 %v1285, %v1285
    %v1294 = vpack.c.bf16 %v1286, %v1286
    %v1295 = vpack.c.bf16 %v1287, %v1287
    %v1296 = vpack.c.bf16 %v1288, %v1288
    %v1297 = vpack.c.bf16 %v1289, %v1289
    %v1298 = vld [vmem:[#allocation13] sm:$0xff]
    %v1299 = vld [vmem:[#allocation13 + $0x8] sm:$0xff]
    %v1300 = vld [vmem:[#allocation13 + $0x10] sm:$0xff]
    %v1301 = vld [vmem:[#allocation13 + $0x18] sm:$0xff]
    %v1302 = vld [vmem:[#allocation13 + $0x20] sm:$0xff]
    %v1303 = vld [vmem:[#allocation13 + $0x28] sm:$0xff]
    %v1304 = vld [vmem:[#allocation13 + $0x30] sm:$0xff]
    %v1305 = vld [vmem:[#allocation13 + $0x38] sm:$0xff]
    %v1306 = vld [vmem:[#allocation13 + $0x40] sm:$0xff]
    %v1307 = vld [vmem:[#allocation13 + $0x48] sm:$0xff]
    %v1308 = vld [vmem:[#allocation13 + $0x50] sm:$0xff]
    %v1309 = vld [vmem:[#allocation13 + $0x58] sm:$0xff]
    %v1310 = vld [vmem:[#allocation13 + $0x60] sm:$0xff]
    %v1311 = vld [vmem:[#allocation13 + $0x68] sm:$0xff]
    %v1312 = vld [vmem:[#allocation13 + $0x70] sm:$0xff]
    %v1313 = vld [vmem:[#allocation13 + $0x78] sm:$0xff]
    %v1314 = vld [vmem:[#allocation13 + $0x80] sm:$0xff]
    %v1315 = vld [vmem:[#allocation13 + $0x88] sm:$0xff]
    %v1316 = vld [vmem:[#allocation13 + $0x90] sm:$0xff]
    %v1317 = vld [vmem:[#allocation13 + $0x98] sm:$0xff]
    %v1318 = vld [vmem:[#allocation13 + $0xa0] sm:$0xff]
    %v1319 = vld [vmem:[#allocation13 + $0xa8] sm:$0xff]
    %v1320 = vld [vmem:[#allocation13 + $0xb0] sm:$0xff]
    %v1321 = vld [vmem:[#allocation13 + $0xb8] sm:$0xff]
    %v1322 = vld [vmem:[#allocation13 + $0xc0] sm:$0xff]
    %v1323 = vld [vmem:[#allocation13 + $0xc8] sm:$0xff]
    %v1324 = vld [vmem:[#allocation13 + $0xd0] sm:$0xff]
    %v1325 = vld [vmem:[#allocation13 + $0xd8] sm:$0xff]
    %v1326 = vld [vmem:[#allocation13 + $0xe0] sm:$0xff]
    %v1327 = vld [vmem:[#allocation13 + $0xe8] sm:$0xff]
    %v1328 = vld [vmem:[#allocation13 + $0xf0] sm:$0xff]
    %v1329 = vld [vmem:[#allocation13 + $0xf8] sm:$0xff]
    %v1330 = vld [vmem:[#allocation13 + $0x100] sm:$0xff]
    %v1331 = vld [vmem:[#allocation13 + $0x108] sm:$0xff]
    %v1332 = vld [vmem:[#allocation13 + $0x110] sm:$0xff]
    %v1333 = vld [vmem:[#allocation13 + $0x118] sm:$0xff]
    %v1334 = vld [vmem:[#allocation13 + $0x120] sm:$0xff]
    %v1335 = vld [vmem:[#allocation13 + $0x128] sm:$0xff]
    %v1336 = vld [vmem:[#allocation13 + $0x130] sm:$0xff]
    %v1337 = vld [vmem:[#allocation13 + $0x138] sm:$0xff]
    %v1338 = vld [vmem:[#allocation13 + $0x140] sm:$0xff]
    %v1339 = vld [vmem:[#allocation13 + $0x148] sm:$0xff]
    %v1340 = vld [vmem:[#allocation13 + $0x150] sm:$0xff]
    %v1341 = vld [vmem:[#allocation13 + $0x158] sm:$0xff]
    %v1342 = vld [vmem:[#allocation13 + $0x160] sm:$0xff]
    %v1343 = vld [vmem:[#allocation13 + $0x168] sm:$0xff]
    %v1344 = vld [vmem:[#allocation13 + $0x170] sm:$0xff]
    %v1345 = vld [vmem:[#allocation13 + $0x178] sm:$0xff]
    %v1346 = vld [vmem:[#allocation13 + $0x180] sm:$0xff]
    %v1347 = vld [vmem:[#allocation13 + $0x188] sm:$0xff]
    %v1348 = vld [vmem:[#allocation13 + $0x190] sm:$0xff]
    %v1349 = vld [vmem:[#allocation13 + $0x198] sm:$0xff]
    %v1350 = vld [vmem:[#allocation13 + $0x1a0] sm:$0xff]
    %v1351 = vld [vmem:[#allocation13 + $0x1a8] sm:$0xff]
    %v1352 = vld [vmem:[#allocation13 + $0x1b0] sm:$0xff]
    %v1353 = vld [vmem:[#allocation13 + $0x1b8] sm:$0xff]
    %v1354 = vld [vmem:[#allocation13 + $0x1c0] sm:$0xff]
    %v1355 = vld [vmem:[#allocation13 + $0x1c8] sm:$0xff]
    %v1356 = vld [vmem:[#allocation13 + $0x1d0] sm:$0xff]
    %v1357 = vld [vmem:[#allocation13 + $0x1d8] sm:$0xff]
    %v1358 = vld [vmem:[#allocation13 + $0x1e0] sm:$0xff]
    %v1359 = vld [vmem:[#allocation13 + $0x1e8] sm:$0xff]
    %v1360 = vld [vmem:[#allocation13 + $0x1f0] sm:$0xff]
    %v1361 = vld [vmem:[#allocation13 + $0x1f8] sm:$0xff]
    %v1362 = vld [vmem:[#allocation13 + $0x200] sm:$0xff]
    %v1363 = vld [vmem:[#allocation13 + $0x208] sm:$0xff]
    %v1364 = vld [vmem:[#allocation13 + $0x210] sm:$0xff]
    %v1365 = vld [vmem:[#allocation13 + $0x218] sm:$0xff]
    %v1366 = vld [vmem:[#allocation13 + $0x220] sm:$0xff]
    %v1367 = vld [vmem:[#allocation13 + $0x228] sm:$0xff]
    %v1368 = vld [vmem:[#allocation13 + $0x230] sm:$0xff]
    %v1369 = vld [vmem:[#allocation13 + $0x238] sm:$0xff]
    %v1370 = vld [vmem:[#allocation13 + $0x240] sm:$0xff]
    %v1371 = vld [vmem:[#allocation13 + $0x248] sm:$0xff]
    %v1372 = vld [vmem:[#allocation13 + $0x250] sm:$0xff]
    %v1373 = vld [vmem:[#allocation13 + $0x258] sm:$0xff]
    %v1374 = vld [vmem:[#allocation13 + $0x260] sm:$0xff]
    %v1375 = vld [vmem:[#allocation13 + $0x268] sm:$0xff]
    %v1376 = vld [vmem:[#allocation13 + $0x270] sm:$0xff]
    %v1377 = vld [vmem:[#allocation13 + $0x278] sm:$0xff]
    %v1378 = vld [vmem:[#allocation13 + $0x280] sm:$0xff]
    %v1379 = vld [vmem:[#allocation13 + $0x288] sm:$0xff]
    %v1380 = vld [vmem:[#allocation13 + $0x290] sm:$0xff]
    %v1381 = vld [vmem:[#allocation13 + $0x298] sm:$0xff]
    %v1382 = vld [vmem:[#allocation13 + $0x2a0] sm:$0xff]
    %v1383 = vld [vmem:[#allocation13 + $0x2a8] sm:$0xff]
    %v1384 = vld [vmem:[#allocation13 + $0x2b0] sm:$0xff]
    %v1385 = vld [vmem:[#allocation13 + $0x2b8] sm:$0xff]
    %v1386 = vld [vmem:[#allocation13 + $0x2c0] sm:$0xff]
    %v1387 = vld [vmem:[#allocation13 + $0x2c8] sm:$0xff]
    %v1388 = vld [vmem:[#allocation13 + $0x2d0] sm:$0xff]
    %v1389 = vld [vmem:[#allocation13 + $0x2d8] sm:$0xff]
    %v1390 = vld [vmem:[#allocation13 + $0x2e0] sm:$0xff]
    %v1391 = vld [vmem:[#allocation13 + $0x2e8] sm:$0xff]
    %v1392 = vld [vmem:[#allocation13 + $0x2f0] sm:$0xff]
    %v1393 = vld [vmem:[#allocation13 + $0x2f8] sm:$0xff]
    %v1394 = vld [vmem:[#allocation13 + $0x300] sm:$0xff]
    %v1395 = vld [vmem:[#allocation13 + $0x308] sm:$0xff]
    %v1396 = vld [vmem:[#allocation13 + $0x310] sm:$0xff]
    %v1397 = vld [vmem:[#allocation13 + $0x318] sm:$0xff]
    %v1398 = vld [vmem:[#allocation13 + $0x320] sm:$0xff]
    %v1399 = vld [vmem:[#allocation13 + $0x328] sm:$0xff]
    %v1400 = vld [vmem:[#allocation13 + $0x330] sm:$0xff]
    %v1401 = vld [vmem:[#allocation13 + $0x338] sm:$0xff]
    %v1402 = vld [vmem:[#allocation13 + $0x340] sm:$0xff]
    %v1403 = vld [vmem:[#allocation13 + $0x348] sm:$0xff]
    %v1404 = vld [vmem:[#allocation13 + $0x350] sm:$0xff]
    %v1405 = vld [vmem:[#allocation13 + $0x358] sm:$0xff]
    %v1406 = vld [vmem:[#allocation13 + $0x360] sm:$0xff]
    %v1407 = vld [vmem:[#allocation13 + $0x368] sm:$0xff]
    %v1408 = vld [vmem:[#allocation13 + $0x370] sm:$0xff]
    %v1409 = vld [vmem:[#allocation13 + $0x378] sm:$0xff]
    %v1410 = vld [vmem:[#allocation13 + $0x380] sm:$0xff]
    %v1411 = vld [vmem:[#allocation13 + $0x388] sm:$0xff]
    %v1412 = vld [vmem:[#allocation13 + $0x390] sm:$0xff]
    %v1413 = vld [vmem:[#allocation13 + $0x398] sm:$0xff]
    %v1414 = vld [vmem:[#allocation13 + $0x3a0] sm:$0xff]
    %v1415 = vld [vmem:[#allocation13 + $0x3a8] sm:$0xff]
    %v1416 = vld [vmem:[#allocation13 + $0x3b0] sm:$0xff]
    %v1417 = vld [vmem:[#allocation13 + $0x3b8] sm:$0xff]
    %v1418 = vld [vmem:[#allocation13 + $0x3c0] sm:$0xff]
    %v1419 = vld [vmem:[#allocation13 + $0x3c8] sm:$0xff]
    %v1420 = vld [vmem:[#allocation13 + $0x3d0] sm:$0xff]
    %v1421 = vld [vmem:[#allocation13 + $0x3d8] sm:$0xff]
    %v1422 = vld [vmem:[#allocation13 + $0x3e0] sm:$0xff]
    %v1423 = vld [vmem:[#allocation13 + $0x3e8] sm:$0xff]
    %v1424 = vld [vmem:[#allocation13 + $0x3f0] sm:$0xff]
    %v1425 = vld [vmem:[#allocation13 + $0x3f8] sm:$0xff]
    %v1426 = vld [vmem:[#allocation13 + $0x400] sm:$0xff]
    %v1427 = vld [vmem:[#allocation13 + $0x408] sm:$0xff]
    %v1428 = vld [vmem:[#allocation13 + $0x410] sm:$0xff]
    %v1429 = vld [vmem:[#allocation13 + $0x418] sm:$0xff]
    %v1430 = vld [vmem:[#allocation13 + $0x420] sm:$0xff]
    %v1431 = vld [vmem:[#allocation13 + $0x428] sm:$0xff]
    %v1432 = vld [vmem:[#allocation13 + $0x430] sm:$0xff]
    %v1433 = vld [vmem:[#allocation13 + $0x438] sm:$0xff]
    %v1434 = vld [vmem:[#allocation13 + $0x440] sm:$0xff]
    %v1435 = vld [vmem:[#allocation13 + $0x448] sm:$0xff]
    %v1436 = vld [vmem:[#allocation13 + $0x450] sm:$0xff]
    %v1437 = vld [vmem:[#allocation13 + $0x458] sm:$0xff]
    %v1438 = vld [vmem:[#allocation13 + $0x460] sm:$0xff]
    %v1439 = vld [vmem:[#allocation13 + $0x468] sm:$0xff]
    %v1440 = vld [vmem:[#allocation13 + $0x470] sm:$0xff]
    %v1441 = vld [vmem:[#allocation13 + $0x478] sm:$0xff]
    %v1442 = vld [vmem:[#allocation13 + $0x480] sm:$0xff]
    %v1443 = vld [vmem:[#allocation13 + $0x488] sm:$0xff]
    %v1444 = vld [vmem:[#allocation13 + $0x490] sm:$0xff]
    %v1445 = vld [vmem:[#allocation13 + $0x498] sm:$0xff]
    %v1446 = vld [vmem:[#allocation13 + $0x4a0] sm:$0xff]
    %v1447 = vld [vmem:[#allocation13 + $0x4a8] sm:$0xff]
    %v1448 = vld [vmem:[#allocation13 + $0x4b0] sm:$0xff]
    %v1449 = vld [vmem:[#allocation13 + $0x4b8] sm:$0xff]
    %v1450 = vld [vmem:[#allocation13 + $0x4c0] sm:$0xff]
    %v1451 = vld [vmem:[#allocation13 + $0x4c8] sm:$0xff]
    %v1452 = vld [vmem:[#allocation13 + $0x4d0] sm:$0xff]
    %v1453 = vld [vmem:[#allocation13 + $0x4d8] sm:$0xff]
    %v1454 = vld [vmem:[#allocation13 + $0x4e0] sm:$0xff]
    %v1455 = vld [vmem:[#allocation13 + $0x4e8] sm:$0xff]
    %v1456 = vld [vmem:[#allocation13 + $0x4f0] sm:$0xff]
    %v1457 = vld [vmem:[#allocation13 + $0x4f8] sm:$0xff]
    %v1458 = vld [vmem:[#allocation13 + $0x500] sm:$0xff]
    %v1459 = vld [vmem:[#allocation13 + $0x508] sm:$0xff]
    %v1460 = vld [vmem:[#allocation13 + $0x510] sm:$0xff]
    %v1461 = vld [vmem:[#allocation13 + $0x518] sm:$0xff]
    %v1462 = vld [vmem:[#allocation13 + $0x520] sm:$0xff]
    %v1463 = vld [vmem:[#allocation13 + $0x528] sm:$0xff]
    %v1464 = vld [vmem:[#allocation13 + $0x530] sm:$0xff]
    %v1465 = vld [vmem:[#allocation13 + $0x538] sm:$0xff]
    %v1466 = vld [vmem:[#allocation13 + $0x540] sm:$0xff]
    %v1467 = vld [vmem:[#allocation13 + $0x548] sm:$0xff]
    %v1468 = vld [vmem:[#allocation13 + $0x550] sm:$0xff]
    %v1469 = vld [vmem:[#allocation13 + $0x558] sm:$0xff]
    %v1470 = vld [vmem:[#allocation13 + $0x560] sm:$0xff]
    %v1471 = vld [vmem:[#allocation13 + $0x568] sm:$0xff]
    %v1472 = vld [vmem:[#allocation13 + $0x570] sm:$0xff]
    %v1473 = vld [vmem:[#allocation13 + $0x578] sm:$0xff]
    %v1474 = vld [vmem:[#allocation13 + $0x580] sm:$0xff]
    %v1475 = vld [vmem:[#allocation13 + $0x588] sm:$0xff]
    %v1476 = vld [vmem:[#allocation13 + $0x590] sm:$0xff]
    %v1477 = vld [vmem:[#allocation13 + $0x598] sm:$0xff]
    %v1478 = vld [vmem:[#allocation13 + $0x5a0] sm:$0xff]
    %v1479 = vld [vmem:[#allocation13 + $0x5a8] sm:$0xff]
    %v1480 = vld [vmem:[#allocation13 + $0x5b0] sm:$0xff]
    %v1481 = vld [vmem:[#allocation13 + $0x5b8] sm:$0xff]
    %v1482 = vld [vmem:[#allocation13 + $0x5c0] sm:$0xff]
    %v1483 = vld [vmem:[#allocation13 + $0x5c8] sm:$0xff]
    %v1484 = vld [vmem:[#allocation13 + $0x5d0] sm:$0xff]
    %v1485 = vld [vmem:[#allocation13 + $0x5d8] sm:$0xff]
    %v1486 = vld [vmem:[#allocation13 + $0x5e0] sm:$0xff]
    %v1487 = vld [vmem:[#allocation13 + $0x5e8] sm:$0xff]
    %v1488 = vld [vmem:[#allocation13 + $0x5f0] sm:$0xff]
    %v1489 = vld [vmem:[#allocation13 + $0x5f8] sm:$0xff]
    %v1490 = vld [vmem:[#allocation13 + $0x600] sm:$0xff]
    %v1491 = vld [vmem:[#allocation13 + $0x608] sm:$0xff]
    %v1492 = vld [vmem:[#allocation13 + $0x610] sm:$0xff]
    %v1493 = vld [vmem:[#allocation13 + $0x618] sm:$0xff]
    %v1494 = vld [vmem:[#allocation13 + $0x620] sm:$0xff]
    %v1495 = vld [vmem:[#allocation13 + $0x628] sm:$0xff]
    %v1496 = vld [vmem:[#allocation13 + $0x630] sm:$0xff]
    %v1497 = vld [vmem:[#allocation13 + $0x638] sm:$0xff]
    %v1498 = vld [vmem:[#allocation13 + $0x640] sm:$0xff]
    %v1499 = vld [vmem:[#allocation13 + $0x648] sm:$0xff]
    %v1500 = vld [vmem:[#allocation13 + $0x650] sm:$0xff]
    %v1501 = vld [vmem:[#allocation13 + $0x658] sm:$0xff]
    %v1502 = vld [vmem:[#allocation13 + $0x660] sm:$0xff]
    %v1503 = vld [vmem:[#allocation13 + $0x668] sm:$0xff]
    %v1504 = vld [vmem:[#allocation13 + $0x670] sm:$0xff]
    %v1505 = vld [vmem:[#allocation13 + $0x678] sm:$0xff]
    %v1506 = vld [vmem:[#allocation13 + $0x680] sm:$0xff]
    %v1507 = vld [vmem:[#allocation13 + $0x688] sm:$0xff]
    %v1508 = vld [vmem:[#allocation13 + $0x690] sm:$0xff]
    %v1509 = vld [vmem:[#allocation13 + $0x698] sm:$0xff]
    %v1510 = vld [vmem:[#allocation13 + $0x6a0] sm:$0xff]
    %v1511 = vld [vmem:[#allocation13 + $0x6a8] sm:$0xff]
    %v1512 = vld [vmem:[#allocation13 + $0x6b0] sm:$0xff]
    %v1513 = vld [vmem:[#allocation13 + $0x6b8] sm:$0xff]
    %v1514 = vld [vmem:[#allocation13 + $0x6c0] sm:$0xff]
    %v1515 = vld [vmem:[#allocation13 + $0x6c8] sm:$0xff]
    %v1516 = vld [vmem:[#allocation13 + $0x6d0] sm:$0xff]
    %v1517 = vld [vmem:[#allocation13 + $0x6d8] sm:$0xff]
    %v1518 = vld [vmem:[#allocation13 + $0x6e0] sm:$0xff]
    %v1519 = vld [vmem:[#allocation13 + $0x6e8] sm:$0xff]
    %v1520 = vld [vmem:[#allocation13 + $0x6f0] sm:$0xff]
    %v1521 = vld [vmem:[#allocation13 + $0x6f8] sm:$0xff]
    %v1522 = vld [vmem:[#allocation13 + $0x700] sm:$0xff]
    %v1523 = vld [vmem:[#allocation13 + $0x708] sm:$0xff]
    %v1524 = vld [vmem:[#allocation13 + $0x710] sm:$0xff]
    %v1525 = vld [vmem:[#allocation13 + $0x718] sm:$0xff]
    %v1526 = vld [vmem:[#allocation13 + $0x720] sm:$0xff]
    %v1527 = vld [vmem:[#allocation13 + $0x728] sm:$0xff]
    %v1528 = vld [vmem:[#allocation13 + $0x730] sm:$0xff]
    %v1529 = vld [vmem:[#allocation13 + $0x738] sm:$0xff]
    %v1530 = vld [vmem:[#allocation13 + $0x740] sm:$0xff]
    %v1531 = vld [vmem:[#allocation13 + $0x748] sm:$0xff]
    %v1532 = vld [vmem:[#allocation13 + $0x750] sm:$0xff]
    %v1533 = vld [vmem:[#allocation13 + $0x758] sm:$0xff]
    %v1534 = vld [vmem:[#allocation13 + $0x760] sm:$0xff]
    %v1535 = vld [vmem:[#allocation13 + $0x768] sm:$0xff]
    %v1536 = vld [vmem:[#allocation13 + $0x770] sm:$0xff]
    %v1537 = vld [vmem:[#allocation13 + $0x778] sm:$0xff]
    %v1538 = vld [vmem:[#allocation13 + $0x780] sm:$0xff]
    %v1539 = vld [vmem:[#allocation13 + $0x788] sm:$0xff]
    %v1540 = vld [vmem:[#allocation13 + $0x790] sm:$0xff]
    %v1541 = vld [vmem:[#allocation13 + $0x798] sm:$0xff]
    %v1542 = vld [vmem:[#allocation13 + $0x7a0] sm:$0xff]
    %v1543 = vld [vmem:[#allocation13 + $0x7a8] sm:$0xff]
    %v1544 = vld [vmem:[#allocation13 + $0x7b0] sm:$0xff]
    %v1545 = vld [vmem:[#allocation13 + $0x7b8] sm:$0xff]
    %v1546 = vld [vmem:[#allocation13 + $0x7c0] sm:$0xff]
    %v1547 = vld [vmem:[#allocation13 + $0x7c8] sm:$0xff]
    %v1548 = vld [vmem:[#allocation13 + $0x7d0] sm:$0xff]
    %v1549 = vld [vmem:[#allocation13 + $0x7d8] sm:$0xff]
    %v1550 = vld [vmem:[#allocation13 + $0x7e0] sm:$0xff]
    %v1551 = vld [vmem:[#allocation13 + $0x7e8] sm:$0xff]
    %v1552 = vld [vmem:[#allocation13 + $0x7f0] sm:$0xff]
    %v1553 = vld [vmem:[#allocation13 + $0x7f8] sm:$0xff]
    %v1554 = vld [vmem:[#allocation13 + $0x800] sm:$0xff]
    %v1555 = vld [vmem:[#allocation13 + $0x808] sm:$0xff]
    %v1556 = vld [vmem:[#allocation13 + $0x810] sm:$0xff]
    %v1557 = vld [vmem:[#allocation13 + $0x818] sm:$0xff]
    %v1558 = vld [vmem:[#allocation13 + $0x820] sm:$0xff]
    %v1559 = vld [vmem:[#allocation13 + $0x828] sm:$0xff]
    %v1560 = vld [vmem:[#allocation13 + $0x830] sm:$0xff]
    %v1561 = vld [vmem:[#allocation13 + $0x838] sm:$0xff]
    %v1562 = vld [vmem:[#allocation13 + $0x840] sm:$0xff]
    %v1563 = vld [vmem:[#allocation13 + $0x848] sm:$0xff]
    %v1564 = vld [vmem:[#allocation13 + $0x850] sm:$0xff]
    %v1565 = vld [vmem:[#allocation13 + $0x858] sm:$0xff]
    %v1566 = vld [vmem:[#allocation13 + $0x860] sm:$0xff]
    %v1567 = vld [vmem:[#allocation13 + $0x868] sm:$0xff]
    %v1568 = vld [vmem:[#allocation13 + $0x870] sm:$0xff]
    %v1569 = vld [vmem:[#allocation13 + $0x878] sm:$0xff]
    %v1570 = vld [vmem:[#allocation13 + $0x880] sm:$0xff]
    %v1571 = vld [vmem:[#allocation13 + $0x888] sm:$0xff]
    %v1572 = vld [vmem:[#allocation13 + $0x890] sm:$0xff]
    %v1573 = vld [vmem:[#allocation13 + $0x898] sm:$0xff]
    %v1574 = vld [vmem:[#allocation13 + $0x8a0] sm:$0xff]
    %v1575 = vld [vmem:[#allocation13 + $0x8a8] sm:$0xff]
    %v1576 = vld [vmem:[#allocation13 + $0x8b0] sm:$0xff]
    %v1577 = vld [vmem:[#allocation13 + $0x8b8] sm:$0xff]
    %v1578 = vld [vmem:[#allocation13 + $0x8c0] sm:$0xff]
    %v1579 = vld [vmem:[#allocation13 + $0x8c8] sm:$0xff]
    %v1580 = vld [vmem:[#allocation13 + $0x8d0] sm:$0xff]
    %v1581 = vld [vmem:[#allocation13 + $0x8d8] sm:$0xff]
    %v1582 = vld [vmem:[#allocation13 + $0x8e0] sm:$0xff]
    %v1583 = vld [vmem:[#allocation13 + $0x8e8] sm:$0xff]
    %v1584 = vld [vmem:[#allocation13 + $0x8f0] sm:$0xff]
    %v1585 = vld [vmem:[#allocation13 + $0x8f8] sm:$0xff]
    %v1586 = vld [vmem:[#allocation13 + $0x900] sm:$0xff]
    %v1587 = vld [vmem:[#allocation13 + $0x908] sm:$0xff]
    %v1588 = vld [vmem:[#allocation13 + $0x910] sm:$0xff]
    %v1589 = vld [vmem:[#allocation13 + $0x918] sm:$0xff]
    %v1590 = vld [vmem:[#allocation13 + $0x920] sm:$0xff]
    %v1591 = vld [vmem:[#allocation13 + $0x928] sm:$0xff]
    %v1592 = vld [vmem:[#allocation13 + $0x930] sm:$0xff]
    %v1593 = vld [vmem:[#allocation13 + $0x938] sm:$0xff]
    %v1594 = vld [vmem:[#allocation13 + $0x940] sm:$0xff]
    %v1595 = vld [vmem:[#allocation13 + $0x948] sm:$0xff]
    %v1596 = vld [vmem:[#allocation13 + $0x950] sm:$0xff]
    %v1597 = vld [vmem:[#allocation13 + $0x958] sm:$0xff]
    %v1598 = vld [vmem:[#allocation13 + $0x960] sm:$0xff]
    %v1599 = vld [vmem:[#allocation13 + $0x968] sm:$0xff]
    %v1600 = vld [vmem:[#allocation13 + $0x970] sm:$0xff]
    %v1601 = vld [vmem:[#allocation13 + $0x978] sm:$0xff]
    %v1602 = vld [vmem:[#allocation13 + $0x980] sm:$0xff]
    %v1603 = vld [vmem:[#allocation13 + $0x988] sm:$0xff]
    %v1604 = vld [vmem:[#allocation13 + $0x990] sm:$0xff]
    %v1605 = vld [vmem:[#allocation13 + $0x998] sm:$0xff]
    %v1606 = vld [vmem:[#allocation13 + $0x9a0] sm:$0xff]
    %v1607 = vld [vmem:[#allocation13 + $0x9a8] sm:$0xff]
    %v1608 = vld [vmem:[#allocation13 + $0x9b0] sm:$0xff]
    %v1609 = vld [vmem:[#allocation13 + $0x9b8] sm:$0xff]
    %v1610 = vld [vmem:[#allocation13 + $0x9c0] sm:$0xff]
    %v1611 = vld [vmem:[#allocation13 + $0x9c8] sm:$0xff]
    %v1612 = vld [vmem:[#allocation13 + $0x9d0] sm:$0xff]
    %v1613 = vld [vmem:[#allocation13 + $0x9d8] sm:$0xff]
    %v1614 = vld [vmem:[#allocation13 + $0x9e0] sm:$0xff]
    %v1615 = vld [vmem:[#allocation13 + $0x9e8] sm:$0xff]
    %v1616 = vld [vmem:[#allocation13 + $0x9f0] sm:$0xff]
    %v1617 = vld [vmem:[#allocation13 + $0x9f8] sm:$0xff]
    %v1618 = vld [vmem:[#allocation13 + $0xa00] sm:$0xff]
    %v1619 = vld [vmem:[#allocation13 + $0xa08] sm:$0xff]
    %v1620 = vld [vmem:[#allocation13 + $0xa10] sm:$0xff]
    %v1621 = vld [vmem:[#allocation13 + $0xa18] sm:$0xff]
    %v1622 = vld [vmem:[#allocation13 + $0xa20] sm:$0xff]
    %v1623 = vld [vmem:[#allocation13 + $0xa28] sm:$0xff]
    %v1624 = vld [vmem:[#allocation13 + $0xa30] sm:$0xff]
    %v1625 = vld [vmem:[#allocation13 + $0xa38] sm:$0xff]
    %v1626 = vld [vmem:[#allocation13 + $0xa40] sm:$0xff]
    %v1627 = vld [vmem:[#allocation13 + $0xa48] sm:$0xff]
    %v1628 = vld [vmem:[#allocation13 + $0xa50] sm:$0xff]
    %v1629 = vld [vmem:[#allocation13 + $0xa58] sm:$0xff]
    %v1630 = vld [vmem:[#allocation13 + $0xa60] sm:$0xff]
    %v1631 = vld [vmem:[#allocation13 + $0xa68] sm:$0xff]
    %v1632 = vld [vmem:[#allocation13 + $0xa70] sm:$0xff]
    %v1633 = vld [vmem:[#allocation13 + $0xa78] sm:$0xff]
    %v1634 = vld [vmem:[#allocation13 + $0xa80] sm:$0xff]
    %v1635 = vld [vmem:[#allocation13 + $0xa88] sm:$0xff]
    %v1636 = vld [vmem:[#allocation13 + $0xa90] sm:$0xff]
    %v1637 = vld [vmem:[#allocation13 + $0xa98] sm:$0xff]
    %v1638 = vld [vmem:[#allocation13 + $0xaa0] sm:$0xff]
    %v1639 = vld [vmem:[#allocation13 + $0xaa8] sm:$0xff]
    %v1640 = vld [vmem:[#allocation13 + $0xab0] sm:$0xff]
    %v1641 = vld [vmem:[#allocation13 + $0xab8] sm:$0xff]
    %v1642 = vld [vmem:[#allocation13 + $0xac0] sm:$0xff]
    %v1643 = vld [vmem:[#allocation13 + $0xac8] sm:$0xff]
    %v1644 = vld [vmem:[#allocation13 + $0xad0] sm:$0xff]
    %v1645 = vld [vmem:[#allocation13 + $0xad8] sm:$0xff]
    %v1646 = vld [vmem:[#allocation13 + $0xae0] sm:$0xff]
    %v1647 = vld [vmem:[#allocation13 + $0xae8] sm:$0xff]
    %v1648 = vld [vmem:[#allocation13 + $0xaf0] sm:$0xff]
    %v1649 = vld [vmem:[#allocation13 + $0xaf8] sm:$0xff]
    %v1650 = vld [vmem:[#allocation13 + $0xb00] sm:$0xff]
    %v1651 = vld [vmem:[#allocation13 + $0xb08] sm:$0xff]
    %v1652 = vld [vmem:[#allocation13 + $0xb10] sm:$0xff]
    %v1653 = vld [vmem:[#allocation13 + $0xb18] sm:$0xff]
    %v1654 = vld [vmem:[#allocation13 + $0xb20] sm:$0xff]
    %v1655 = vld [vmem:[#allocation13 + $0xb28] sm:$0xff]
    %v1656 = vld [vmem:[#allocation13 + $0xb30] sm:$0xff]
    %v1657 = vld [vmem:[#allocation13 + $0xb38] sm:$0xff]
    %v1658 = vld [vmem:[#allocation13 + $0xb40] sm:$0xff]
    %v1659 = vld [vmem:[#allocation13 + $0xb48] sm:$0xff]
    %v1660 = vld [vmem:[#allocation13 + $0xb50] sm:$0xff]
    %v1661 = vld [vmem:[#allocation13 + $0xb58] sm:$0xff]
    %v1662 = vld [vmem:[#allocation13 + $0xb60] sm:$0xff]
    %v1663 = vld [vmem:[#allocation13 + $0xb68] sm:$0xff]
    %v1664 = vld [vmem:[#allocation13 + $0xb70] sm:$0xff]
    %v1665 = vld [vmem:[#allocation13 + $0xb78] sm:$0xff]
    %v1666 = vld [vmem:[#allocation13 + $0xb80] sm:$0xff]
    %v1667 = vld [vmem:[#allocation13 + $0xb88] sm:$0xff]
    %v1668 = vld [vmem:[#allocation13 + $0xb90] sm:$0xff]
    %v1669 = vld [vmem:[#allocation13 + $0xb98] sm:$0xff]
    %v1670 = vld [vmem:[#allocation13 + $0xba0] sm:$0xff]
    %v1671 = vld [vmem:[#allocation13 + $0xba8] sm:$0xff]
    %v1672 = vld [vmem:[#allocation13 + $0xbb0] sm:$0xff]
    %v1673 = vld [vmem:[#allocation13 + $0xbb8] sm:$0xff]
    %v1674 = vld [vmem:[#allocation13 + $0xbc0] sm:$0xff]
    %v1675 = vld [vmem:[#allocation13 + $0xbc8] sm:$0xff]
    %v1676 = vld [vmem:[#allocation13 + $0xbd0] sm:$0xff]
    %v1677 = vld [vmem:[#allocation13 + $0xbd8] sm:$0xff]
    %v1678 = vld [vmem:[#allocation13 + $0xbe0] sm:$0xff]
    %v1679 = vld [vmem:[#allocation13 + $0xbe8] sm:$0xff]
    %v1680 = vld [vmem:[#allocation13 + $0xbf0] sm:$0xff]
    %v1681 = vld [vmem:[#allocation13 + $0xbf8] sm:$0xff]
    %v1682 = vld [vmem:[#allocation13 + $0xc00] sm:$0xff]
    %v1683 = vld [vmem:[#allocation13 + $0xc08] sm:$0xff]
    %v1684 = vld [vmem:[#allocation13 + $0xc10] sm:$0xff]
    %v1685 = vld [vmem:[#allocation13 + $0xc18] sm:$0xff]
    %v1686 = vld [vmem:[#allocation13 + $0xc20] sm:$0xff]
    %v1687 = vld [vmem:[#allocation13 + $0xc28] sm:$0xff]
    %v1688 = vld [vmem:[#allocation13 + $0xc30] sm:$0xff]
    %v1689 = vld [vmem:[#allocation13 + $0xc38] sm:$0xff]
    %v1690 = vld [vmem:[#allocation13 + $0xc40] sm:$0xff]
    %v1691 = vld [vmem:[#allocation13 + $0xc48] sm:$0xff]
    %v1692 = vld [vmem:[#allocation13 + $0xc50] sm:$0xff]
    %v1693 = vld [vmem:[#allocation13 + $0xc58] sm:$0xff]
    %v1694 = vld [vmem:[#allocation13 + $0xc60] sm:$0xff]
    %v1695 = vld [vmem:[#allocation13 + $0xc68] sm:$0xff]
    %v1696 = vld [vmem:[#allocation13 + $0xc70] sm:$0xff]
    %v1697 = vld [vmem:[#allocation13 + $0xc78] sm:$0xff]
    %v1698 = vld [vmem:[#allocation13 + $0xc80] sm:$0xff]
    %v1699 = vld [vmem:[#allocation13 + $0xc88] sm:$0xff]
    %v1700 = vld [vmem:[#allocation13 + $0xc90] sm:$0xff]
    %v1701 = vld [vmem:[#allocation13 + $0xc98] sm:$0xff]
    %v1702 = vld [vmem:[#allocation13 + $0xca0] sm:$0xff]
    %v1703 = vld [vmem:[#allocation13 + $0xca8] sm:$0xff]
    %v1704 = vld [vmem:[#allocation13 + $0xcb0] sm:$0xff]
    %v1705 = vld [vmem:[#allocation13 + $0xcb8] sm:$0xff]
    %v1706 = vld [vmem:[#allocation13 + $0xcc0] sm:$0xff]
    %v1707 = vld [vmem:[#allocation13 + $0xcc8] sm:$0xff]
    %v1708 = vld [vmem:[#allocation13 + $0xcd0] sm:$0xff]
    %v1709 = vld [vmem:[#allocation13 + $0xcd8] sm:$0xff]
    %v1710 = vld [vmem:[#allocation13 + $0xce0] sm:$0xff]
    %v1711 = vld [vmem:[#allocation13 + $0xce8] sm:$0xff]
    %v1712 = vld [vmem:[#allocation13 + $0xcf0] sm:$0xff]
    %v1713 = vld [vmem:[#allocation13 + $0xcf8] sm:$0xff]
    %v1714 = vld [vmem:[#allocation13 + $0xd00] sm:$0xff]
    %v1715 = vld [vmem:[#allocation13 + $0xd08] sm:$0xff]
    %v1716 = vld [vmem:[#allocation13 + $0xd10] sm:$0xff]
    %v1717 = vld [vmem:[#allocation13 + $0xd18] sm:$0xff]
    %v1718 = vld [vmem:[#allocation13 + $0xd20] sm:$0xff]
    %v1719 = vld [vmem:[#allocation13 + $0xd28] sm:$0xff]
    %v1720 = vld [vmem:[#allocation13 + $0xd30] sm:$0xff]
    %v1721 = vld [vmem:[#allocation13 + $0xd38] sm:$0xff]
    %v1722 = vld [vmem:[#allocation13 + $0xd40] sm:$0xff]
    %v1723 = vld [vmem:[#allocation13 + $0xd48] sm:$0xff]
    %v1724 = vld [vmem:[#allocation13 + $0xd50] sm:$0xff]
    %v1725 = vld [vmem:[#allocation13 + $0xd58] sm:$0xff]
    %v1726 = vld [vmem:[#allocation13 + $0xd60] sm:$0xff]
    %v1727 = vld [vmem:[#allocation13 + $0xd68] sm:$0xff]
    %v1728 = vld [vmem:[#allocation13 + $0xd70] sm:$0xff]
    %v1729 = vld [vmem:[#allocation13 + $0xd78] sm:$0xff]
    %v1730 = vld [vmem:[#allocation13 + $0xd80] sm:$0xff]
    %v1731 = vld [vmem:[#allocation13 + $0xd88] sm:$0xff]
    %v1732 = vld [vmem:[#allocation13 + $0xd90] sm:$0xff]
    %v1733 = vld [vmem:[#allocation13 + $0xd98] sm:$0xff]
    %v1734 = vld [vmem:[#allocation13 + $0xda0] sm:$0xff]
    %v1735 = vld [vmem:[#allocation13 + $0xda8] sm:$0xff]
    %v1736 = vld [vmem:[#allocation13 + $0xdb0] sm:$0xff]
    %v1737 = vld [vmem:[#allocation13 + $0xdb8] sm:$0xff]
    %v1738 = vld [vmem:[#allocation13 + $0xdc0] sm:$0xff]
    %v1739 = vld [vmem:[#allocation13 + $0xdc8] sm:$0xff]
    %v1740 = vld [vmem:[#allocation13 + $0xdd0] sm:$0xff]
    %v1741 = vld [vmem:[#allocation13 + $0xdd8] sm:$0xff]
    %v1742 = vld [vmem:[#allocation13 + $0xde0] sm:$0xff]
    %v1743 = vld [vmem:[#allocation13 + $0xde8] sm:$0xff]
    %v1744 = vld [vmem:[#allocation13 + $0xdf0] sm:$0xff]
    %v1745 = vld [vmem:[#allocation13 + $0xdf8] sm:$0xff]
    %v1746 = vld [vmem:[#allocation13 + $0xe00] sm:$0xff]
    %v1747 = vld [vmem:[#allocation13 + $0xe08] sm:$0xff]
    %v1748 = vld [vmem:[#allocation13 + $0xe10] sm:$0xff]
    %v1749 = vld [vmem:[#allocation13 + $0xe18] sm:$0xff]
    %v1750 = vld [vmem:[#allocation13 + $0xe20] sm:$0xff]
    %v1751 = vld [vmem:[#allocation13 + $0xe28] sm:$0xff]
    %v1752 = vld [vmem:[#allocation13 + $0xe30] sm:$0xff]
    %v1753 = vld [vmem:[#allocation13 + $0xe38] sm:$0xff]
    %v1754 = vld [vmem:[#allocation13 + $0xe40] sm:$0xff]
    %v1755 = vld [vmem:[#allocation13 + $0xe48] sm:$0xff]
    %v1756 = vld [vmem:[#allocation13 + $0xe50] sm:$0xff]
    %v1757 = vld [vmem:[#allocation13 + $0xe58] sm:$0xff]
    %v1758 = vld [vmem:[#allocation13 + $0xe60] sm:$0xff]
    %v1759 = vld [vmem:[#allocation13 + $0xe68] sm:$0xff]
    %v1760 = vld [vmem:[#allocation13 + $0xe70] sm:$0xff]
    %v1761 = vld [vmem:[#allocation13 + $0xe78] sm:$0xff]
    %v1762 = vld [vmem:[#allocation13 + $0xe80] sm:$0xff]
    %v1763 = vld [vmem:[#allocation13 + $0xe88] sm:$0xff]
    %v1764 = vld [vmem:[#allocation13 + $0xe90] sm:$0xff]
    %v1765 = vld [vmem:[#allocation13 + $0xe98] sm:$0xff]
    %v1766 = vld [vmem:[#allocation13 + $0xea0] sm:$0xff]
    %v1767 = vld [vmem:[#allocation13 + $0xea8] sm:$0xff]
    %v1768 = vld [vmem:[#allocation13 + $0xeb0] sm:$0xff]
    %v1769 = vld [vmem:[#allocation13 + $0xeb8] sm:$0xff]
    %v1770 = vld [vmem:[#allocation13 + $0xec0] sm:$0xff]
    %v1771 = vld [vmem:[#allocation13 + $0xec8] sm:$0xff]
    %v1772 = vld [vmem:[#allocation13 + $0xed0] sm:$0xff]
    %v1773 = vld [vmem:[#allocation13 + $0xed8] sm:$0xff]
    %v1774 = vld [vmem:[#allocation13 + $0xee0] sm:$0xff]
    %v1775 = vld [vmem:[#allocation13 + $0xee8] sm:$0xff]
    %v1776 = vld [vmem:[#allocation13 + $0xef0] sm:$0xff]
    %v1777 = vld [vmem:[#allocation13 + $0xef8] sm:$0xff]
    %v1778 = vld [vmem:[#allocation13 + $0xf00] sm:$0xff]
    %v1779 = vld [vmem:[#allocation13 + $0xf08] sm:$0xff]
    %v1780 = vld [vmem:[#allocation13 + $0xf10] sm:$0xff]
    %v1781 = vld [vmem:[#allocation13 + $0xf18] sm:$0xff]
    %v1782 = vld [vmem:[#allocation13 + $0xf20] sm:$0xff]
    %v1783 = vld [vmem:[#allocation13 + $0xf28] sm:$0xff]
    %v1784 = vld [vmem:[#allocation13 + $0xf30] sm:$0xff]
    %v1785 = vld [vmem:[#allocation13 + $0xf38] sm:$0xff]
    %v1786 = vld [vmem:[#allocation13 + $0xf40] sm:$0xff]
    %v1787 = vld [vmem:[#allocation13 + $0xf48] sm:$0xff]
    %v1788 = vld [vmem:[#allocation13 + $0xf50] sm:$0xff]
    %v1789 = vld [vmem:[#allocation13 + $0xf58] sm:$0xff]
    %v1790 = vld [vmem:[#allocation13 + $0xf60] sm:$0xff]
    %v1791 = vld [vmem:[#allocation13 + $0xf68] sm:$0xff]
    %v1792 = vld [vmem:[#allocation13 + $0xf70] sm:$0xff]
    %v1793 = vld [vmem:[#allocation13 + $0xf78] sm:$0xff]
    %v1794 = vld [vmem:[#allocation13 + $0xf80] sm:$0xff]
    %v1795 = vld [vmem:[#allocation13 + $0xf88] sm:$0xff]
    %v1796 = vld [vmem:[#allocation13 + $0xf90] sm:$0xff]
    %v1797 = vld [vmem:[#allocation13 + $0xf98] sm:$0xff]
    %v1798 = vld [vmem:[#allocation13 + $0xfa0] sm:$0xff]
    %v1799 = vld [vmem:[#allocation13 + $0xfa8] sm:$0xff]
    %v1800 = vld [vmem:[#allocation13 + $0xfb0] sm:$0xff]
    %v1801 = vld [vmem:[#allocation13 + $0xfb8] sm:$0xff]
    %v1802 = vld [vmem:[#allocation13 + $0xfc0] sm:$0xff]
    %v1803 = vld [vmem:[#allocation13 + $0xfc8] sm:$0xff]
    %v1804 = vld [vmem:[#allocation13 + $0xfd0] sm:$0xff]
    %v1805 = vld [vmem:[#allocation13 + $0xfd8] sm:$0xff]
    %v1806 = vld [vmem:[#allocation13 + $0xfe0] sm:$0xff]
    %v1807 = vld [vmem:[#allocation13 + $0xfe8] sm:$0xff]
    %v1808 = vld [vmem:[#allocation13 + $0xff0] sm:$0xff]
    %v1809 = vld [vmem:[#allocation13 + $0xff8] sm:$0xff]
    %v1810 = vld [vmem:[#allocation14] sm:$0xff]
    %v1812 = vlaneseq
    %v1813 = vshrl.u32 %v1812, 7
    %v1814 = vsub.s32 0, %v1813
    %v1815 = vrot.slane %v1810, %v1814
    %v1816 = vlaneseq
    %v1817 = vshrl.u32 %v1816, 7
    %v1818 = vsub.s32 1, %v1817
    %v1819 = vrot.slane %v1810, %v1818
    %v1820 = vlaneseq
    %v1821 = vshrl.u32 %v1820, 7
    %v1822 = vsub.s32 2, %v1821
    %v1823 = vrot.slane %v1810, %v1822
    %v1824 = vlaneseq
    %v1825 = vshrl.u32 %v1824, 7
    %v1826 = vsub.s32 3, %v1825
    %v1827 = vrot.slane %v1810, %v1826
    %v1828 = vlaneseq
    %v1829 = vshrl.u32 %v1828, 7
    %v1830 = vsub.s32 4, %v1829
    %v1831 = vrot.slane %v1810, %v1830
    %v1832 = vlaneseq
    %v1833 = vshrl.u32 %v1832, 7
    %v1834 = vsub.s32 5, %v1833
    %v1835 = vrot.slane %v1810, %v1834
    %v1836 = vlaneseq
    %v1837 = vshrl.u32 %v1836, 7
    %v1838 = vsub.s32 6, %v1837
    %v1839 = vrot.slane %v1810, %v1838
    %v1840 = vlaneseq
    %v1841 = vshrl.u32 %v1840, 7
    %v1842 = vsub.s32 7, %v1841
    %v1843 = vrot.slane %v1810, %v1842
    %v2364 = vunpack.c.l.b16 %v1298
    %v2365 = vunpack.c.h.b16 %v1298
    %v2366 = vunpack.c.l.b16 %v1299
    %v2367 = vunpack.c.h.b16 %v1299
    %v2368 = vunpack.c.l.b16 %v1300
    %v2369 = vunpack.c.h.b16 %v1300
    %v2370 = vunpack.c.l.b16 %v1301
    %v2371 = vunpack.c.h.b16 %v1301
    %v2372 = vunpack.c.l.b16 %v1302
    %v2373 = vunpack.c.h.b16 %v1302
    %v2374 = vunpack.c.l.b16 %v1303
    %v2375 = vunpack.c.h.b16 %v1303
    %v2376 = vunpack.c.l.b16 %v1304
    %v2377 = vunpack.c.h.b16 %v1304
    %v2378 = vunpack.c.l.b16 %v1305
    %v2379 = vunpack.c.h.b16 %v1305
    %v2380 = vunpack.c.l.b16 %v1306
    %v2381 = vunpack.c.h.b16 %v1306
    %v2382 = vunpack.c.l.b16 %v1307
    %v2383 = vunpack.c.h.b16 %v1307
    %v2384 = vunpack.c.l.b16 %v1308
    %v2385 = vunpack.c.h.b16 %v1308
    %v2386 = vunpack.c.l.b16 %v1309
    %v2387 = vunpack.c.h.b16 %v1309
    %v2388 = vunpack.c.l.b16 %v1310
    %v2389 = vunpack.c.h.b16 %v1310
    %v2390 = vunpack.c.l.b16 %v1311
    %v2391 = vunpack.c.h.b16 %v1311
    %v2392 = vunpack.c.l.b16 %v1312
    %v2393 = vunpack.c.h.b16 %v1312
    %v2394 = vunpack.c.l.b16 %v1313
    %v2395 = vunpack.c.h.b16 %v1313
    %v2396 = vunpack.c.l.b16 %v1314
    %v2397 = vunpack.c.h.b16 %v1314
    %v2398 = vunpack.c.l.b16 %v1315
    %v2399 = vunpack.c.h.b16 %v1315
    %v2400 = vunpack.c.l.b16 %v1316
    %v2401 = vunpack.c.h.b16 %v1316
    %v2402 = vunpack.c.l.b16 %v1317
    %v2403 = vunpack.c.h.b16 %v1317
    %v2404 = vunpack.c.l.b16 %v1318
    %v2405 = vunpack.c.h.b16 %v1318
    %v2406 = vunpack.c.l.b16 %v1319
    %v2407 = vunpack.c.h.b16 %v1319
    %v2408 = vunpack.c.l.b16 %v1320
    %v2409 = vunpack.c.h.b16 %v1320
    %v2410 = vunpack.c.l.b16 %v1321
    %v2411 = vunpack.c.h.b16 %v1321
    %v2412 = vunpack.c.l.b16 %v1322
    %v2413 = vunpack.c.h.b16 %v1322
    %v2414 = vunpack.c.l.b16 %v1323
    %v2415 = vunpack.c.h.b16 %v1323
    %v2416 = vunpack.c.l.b16 %v1324
    %v2417 = vunpack.c.h.b16 %v1324
    %v2418 = vunpack.c.l.b16 %v1325
    %v2419 = vunpack.c.h.b16 %v1325
    %v2420 = vunpack.c.l.b16 %v1326
    %v2421 = vunpack.c.h.b16 %v1326
    %v2422 = vunpack.c.l.b16 %v1327
    %v2423 = vunpack.c.h.b16 %v1327
    %v2424 = vunpack.c.l.b16 %v1328
    %v2425 = vunpack.c.h.b16 %v1328
    %v2426 = vunpack.c.l.b16 %v1329
    %v2427 = vunpack.c.h.b16 %v1329
    %v2428 = vunpack.c.l.b16 %v1330
    %v2429 = vunpack.c.h.b16 %v1330
    %v2430 = vunpack.c.l.b16 %v1331
    %v2431 = vunpack.c.h.b16 %v1331
    %v2432 = vunpack.c.l.b16 %v1332
    %v2433 = vunpack.c.h.b16 %v1332
    %v2434 = vunpack.c.l.b16 %v1333
    %v2435 = vunpack.c.h.b16 %v1333
    %v2436 = vunpack.c.l.b16 %v1334
    %v2437 = vunpack.c.h.b16 %v1334
    %v2438 = vunpack.c.l.b16 %v1335
    %v2439 = vunpack.c.h.b16 %v1335
    %v2440 = vunpack.c.l.b16 %v1336
    %v2441 = vunpack.c.h.b16 %v1336
    %v2442 = vunpack.c.l.b16 %v1337
    %v2443 = vunpack.c.h.b16 %v1337
    %v2444 = vunpack.c.l.b16 %v1338
    %v2445 = vunpack.c.h.b16 %v1338
    %v2446 = vunpack.c.l.b16 %v1339
    %v2447 = vunpack.c.h.b16 %v1339
    %v2448 = vunpack.c.l.b16 %v1340
    %v2449 = vunpack.c.h.b16 %v1340
    %v2450 = vunpack.c.l.b16 %v1341
    %v2451 = vunpack.c.h.b16 %v1341
    %v2452 = vunpack.c.l.b16 %v1342
    %v2453 = vunpack.c.h.b16 %v1342
    %v2454 = vunpack.c.l.b16 %v1343
    %v2455 = vunpack.c.h.b16 %v1343
    %v2456 = vunpack.c.l.b16 %v1344
    %v2457 = vunpack.c.h.b16 %v1344
    %v2458 = vunpack.c.l.b16 %v1345
    %v2459 = vunpack.c.h.b16 %v1345
    %v2460 = vunpack.c.l.b16 %v1346
    %v2461 = vunpack.c.h.b16 %v1346
    %v2462 = vunpack.c.l.b16 %v1347
    %v2463 = vunpack.c.h.b16 %v1347
    %v2464 = vunpack.c.l.b16 %v1348
    %v2465 = vunpack.c.h.b16 %v1348
    %v2466 = vunpack.c.l.b16 %v1349
    %v2467 = vunpack.c.h.b16 %v1349
    %v2468 = vunpack.c.l.b16 %v1350
    %v2469 = vunpack.c.h.b16 %v1350
    %v2470 = vunpack.c.l.b16 %v1351
    %v2471 = vunpack.c.h.b16 %v1351
    %v2472 = vunpack.c.l.b16 %v1352
    %v2473 = vunpack.c.h.b16 %v1352
    %v2474 = vunpack.c.l.b16 %v1353
    %v2475 = vunpack.c.h.b16 %v1353
    %v2476 = vunpack.c.l.b16 %v1354
    %v2477 = vunpack.c.h.b16 %v1354
    %v2478 = vunpack.c.l.b16 %v1355
    %v2479 = vunpack.c.h.b16 %v1355
    %v2480 = vunpack.c.l.b16 %v1356
    %v2481 = vunpack.c.h.b16 %v1356
    %v2482 = vunpack.c.l.b16 %v1357
    %v2483 = vunpack.c.h.b16 %v1357
    %v2484 = vunpack.c.l.b16 %v1358
    %v2485 = vunpack.c.h.b16 %v1358
    %v2486 = vunpack.c.l.b16 %v1359
    %v2487 = vunpack.c.h.b16 %v1359
    %v2488 = vunpack.c.l.b16 %v1360
    %v2489 = vunpack.c.h.b16 %v1360
    %v2490 = vunpack.c.l.b16 %v1361
    %v2491 = vunpack.c.h.b16 %v1361
    %v2492 = vunpack.c.l.b16 %v1362
    %v2493 = vunpack.c.h.b16 %v1362
    %v2494 = vunpack.c.l.b16 %v1363
    %v2495 = vunpack.c.h.b16 %v1363
    %v2496 = vunpack.c.l.b16 %v1364
    %v2497 = vunpack.c.h.b16 %v1364
    %v2498 = vunpack.c.l.b16 %v1365
    %v2499 = vunpack.c.h.b16 %v1365
    %v2500 = vunpack.c.l.b16 %v1366
    %v2501 = vunpack.c.h.b16 %v1366
    %v2502 = vunpack.c.l.b16 %v1367
    %v2503 = vunpack.c.h.b16 %v1367
    %v2504 = vunpack.c.l.b16 %v1368
    %v2505 = vunpack.c.h.b16 %v1368
    %v2506 = vunpack.c.l.b16 %v1369
    %v2507 = vunpack.c.h.b16 %v1369
    %v2508 = vunpack.c.l.b16 %v1370
    %v2509 = vunpack.c.h.b16 %v1370
    %v2510 = vunpack.c.l.b16 %v1371
    %v2511 = vunpack.c.h.b16 %v1371
    %v2512 = vunpack.c.l.b16 %v1372
    %v2513 = vunpack.c.h.b16 %v1372
    %v2514 = vunpack.c.l.b16 %v1373
    %v2515 = vunpack.c.h.b16 %v1373
    %v2516 = vunpack.c.l.b16 %v1374
    %v2517 = vunpack.c.h.b16 %v1374
    %v2518 = vunpack.c.l.b16 %v1375
    %v2519 = vunpack.c.h.b16 %v1375
    %v2520 = vunpack.c.l.b16 %v1376
    %v2521 = vunpack.c.h.b16 %v1376
    %v2522 = vunpack.c.l.b16 %v1377
    %v2523 = vunpack.c.h.b16 %v1377
    %v2524 = vunpack.c.l.b16 %v1378
    %v2525 = vunpack.c.h.b16 %v1378
    %v2526 = vunpack.c.l.b16 %v1379
    %v2527 = vunpack.c.h.b16 %v1379
    %v2528 = vunpack.c.l.b16 %v1380
    %v2529 = vunpack.c.h.b16 %v1380
    %v2530 = vunpack.c.l.b16 %v1381
    %v2531 = vunpack.c.h.b16 %v1381
    %v2532 = vunpack.c.l.b16 %v1382
    %v2533 = vunpack.c.h.b16 %v1382
    %v2534 = vunpack.c.l.b16 %v1383
    %v2535 = vunpack.c.h.b16 %v1383
    %v2536 = vunpack.c.l.b16 %v1384
    %v2537 = vunpack.c.h.b16 %v1384
    %v2538 = vunpack.c.l.b16 %v1385
    %v2539 = vunpack.c.h.b16 %v1385
    %v2540 = vunpack.c.l.b16 %v1386
    %v2541 = vunpack.c.h.b16 %v1386
    %v2542 = vunpack.c.l.b16 %v1387
    %v2543 = vunpack.c.h.b16 %v1387
    %v2544 = vunpack.c.l.b16 %v1388
    %v2545 = vunpack.c.h.b16 %v1388
    %v2546 = vunpack.c.l.b16 %v1389
    %v2547 = vunpack.c.h.b16 %v1389
    %v2548 = vunpack.c.l.b16 %v1390
    %v2549 = vunpack.c.h.b16 %v1390
    %v2550 = vunpack.c.l.b16 %v1391
    %v2551 = vunpack.c.h.b16 %v1391
    %v2552 = vunpack.c.l.b16 %v1392
    %v2553 = vunpack.c.h.b16 %v1392
    %v2554 = vunpack.c.l.b16 %v1393
    %v2555 = vunpack.c.h.b16 %v1393
    %v2556 = vunpack.c.l.b16 %v1394
    %v2557 = vunpack.c.h.b16 %v1394
    %v2558 = vunpack.c.l.b16 %v1395
    %v2559 = vunpack.c.h.b16 %v1395
    %v2560 = vunpack.c.l.b16 %v1396
    %v2561 = vunpack.c.h.b16 %v1396
    %v2562 = vunpack.c.l.b16 %v1397
    %v2563 = vunpack.c.h.b16 %v1397
    %v2564 = vunpack.c.l.b16 %v1398
    %v2565 = vunpack.c.h.b16 %v1398
    %v2566 = vunpack.c.l.b16 %v1399
    %v2567 = vunpack.c.h.b16 %v1399
    %v2568 = vunpack.c.l.b16 %v1400
    %v2569 = vunpack.c.h.b16 %v1400
    %v2570 = vunpack.c.l.b16 %v1401
    %v2571 = vunpack.c.h.b16 %v1401
    %v2572 = vunpack.c.l.b16 %v1402
    %v2573 = vunpack.c.h.b16 %v1402
    %v2574 = vunpack.c.l.b16 %v1403
    %v2575 = vunpack.c.h.b16 %v1403
    %v2576 = vunpack.c.l.b16 %v1404
    %v2577 = vunpack.c.h.b16 %v1404
    %v2578 = vunpack.c.l.b16 %v1405
    %v2579 = vunpack.c.h.b16 %v1405
    %v2580 = vunpack.c.l.b16 %v1406
    %v2581 = vunpack.c.h.b16 %v1406
    %v2582 = vunpack.c.l.b16 %v1407
    %v2583 = vunpack.c.h.b16 %v1407
    %v2584 = vunpack.c.l.b16 %v1408
    %v2585 = vunpack.c.h.b16 %v1408
    %v2586 = vunpack.c.l.b16 %v1409
    %v2587 = vunpack.c.h.b16 %v1409
    %v2588 = vunpack.c.l.b16 %v1410
    %v2589 = vunpack.c.h.b16 %v1410
    %v2590 = vunpack.c.l.b16 %v1411
    %v2591 = vunpack.c.h.b16 %v1411
    %v2592 = vunpack.c.l.b16 %v1412
    %v2593 = vunpack.c.h.b16 %v1412
    %v2594 = vunpack.c.l.b16 %v1413
    %v2595 = vunpack.c.h.b16 %v1413
    %v2596 = vunpack.c.l.b16 %v1414
    %v2597 = vunpack.c.h.b16 %v1414
    %v2598 = vunpack.c.l.b16 %v1415
    %v2599 = vunpack.c.h.b16 %v1415
    %v2600 = vunpack.c.l.b16 %v1416
    %v2601 = vunpack.c.h.b16 %v1416
    %v2602 = vunpack.c.l.b16 %v1417
    %v2603 = vunpack.c.h.b16 %v1417
    %v2604 = vunpack.c.l.b16 %v1418
    %v2605 = vunpack.c.h.b16 %v1418
    %v2606 = vunpack.c.l.b16 %v1419
    %v2607 = vunpack.c.h.b16 %v1419
    %v2608 = vunpack.c.l.b16 %v1420
    %v2609 = vunpack.c.h.b16 %v1420
    %v2610 = vunpack.c.l.b16 %v1421
    %v2611 = vunpack.c.h.b16 %v1421
    %v2612 = vunpack.c.l.b16 %v1422
    %v2613 = vunpack.c.h.b16 %v1422
    %v2614 = vunpack.c.l.b16 %v1423
    %v2615 = vunpack.c.h.b16 %v1423
    %v2616 = vunpack.c.l.b16 %v1424
    %v2617 = vunpack.c.h.b16 %v1424
    %v2618 = vunpack.c.l.b16 %v1425
    %v2619 = vunpack.c.h.b16 %v1425
    %v2620 = vunpack.c.l.b16 %v1426
    %v2621 = vunpack.c.h.b16 %v1426
    %v2622 = vunpack.c.l.b16 %v1427
    %v2623 = vunpack.c.h.b16 %v1427
    %v2624 = vunpack.c.l.b16 %v1428
    %v2625 = vunpack.c.h.b16 %v1428
    %v2626 = vunpack.c.l.b16 %v1429
    %v2627 = vunpack.c.h.b16 %v1429
    %v2628 = vunpack.c.l.b16 %v1430
    %v2629 = vunpack.c.h.b16 %v1430
    %v2630 = vunpack.c.l.b16 %v1431
    %v2631 = vunpack.c.h.b16 %v1431
    %v2632 = vunpack.c.l.b16 %v1432
    %v2633 = vunpack.c.h.b16 %v1432
    %v2634 = vunpack.c.l.b16 %v1433
    %v2635 = vunpack.c.h.b16 %v1433
    %v2636 = vunpack.c.l.b16 %v1434
    %v2637 = vunpack.c.h.b16 %v1434
    %v2638 = vunpack.c.l.b16 %v1435
    %v2639 = vunpack.c.h.b16 %v1435
    %v2640 = vunpack.c.l.b16 %v1436
    %v2641 = vunpack.c.h.b16 %v1436
    %v2642 = vunpack.c.l.b16 %v1437
    %v2643 = vunpack.c.h.b16 %v1437
    %v2644 = vunpack.c.l.b16 %v1438
    %v2645 = vunpack.c.h.b16 %v1438
    %v2646 = vunpack.c.l.b16 %v1439
    %v2647 = vunpack.c.h.b16 %v1439
    %v2648 = vunpack.c.l.b16 %v1440
    %v2649 = vunpack.c.h.b16 %v1440
    %v2650 = vunpack.c.l.b16 %v1441
    %v2651 = vunpack.c.h.b16 %v1441
    %v2652 = vunpack.c.l.b16 %v1442
    %v2653 = vunpack.c.h.b16 %v1442
    %v2654 = vunpack.c.l.b16 %v1443
    %v2655 = vunpack.c.h.b16 %v1443
    %v2656 = vunpack.c.l.b16 %v1444
    %v2657 = vunpack.c.h.b16 %v1444
    %v2658 = vunpack.c.l.b16 %v1445
    %v2659 = vunpack.c.h.b16 %v1445
    %v2660 = vunpack.c.l.b16 %v1446
    %v2661 = vunpack.c.h.b16 %v1446
    %v2662 = vunpack.c.l.b16 %v1447
    %v2663 = vunpack.c.h.b16 %v1447
    %v2664 = vunpack.c.l.b16 %v1448
    %v2665 = vunpack.c.h.b16 %v1448
    %v2666 = vunpack.c.l.b16 %v1449
    %v2667 = vunpack.c.h.b16 %v1449
    %v2668 = vunpack.c.l.b16 %v1450
    %v2669 = vunpack.c.h.b16 %v1450
    %v2670 = vunpack.c.l.b16 %v1451
    %v2671 = vunpack.c.h.b16 %v1451
    %v2672 = vunpack.c.l.b16 %v1452
    %v2673 = vunpack.c.h.b16 %v1452
    %v2674 = vunpack.c.l.b16 %v1453
    %v2675 = vunpack.c.h.b16 %v1453
    %v2676 = vunpack.c.l.b16 %v1454
    %v2677 = vunpack.c.h.b16 %v1454
    %v2678 = vunpack.c.l.b16 %v1455
    %v2679 = vunpack.c.h.b16 %v1455
    %v2680 = vunpack.c.l.b16 %v1456
    %v2681 = vunpack.c.h.b16 %v1456
    %v2682 = vunpack.c.l.b16 %v1457
    %v2683 = vunpack.c.h.b16 %v1457
    %v2684 = vunpack.c.l.b16 %v1458
    %v2685 = vunpack.c.h.b16 %v1458
    %v2686 = vunpack.c.l.b16 %v1459
    %v2687 = vunpack.c.h.b16 %v1459
    %v2688 = vunpack.c.l.b16 %v1460
    %v2689 = vunpack.c.h.b16 %v1460
    %v2690 = vunpack.c.l.b16 %v1461
    %v2691 = vunpack.c.h.b16 %v1461
    %v2692 = vunpack.c.l.b16 %v1462
    %v2693 = vunpack.c.h.b16 %v1462
    %v2694 = vunpack.c.l.b16 %v1463
    %v2695 = vunpack.c.h.b16 %v1463
    %v2696 = vunpack.c.l.b16 %v1464
    %v2697 = vunpack.c.h.b16 %v1464
    %v2698 = vunpack.c.l.b16 %v1465
    %v2699 = vunpack.c.h.b16 %v1465
    %v2700 = vunpack.c.l.b16 %v1466
    %v2701 = vunpack.c.h.b16 %v1466
    %v2702 = vunpack.c.l.b16 %v1467
    %v2703 = vunpack.c.h.b16 %v1467
    %v2704 = vunpack.c.l.b16 %v1468
    %v2705 = vunpack.c.h.b16 %v1468
    %v2706 = vunpack.c.l.b16 %v1469
    %v2707 = vunpack.c.h.b16 %v1469
    %v2708 = vunpack.c.l.b16 %v1470
    %v2709 = vunpack.c.h.b16 %v1470
    %v2710 = vunpack.c.l.b16 %v1471
    %v2711 = vunpack.c.h.b16 %v1471
    %v2712 = vunpack.c.l.b16 %v1472
    %v2713 = vunpack.c.h.b16 %v1472
    %v2714 = vunpack.c.l.b16 %v1473
    %v2715 = vunpack.c.h.b16 %v1473
    %v2716 = vunpack.c.l.b16 %v1474
    %v2717 = vunpack.c.h.b16 %v1474
    %v2718 = vunpack.c.l.b16 %v1475
    %v2719 = vunpack.c.h.b16 %v1475
    %v2720 = vunpack.c.l.b16 %v1476
    %v2721 = vunpack.c.h.b16 %v1476
    %v2722 = vunpack.c.l.b16 %v1477
    %v2723 = vunpack.c.h.b16 %v1477
    %v2724 = vunpack.c.l.b16 %v1478
    %v2725 = vunpack.c.h.b16 %v1478
    %v2726 = vunpack.c.l.b16 %v1479
    %v2727 = vunpack.c.h.b16 %v1479
    %v2728 = vunpack.c.l.b16 %v1480
    %v2729 = vunpack.c.h.b16 %v1480
    %v2730 = vunpack.c.l.b16 %v1481
    %v2731 = vunpack.c.h.b16 %v1481
    %v2732 = vunpack.c.l.b16 %v1482
    %v2733 = vunpack.c.h.b16 %v1482
    %v2734 = vunpack.c.l.b16 %v1483
    %v2735 = vunpack.c.h.b16 %v1483
    %v2736 = vunpack.c.l.b16 %v1484
    %v2737 = vunpack.c.h.b16 %v1484
    %v2738 = vunpack.c.l.b16 %v1485
    %v2739 = vunpack.c.h.b16 %v1485
    %v2740 = vunpack.c.l.b16 %v1486
    %v2741 = vunpack.c.h.b16 %v1486
    %v2742 = vunpack.c.l.b16 %v1487
    %v2743 = vunpack.c.h.b16 %v1487
    %v2744 = vunpack.c.l.b16 %v1488
    %v2745 = vunpack.c.h.b16 %v1488
    %v2746 = vunpack.c.l.b16 %v1489
    %v2747 = vunpack.c.h.b16 %v1489
    %v2748 = vunpack.c.l.b16 %v1490
    %v2749 = vunpack.c.h.b16 %v1490
    %v2750 = vunpack.c.l.b16 %v1491
    %v2751 = vunpack.c.h.b16 %v1491
    %v2752 = vunpack.c.l.b16 %v1492
    %v2753 = vunpack.c.h.b16 %v1492
    %v2754 = vunpack.c.l.b16 %v1493
    %v2755 = vunpack.c.h.b16 %v1493
    %v2756 = vunpack.c.l.b16 %v1494
    %v2757 = vunpack.c.h.b16 %v1494
    %v2758 = vunpack.c.l.b16 %v1495
    %v2759 = vunpack.c.h.b16 %v1495
    %v2760 = vunpack.c.l.b16 %v1496
    %v2761 = vunpack.c.h.b16 %v1496
    %v2762 = vunpack.c.l.b16 %v1497
    %v2763 = vunpack.c.h.b16 %v1497
    %v2764 = vunpack.c.l.b16 %v1498
    %v2765 = vunpack.c.h.b16 %v1498
    %v2766 = vunpack.c.l.b16 %v1499
    %v2767 = vunpack.c.h.b16 %v1499
    %v2768 = vunpack.c.l.b16 %v1500
    %v2769 = vunpack.c.h.b16 %v1500
    %v2770 = vunpack.c.l.b16 %v1501
    %v2771 = vunpack.c.h.b16 %v1501
    %v2772 = vunpack.c.l.b16 %v1502
    %v2773 = vunpack.c.h.b16 %v1502
    %v2774 = vunpack.c.l.b16 %v1503
    %v2775 = vunpack.c.h.b16 %v1503
    %v2776 = vunpack.c.l.b16 %v1504
    %v2777 = vunpack.c.h.b16 %v1504
    %v2778 = vunpack.c.l.b16 %v1505
    %v2779 = vunpack.c.h.b16 %v1505
    %v2780 = vunpack.c.l.b16 %v1506
    %v2781 = vunpack.c.h.b16 %v1506
    %v2782 = vunpack.c.l.b16 %v1507
    %v2783 = vunpack.c.h.b16 %v1507
    %v2784 = vunpack.c.l.b16 %v1508
    %v2785 = vunpack.c.h.b16 %v1508
    %v2786 = vunpack.c.l.b16 %v1509
    %v2787 = vunpack.c.h.b16 %v1509
    %v2788 = vunpack.c.l.b16 %v1510
    %v2789 = vunpack.c.h.b16 %v1510
    %v2790 = vunpack.c.l.b16 %v1511
    %v2791 = vunpack.c.h.b16 %v1511
    %v2792 = vunpack.c.l.b16 %v1512
    %v2793 = vunpack.c.h.b16 %v1512
    %v2794 = vunpack.c.l.b16 %v1513
    %v2795 = vunpack.c.h.b16 %v1513
    %v2796 = vunpack.c.l.b16 %v1514
    %v2797 = vunpack.c.h.b16 %v1514
    %v2798 = vunpack.c.l.b16 %v1515
    %v2799 = vunpack.c.h.b16 %v1515
    %v2800 = vunpack.c.l.b16 %v1516
    %v2801 = vunpack.c.h.b16 %v1516
    %v2802 = vunpack.c.l.b16 %v1517
    %v2803 = vunpack.c.h.b16 %v1517
    %v2804 = vunpack.c.l.b16 %v1518
    %v2805 = vunpack.c.h.b16 %v1518
    %v2806 = vunpack.c.l.b16 %v1519
    %v2807 = vunpack.c.h.b16 %v1519
    %v2808 = vunpack.c.l.b16 %v1520
    %v2809 = vunpack.c.h.b16 %v1520
    %v2810 = vunpack.c.l.b16 %v1521
    %v2811 = vunpack.c.h.b16 %v1521
    %v2812 = vunpack.c.l.b16 %v1522
    %v2813 = vunpack.c.h.b16 %v1522
    %v2814 = vunpack.c.l.b16 %v1523
    %v2815 = vunpack.c.h.b16 %v1523
    %v2816 = vunpack.c.l.b16 %v1524
    %v2817 = vunpack.c.h.b16 %v1524
    %v2818 = vunpack.c.l.b16 %v1525
    %v2819 = vunpack.c.h.b16 %v1525
    %v2820 = vunpack.c.l.b16 %v1526
    %v2821 = vunpack.c.h.b16 %v1526
    %v2822 = vunpack.c.l.b16 %v1527
    %v2823 = vunpack.c.h.b16 %v1527
    %v2824 = vunpack.c.l.b16 %v1528
    %v2825 = vunpack.c.h.b16 %v1528
    %v2826 = vunpack.c.l.b16 %v1529
    %v2827 = vunpack.c.h.b16 %v1529
    %v2828 = vunpack.c.l.b16 %v1530
    %v2829 = vunpack.c.h.b16 %v1530
    %v2830 = vunpack.c.l.b16 %v1531
    %v2831 = vunpack.c.h.b16 %v1531
    %v2832 = vunpack.c.l.b16 %v1532
    %v2833 = vunpack.c.h.b16 %v1532
    %v2834 = vunpack.c.l.b16 %v1533
    %v2835 = vunpack.c.h.b16 %v1533
    %v2836 = vunpack.c.l.b16 %v1534
    %v2837 = vunpack.c.h.b16 %v1534
    %v2838 = vunpack.c.l.b16 %v1535
    %v2839 = vunpack.c.h.b16 %v1535
    %v2840 = vunpack.c.l.b16 %v1536
    %v2841 = vunpack.c.h.b16 %v1536
    %v2842 = vunpack.c.l.b16 %v1537
    %v2843 = vunpack.c.h.b16 %v1537
    %v2844 = vunpack.c.l.b16 %v1538
    %v2845 = vunpack.c.h.b16 %v1538
    %v2846 = vunpack.c.l.b16 %v1539
    %v2847 = vunpack.c.h.b16 %v1539
    %v2848 = vunpack.c.l.b16 %v1540
    %v2849 = vunpack.c.h.b16 %v1540
    %v2850 = vunpack.c.l.b16 %v1541
    %v2851 = vunpack.c.h.b16 %v1541
    %v2852 = vunpack.c.l.b16 %v1542
    %v2853 = vunpack.c.h.b16 %v1542
    %v2854 = vunpack.c.l.b16 %v1543
    %v2855 = vunpack.c.h.b16 %v1543
    %v2856 = vunpack.c.l.b16 %v1544
    %v2857 = vunpack.c.h.b16 %v1544
    %v2858 = vunpack.c.l.b16 %v1545
    %v2859 = vunpack.c.h.b16 %v1545
    %v2860 = vunpack.c.l.b16 %v1546
    %v2861 = vunpack.c.h.b16 %v1546
    %v2862 = vunpack.c.l.b16 %v1547
    %v2863 = vunpack.c.h.b16 %v1547
    %v2864 = vunpack.c.l.b16 %v1548
    %v2865 = vunpack.c.h.b16 %v1548
    %v2866 = vunpack.c.l.b16 %v1549
    %v2867 = vunpack.c.h.b16 %v1549
    %v2868 = vunpack.c.l.b16 %v1550
    %v2869 = vunpack.c.h.b16 %v1550
    %v2870 = vunpack.c.l.b16 %v1551
    %v2871 = vunpack.c.h.b16 %v1551
    %v2872 = vunpack.c.l.b16 %v1552
    %v2873 = vunpack.c.h.b16 %v1552
    %v2874 = vunpack.c.l.b16 %v1553
    %v2875 = vunpack.c.h.b16 %v1553
    %v2876 = vunpack.c.l.b16 %v1554
    %v2877 = vunpack.c.h.b16 %v1554
    %v2878 = vunpack.c.l.b16 %v1555
    %v2879 = vunpack.c.h.b16 %v1555
    %v2880 = vunpack.c.l.b16 %v1556
    %v2881 = vunpack.c.h.b16 %v1556
    %v2882 = vunpack.c.l.b16 %v1557
    %v2883 = vunpack.c.h.b16 %v1557
    %v2884 = vunpack.c.l.b16 %v1558
    %v2885 = vunpack.c.h.b16 %v1558
    %v2886 = vunpack.c.l.b16 %v1559
    %v2887 = vunpack.c.h.b16 %v1559
    %v2888 = vunpack.c.l.b16 %v1560
    %v2889 = vunpack.c.h.b16 %v1560
    %v2890 = vunpack.c.l.b16 %v1561
    %v2891 = vunpack.c.h.b16 %v1561
    %v2892 = vunpack.c.l.b16 %v1562
    %v2893 = vunpack.c.h.b16 %v1562
    %v2894 = vunpack.c.l.b16 %v1563
    %v2895 = vunpack.c.h.b16 %v1563
    %v2896 = vunpack.c.l.b16 %v1564
    %v2897 = vunpack.c.h.b16 %v1564
    %v2898 = vunpack.c.l.b16 %v1565
    %v2899 = vunpack.c.h.b16 %v1565
    %v2900 = vunpack.c.l.b16 %v1566
    %v2901 = vunpack.c.h.b16 %v1566
    %v2902 = vunpack.c.l.b16 %v1567
    %v2903 = vunpack.c.h.b16 %v1567
    %v2904 = vunpack.c.l.b16 %v1568
    %v2905 = vunpack.c.h.b16 %v1568
    %v2906 = vunpack.c.l.b16 %v1569
    %v2907 = vunpack.c.h.b16 %v1569
    %v2908 = vunpack.c.l.b16 %v1570
    %v2909 = vunpack.c.h.b16 %v1570
    %v2910 = vunpack.c.l.b16 %v1571
    %v2911 = vunpack.c.h.b16 %v1571
    %v2912 = vunpack.c.l.b16 %v1572
    %v2913 = vunpack.c.h.b16 %v1572
    %v2914 = vunpack.c.l.b16 %v1573
    %v2915 = vunpack.c.h.b16 %v1573
    %v2916 = vunpack.c.l.b16 %v1574
    %v2917 = vunpack.c.h.b16 %v1574
    %v2918 = vunpack.c.l.b16 %v1575
    %v2919 = vunpack.c.h.b16 %v1575
    %v2920 = vunpack.c.l.b16 %v1576
    %v2921 = vunpack.c.h.b16 %v1576
    %v2922 = vunpack.c.l.b16 %v1577
    %v2923 = vunpack.c.h.b16 %v1577
    %v2924 = vunpack.c.l.b16 %v1578
    %v2925 = vunpack.c.h.b16 %v1578
    %v2926 = vunpack.c.l.b16 %v1579
    %v2927 = vunpack.c.h.b16 %v1579
    %v2928 = vunpack.c.l.b16 %v1580
    %v2929 = vunpack.c.h.b16 %v1580
    %v2930 = vunpack.c.l.b16 %v1581
    %v2931 = vunpack.c.h.b16 %v1581
    %v2932 = vunpack.c.l.b16 %v1582
    %v2933 = vunpack.c.h.b16 %v1582
    %v2934 = vunpack.c.l.b16 %v1583
    %v2935 = vunpack.c.h.b16 %v1583
    %v2936 = vunpack.c.l.b16 %v1584
    %v2937 = vunpack.c.h.b16 %v1584
    %v2938 = vunpack.c.l.b16 %v1585
    %v2939 = vunpack.c.h.b16 %v1585
    %v2940 = vunpack.c.l.b16 %v1586
    %v2941 = vunpack.c.h.b16 %v1586
    %v2942 = vunpack.c.l.b16 %v1587
    %v2943 = vunpack.c.h.b16 %v1587
    %v2944 = vunpack.c.l.b16 %v1588
    %v2945 = vunpack.c.h.b16 %v1588
    %v2946 = vunpack.c.l.b16 %v1589
    %v2947 = vunpack.c.h.b16 %v1589
    %v2948 = vunpack.c.l.b16 %v1590
    %v2949 = vunpack.c.h.b16 %v1590
    %v2950 = vunpack.c.l.b16 %v1591
    %v2951 = vunpack.c.h.b16 %v1591
    %v2952 = vunpack.c.l.b16 %v1592
    %v2953 = vunpack.c.h.b16 %v1592
    %v2954 = vunpack.c.l.b16 %v1593
    %v2955 = vunpack.c.h.b16 %v1593
    %v2956 = vunpack.c.l.b16 %v1594
    %v2957 = vunpack.c.h.b16 %v1594
    %v2958 = vunpack.c.l.b16 %v1595
    %v2959 = vunpack.c.h.b16 %v1595
    %v2960 = vunpack.c.l.b16 %v1596
    %v2961 = vunpack.c.h.b16 %v1596
    %v2962 = vunpack.c.l.b16 %v1597
    %v2963 = vunpack.c.h.b16 %v1597
    %v2964 = vunpack.c.l.b16 %v1598
    %v2965 = vunpack.c.h.b16 %v1598
    %v2966 = vunpack.c.l.b16 %v1599
    %v2967 = vunpack.c.h.b16 %v1599
    %v2968 = vunpack.c.l.b16 %v1600
    %v2969 = vunpack.c.h.b16 %v1600
    %v2970 = vunpack.c.l.b16 %v1601
    %v2971 = vunpack.c.h.b16 %v1601
    %v2972 = vunpack.c.l.b16 %v1602
    %v2973 = vunpack.c.h.b16 %v1602
    %v2974 = vunpack.c.l.b16 %v1603
    %v2975 = vunpack.c.h.b16 %v1603
    %v2976 = vunpack.c.l.b16 %v1604
    %v2977 = vunpack.c.h.b16 %v1604
    %v2978 = vunpack.c.l.b16 %v1605
    %v2979 = vunpack.c.h.b16 %v1605
    %v2980 = vunpack.c.l.b16 %v1606
    %v2981 = vunpack.c.h.b16 %v1606
    %v2982 = vunpack.c.l.b16 %v1607
    %v2983 = vunpack.c.h.b16 %v1607
    %v2984 = vunpack.c.l.b16 %v1608
    %v2985 = vunpack.c.h.b16 %v1608
    %v2986 = vunpack.c.l.b16 %v1609
    %v2987 = vunpack.c.h.b16 %v1609
    %v2988 = vunpack.c.l.b16 %v1610
    %v2989 = vunpack.c.h.b16 %v1610
    %v2990 = vunpack.c.l.b16 %v1611
    %v2991 = vunpack.c.h.b16 %v1611
    %v2992 = vunpack.c.l.b16 %v1612
    %v2993 = vunpack.c.h.b16 %v1612
    %v2994 = vunpack.c.l.b16 %v1613
    %v2995 = vunpack.c.h.b16 %v1613
    %v2996 = vunpack.c.l.b16 %v1614
    %v2997 = vunpack.c.h.b16 %v1614
    %v2998 = vunpack.c.l.b16 %v1615
    %v2999 = vunpack.c.h.b16 %v1615
    %v3000 = vunpack.c.l.b16 %v1616
    %v3001 = vunpack.c.h.b16 %v1616
    %v3002 = vunpack.c.l.b16 %v1617
    %v3003 = vunpack.c.h.b16 %v1617
    %v3004 = vunpack.c.l.b16 %v1618
    %v3005 = vunpack.c.h.b16 %v1618
    %v3006 = vunpack.c.l.b16 %v1619
    %v3007 = vunpack.c.h.b16 %v1619
    %v3008 = vunpack.c.l.b16 %v1620
    %v3009 = vunpack.c.h.b16 %v1620
    %v3010 = vunpack.c.l.b16 %v1621
    %v3011 = vunpack.c.h.b16 %v1621
    %v3012 = vunpack.c.l.b16 %v1622
    %v3013 = vunpack.c.h.b16 %v1622
    %v3014 = vunpack.c.l.b16 %v1623
    %v3015 = vunpack.c.h.b16 %v1623
    %v3016 = vunpack.c.l.b16 %v1624
    %v3017 = vunpack.c.h.b16 %v1624
    %v3018 = vunpack.c.l.b16 %v1625
    %v3019 = vunpack.c.h.b16 %v1625
    %v3020 = vunpack.c.l.b16 %v1626
    %v3021 = vunpack.c.h.b16 %v1626
    %v3022 = vunpack.c.l.b16 %v1627
    %v3023 = vunpack.c.h.b16 %v1627
    %v3024 = vunpack.c.l.b16 %v1628
    %v3025 = vunpack.c.h.b16 %v1628
    %v3026 = vunpack.c.l.b16 %v1629
    %v3027 = vunpack.c.h.b16 %v1629
    %v3028 = vunpack.c.l.b16 %v1630
    %v3029 = vunpack.c.h.b16 %v1630
    %v3030 = vunpack.c.l.b16 %v1631
    %v3031 = vunpack.c.h.b16 %v1631
    %v3032 = vunpack.c.l.b16 %v1632
    %v3033 = vunpack.c.h.b16 %v1632
    %v3034 = vunpack.c.l.b16 %v1633
    %v3035 = vunpack.c.h.b16 %v1633
    %v3036 = vunpack.c.l.b16 %v1634
    %v3037 = vunpack.c.h.b16 %v1634
    %v3038 = vunpack.c.l.b16 %v1635
    %v3039 = vunpack.c.h.b16 %v1635
    %v3040 = vunpack.c.l.b16 %v1636
    %v3041 = vunpack.c.h.b16 %v1636
    %v3042 = vunpack.c.l.b16 %v1637
    %v3043 = vunpack.c.h.b16 %v1637
    %v3044 = vunpack.c.l.b16 %v1638
    %v3045 = vunpack.c.h.b16 %v1638
    %v3046 = vunpack.c.l.b16 %v1639
    %v3047 = vunpack.c.h.b16 %v1639
    %v3048 = vunpack.c.l.b16 %v1640
    %v3049 = vunpack.c.h.b16 %v1640
    %v3050 = vunpack.c.l.b16 %v1641
    %v3051 = vunpack.c.h.b16 %v1641
    %v3052 = vunpack.c.l.b16 %v1642
    %v3053 = vunpack.c.h.b16 %v1642
    %v3054 = vunpack.c.l.b16 %v1643
    %v3055 = vunpack.c.h.b16 %v1643
    %v3056 = vunpack.c.l.b16 %v1644
    %v3057 = vunpack.c.h.b16 %v1644
    %v3058 = vunpack.c.l.b16 %v1645
    %v3059 = vunpack.c.h.b16 %v1645
    %v3060 = vunpack.c.l.b16 %v1646
    %v3061 = vunpack.c.h.b16 %v1646
    %v3062 = vunpack.c.l.b16 %v1647
    %v3063 = vunpack.c.h.b16 %v1647
    %v3064 = vunpack.c.l.b16 %v1648
    %v3065 = vunpack.c.h.b16 %v1648
    %v3066 = vunpack.c.l.b16 %v1649
    %v3067 = vunpack.c.h.b16 %v1649
    %v3068 = vunpack.c.l.b16 %v1650
    %v3069 = vunpack.c.h.b16 %v1650
    %v3070 = vunpack.c.l.b16 %v1651
    %v3071 = vunpack.c.h.b16 %v1651
    %v3072 = vunpack.c.l.b16 %v1652
    %v3073 = vunpack.c.h.b16 %v1652
    %v3074 = vunpack.c.l.b16 %v1653
    %v3075 = vunpack.c.h.b16 %v1653
    %v3076 = vunpack.c.l.b16 %v1654
    %v3077 = vunpack.c.h.b16 %v1654
    %v3078 = vunpack.c.l.b16 %v1655
    %v3079 = vunpack.c.h.b16 %v1655
    %v3080 = vunpack.c.l.b16 %v1656
    %v3081 = vunpack.c.h.b16 %v1656
    %v3082 = vunpack.c.l.b16 %v1657
    %v3083 = vunpack.c.h.b16 %v1657
    %v3084 = vunpack.c.l.b16 %v1658
    %v3085 = vunpack.c.h.b16 %v1658
    %v3086 = vunpack.c.l.b16 %v1659
    %v3087 = vunpack.c.h.b16 %v1659
    %v3088 = vunpack.c.l.b16 %v1660
    %v3089 = vunpack.c.h.b16 %v1660
    %v3090 = vunpack.c.l.b16 %v1661
    %v3091 = vunpack.c.h.b16 %v1661
    %v3092 = vunpack.c.l.b16 %v1662
    %v3093 = vunpack.c.h.b16 %v1662
    %v3094 = vunpack.c.l.b16 %v1663
    %v3095 = vunpack.c.h.b16 %v1663
    %v3096 = vunpack.c.l.b16 %v1664
    %v3097 = vunpack.c.h.b16 %v1664
    %v3098 = vunpack.c.l.b16 %v1665
    %v3099 = vunpack.c.h.b16 %v1665
    %v3100 = vunpack.c.l.b16 %v1666
    %v3101 = vunpack.c.h.b16 %v1666
    %v3102 = vunpack.c.l.b16 %v1667
    %v3103 = vunpack.c.h.b16 %v1667
    %v3104 = vunpack.c.l.b16 %v1668
    %v3105 = vunpack.c.h.b16 %v1668
    %v3106 = vunpack.c.l.b16 %v1669
    %v3107 = vunpack.c.h.b16 %v1669
    %v3108 = vunpack.c.l.b16 %v1670
    %v3109 = vunpack.c.h.b16 %v1670
    %v3110 = vunpack.c.l.b16 %v1671
    %v3111 = vunpack.c.h.b16 %v1671
    %v3112 = vunpack.c.l.b16 %v1672
    %v3113 = vunpack.c.h.b16 %v1672
    %v3114 = vunpack.c.l.b16 %v1673
    %v3115 = vunpack.c.h.b16 %v1673
    %v3116 = vunpack.c.l.b16 %v1674
    %v3117 = vunpack.c.h.b16 %v1674
    %v3118 = vunpack.c.l.b16 %v1675
    %v3119 = vunpack.c.h.b16 %v1675
    %v3120 = vunpack.c.l.b16 %v1676
    %v3121 = vunpack.c.h.b16 %v1676
    %v3122 = vunpack.c.l.b16 %v1677
    %v3123 = vunpack.c.h.b16 %v1677
    %v3124 = vunpack.c.l.b16 %v1678
    %v3125 = vunpack.c.h.b16 %v1678
    %v3126 = vunpack.c.l.b16 %v1679
    %v3127 = vunpack.c.h.b16 %v1679
    %v3128 = vunpack.c.l.b16 %v1680
    %v3129 = vunpack.c.h.b16 %v1680
    %v3130 = vunpack.c.l.b16 %v1681
    %v3131 = vunpack.c.h.b16 %v1681
    %v3132 = vunpack.c.l.b16 %v1682
    %v3133 = vunpack.c.h.b16 %v1682
    %v3134 = vunpack.c.l.b16 %v1683
    %v3135 = vunpack.c.h.b16 %v1683
    %v3136 = vunpack.c.l.b16 %v1684
    %v3137 = vunpack.c.h.b16 %v1684
    %v3138 = vunpack.c.l.b16 %v1685
    %v3139 = vunpack.c.h.b16 %v1685
    %v3140 = vunpack.c.l.b16 %v1686
    %v3141 = vunpack.c.h.b16 %v1686
    %v3142 = vunpack.c.l.b16 %v1687
    %v3143 = vunpack.c.h.b16 %v1687
    %v3144 = vunpack.c.l.b16 %v1688
    %v3145 = vunpack.c.h.b16 %v1688
    %v3146 = vunpack.c.l.b16 %v1689
    %v3147 = vunpack.c.h.b16 %v1689
    %v3148 = vunpack.c.l.b16 %v1690
    %v3149 = vunpack.c.h.b16 %v1690
    %v3150 = vunpack.c.l.b16 %v1691
    %v3151 = vunpack.c.h.b16 %v1691
    %v3152 = vunpack.c.l.b16 %v1692
    %v3153 = vunpack.c.h.b16 %v1692
    %v3154 = vunpack.c.l.b16 %v1693
    %v3155 = vunpack.c.h.b16 %v1693
    %v3156 = vunpack.c.l.b16 %v1694
    %v3157 = vunpack.c.h.b16 %v1694
    %v3158 = vunpack.c.l.b16 %v1695
    %v3159 = vunpack.c.h.b16 %v1695
    %v3160 = vunpack.c.l.b16 %v1696
    %v3161 = vunpack.c.h.b16 %v1696
    %v3162 = vunpack.c.l.b16 %v1697
    %v3163 = vunpack.c.h.b16 %v1697
    %v3164 = vunpack.c.l.b16 %v1698
    %v3165 = vunpack.c.h.b16 %v1698
    %v3166 = vunpack.c.l.b16 %v1699
    %v3167 = vunpack.c.h.b16 %v1699
    %v3168 = vunpack.c.l.b16 %v1700
    %v3169 = vunpack.c.h.b16 %v1700
    %v3170 = vunpack.c.l.b16 %v1701
    %v3171 = vunpack.c.h.b16 %v1701
    %v3172 = vunpack.c.l.b16 %v1702
    %v3173 = vunpack.c.h.b16 %v1702
    %v3174 = vunpack.c.l.b16 %v1703
    %v3175 = vunpack.c.h.b16 %v1703
    %v3176 = vunpack.c.l.b16 %v1704
    %v3177 = vunpack.c.h.b16 %v1704
    %v3178 = vunpack.c.l.b16 %v1705
    %v3179 = vunpack.c.h.b16 %v1705
    %v3180 = vunpack.c.l.b16 %v1706
    %v3181 = vunpack.c.h.b16 %v1706
    %v3182 = vunpack.c.l.b16 %v1707
    %v3183 = vunpack.c.h.b16 %v1707
    %v3184 = vunpack.c.l.b16 %v1708
    %v3185 = vunpack.c.h.b16 %v1708
    %v3186 = vunpack.c.l.b16 %v1709
    %v3187 = vunpack.c.h.b16 %v1709
    %v3188 = vunpack.c.l.b16 %v1710
    %v3189 = vunpack.c.h.b16 %v1710
    %v3190 = vunpack.c.l.b16 %v1711
    %v3191 = vunpack.c.h.b16 %v1711
    %v3192 = vunpack.c.l.b16 %v1712
    %v3193 = vunpack.c.h.b16 %v1712
    %v3194 = vunpack.c.l.b16 %v1713
    %v3195 = vunpack.c.h.b16 %v1713
    %v3196 = vunpack.c.l.b16 %v1714
    %v3197 = vunpack.c.h.b16 %v1714
    %v3198 = vunpack.c.l.b16 %v1715
    %v3199 = vunpack.c.h.b16 %v1715
    %v3200 = vunpack.c.l.b16 %v1716
    %v3201 = vunpack.c.h.b16 %v1716
    %v3202 = vunpack.c.l.b16 %v1717
    %v3203 = vunpack.c.h.b16 %v1717
    %v3204 = vunpack.c.l.b16 %v1718
    %v3205 = vunpack.c.h.b16 %v1718
    %v3206 = vunpack.c.l.b16 %v1719
    %v3207 = vunpack.c.h.b16 %v1719
    %v3208 = vunpack.c.l.b16 %v1720
    %v3209 = vunpack.c.h.b16 %v1720
    %v3210 = vunpack.c.l.b16 %v1721
    %v3211 = vunpack.c.h.b16 %v1721
    %v3212 = vunpack.c.l.b16 %v1722
    %v3213 = vunpack.c.h.b16 %v1722
    %v3214 = vunpack.c.l.b16 %v1723
    %v3215 = vunpack.c.h.b16 %v1723
    %v3216 = vunpack.c.l.b16 %v1724
    %v3217 = vunpack.c.h.b16 %v1724
    %v3218 = vunpack.c.l.b16 %v1725
    %v3219 = vunpack.c.h.b16 %v1725
    %v3220 = vunpack.c.l.b16 %v1726
    %v3221 = vunpack.c.h.b16 %v1726
    %v3222 = vunpack.c.l.b16 %v1727
    %v3223 = vunpack.c.h.b16 %v1727
    %v3224 = vunpack.c.l.b16 %v1728
    %v3225 = vunpack.c.h.b16 %v1728
    %v3226 = vunpack.c.l.b16 %v1729
    %v3227 = vunpack.c.h.b16 %v1729
    %v3228 = vunpack.c.l.b16 %v1730
    %v3229 = vunpack.c.h.b16 %v1730
    %v3230 = vunpack.c.l.b16 %v1731
    %v3231 = vunpack.c.h.b16 %v1731
    %v3232 = vunpack.c.l.b16 %v1732
    %v3233 = vunpack.c.h.b16 %v1732
    %v3234 = vunpack.c.l.b16 %v1733
    %v3235 = vunpack.c.h.b16 %v1733
    %v3236 = vunpack.c.l.b16 %v1734
    %v3237 = vunpack.c.h.b16 %v1734
    %v3238 = vunpack.c.l.b16 %v1735
    %v3239 = vunpack.c.h.b16 %v1735
    %v3240 = vunpack.c.l.b16 %v1736
    %v3241 = vunpack.c.h.b16 %v1736
    %v3242 = vunpack.c.l.b16 %v1737
    %v3243 = vunpack.c.h.b16 %v1737
    %v3244 = vunpack.c.l.b16 %v1738
    %v3245 = vunpack.c.h.b16 %v1738
    %v3246 = vunpack.c.l.b16 %v1739
    %v3247 = vunpack.c.h.b16 %v1739
    %v3248 = vunpack.c.l.b16 %v1740
    %v3249 = vunpack.c.h.b16 %v1740
    %v3250 = vunpack.c.l.b16 %v1741
    %v3251 = vunpack.c.h.b16 %v1741
    %v3252 = vunpack.c.l.b16 %v1742
    %v3253 = vunpack.c.h.b16 %v1742
    %v3254 = vunpack.c.l.b16 %v1743
    %v3255 = vunpack.c.h.b16 %v1743
    %v3256 = vunpack.c.l.b16 %v1744
    %v3257 = vunpack.c.h.b16 %v1744
    %v3258 = vunpack.c.l.b16 %v1745
    %v3259 = vunpack.c.h.b16 %v1745
    %v3260 = vunpack.c.l.b16 %v1746
    %v3261 = vunpack.c.h.b16 %v1746
    %v3262 = vunpack.c.l.b16 %v1747
    %v3263 = vunpack.c.h.b16 %v1747
    %v3264 = vunpack.c.l.b16 %v1748
    %v3265 = vunpack.c.h.b16 %v1748
    %v3266 = vunpack.c.l.b16 %v1749
    %v3267 = vunpack.c.h.b16 %v1749
    %v3268 = vunpack.c.l.b16 %v1750
    %v3269 = vunpack.c.h.b16 %v1750
    %v3270 = vunpack.c.l.b16 %v1751
    %v3271 = vunpack.c.h.b16 %v1751
    %v3272 = vunpack.c.l.b16 %v1752
    %v3273 = vunpack.c.h.b16 %v1752
    %v3274 = vunpack.c.l.b16 %v1753
    %v3275 = vunpack.c.h.b16 %v1753
    %v3276 = vunpack.c.l.b16 %v1754
    %v3277 = vunpack.c.h.b16 %v1754
    %v3278 = vunpack.c.l.b16 %v1755
    %v3279 = vunpack.c.h.b16 %v1755
    %v3280 = vunpack.c.l.b16 %v1756
    %v3281 = vunpack.c.h.b16 %v1756
    %v3282 = vunpack.c.l.b16 %v1757
    %v3283 = vunpack.c.h.b16 %v1757
    %v3284 = vunpack.c.l.b16 %v1758
    %v3285 = vunpack.c.h.b16 %v1758
    %v3286 = vunpack.c.l.b16 %v1759
    %v3287 = vunpack.c.h.b16 %v1759
    %v3288 = vunpack.c.l.b16 %v1760
    %v3289 = vunpack.c.h.b16 %v1760
    %v3290 = vunpack.c.l.b16 %v1761
    %v3291 = vunpack.c.h.b16 %v1761
    %v3292 = vunpack.c.l.b16 %v1762
    %v3293 = vunpack.c.h.b16 %v1762
    %v3294 = vunpack.c.l.b16 %v1763
    %v3295 = vunpack.c.h.b16 %v1763
    %v3296 = vunpack.c.l.b16 %v1764
    %v3297 = vunpack.c.h.b16 %v1764
    %v3298 = vunpack.c.l.b16 %v1765
    %v3299 = vunpack.c.h.b16 %v1765
    %v3300 = vunpack.c.l.b16 %v1766
    %v3301 = vunpack.c.h.b16 %v1766
    %v3302 = vunpack.c.l.b16 %v1767
    %v3303 = vunpack.c.h.b16 %v1767
    %v3304 = vunpack.c.l.b16 %v1768
    %v3305 = vunpack.c.h.b16 %v1768
    %v3306 = vunpack.c.l.b16 %v1769
    %v3307 = vunpack.c.h.b16 %v1769
    %v3308 = vunpack.c.l.b16 %v1770
    %v3309 = vunpack.c.h.b16 %v1770
    %v3310 = vunpack.c.l.b16 %v1771
    %v3311 = vunpack.c.h.b16 %v1771
    %v3312 = vunpack.c.l.b16 %v1772
    %v3313 = vunpack.c.h.b16 %v1772
    %v3314 = vunpack.c.l.b16 %v1773
    %v3315 = vunpack.c.h.b16 %v1773
    %v3316 = vunpack.c.l.b16 %v1774
    %v3317 = vunpack.c.h.b16 %v1774
    %v3318 = vunpack.c.l.b16 %v1775
    %v3319 = vunpack.c.h.b16 %v1775
    %v3320 = vunpack.c.l.b16 %v1776
    %v3321 = vunpack.c.h.b16 %v1776
    %v3322 = vunpack.c.l.b16 %v1777
    %v3323 = vunpack.c.h.b16 %v1777
    %v3324 = vunpack.c.l.b16 %v1778
    %v3325 = vunpack.c.h.b16 %v1778
    %v3326 = vunpack.c.l.b16 %v1779
    %v3327 = vunpack.c.h.b16 %v1779
    %v3328 = vunpack.c.l.b16 %v1780
    %v3329 = vunpack.c.h.b16 %v1780
    %v3330 = vunpack.c.l.b16 %v1781
    %v3331 = vunpack.c.h.b16 %v1781
    %v3332 = vunpack.c.l.b16 %v1782
    %v3333 = vunpack.c.h.b16 %v1782
    %v3334 = vunpack.c.l.b16 %v1783
    %v3335 = vunpack.c.h.b16 %v1783
    %v3336 = vunpack.c.l.b16 %v1784
    %v3337 = vunpack.c.h.b16 %v1784
    %v3338 = vunpack.c.l.b16 %v1785
    %v3339 = vunpack.c.h.b16 %v1785
    %v3340 = vunpack.c.l.b16 %v1786
    %v3341 = vunpack.c.h.b16 %v1786
    %v3342 = vunpack.c.l.b16 %v1787
    %v3343 = vunpack.c.h.b16 %v1787
    %v3344 = vunpack.c.l.b16 %v1788
    %v3345 = vunpack.c.h.b16 %v1788
    %v3346 = vunpack.c.l.b16 %v1789
    %v3347 = vunpack.c.h.b16 %v1789
    %v3348 = vunpack.c.l.b16 %v1790
    %v3349 = vunpack.c.h.b16 %v1790
    %v3350 = vunpack.c.l.b16 %v1791
    %v3351 = vunpack.c.h.b16 %v1791
    %v3352 = vunpack.c.l.b16 %v1792
    %v3353 = vunpack.c.h.b16 %v1792
    %v3354 = vunpack.c.l.b16 %v1793
    %v3355 = vunpack.c.h.b16 %v1793
    %v3356 = vunpack.c.l.b16 %v1794
    %v3357 = vunpack.c.h.b16 %v1794
    %v3358 = vunpack.c.l.b16 %v1795
    %v3359 = vunpack.c.h.b16 %v1795
    %v3360 = vunpack.c.l.b16 %v1796
    %v3361 = vunpack.c.h.b16 %v1796
    %v3362 = vunpack.c.l.b16 %v1797
    %v3363 = vunpack.c.h.b16 %v1797
    %v3364 = vunpack.c.l.b16 %v1798
    %v3365 = vunpack.c.h.b16 %v1798
    %v3366 = vunpack.c.l.b16 %v1799
    %v3367 = vunpack.c.h.b16 %v1799
    %v3368 = vunpack.c.l.b16 %v1800
    %v3369 = vunpack.c.h.b16 %v1800
    %v3370 = vunpack.c.l.b16 %v1801
    %v3371 = vunpack.c.h.b16 %v1801
    %v3372 = vunpack.c.l.b16 %v1802
    %v3373 = vunpack.c.h.b16 %v1802
    %v3374 = vunpack.c.l.b16 %v1803
    %v3375 = vunpack.c.h.b16 %v1803
    %v3376 = vunpack.c.l.b16 %v1804
    %v3377 = vunpack.c.h.b16 %v1804
    %v3378 = vunpack.c.l.b16 %v1805
    %v3379 = vunpack.c.h.b16 %v1805
    %v3380 = vunpack.c.l.b16 %v1806
    %v3381 = vunpack.c.h.b16 %v1806
    %v3382 = vunpack.c.l.b16 %v1807
    %v3383 = vunpack.c.h.b16 %v1807
    %v3384 = vunpack.c.l.b16 %v1808
    %v3385 = vunpack.c.h.b16 %v1808
    %v3386 = vunpack.c.l.b16 %v1809
    %v3387 = vunpack.c.h.b16 %v1809
    %v3388 = vpack.c.b16 %v2372, %v2364
    %v3389 = vpack.c.b16 %v2373, %v2365
    %v3390 = vpack.c.b16 %v2374, %v2366
    %v3391 = vpack.c.b16 %v2375, %v2367
    %v3392 = vpack.c.b16 %v2376, %v2368
    %v3393 = vpack.c.b16 %v2377, %v2369
    %v3394 = vpack.c.b16 %v2378, %v2370
    %v3395 = vpack.c.b16 %v2379, %v2371
    %v3396 = vpack.c.b16 %v2388, %v2380
    %v3397 = vpack.c.b16 %v2389, %v2381
    %v3398 = vpack.c.b16 %v2390, %v2382
    %v3399 = vpack.c.b16 %v2391, %v2383
    %v3400 = vpack.c.b16 %v2392, %v2384
    %v3401 = vpack.c.b16 %v2393, %v2385
    %v3402 = vpack.c.b16 %v2394, %v2386
    %v3403 = vpack.c.b16 %v2395, %v2387
    %v3404 = vpack.c.b16 %v2404, %v2396
    %v3405 = vpack.c.b16 %v2405, %v2397
    %v3406 = vpack.c.b16 %v2406, %v2398
    %v3407 = vpack.c.b16 %v2407, %v2399
    %v3408 = vpack.c.b16 %v2408, %v2400
    %v3409 = vpack.c.b16 %v2409, %v2401
    %v3410 = vpack.c.b16 %v2410, %v2402
    %v3411 = vpack.c.b16 %v2411, %v2403
    %v3412 = vpack.c.b16 %v2420, %v2412
    %v3413 = vpack.c.b16 %v2421, %v2413
    %v3414 = vpack.c.b16 %v2422, %v2414
    %v3415 = vpack.c.b16 %v2423, %v2415
    %v3416 = vpack.c.b16 %v2424, %v2416
    %v3417 = vpack.c.b16 %v2425, %v2417
    %v3418 = vpack.c.b16 %v2426, %v2418
    %v3419 = vpack.c.b16 %v2427, %v2419
    %v3420 = vpack.c.b16 %v2436, %v2428
    %v3421 = vpack.c.b16 %v2437, %v2429
    %v3422 = vpack.c.b16 %v2438, %v2430
    %v3423 = vpack.c.b16 %v2439, %v2431
    %v3424 = vpack.c.b16 %v2440, %v2432
    %v3425 = vpack.c.b16 %v2441, %v2433
    %v3426 = vpack.c.b16 %v2442, %v2434
    %v3427 = vpack.c.b16 %v2443, %v2435
    %v3428 = vpack.c.b16 %v2452, %v2444
    %v3429 = vpack.c.b16 %v2453, %v2445
    %v3430 = vpack.c.b16 %v2454, %v2446
    %v3431 = vpack.c.b16 %v2455, %v2447
    %v3432 = vpack.c.b16 %v2456, %v2448
    %v3433 = vpack.c.b16 %v2457, %v2449
    %v3434 = vpack.c.b16 %v2458, %v2450
    %v3435 = vpack.c.b16 %v2459, %v2451
    %v3436 = vpack.c.b16 %v2468, %v2460
    %v3437 = vpack.c.b16 %v2469, %v2461
    %v3438 = vpack.c.b16 %v2470, %v2462
    %v3439 = vpack.c.b16 %v2471, %v2463
    %v3440 = vpack.c.b16 %v2472, %v2464
    %v3441 = vpack.c.b16 %v2473, %v2465
    %v3442 = vpack.c.b16 %v2474, %v2466
    %v3443 = vpack.c.b16 %v2475, %v2467
    %v3444 = vpack.c.b16 %v2484, %v2476
    %v3445 = vpack.c.b16 %v2485, %v2477
    %v3446 = vpack.c.b16 %v2486, %v2478
    %v3447 = vpack.c.b16 %v2487, %v2479
    %v3448 = vpack.c.b16 %v2488, %v2480
    %v3449 = vpack.c.b16 %v2489, %v2481
    %v3450 = vpack.c.b16 %v2490, %v2482
    %v3451 = vpack.c.b16 %v2491, %v2483
    %v3452 = vpack.c.b16 %v2500, %v2492
    %v3453 = vpack.c.b16 %v2501, %v2493
    %v3454 = vpack.c.b16 %v2502, %v2494
    %v3455 = vpack.c.b16 %v2503, %v2495
    %v3456 = vpack.c.b16 %v2504, %v2496
    %v3457 = vpack.c.b16 %v2505, %v2497
    %v3458 = vpack.c.b16 %v2506, %v2498
    %v3459 = vpack.c.b16 %v2507, %v2499
    %v3460 = vpack.c.b16 %v2516, %v2508
    %v3461 = vpack.c.b16 %v2517, %v2509
    %v3462 = vpack.c.b16 %v2518, %v2510
    %v3463 = vpack.c.b16 %v2519, %v2511
    %v3464 = vpack.c.b16 %v2520, %v2512
    %v3465 = vpack.c.b16 %v2521, %v2513
    %v3466 = vpack.c.b16 %v2522, %v2514
    %v3467 = vpack.c.b16 %v2523, %v2515
    %v3468 = vpack.c.b16 %v2532, %v2524
    %v3469 = vpack.c.b16 %v2533, %v2525
    %v3470 = vpack.c.b16 %v2534, %v2526
    %v3471 = vpack.c.b16 %v2535, %v2527
    %v3472 = vpack.c.b16 %v2536, %v2528
    %v3473 = vpack.c.b16 %v2537, %v2529
    %v3474 = vpack.c.b16 %v2538, %v2530
    %v3475 = vpack.c.b16 %v2539, %v2531
    %v3476 = vpack.c.b16 %v2548, %v2540
    %v3477 = vpack.c.b16 %v2549, %v2541
    %v3478 = vpack.c.b16 %v2550, %v2542
    %v3479 = vpack.c.b16 %v2551, %v2543
    %v3480 = vpack.c.b16 %v2552, %v2544
    %v3481 = vpack.c.b16 %v2553, %v2545
    %v3482 = vpack.c.b16 %v2554, %v2546
    %v3483 = vpack.c.b16 %v2555, %v2547
    %v3484 = vpack.c.b16 %v2564, %v2556
    %v3485 = vpack.c.b16 %v2565, %v2557
    %v3486 = vpack.c.b16 %v2566, %v2558
    %v3487 = vpack.c.b16 %v2567, %v2559
    %v3488 = vpack.c.b16 %v2568, %v2560
    %v3489 = vpack.c.b16 %v2569, %v2561
    %v3490 = vpack.c.b16 %v2570, %v2562
    %v3491 = vpack.c.b16 %v2571, %v2563
    %v3492 = vpack.c.b16 %v2580, %v2572
    %v3493 = vpack.c.b16 %v2581, %v2573
    %v3494 = vpack.c.b16 %v2582, %v2574
    %v3495 = vpack.c.b16 %v2583, %v2575
    %v3496 = vpack.c.b16 %v2584, %v2576
    %v3497 = vpack.c.b16 %v2585, %v2577
    %v3498 = vpack.c.b16 %v2586, %v2578
    %v3499 = vpack.c.b16 %v2587, %v2579
    %v3500 = vpack.c.b16 %v2596, %v2588
    %v3501 = vpack.c.b16 %v2597, %v2589
    %v3502 = vpack.c.b16 %v2598, %v2590
    %v3503 = vpack.c.b16 %v2599, %v2591
    %v3504 = vpack.c.b16 %v2600, %v2592
    %v3505 = vpack.c.b16 %v2601, %v2593
    %v3506 = vpack.c.b16 %v2602, %v2594
    %v3507 = vpack.c.b16 %v2603, %v2595
    %v3508 = vpack.c.b16 %v2612, %v2604
    %v3509 = vpack.c.b16 %v2613, %v2605
    %v3510 = vpack.c.b16 %v2614, %v2606
    %v3511 = vpack.c.b16 %v2615, %v2607
    %v3512 = vpack.c.b16 %v2616, %v2608
    %v3513 = vpack.c.b16 %v2617, %v2609
    %v3514 = vpack.c.b16 %v2618, %v2610
    %v3515 = vpack.c.b16 %v2619, %v2611
    %v3516 = vpack.c.b16 %v2628, %v2620
    %v3517 = vpack.c.b16 %v2629, %v2621
    %v3518 = vpack.c.b16 %v2630, %v2622
    %v3519 = vpack.c.b16 %v2631, %v2623
    %v3520 = vpack.c.b16 %v2632, %v2624
    %v3521 = vpack.c.b16 %v2633, %v2625
    %v3522 = vpack.c.b16 %v2634, %v2626
    %v3523 = vpack.c.b16 %v2635, %v2627
    %v3524 = vpack.c.b16 %v2644, %v2636
    %v3525 = vpack.c.b16 %v2645, %v2637
    %v3526 = vpack.c.b16 %v2646, %v2638
    %v3527 = vpack.c.b16 %v2647, %v2639
    %v3528 = vpack.c.b16 %v2648, %v2640
    %v3529 = vpack.c.b16 %v2649, %v2641
    %v3530 = vpack.c.b16 %v2650, %v2642
    %v3531 = vpack.c.b16 %v2651, %v2643
    %v3532 = vpack.c.b16 %v2660, %v2652
    %v3533 = vpack.c.b16 %v2661, %v2653
    %v3534 = vpack.c.b16 %v2662, %v2654
    %v3535 = vpack.c.b16 %v2663, %v2655
    %v3536 = vpack.c.b16 %v2664, %v2656
    %v3537 = vpack.c.b16 %v2665, %v2657
    %v3538 = vpack.c.b16 %v2666, %v2658
    %v3539 = vpack.c.b16 %v2667, %v2659
    %v3540 = vpack.c.b16 %v2676, %v2668
    %v3541 = vpack.c.b16 %v2677, %v2669
    %v3542 = vpack.c.b16 %v2678, %v2670
    %v3543 = vpack.c.b16 %v2679, %v2671
    %v3544 = vpack.c.b16 %v2680, %v2672
    %v3545 = vpack.c.b16 %v2681, %v2673
    %v3546 = vpack.c.b16 %v2682, %v2674
    %v3547 = vpack.c.b16 %v2683, %v2675
    %v3548 = vpack.c.b16 %v2692, %v2684
    %v3549 = vpack.c.b16 %v2693, %v2685
    %v3550 = vpack.c.b16 %v2694, %v2686
    %v3551 = vpack.c.b16 %v2695, %v2687
    %v3552 = vpack.c.b16 %v2696, %v2688
    %v3553 = vpack.c.b16 %v2697, %v2689
    %v3554 = vpack.c.b16 %v2698, %v2690
    %v3555 = vpack.c.b16 %v2699, %v2691
    %v3556 = vpack.c.b16 %v2708, %v2700
    %v3557 = vpack.c.b16 %v2709, %v2701
    %v3558 = vpack.c.b16 %v2710, %v2702
    %v3559 = vpack.c.b16 %v2711, %v2703
    %v3560 = vpack.c.b16 %v2712, %v2704
    %v3561 = vpack.c.b16 %v2713, %v2705
    %v3562 = vpack.c.b16 %v2714, %v2706
    %v3563 = vpack.c.b16 %v2715, %v2707
    %v3564 = vpack.c.b16 %v2724, %v2716
    %v3565 = vpack.c.b16 %v2725, %v2717
    %v3566 = vpack.c.b16 %v2726, %v2718
    %v3567 = vpack.c.b16 %v2727, %v2719
    %v3568 = vpack.c.b16 %v2728, %v2720
    %v3569 = vpack.c.b16 %v2729, %v2721
    %v3570 = vpack.c.b16 %v2730, %v2722
    %v3571 = vpack.c.b16 %v2731, %v2723
    %v3572 = vpack.c.b16 %v2740, %v2732
    %v3573 = vpack.c.b16 %v2741, %v2733
    %v3574 = vpack.c.b16 %v2742, %v2734
    %v3575 = vpack.c.b16 %v2743, %v2735
    %v3576 = vpack.c.b16 %v2744, %v2736
    %v3577 = vpack.c.b16 %v2745, %v2737
    %v3578 = vpack.c.b16 %v2746, %v2738
    %v3579 = vpack.c.b16 %v2747, %v2739
    %v3580 = vpack.c.b16 %v2756, %v2748
    %v3581 = vpack.c.b16 %v2757, %v2749
    %v3582 = vpack.c.b16 %v2758, %v2750
    %v3583 = vpack.c.b16 %v2759, %v2751
    %v3584 = vpack.c.b16 %v2760, %v2752
    %v3585 = vpack.c.b16 %v2761, %v2753
    %v3586 = vpack.c.b16 %v2762, %v2754
    %v3587 = vpack.c.b16 %v2763, %v2755
    %v3588 = vpack.c.b16 %v2772, %v2764
    %v3589 = vpack.c.b16 %v2773, %v2765
    %v3590 = vpack.c.b16 %v2774, %v2766
    %v3591 = vpack.c.b16 %v2775, %v2767
    %v3592 = vpack.c.b16 %v2776, %v2768
    %v3593 = vpack.c.b16 %v2777, %v2769
    %v3594 = vpack.c.b16 %v2778, %v2770
    %v3595 = vpack.c.b16 %v2779, %v2771
    %v3596 = vpack.c.b16 %v2788, %v2780
    %v3597 = vpack.c.b16 %v2789, %v2781
    %v3598 = vpack.c.b16 %v2790, %v2782
    %v3599 = vpack.c.b16 %v2791, %v2783
    %v3600 = vpack.c.b16 %v2792, %v2784
    %v3601 = vpack.c.b16 %v2793, %v2785
    %v3602 = vpack.c.b16 %v2794, %v2786
    %v3603 = vpack.c.b16 %v2795, %v2787
    %v3604 = vpack.c.b16 %v2804, %v2796
    %v3605 = vpack.c.b16 %v2805, %v2797
    %v3606 = vpack.c.b16 %v2806, %v2798
    %v3607 = vpack.c.b16 %v2807, %v2799
    %v3608 = vpack.c.b16 %v2808, %v2800
    %v3609 = vpack.c.b16 %v2809, %v2801
    %v3610 = vpack.c.b16 %v2810, %v2802
    %v3611 = vpack.c.b16 %v2811, %v2803
    %v3612 = vpack.c.b16 %v2820, %v2812
    %v3613 = vpack.c.b16 %v2821, %v2813
    %v3614 = vpack.c.b16 %v2822, %v2814
    %v3615 = vpack.c.b16 %v2823, %v2815
    %v3616 = vpack.c.b16 %v2824, %v2816
    %v3617 = vpack.c.b16 %v2825, %v2817
    %v3618 = vpack.c.b16 %v2826, %v2818
    %v3619 = vpack.c.b16 %v2827, %v2819
    %v3620 = vpack.c.b16 %v2836, %v2828
    %v3621 = vpack.c.b16 %v2837, %v2829
    %v3622 = vpack.c.b16 %v2838, %v2830
    %v3623 = vpack.c.b16 %v2839, %v2831
    %v3624 = vpack.c.b16 %v2840, %v2832
    %v3625 = vpack.c.b16 %v2841, %v2833
    %v3626 = vpack.c.b16 %v2842, %v2834
    %v3627 = vpack.c.b16 %v2843, %v2835
    %v3628 = vpack.c.b16 %v2852, %v2844
    %v3629 = vpack.c.b16 %v2853, %v2845
    %v3630 = vpack.c.b16 %v2854, %v2846
    %v3631 = vpack.c.b16 %v2855, %v2847
    %v3632 = vpack.c.b16 %v2856, %v2848
    %v3633 = vpack.c.b16 %v2857, %v2849
    %v3634 = vpack.c.b16 %v2858, %v2850
    %v3635 = vpack.c.b16 %v2859, %v2851
    %v3636 = vpack.c.b16 %v2868, %v2860
    %v3637 = vpack.c.b16 %v2869, %v2861
    %v3638 = vpack.c.b16 %v2870, %v2862
    %v3639 = vpack.c.b16 %v2871, %v2863
    %v3640 = vpack.c.b16 %v2872, %v2864
    %v3641 = vpack.c.b16 %v2873, %v2865
    %v3642 = vpack.c.b16 %v2874, %v2866
    %v3643 = vpack.c.b16 %v2875, %v2867
    %v3644 = vpack.c.b16 %v2884, %v2876
    %v3645 = vpack.c.b16 %v2885, %v2877
    %v3646 = vpack.c.b16 %v2886, %v2878
    %v3647 = vpack.c.b16 %v2887, %v2879
    %v3648 = vpack.c.b16 %v2888, %v2880
    %v3649 = vpack.c.b16 %v2889, %v2881
    %v3650 = vpack.c.b16 %v2890, %v2882
    %v3651 = vpack.c.b16 %v2891, %v2883
    %v3652 = vpack.c.b16 %v2900, %v2892
    %v3653 = vpack.c.b16 %v2901, %v2893
    %v3654 = vpack.c.b16 %v2902, %v2894
    %v3655 = vpack.c.b16 %v2903, %v2895
    %v3656 = vpack.c.b16 %v2904, %v2896
    %v3657 = vpack.c.b16 %v2905, %v2897
    %v3658 = vpack.c.b16 %v2906, %v2898
    %v3659 = vpack.c.b16 %v2907, %v2899
    %v3660 = vpack.c.b16 %v2916, %v2908
    %v3661 = vpack.c.b16 %v2917, %v2909
    %v3662 = vpack.c.b16 %v2918, %v2910
    %v3663 = vpack.c.b16 %v2919, %v2911
    %v3664 = vpack.c.b16 %v2920, %v2912
    %v3665 = vpack.c.b16 %v2921, %v2913
    %v3666 = vpack.c.b16 %v2922, %v2914
    %v3667 = vpack.c.b16 %v2923, %v2915
    %v3668 = vpack.c.b16 %v2932, %v2924
    %v3669 = vpack.c.b16 %v2933, %v2925
    %v3670 = vpack.c.b16 %v2934, %v2926
    %v3671 = vpack.c.b16 %v2935, %v2927
    %v3672 = vpack.c.b16 %v2936, %v2928
    %v3673 = vpack.c.b16 %v2937, %v2929
    %v3674 = vpack.c.b16 %v2938, %v2930
    %v3675 = vpack.c.b16 %v2939, %v2931
    %v3676 = vpack.c.b16 %v2948, %v2940
    %v3677 = vpack.c.b16 %v2949, %v2941
    %v3678 = vpack.c.b16 %v2950, %v2942
    %v3679 = vpack.c.b16 %v2951, %v2943
    %v3680 = vpack.c.b16 %v2952, %v2944
    %v3681 = vpack.c.b16 %v2953, %v2945
    %v3682 = vpack.c.b16 %v2954, %v2946
    %v3683 = vpack.c.b16 %v2955, %v2947
    %v3684 = vpack.c.b16 %v2964, %v2956
    %v3685 = vpack.c.b16 %v2965, %v2957
    %v3686 = vpack.c.b16 %v2966, %v2958
    %v3687 = vpack.c.b16 %v2967, %v2959
    %v3688 = vpack.c.b16 %v2968, %v2960
    %v3689 = vpack.c.b16 %v2969, %v2961
    %v3690 = vpack.c.b16 %v2970, %v2962
    %v3691 = vpack.c.b16 %v2971, %v2963
    %v3692 = vpack.c.b16 %v2980, %v2972
    %v3693 = vpack.c.b16 %v2981, %v2973
    %v3694 = vpack.c.b16 %v2982, %v2974
    %v3695 = vpack.c.b16 %v2983, %v2975
    %v3696 = vpack.c.b16 %v2984, %v2976
    %v3697 = vpack.c.b16 %v2985, %v2977
    %v3698 = vpack.c.b16 %v2986, %v2978
    %v3699 = vpack.c.b16 %v2987, %v2979
    %v3700 = vpack.c.b16 %v2996, %v2988
    %v3701 = vpack.c.b16 %v2997, %v2989
    %v3702 = vpack.c.b16 %v2998, %v2990
    %v3703 = vpack.c.b16 %v2999, %v2991
    %v3704 = vpack.c.b16 %v3000, %v2992
    %v3705 = vpack.c.b16 %v3001, %v2993
    %v3706 = vpack.c.b16 %v3002, %v2994
    %v3707 = vpack.c.b16 %v3003, %v2995
    %v3708 = vpack.c.b16 %v3012, %v3004
    %v3709 = vpack.c.b16 %v3013, %v3005
    %v3710 = vpack.c.b16 %v3014, %v3006
    %v3711 = vpack.c.b16 %v3015, %v3007
    %v3712 = vpack.c.b16 %v3016, %v3008
    %v3713 = vpack.c.b16 %v3017, %v3009
    %v3714 = vpack.c.b16 %v3018, %v3010
    %v3715 = vpack.c.b16 %v3019, %v3011
    %v3716 = vpack.c.b16 %v3028, %v3020
    %v3717 = vpack.c.b16 %v3029, %v3021
    %v3718 = vpack.c.b16 %v3030, %v3022
    %v3719 = vpack.c.b16 %v3031, %v3023
    %v3720 = vpack.c.b16 %v3032, %v3024
    %v3721 = vpack.c.b16 %v3033, %v3025
    %v3722 = vpack.c.b16 %v3034, %v3026
    %v3723 = vpack.c.b16 %v3035, %v3027
    %v3724 = vpack.c.b16 %v3044, %v3036
    %v3725 = vpack.c.b16 %v3045, %v3037
    %v3726 = vpack.c.b16 %v3046, %v3038
    %v3727 = vpack.c.b16 %v3047, %v3039
    %v3728 = vpack.c.b16 %v3048, %v3040
    %v3729 = vpack.c.b16 %v3049, %v3041
    %v3730 = vpack.c.b16 %v3050, %v3042
    %v3731 = vpack.c.b16 %v3051, %v3043
    %v3732 = vpack.c.b16 %v3060, %v3052
    %v3733 = vpack.c.b16 %v3061, %v3053
    %v3734 = vpack.c.b16 %v3062, %v3054
    %v3735 = vpack.c.b16 %v3063, %v3055
    %v3736 = vpack.c.b16 %v3064, %v3056
    %v3737 = vpack.c.b16 %v3065, %v3057
    %v3738 = vpack.c.b16 %v3066, %v3058
    %v3739 = vpack.c.b16 %v3067, %v3059
    %v3740 = vpack.c.b16 %v3076, %v3068
    %v3741 = vpack.c.b16 %v3077, %v3069
    %v3742 = vpack.c.b16 %v3078, %v3070
    %v3743 = vpack.c.b16 %v3079, %v3071
    %v3744 = vpack.c.b16 %v3080, %v3072
    %v3745 = vpack.c.b16 %v3081, %v3073
    %v3746 = vpack.c.b16 %v3082, %v3074
    %v3747 = vpack.c.b16 %v3083, %v3075
    %v3748 = vpack.c.b16 %v3092, %v3084
    %v3749 = vpack.c.b16 %v3093, %v3085
    %v3750 = vpack.c.b16 %v3094, %v3086
    %v3751 = vpack.c.b16 %v3095, %v3087
    %v3752 = vpack.c.b16 %v3096, %v3088
    %v3753 = vpack.c.b16 %v3097, %v3089
    %v3754 = vpack.c.b16 %v3098, %v3090
    %v3755 = vpack.c.b16 %v3099, %v3091
    %v3756 = vpack.c.b16 %v3108, %v3100
    %v3757 = vpack.c.b16 %v3109, %v3101
    %v3758 = vpack.c.b16 %v3110, %v3102
    %v3759 = vpack.c.b16 %v3111, %v3103
    %v3760 = vpack.c.b16 %v3112, %v3104
    %v3761 = vpack.c.b16 %v3113, %v3105
    %v3762 = vpack.c.b16 %v3114, %v3106
    %v3763 = vpack.c.b16 %v3115, %v3107
    %v3764 = vpack.c.b16 %v3124, %v3116
    %v3765 = vpack.c.b16 %v3125, %v3117
    %v3766 = vpack.c.b16 %v3126, %v3118
    %v3767 = vpack.c.b16 %v3127, %v3119
    %v3768 = vpack.c.b16 %v3128, %v3120
    %v3769 = vpack.c.b16 %v3129, %v3121
    %v3770 = vpack.c.b16 %v3130, %v3122
    %v3771 = vpack.c.b16 %v3131, %v3123
    %v3772 = vpack.c.b16 %v3140, %v3132
    %v3773 = vpack.c.b16 %v3141, %v3133
    %v3774 = vpack.c.b16 %v3142, %v3134
    %v3775 = vpack.c.b16 %v3143, %v3135
    %v3776 = vpack.c.b16 %v3144, %v3136
    %v3777 = vpack.c.b16 %v3145, %v3137
    %v3778 = vpack.c.b16 %v3146, %v3138
    %v3779 = vpack.c.b16 %v3147, %v3139
    %v3780 = vpack.c.b16 %v3156, %v3148
    %v3781 = vpack.c.b16 %v3157, %v3149
    %v3782 = vpack.c.b16 %v3158, %v3150
    %v3783 = vpack.c.b16 %v3159, %v3151
    %v3784 = vpack.c.b16 %v3160, %v3152
    %v3785 = vpack.c.b16 %v3161, %v3153
    %v3786 = vpack.c.b16 %v3162, %v3154
    %v3787 = vpack.c.b16 %v3163, %v3155
    %v3788 = vpack.c.b16 %v3172, %v3164
    %v3789 = vpack.c.b16 %v3173, %v3165
    %v3790 = vpack.c.b16 %v3174, %v3166
    %v3791 = vpack.c.b16 %v3175, %v3167
    %v3792 = vpack.c.b16 %v3176, %v3168
    %v3793 = vpack.c.b16 %v3177, %v3169
    %v3794 = vpack.c.b16 %v3178, %v3170
    %v3795 = vpack.c.b16 %v3179, %v3171
    %v3796 = vpack.c.b16 %v3188, %v3180
    %v3797 = vpack.c.b16 %v3189, %v3181
    %v3798 = vpack.c.b16 %v3190, %v3182
    %v3799 = vpack.c.b16 %v3191, %v3183
    %v3800 = vpack.c.b16 %v3192, %v3184
    %v3801 = vpack.c.b16 %v3193, %v3185
    %v3802 = vpack.c.b16 %v3194, %v3186
    %v3803 = vpack.c.b16 %v3195, %v3187
    %v3804 = vpack.c.b16 %v3204, %v3196
    %v3805 = vpack.c.b16 %v3205, %v3197
    %v3806 = vpack.c.b16 %v3206, %v3198
    %v3807 = vpack.c.b16 %v3207, %v3199
    %v3808 = vpack.c.b16 %v3208, %v3200
    %v3809 = vpack.c.b16 %v3209, %v3201
    %v3810 = vpack.c.b16 %v3210, %v3202
    %v3811 = vpack.c.b16 %v3211, %v3203
    %v3812 = vpack.c.b16 %v3220, %v3212
    %v3813 = vpack.c.b16 %v3221, %v3213
    %v3814 = vpack.c.b16 %v3222, %v3214
    %v3815 = vpack.c.b16 %v3223, %v3215
    %v3816 = vpack.c.b16 %v3224, %v3216
    %v3817 = vpack.c.b16 %v3225, %v3217
    %v3818 = vpack.c.b16 %v3226, %v3218
    %v3819 = vpack.c.b16 %v3227, %v3219
    %v3820 = vpack.c.b16 %v3236, %v3228
    %v3821 = vpack.c.b16 %v3237, %v3229
    %v3822 = vpack.c.b16 %v3238, %v3230
    %v3823 = vpack.c.b16 %v3239, %v3231
    %v3824 = vpack.c.b16 %v3240, %v3232
    %v3825 = vpack.c.b16 %v3241, %v3233
    %v3826 = vpack.c.b16 %v3242, %v3234
    %v3827 = vpack.c.b16 %v3243, %v3235
    %v3828 = vpack.c.b16 %v3252, %v3244
    %v3829 = vpack.c.b16 %v3253, %v3245
    %v3830 = vpack.c.b16 %v3254, %v3246
    %v3831 = vpack.c.b16 %v3255, %v3247
    %v3832 = vpack.c.b16 %v3256, %v3248
    %v3833 = vpack.c.b16 %v3257, %v3249
    %v3834 = vpack.c.b16 %v3258, %v3250
    %v3835 = vpack.c.b16 %v3259, %v3251
    %v3836 = vpack.c.b16 %v3268, %v3260
    %v3837 = vpack.c.b16 %v3269, %v3261
    %v3838 = vpack.c.b16 %v3270, %v3262
    %v3839 = vpack.c.b16 %v3271, %v3263
    %v3840 = vpack.c.b16 %v3272, %v3264
    %v3841 = vpack.c.b16 %v3273, %v3265
    %v3842 = vpack.c.b16 %v3274, %v3266
    %v3843 = vpack.c.b16 %v3275, %v3267
    %v3844 = vpack.c.b16 %v3284, %v3276
    %v3845 = vpack.c.b16 %v3285, %v3277
    %v3846 = vpack.c.b16 %v3286, %v3278
    %v3847 = vpack.c.b16 %v3287, %v3279
    %v3848 = vpack.c.b16 %v3288, %v3280
    %v3849 = vpack.c.b16 %v3289, %v3281
    %v3850 = vpack.c.b16 %v3290, %v3282
    %v3851 = vpack.c.b16 %v3291, %v3283
    %v3852 = vpack.c.b16 %v3300, %v3292
    %v3853 = vpack.c.b16 %v3301, %v3293
    %v3854 = vpack.c.b16 %v3302, %v3294
    %v3855 = vpack.c.b16 %v3303, %v3295
    %v3856 = vpack.c.b16 %v3304, %v3296
    %v3857 = vpack.c.b16 %v3305, %v3297
    %v3858 = vpack.c.b16 %v3306, %v3298
    %v3859 = vpack.c.b16 %v3307, %v3299
    %v3860 = vpack.c.b16 %v3316, %v3308
    %v3861 = vpack.c.b16 %v3317, %v3309
    %v3862 = vpack.c.b16 %v3318, %v3310
    %v3863 = vpack.c.b16 %v3319, %v3311
    %v3864 = vpack.c.b16 %v3320, %v3312
    %v3865 = vpack.c.b16 %v3321, %v3313
    %v3866 = vpack.c.b16 %v3322, %v3314
    %v3867 = vpack.c.b16 %v3323, %v3315
    %v3868 = vpack.c.b16 %v3332, %v3324
    %v3869 = vpack.c.b16 %v3333, %v3325
    %v3870 = vpack.c.b16 %v3334, %v3326
    %v3871 = vpack.c.b16 %v3335, %v3327
    %v3872 = vpack.c.b16 %v3336, %v3328
    %v3873 = vpack.c.b16 %v3337, %v3329
    %v3874 = vpack.c.b16 %v3338, %v3330
    %v3875 = vpack.c.b16 %v3339, %v3331
    %v3876 = vpack.c.b16 %v3348, %v3340
    %v3877 = vpack.c.b16 %v3349, %v3341
    %v3878 = vpack.c.b16 %v3350, %v3342
    %v3879 = vpack.c.b16 %v3351, %v3343
    %v3880 = vpack.c.b16 %v3352, %v3344
    %v3881 = vpack.c.b16 %v3353, %v3345
    %v3882 = vpack.c.b16 %v3354, %v3346
    %v3883 = vpack.c.b16 %v3355, %v3347
    %v3884 = vpack.c.b16 %v3364, %v3356
    %v3885 = vpack.c.b16 %v3365, %v3357
    %v3886 = vpack.c.b16 %v3366, %v3358
    %v3887 = vpack.c.b16 %v3367, %v3359
    %v3888 = vpack.c.b16 %v3368, %v3360
    %v3889 = vpack.c.b16 %v3369, %v3361
    %v3890 = vpack.c.b16 %v3370, %v3362
    %v3891 = vpack.c.b16 %v3371, %v3363
    %v3892 = vpack.c.b16 %v3380, %v3372
    %v3893 = vpack.c.b16 %v3381, %v3373
    %v3894 = vpack.c.b16 %v3382, %v3374
    %v3895 = vpack.c.b16 %v3383, %v3375
    %v3896 = vpack.c.b16 %v3384, %v3376
    %v3897 = vpack.c.b16 %v3385, %v3377
    %v3898 = vpack.c.b16 %v3386, %v3378
    %v3899 = vpack.c.b16 %v3387, %v3379
    %4412 = vmatprep.subr.bf16.mxu0 %v3389
    %4413 = vmatpush1.bf16.msra.mxu0 %v3388
    %4414 = vmatprep.subr.bf16.mxu0 %v3397
    %4415 = vmatpush1.bf16.msra.mxu0 %v3396
    %4416 = vmatprep.subr.bf16.mxu0 %v3405
    %4417 = vmatpush1.bf16.msra.mxu0 %v3404
    %4418 = vmatprep.subr.bf16.mxu0 %v3413
    %4419 = vmatpush1.bf16.msra.mxu0 %v3412
    %4420 = vmatprep.subr.bf16.mxu0 %v3421
    %4421 = vmatpush1.bf16.msra.mxu0 %v3420
    %4422 = vmatprep.subr.bf16.mxu0 %v3429
    %4423 = vmatpush1.bf16.msra.mxu0 %v3428
    %4424 = vmatprep.subr.bf16.mxu0 %v3437
    %4425 = vmatpush1.bf16.msra.mxu0 %v3436
    %4426 = vmatprep.subr.bf16.mxu0 %v3445
    %4427 = vmatpush1.bf16.msra.mxu0 %v3444
    %4428 = vmatprep.subr.bf16.mxu0 %v3453
    %4429 = vmatpush1.bf16.msra.mxu0 %v3452
    %4430 = vmatprep.subr.bf16.mxu0 %v3461
    %4431 = vmatpush1.bf16.msra.mxu0 %v3460
    %4432 = vmatprep.subr.bf16.mxu0 %v3469
    %4433 = vmatpush1.bf16.msra.mxu0 %v3468
    %4434 = vmatprep.subr.bf16.mxu0 %v3477
    %4435 = vmatpush1.bf16.msra.mxu0 %v3476
    %4436 = vmatprep.subr.bf16.mxu0 %v3485
    %4437 = vmatpush1.bf16.msra.mxu0 %v3484
    %4438 = vmatprep.subr.bf16.mxu0 %v3493
    %4439 = vmatpush1.bf16.msra.mxu0 %v3492
    %4440 = vmatprep.subr.bf16.mxu0 %v3501
    %4441 = vmatpush1.bf16.msra.mxu0 %v3500
    %4442 = vmatprep.subr.bf16.mxu0 %v3509
    %4443 = vmatpush1.bf16.msra.mxu0 %v3508
    %4444 = vmatprep.mubr.bf16.mxu0 %v1291
    %4445 = vmatmul.mubr.bf16.gmra.mrb[0].mxu0 %v1290
    %v4446 = vpop.f32.mrb[0].mxu0
    %v4447 = vadd.f32 %v1815, %v4446
    %v4448 = vpop.f32.mrb[0].mxu0
    %v4449 = vadd.f32 %v1819, %v4448
    %v4450 = vpop.f32.mrb[0].mxu0
    %v4451 = vpop.f32.mrb[0].mxu0
    %4452 = vdwg.mxu0
    %4453 = vmatprep.subr.bf16.mxu0 %v3517
    %4454 = vmatpush1.bf16.msra.mxu0 %v3516
    %4455 = vmatprep.subr.bf16.mxu0 %v3525
    %4456 = vmatpush1.bf16.msra.mxu0 %v3524
    %4457 = vmatprep.subr.bf16.mxu0 %v3533
    %4458 = vmatpush1.bf16.msra.mxu0 %v3532
    %4459 = vmatprep.subr.bf16.mxu0 %v3541
    %4460 = vmatpush1.bf16.msra.mxu0 %v3540
    %4461 = vmatprep.subr.bf16.mxu0 %v3549
    %4462 = vmatpush1.bf16.msra.mxu0 %v3548
    %4463 = vmatprep.subr.bf16.mxu0 %v3557
    %4464 = vmatpush1.bf16.msra.mxu0 %v3556
    %4465 = vmatprep.subr.bf16.mxu0 %v3565
    %4466 = vmatpush1.bf16.msra.mxu0 %v3564
    %4467 = vmatprep.subr.bf16.mxu0 %v3573
    %4468 = vmatpush1.bf16.msra.mxu0 %v3572
    %4469 = vmatprep.subr.bf16.mxu0 %v3581
    %4470 = vmatpush1.bf16.msra.mxu0 %v3580
    %4471 = vmatprep.subr.bf16.mxu0 %v3589
    %4472 = vmatpush1.bf16.msra.mxu0 %v3588
    %4473 = vmatprep.subr.bf16.mxu0 %v3597
    %4474 = vmatpush1.bf16.msra.mxu0 %v3596
    %4475 = vmatprep.subr.bf16.mxu0 %v3605
    %4476 = vmatpush1.bf16.msra.mxu0 %v3604
    %4477 = vmatprep.subr.bf16.mxu0 %v3613
    %4478 = vmatpush1.bf16.msra.mxu0 %v3612
    %4479 = vmatprep.subr.bf16.mxu0 %v3621
    %4480 = vmatpush1.bf16.msra.mxu0 %v3620
    %4481 = vmatprep.subr.bf16.mxu0 %v3629
    %4482 = vmatpush1.bf16.msra.mxu0 %v3628
    %4483 = vmatprep.subr.bf16.mxu0 %v3637
    %4484 = vmatpush1.bf16.msra.mxu0 %v3636
    %4485 = vmatprep.mubr.bf16.mxu0 %v1293
    %4486 = vmatmul.mubr.bf16.gmra.mrb[0].mxu0 %v1292
    %v4487 = vpop.f32.mrb[0].mxu0
    %v4488 = vadd.f32 %v4447, %v4487
    %v4489 = vpop.f32.mrb[0].mxu0
    %v4490 = vadd.f32 %v4449, %v4489
    %v4491 = vpop.f32.mrb[0].mxu0
    %v4492 = vpop.f32.mrb[0].mxu0
    %4493 = vdwg.mxu0
    %4494 = vmatprep.subr.bf16.mxu0 %v3645
    %4495 = vmatpush1.bf16.msra.mxu0 %v3644
    %4496 = vmatprep.subr.bf16.mxu0 %v3653
    %4497 = vmatpush1.bf16.msra.mxu0 %v3652
    %4498 = vmatprep.subr.bf16.mxu0 %v3661
    %4499 = vmatpush1.bf16.msra.mxu0 %v3660
    %4500 = vmatprep.subr.bf16.mxu0 %v3669
    %4501 = vmatpush1.bf16.msra.mxu0 %v3668
    %4502 = vmatprep.subr.bf16.mxu0 %v3677
    %4503 = vmatpush1.bf16.msra.mxu0 %v3676
    %4504 = vmatprep.subr.bf16.mxu0 %v3685
    %4505 = vmatpush1.bf16.msra.mxu0 %v3684
    %4506 = vmatprep.subr.bf16.mxu0 %v3693
    %4507 = vmatpush1.bf16.msra.mxu0 %v3692
    %4508 = vmatprep.subr.bf16.mxu0 %v3701
    %4509 = vmatpush1.bf16.msra.mxu0 %v3700
    %4510 = vmatprep.subr.bf16.mxu0 %v3709
    %4511 = vmatpush1.bf16.msra.mxu0 %v3708
    %4512 = vmatprep.subr.bf16.mxu0 %v3717
    %4513 = vmatpush1.bf16.msra.mxu0 %v3716
    %4514 = vmatprep.subr.bf16.mxu0 %v3725
    %4515 = vmatpush1.bf16.msra.mxu0 %v3724
    %4516 = vmatprep.subr.bf16.mxu0 %v3733
    %4517 = vmatpush1.bf16.msra.mxu0 %v3732
    %4518 = vmatprep.subr.bf16.mxu0 %v3741
    %4519 = vmatpush1.bf16.msra.mxu0 %v3740
    %4520 = vmatprep.subr.bf16.mxu0 %v3749
    %4521 = vmatpush1.bf16.msra.mxu0 %v3748
    %4522 = vmatprep.subr.bf16.mxu0 %v3757
    %4523 = vmatpush1.bf16.msra.mxu0 %v3756
    %4524 = vmatprep.subr.bf16.mxu0 %v3765
    %4525 = vmatpush1.bf16.msra.mxu0 %v3764
    %4526 = vmatprep.mubr.bf16.mxu0 %v1295
    %4527 = vmatmul.mubr.bf16.gmra.mrb[0].mxu0 %v1294
    %v4528 = vpop.f32.mrb[0].mxu0
    %v4529 = vadd.f32 %v4488, %v4528
    %v4530 = vpop.f32.mrb[0].mxu0
    %v4531 = vadd.f32 %v4490, %v4530
    %v4532 = vpop.f32.mrb[0].mxu0
    %v4533 = vpop.f32.mrb[0].mxu0
    %4534 = vdwg.mxu0
    %4535 = vmatprep.subr.bf16.mxu0 %v3773
    %4536 = vmatpush1.bf16.msra.mxu0 %v3772
    %4537 = vmatprep.subr.bf16.mxu0 %v3781
    %4538 = vmatpush1.bf16.msra.mxu0 %v3780
    %4539 = vmatprep.subr.bf16.mxu0 %v3789
    %4540 = vmatpush1.bf16.msra.mxu0 %v3788
    %4541 = vmatprep.subr.bf16.mxu0 %v3797
    %4542 = vmatpush1.bf16.msra.mxu0 %v3796
    %4543 = vmatprep.subr.bf16.mxu0 %v3805
    %4544 = vmatpush1.bf16.msra.mxu0 %v3804
    %4545 = vmatprep.subr.bf16.mxu0 %v3813
    %4546 = vmatpush1.bf16.msra.mxu0 %v3812
    %4547 = vmatprep.subr.bf16.mxu0 %v3821
    %4548 = vmatpush1.bf16.msra.mxu0 %v3820
    %4549 = vmatprep.subr.bf16.mxu0 %v3829
    %4550 = vmatpush1.bf16.msra.mxu0 %v3828
    %4551 = vmatprep.subr.bf16.mxu0 %v3837
    %4552 = vmatpush1.bf16.msra.mxu0 %v3836
    %4553 = vmatprep.subr.bf16.mxu0 %v3845
    %4554 = vmatpush1.bf16.msra.mxu0 %v3844
    %4555 = vmatprep.subr.bf16.mxu0 %v3853
    %4556 = vmatpush1.bf16.msra.mxu0 %v3852
    %4557 = vmatprep.subr.bf16.mxu0 %v3861
    %4558 = vmatpush1.bf16.msra.mxu0 %v3860
    %4559 = vmatprep.subr.bf16.mxu0 %v3869
    %4560 = vmatpush1.bf16.msra.mxu0 %v3868
    %4561 = vmatprep.subr.bf16.mxu0 %v3877
    %4562 = vmatpush1.bf16.msra.mxu0 %v3876
    %4563 = vmatprep.subr.bf16.mxu0 %v3885
    %4564 = vmatpush1.bf16.msra.mxu0 %v3884
    %4565 = vmatprep.subr.bf16.mxu0 %v3893
    %4566 = vmatpush1.bf16.msra.mxu0 %v3892
    %4567 = vmatprep.mubr.bf16.mxu0 %v1297
    %4568 = vmatmul.mubr.bf16.gmra.mrb[0].mxu0 %v1296
    %v4569 = vpop.f32.mrb[0].mxu0
    %v4570 = vadd.f32 %v4529, %v4569
    %v4571 = vpop.f32.mrb[0].mxu0
    %v4572 = vadd.f32 %v4531, %v4571
    %v4573 = vpop.f32.mrb[0].mxu0
    %v4574 = vpop.f32.mrb[0].mxu0
    %4575 = vdwg.mxu0
    %4576 = vmatprep.subr.bf16.mxu0 %v3391
    %4577 = vmatpush1.bf16.msra.mxu0 %v3390
    %4578 = vmatprep.subr.bf16.mxu0 %v3399
    %4579 = vmatpush1.bf16.msra.mxu0 %v3398
    %4580 = vmatprep.subr.bf16.mxu0 %v3407
    %4581 = vmatpush1.bf16.msra.mxu0 %v3406
    %4582 = vmatprep.subr.bf16.mxu0 %v3415
    %4583 = vmatpush1.bf16.msra.mxu0 %v3414
    %4584 = vmatprep.subr.bf16.mxu0 %v3423
    %4585 = vmatpush1.bf16.msra.mxu0 %v3422
    %4586 = vmatprep.subr.bf16.mxu0 %v3431
    %4587 = vmatpush1.bf16.msra.mxu0 %v3430
    %4588 = vmatprep.subr.bf16.mxu0 %v3439
    %4589 = vmatpush1.bf16.msra.mxu0 %v3438
    %4590 = vmatprep.subr.bf16.mxu0 %v3447
    %4591 = vmatpush1.bf16.msra.mxu0 %v3446
    %4592 = vmatprep.subr.bf16.mxu0 %v3455
    %4593 = vmatpush1.bf16.msra.mxu0 %v3454
    %4594 = vmatprep.subr.bf16.mxu0 %v3463
    %4595 = vmatpush1.bf16.msra.mxu0 %v3462
    %4596 = vmatprep.subr.bf16.mxu0 %v3471
    %4597 = vmatpush1.bf16.msra.mxu0 %v3470
    %4598 = vmatprep.subr.bf16.mxu0 %v3479
    %4599 = vmatpush1.bf16.msra.mxu0 %v3478
    %4600 = vmatprep.subr.bf16.mxu0 %v3487
    %4601 = vmatpush1.bf16.msra.mxu0 %v3486
    %4602 = vmatprep.subr.bf16.mxu0 %v3495
    %4603 = vmatpush1.bf16.msra.mxu0 %v3494
    %4604 = vmatprep.subr.bf16.mxu0 %v3503
    %4605 = vmatpush1.bf16.msra.mxu0 %v3502
    %4606 = vmatprep.subr.bf16.mxu0 %v3511
    %4607 = vmatpush1.bf16.msra.mxu0 %v3510
    %4608 = vmatprep.mubr.bf16.mxu0 %v1291
    %4609 = vmatmul.mubr.bf16.gmra.mrb[0].mxu0 %v1290
    %v4610 = vpop.f32.mrb[0].mxu0
    %v4611 = vadd.f32 %v1823, %v4610
    %v4612 = vpop.f32.mrb[0].mxu0
    %v4613 = vadd.f32 %v1827, %v4612
    %v4614 = vpop.f32.mrb[0].mxu0
    %v4615 = vpop.f32.mrb[0].mxu0
    %4616 = vdwg.mxu0
    %4617 = vmatprep.subr.bf16.mxu0 %v3519
    %4618 = vmatpush1.bf16.msra.mxu0 %v3518
    %4619 = vmatprep.subr.bf16.mxu0 %v3527
    %4620 = vmatpush1.bf16.msra.mxu0 %v3526
    %4621 = vmatprep.subr.bf16.mxu0 %v3535
    %4622 = vmatpush1.bf16.msra.mxu0 %v3534
    %4623 = vmatprep.subr.bf16.mxu0 %v3543
    %4624 = vmatpush1.bf16.msra.mxu0 %v3542
    %4625 = vmatprep.subr.bf16.mxu0 %v3551
    %4626 = vmatpush1.bf16.msra.mxu0 %v3550
    %4627 = vmatprep.subr.bf16.mxu0 %v3559
    %4628 = vmatpush1.bf16.msra.mxu0 %v3558
    %4629 = vmatprep.subr.bf16.mxu0 %v3567
    %4630 = vmatpush1.bf16.msra.mxu0 %v3566
    %4631 = vmatprep.subr.bf16.mxu0 %v3575
    %4632 = vmatpush1.bf16.msra.mxu0 %v3574
    %4633 = vmatprep.subr.bf16.mxu0 %v3583
    %4634 = vmatpush1.bf16.msra.mxu0 %v3582
    %4635 = vmatprep.subr.bf16.mxu0 %v3591
    %4636 = vmatpush1.bf16.msra.mxu0 %v3590
    %4637 = vmatprep.subr.bf16.mxu0 %v3599
    %4638 = vmatpush1.bf16.msra.mxu0 %v3598
    %4639 = vmatprep.subr.bf16.mxu0 %v3607
    %4640 = vmatpush1.bf16.msra.mxu0 %v3606
    %4641 = vmatprep.subr.bf16.mxu0 %v3615
    %4642 = vmatpush1.bf16.msra.mxu0 %v3614
    %4643 = vmatprep.subr.bf16.mxu0 %v3623
    %4644 = vmatpush1.bf16.msra.mxu0 %v3622
    %4645 = vmatprep.subr.bf16.mxu0 %v3631
    %4646 = vmatpush1.bf16.msra.mxu0 %v3630
    %4647 = vmatprep.subr.bf16.mxu0 %v3639
    %4648 = vmatpush1.bf16.msra.mxu0 %v3638
    %4649 = vmatprep.mubr.bf16.mxu0 %v1293
    %4650 = vmatmul.mubr.bf16.gmra.mrb[0].mxu0 %v1292
    %v4651 = vpop.f32.mrb[0].mxu0
    %v4652 = vadd.f32 %v4611, %v4651
    %v4653 = vpop.f32.mrb[0].mxu0
    %v4654 = vadd.f32 %v4613, %v4653
    %v4655 = vpop.f32.mrb[0].mxu0
    %v4656 = vpop.f32.mrb[0].mxu0
    %4657 = vdwg.mxu0
    %4658 = vmatprep.subr.bf16.mxu0 %v3647
    %4659 = vmatpush1.bf16.msra.mxu0 %v3646
    %4660 = vmatprep.subr.bf16.mxu0 %v3655
    %4661 = vmatpush1.bf16.msra.mxu0 %v3654
    %4662 = vmatprep.subr.bf16.mxu0 %v3663
    %4663 = vmatpush1.bf16.msra.mxu0 %v3662
    %4664 = vmatprep.subr.bf16.mxu0 %v3671
    %4665 = vmatpush1.bf16.msra.mxu0 %v3670
    %4666 = vmatprep.subr.bf16.mxu0 %v3679
    %4667 = vmatpush1.bf16.msra.mxu0 %v3678
    %4668 = vmatprep.subr.bf16.mxu0 %v3687
    %4669 = vmatpush1.bf16.msra.mxu0 %v3686
    %4670 = vmatprep.subr.bf16.mxu0 %v3695
    %4671 = vmatpush1.bf16.msra.mxu0 %v3694
    %4672 = vmatprep.subr.bf16.mxu0 %v3703
    %4673 = vmatpush1.bf16.msra.mxu0 %v3702
    %4674 = vmatprep.subr.bf16.mxu0 %v3711
    %4675 = vmatpush1.bf16.msra.mxu0 %v3710
    %4676 = vmatprep.subr.bf16.mxu0 %v3719
    %4677 = vmatpush1.bf16.msra.mxu0 %v3718
    %4678 = vmatprep.subr.bf16.mxu0 %v3727
    %4679 = vmatpush1.bf16.msra.mxu0 %v3726
    %4680 = vmatprep.subr.bf16.mxu0 %v3735
    %4681 = vmatpush1.bf16.msra.mxu0 %v3734
    %4682 = vmatprep.subr.bf16.mxu0 %v3743
    %4683 = vmatpush1.bf16.msra.mxu0 %v3742
    %4684 = vmatprep.subr.bf16.mxu0 %v3751
    %4685 = vmatpush1.bf16.msra.mxu0 %v3750
    %4686 = vmatprep.subr.bf16.mxu0 %v3759
    %4687 = vmatpush1.bf16.msra.mxu0 %v3758
    %4688 = vmatprep.subr.bf16.mxu0 %v3767
    %4689 = vmatpush1.bf16.msra.mxu0 %v3766
    %4690 = vmatprep.mubr.bf16.mxu0 %v1295
    %4691 = vmatmul.mubr.bf16.gmra.mrb[0].mxu0 %v1294
    %v4692 = vpop.f32.mrb[0].mxu0
    %v4693 = vadd.f32 %v4652, %v4692
    %v4694 = vpop.f32.mrb[0].mxu0
    %v4695 = vadd.f32 %v4654, %v4694
    %v4696 = vpop.f32.mrb[0].mxu0
    %v4697 = vpop.f32.mrb[0].mxu0
    %4698 = vdwg.mxu0
    %4699 = vmatprep.subr.bf16.mxu0 %v3775
    %4700 = vmatpush1.bf16.msra.mxu0 %v3774
    %4701 = vmatprep.subr.bf16.mxu0 %v3783
    %4702 = vmatpush1.bf16.msra.mxu0 %v3782
    %4703 = vmatprep.subr.bf16.mxu0 %v3791
    %4704 = vmatpush1.bf16.msra.mxu0 %v3790
    %4705 = vmatprep.subr.bf16.mxu0 %v3799
    %4706 = vmatpush1.bf16.msra.mxu0 %v3798
    %4707 = vmatprep.subr.bf16.mxu0 %v3807
    %4708 = vmatpush1.bf16.msra.mxu0 %v3806
    %4709 = vmatprep.subr.bf16.mxu0 %v3815
    %4710 = vmatpush1.bf16.msra.mxu0 %v3814
    %4711 = vmatprep.subr.bf16.mxu0 %v3823
    %4712 = vmatpush1.bf16.msra.mxu0 %v3822
    %4713 = vmatprep.subr.bf16.mxu0 %v3831
    %4714 = vmatpush1.bf16.msra.mxu0 %v3830
    %4715 = vmatprep.subr.bf16.mxu0 %v3839
    %4716 = vmatpush1.bf16.msra.mxu0 %v3838
    %4717 = vmatprep.subr.bf16.mxu0 %v3847
    %4718 = vmatpush1.bf16.msra.mxu0 %v3846
    %4719 = vmatprep.subr.bf16.mxu0 %v3855
    %4720 = vmatpush1.bf16.msra.mxu0 %v3854
    %4721 = vmatprep.subr.bf16.mxu0 %v3863
    %4722 = vmatpush1.bf16.msra.mxu0 %v3862
    %4723 = vmatprep.subr.bf16.mxu0 %v3871
    %4724 = vmatpush1.bf16.msra.mxu0 %v3870
    %4725 = vmatprep.subr.bf16.mxu0 %v3879
    %4726 = vmatpush1.bf16.msra.mxu0 %v3878
    %4727 = vmatprep.subr.bf16.mxu0 %v3887
    %4728 = vmatpush1.bf16.msra.mxu0 %v3886
    %4729 = vmatprep.subr.bf16.mxu0 %v3895
    %4730 = vmatpush1.bf16.msra.mxu0 %v3894
    %4731 = vmatprep.mubr.bf16.mxu0 %v1297
    %4732 = vmatmul.mubr.bf16.gmra.mrb[0].mxu0 %v1296
    %v4733 = vpop.f32.mrb[0].mxu0
    %v4734 = vadd.f32 %v4693, %v4733
    %v4735 = vpop.f32.mrb[0].mxu0
    %v4736 = vadd.f32 %v4695, %v4735
    %v4737 = vpop.f32.mrb[0].mxu0
    %v4738 = vpop.f32.mrb[0].mxu0
    %4739 = vdwg.mxu0
    %4740 = vmatprep.subr.bf16.mxu0 %v3393
    %4741 = vmatpush1.bf16.msra.mxu0 %v3392
    %4742 = vmatprep.subr.bf16.mxu0 %v3401
    %4743 = vmatpush1.bf16.msra.mxu0 %v3400
    %4744 = vmatprep.subr.bf16.mxu0 %v3409
    %4745 = vmatpush1.bf16.msra.mxu0 %v3408
    %4746 = vmatprep.subr.bf16.mxu0 %v3417
    %4747 = vmatpush1.bf16.msra.mxu0 %v3416
    %4748 = vmatprep.subr.bf16.mxu0 %v3425
    %4749 = vmatpush1.bf16.msra.mxu0 %v3424
    %4750 = vmatprep.subr.bf16.mxu0 %v3433
    %4751 = vmatpush1.bf16.msra.mxu0 %v3432
    %4752 = vmatprep.subr.bf16.mxu0 %v3441
    %4753 = vmatpush1.bf16.msra.mxu0 %v3440
    %4754 = vmatprep.subr.bf16.mxu0 %v3449
    %4755 = vmatpush1.bf16.msra.mxu0 %v3448
    %4756 = vmatprep.subr.bf16.mxu0 %v3457
    %4757 = vmatpush1.bf16.msra.mxu0 %v3456
    %4758 = vmatprep.subr.bf16.mxu0 %v3465
    %4759 = vmatpush1.bf16.msra.mxu0 %v3464
    %4760 = vmatprep.subr.bf16.mxu0 %v3473
    %4761 = vmatpush1.bf16.msra.mxu0 %v3472
    %4762 = vmatprep.subr.bf16.mxu0 %v3481
    %4763 = vmatpush1.bf16.msra.mxu0 %v3480
    %4764 = vmatprep.subr.bf16.mxu0 %v3489
    %4765 = vmatpush1.bf16.msra.mxu0 %v3488
    %4766 = vmatprep.subr.bf16.mxu0 %v3497
    %4767 = vmatpush1.bf16.msra.mxu0 %v3496
    %4768 = vmatprep.subr.bf16.mxu0 %v3505
    %4769 = vmatpush1.bf16.msra.mxu0 %v3504
    %4770 = vmatprep.subr.bf16.mxu0 %v3513
    %4771 = vmatpush1.bf16.msra.mxu0 %v3512
    %4772 = vmatprep.mubr.bf16.mxu0 %v1291
    %4773 = vmatmul.mubr.bf16.gmra.mrb[0].mxu0 %v1290
    %v4774 = vpop.f32.mrb[0].mxu0
    %v4775 = vadd.f32 %v1831, %v4774
    %v4776 = vpop.f32.mrb[0].mxu0
    %v4777 = vadd.f32 %v1835, %v4776
    %v4778 = vpop.f32.mrb[0].mxu0
    %v4779 = vpop.f32.mrb[0].mxu0
    %4780 = vdwg.mxu0
    %4781 = vmatprep.subr.bf16.mxu0 %v3521
    %4782 = vmatpush1.bf16.msra.mxu0 %v3520
    %4783 = vmatprep.subr.bf16.mxu0 %v3529
    %4784 = vmatpush1.bf16.msra.mxu0 %v3528
    %4785 = vmatprep.subr.bf16.mxu0 %v3537
    %4786 = vmatpush1.bf16.msra.mxu0 %v3536
    %4787 = vmatprep.subr.bf16.mxu0 %v3545
    %4788 = vmatpush1.bf16.msra.mxu0 %v3544
    %4789 = vmatprep.subr.bf16.mxu0 %v3553
    %4790 = vmatpush1.bf16.msra.mxu0 %v3552
    %4791 = vmatprep.subr.bf16.mxu0 %v3561
    %4792 = vmatpush1.bf16.msra.mxu0 %v3560
    %4793 = vmatprep.subr.bf16.mxu0 %v3569
    %4794 = vmatpush1.bf16.msra.mxu0 %v3568
    %4795 = vmatprep.subr.bf16.mxu0 %v3577
    %4796 = vmatpush1.bf16.msra.mxu0 %v3576
    %4797 = vmatprep.subr.bf16.mxu0 %v3585
    %4798 = vmatpush1.bf16.msra.mxu0 %v3584
    %4799 = vmatprep.subr.bf16.mxu0 %v3593
    %4800 = vmatpush1.bf16.msra.mxu0 %v3592
    %4801 = vmatprep.subr.bf16.mxu0 %v3601
    %4802 = vmatpush1.bf16.msra.mxu0 %v3600
    %4803 = vmatprep.subr.bf16.mxu0 %v3609
    %4804 = vmatpush1.bf16.msra.mxu0 %v3608
    %4805 = vmatprep.subr.bf16.mxu0 %v3617
    %4806 = vmatpush1.bf16.msra.mxu0 %v3616
    %4807 = vmatprep.subr.bf16.mxu0 %v3625
    %4808 = vmatpush1.bf16.msra.mxu0 %v3624
    %4809 = vmatprep.subr.bf16.mxu0 %v3633
    %4810 = vmatpush1.bf16.msra.mxu0 %v3632
    %4811 = vmatprep.subr.bf16.mxu0 %v3641
    %4812 = vmatpush1.bf16.msra.mxu0 %v3640
    %4813 = vmatprep.mubr.bf16.mxu0 %v1293
    %4814 = vmatmul.mubr.bf16.gmra.mrb[0].mxu0 %v1292
    %v4815 = vpop.f32.mrb[0].mxu0
    %v4816 = vadd.f32 %v4775, %v4815
    %v4817 = vpop.f32.mrb[0].mxu0
    %v4818 = vadd.f32 %v4777, %v4817
    %v4819 = vpop.f32.mrb[0].mxu0
    %v4820 = vpop.f32.mrb[0].mxu0
    %4821 = vdwg.mxu0
    %4822 = vmatprep.subr.bf16.mxu0 %v3649
    %4823 = vmatpush1.bf16.msra.mxu0 %v3648
    %4824 = vmatprep.subr.bf16.mxu0 %v3657
    %4825 = vmatpush1.bf16.msra.mxu0 %v3656
    %4826 = vmatprep.subr.bf16.mxu0 %v3665
    %4827 = vmatpush1.bf16.msra.mxu0 %v3664
    %4828 = vmatprep.subr.bf16.mxu0 %v3673
    %4829 = vmatpush1.bf16.msra.mxu0 %v3672
    %4830 = vmatprep.subr.bf16.mxu0 %v3681
    %4831 = vmatpush1.bf16.msra.mxu0 %v3680
    %4832 = vmatprep.subr.bf16.mxu0 %v3689
    %4833 = vmatpush1.bf16.msra.mxu0 %v3688
    %4834 = vmatprep.subr.bf16.mxu0 %v3697
    %4835 = vmatpush1.bf16.msra.mxu0 %v3696
    %4836 = vmatprep.subr.bf16.mxu0 %v3705
    %4837 = vmatpush1.bf16.msra.mxu0 %v3704
    %4838 = vmatprep.subr.bf16.mxu0 %v3713
    %4839 = vmatpush1.bf16.msra.mxu0 %v3712
    %4840 = vmatprep.subr.bf16.mxu0 %v3721
    %4841 = vmatpush1.bf16.msra.mxu0 %v3720
    %4842 = vmatprep.subr.bf16.mxu0 %v3729
    %4843 = vmatpush1.bf16.msra.mxu0 %v3728
    %4844 = vmatprep.subr.bf16.mxu0 %v3737
    %4845 = vmatpush1.bf16.msra.mxu0 %v3736
    %4846 = vmatprep.subr.bf16.mxu0 %v3745
    %4847 = vmatpush1.bf16.msra.mxu0 %v3744
    %4848 = vmatprep.subr.bf16.mxu0 %v3753
    %4849 = vmatpush1.bf16.msra.mxu0 %v3752
    %4850 = vmatprep.subr.bf16.mxu0 %v3761
    %4851 = vmatpush1.bf16.msra.mxu0 %v3760
    %4852 = vmatprep.subr.bf16.mxu0 %v3769
    %4853 = vmatpush1.bf16.msra.mxu0 %v3768
    %4854 = vmatprep.mubr.bf16.mxu0 %v1295
    %4855 = vmatmul.mubr.bf16.gmra.mrb[0].mxu0 %v1294
    %v4856 = vpop.f32.mrb[0].mxu0
    %v4857 = vadd.f32 %v4816, %v4856
    %v4858 = vpop.f32.mrb[0].mxu0
    %v4859 = vadd.f32 %v4818, %v4858
    %v4860 = vpop.f32.mrb[0].mxu0
    %v4861 = vpop.f32.mrb[0].mxu0
    %4862 = vdwg.mxu0
    %4863 = vmatprep.subr.bf16.mxu0 %v3777
    %4864 = vmatpush1.bf16.msra.mxu0 %v3776
    %4865 = vmatprep.subr.bf16.mxu0 %v3785
    %4866 = vmatpush1.bf16.msra.mxu0 %v3784
    %4867 = vmatprep.subr.bf16.mxu0 %v3793
    %4868 = vmatpush1.bf16.msra.mxu0 %v3792
    %4869 = vmatprep.subr.bf16.mxu0 %v3801
    %4870 = vmatpush1.bf16.msra.mxu0 %v3800
    %4871 = vmatprep.subr.bf16.mxu0 %v3809
    %4872 = vmatpush1.bf16.msra.mxu0 %v3808
    %4873 = vmatprep.subr.bf16.mxu0 %v3817
    %4874 = vmatpush1.bf16.msra.mxu0 %v3816
    %4875 = vmatprep.subr.bf16.mxu0 %v3825
    %4876 = vmatpush1.bf16.msra.mxu0 %v3824
    %4877 = vmatprep.subr.bf16.mxu0 %v3833
    %4878 = vmatpush1.bf16.msra.mxu0 %v3832
    %4879 = vmatprep.subr.bf16.mxu0 %v3841
    %4880 = vmatpush1.bf16.msra.mxu0 %v3840
    %4881 = vmatprep.subr.bf16.mxu0 %v3849
    %4882 = vmatpush1.bf16.msra.mxu0 %v3848
    %4883 = vmatprep.subr.bf16.mxu0 %v3857
    %4884 = vmatpush1.bf16.msra.mxu0 %v3856
    %4885 = vmatprep.subr.bf16.mxu0 %v3865
    %4886 = vmatpush1.bf16.msra.mxu0 %v3864
    %4887 = vmatprep.subr.bf16.mxu0 %v3873
    %4888 = vmatpush1.bf16.msra.mxu0 %v3872
    %4889 = vmatprep.subr.bf16.mxu0 %v3881
    %4890 = vmatpush1.bf16.msra.mxu0 %v3880
    %4891 = vmatprep.subr.bf16.mxu0 %v3889
    %4892 = vmatpush1.bf16.msra.mxu0 %v3888
    %4893 = vmatprep.subr.bf16.mxu0 %v3897
    %4894 = vmatpush1.bf16.msra.mxu0 %v3896
    %4895 = vmatprep.mubr.bf16.mxu0 %v1297
    %4896 = vmatmul.mubr.bf16.gmra.mrb[0].mxu0 %v1296
    %v4897 = vpop.f32.mrb[0].mxu0
    %v4898 = vadd.f32 %v4857, %v4897
    %v4899 = vpop.f32.mrb[0].mxu0
    %v4900 = vadd.f32 %v4859, %v4899
    %v4901 = vpop.f32.mrb[0].mxu0
    %v4902 = vpop.f32.mrb[0].mxu0
    %4903 = vdwg.mxu0
    %4904 = vmatprep.subr.bf16.mxu0 %v3395
    %4905 = vmatpush1.bf16.msra.mxu0 %v3394
    %4906 = vmatprep.subr.bf16.mxu0 %v3403
    %4907 = vmatpush1.bf16.msra.mxu0 %v3402
    %4908 = vmatprep.subr.bf16.mxu0 %v3411
    %4909 = vmatpush1.bf16.msra.mxu0 %v3410
    %4910 = vmatprep.subr.bf16.mxu0 %v3419
    %4911 = vmatpush1.bf16.msra.mxu0 %v3418
    %4912 = vmatprep.subr.bf16.mxu0 %v3427
    %4913 = vmatpush1.bf16.msra.mxu0 %v3426
    %4914 = vmatprep.subr.bf16.mxu0 %v3435
    %4915 = vmatpush1.bf16.msra.mxu0 %v3434
    %4916 = vmatprep.subr.bf16.mxu0 %v3443
    %4917 = vmatpush1.bf16.msra.mxu0 %v3442
    %4918 = vmatprep.subr.bf16.mxu0 %v3451
    %4919 = vmatpush1.bf16.msra.mxu0 %v3450
    %4920 = vmatprep.subr.bf16.mxu0 %v3459
    %4921 = vmatpush1.bf16.msra.mxu0 %v3458
    %4922 = vmatprep.subr.bf16.mxu0 %v3467
    %4923 = vmatpush1.bf16.msra.mxu0 %v3466
    %4924 = vmatprep.subr.bf16.mxu0 %v3475
    %4925 = vmatpush1.bf16.msra.mxu0 %v3474
    %4926 = vmatprep.subr.bf16.mxu0 %v3483
    %4927 = vmatpush1.bf16.msra.mxu0 %v3482
    %4928 = vmatprep.subr.bf16.mxu0 %v3491
    %4929 = vmatpush1.bf16.msra.mxu0 %v3490
    %4930 = vmatprep.subr.bf16.mxu0 %v3499
    %4931 = vmatpush1.bf16.msra.mxu0 %v3498
    %4932 = vmatprep.subr.bf16.mxu0 %v3507
    %4933 = vmatpush1.bf16.msra.mxu0 %v3506
    %4934 = vmatprep.subr.bf16.mxu0 %v3515
    %4935 = vmatpush1.bf16.msra.mxu0 %v3514
    %4936 = vmatprep.mubr.bf16.mxu0 %v1291
    %4937 = vmatmul.mubr.bf16.gmra.mrb[0].mxu0 %v1290
    %v4938 = vpop.f32.mrb[0].mxu0
    %v4939 = vadd.f32 %v1839, %v4938
    %v4940 = vpop.f32.mrb[0].mxu0
    %v4941 = vadd.f32 %v1843, %v4940
    %v4942 = vpop.f32.mrb[0].mxu0
    %v4943 = vpop.f32.mrb[0].mxu0
    %4944 = vdwg.mxu0
    %4945 = vmatprep.subr.bf16.mxu0 %v3523
    %4946 = vmatpush1.bf16.msra.mxu0 %v3522
    %4947 = vmatprep.subr.bf16.mxu0 %v3531
    %4948 = vmatpush1.bf16.msra.mxu0 %v3530
    %4949 = vmatprep.subr.bf16.mxu0 %v3539
    %4950 = vmatpush1.bf16.msra.mxu0 %v3538
    %4951 = vmatprep.subr.bf16.mxu0 %v3547
    %4952 = vmatpush1.bf16.msra.mxu0 %v3546
    %4953 = vmatprep.subr.bf16.mxu0 %v3555
    %4954 = vmatpush1.bf16.msra.mxu0 %v3554
    %4955 = vmatprep.subr.bf16.mxu0 %v3563
    %4956 = vmatpush1.bf16.msra.mxu0 %v3562
    %4957 = vmatprep.subr.bf16.mxu0 %v3571
    %4958 = vmatpush1.bf16.msra.mxu0 %v3570
    %4959 = vmatprep.subr.bf16.mxu0 %v3579
    %4960 = vmatpush1.bf16.msra.mxu0 %v3578
    %4961 = vmatprep.subr.bf16.mxu0 %v3587
    %4962 = vmatpush1.bf16.msra.mxu0 %v3586
    %4963 = vmatprep.subr.bf16.mxu0 %v3595
    %4964 = vmatpush1.bf16.msra.mxu0 %v3594
    %4965 = vmatprep.subr.bf16.mxu0 %v3603
    %4966 = vmatpush1.bf16.msra.mxu0 %v3602
    %4967 = vmatprep.subr.bf16.mxu0 %v3611
    %4968 = vmatpush1.bf16.msra.mxu0 %v3610
    %4969 = vmatprep.subr.bf16.mxu0 %v3619
    %4970 = vmatpush1.bf16.msra.mxu0 %v3618
    %4971 = vmatprep.subr.bf16.mxu0 %v3627
    %4972 = vmatpush1.bf16.msra.mxu0 %v3626
    %4973 = vmatprep.subr.bf16.mxu0 %v3635
    %4974 = vmatpush1.bf16.msra.mxu0 %v3634
    %4975 = vmatprep.subr.bf16.mxu0 %v3643
    %4976 = vmatpush1.bf16.msra.mxu0 %v3642
    %4977 = vmatprep.mubr.bf16.mxu0 %v1293
    %4978 = vmatmul.mubr.bf16.gmra.mrb[0].mxu0 %v1292
    %v4979 = vpop.f32.mrb[0].mxu0
    %v4980 = vadd.f32 %v4939, %v4979
    %v4981 = vpop.f32.mrb[0].mxu0
    %v4982 = vadd.f32 %v4941, %v4981
    %v4983 = vpop.f32.mrb[0].mxu0
    %v4984 = vpop.f32.mrb[0].mxu0
    %4985 = vdwg.mxu0
    %4986 = vmatprep.subr.bf16.mxu0 %v3651
    %4987 = vmatpush1.bf16.msra.mxu0 %v3650
    %4988 = vmatprep.subr.bf16.mxu0 %v3659
    %4989 = vmatpush1.bf16.msra.mxu0 %v3658
    %4990 = vmatprep.subr.bf16.mxu0 %v3667
    %4991 = vmatpush1.bf16.msra.mxu0 %v3666
    %4992 = vmatprep.subr.bf16.mxu0 %v3675
    %4993 = vmatpush1.bf16.msra.mxu0 %v3674
    %4994 = vmatprep.subr.bf16.mxu0 %v3683
    %4995 = vmatpush1.bf16.msra.mxu0 %v3682
    %4996 = vmatprep.subr.bf16.mxu0 %v3691
    %4997 = vmatpush1.bf16.msra.mxu0 %v3690
    %4998 = vmatprep.subr.bf16.mxu0 %v3699
    %4999 = vmatpush1.bf16.msra.mxu0 %v3698
    %5000 = vmatprep.subr.bf16.mxu0 %v3707
    %5001 = vmatpush1.bf16.msra.mxu0 %v3706
    %5002 = vmatprep.subr.bf16.mxu0 %v3715
    %5003 = vmatpush1.bf16.msra.mxu0 %v3714
    %5004 = vmatprep.subr.bf16.mxu0 %v3723
    %5005 = vmatpush1.bf16.msra.mxu0 %v3722
    %5006 = vmatprep.subr.bf16.mxu0 %v3731
    %5007 = vmatpush1.bf16.msra.mxu0 %v3730
    %5008 = vmatprep.subr.bf16.mxu0 %v3739
    %5009 = vmatpush1.bf16.msra.mxu0 %v3738
    %5010 = vmatprep.subr.bf16.mxu0 %v3747
    %5011 = vmatpush1.bf16.msra.mxu0 %v3746
    %5012 = vmatprep.subr.bf16.mxu0 %v3755
    %5013 = vmatpush1.bf16.msra.mxu0 %v3754
    %5014 = vmatprep.subr.bf16.mxu0 %v3763
    %5015 = vmatpush1.bf16.msra.mxu0 %v3762
    %5016 = vmatprep.subr.bf16.mxu0 %v3771
    %5017 = vmatpush1.bf16.msra.mxu0 %v3770
    %5018 = vmatprep.mubr.bf16.mxu0 %v1295
    %5019 = vmatmul.mubr.bf16.gmra.mrb[0].mxu0 %v1294
    %v5020 = vpop.f32.mrb[0].mxu0
    %v5021 = vadd.f32 %v4980, %v5020
    %v5022 = vpop.f32.mrb[0].mxu0
    %v5023 = vadd.f32 %v4982, %v5022
    %v5024 = vpop.f32.mrb[0].mxu0
    %v5025 = vpop.f32.mrb[0].mxu0
    %5026 = vdwg.mxu0
    %5027 = vmatprep.subr.bf16.mxu0 %v3779
    %5028 = vmatpush1.bf16.msra.mxu0 %v3778
    %5029 = vmatprep.subr.bf16.mxu0 %v3787
    %5030 = vmatpush1.bf16.msra.mxu0 %v3786
    %5031 = vmatprep.subr.bf16.mxu0 %v3795
    %5032 = vmatpush1.bf16.msra.mxu0 %v3794
    %5033 = vmatprep.subr.bf16.mxu0 %v3803
    %5034 = vmatpush1.bf16.msra.mxu0 %v3802
    %5035 = vmatprep.subr.bf16.mxu0 %v3811
    %5036 = vmatpush1.bf16.msra.mxu0 %v3810
    %5037 = vmatprep.subr.bf16.mxu0 %v3819
    %5038 = vmatpush1.bf16.msra.mxu0 %v3818
    %5039 = vmatprep.subr.bf16.mxu0 %v3827
    %5040 = vmatpush1.bf16.msra.mxu0 %v3826
    %5041 = vmatprep.subr.bf16.mxu0 %v3835
    %5042 = vmatpush1.bf16.msra.mxu0 %v3834
    %5043 = vmatprep.subr.bf16.mxu0 %v3843
    %5044 = vmatpush1.bf16.msra.mxu0 %v3842
    %5045 = vmatprep.subr.bf16.mxu0 %v3851
    %5046 = vmatpush1.bf16.msra.mxu0 %v3850
    %5047 = vmatprep.subr.bf16.mxu0 %v3859
    %5048 = vmatpush1.bf16.msra.mxu0 %v3858
    %5049 = vmatprep.subr.bf16.mxu0 %v3867
    %5050 = vmatpush1.bf16.msra.mxu0 %v3866
    %5051 = vmatprep.subr.bf16.mxu0 %v3875
    %5052 = vmatpush1.bf16.msra.mxu0 %v3874
    %5053 = vmatprep.subr.bf16.mxu0 %v3883
    %5054 = vmatpush1.bf16.msra.mxu0 %v3882
    %5055 = vmatprep.subr.bf16.mxu0 %v3891
    %5056 = vmatpush1.bf16.msra.mxu0 %v3890
    %5057 = vmatprep.subr.bf16.mxu0 %v3899
    %5058 = vmatpush1.bf16.msra.mxu0 %v3898
    %5059 = vmatprep.mubr.bf16.mxu0 %v1297
    %5060 = vmatmul.mubr.bf16.gmra.mrb[0].mxu0 %v1296
    %v5061 = vpop.f32.mrb[0].mxu0
    %v5062 = vadd.f32 %v5021, %v5061
    %v5063 = vpop.f32.mrb[0].mxu0
    %v5064 = vadd.f32 %v5023, %v5063
    %v5065 = vpop.f32.mrb[0].mxu0
    %v5066 = vpop.f32.mrb[0].mxu0
    %5067 = vdwg.mxu0
    %vm5068 = vcmp.gt.f32.partialorder %v4570, 0.0
    %vm5069 = vcmp.gt.f32.partialorder %v4572, 0.0
    %vm5070 = vcmp.gt.f32.partialorder %v4734, 0.0
    %vm5071 = vcmp.gt.f32.partialorder %v4736, 0.0
    %vm5072 = vcmp.gt.f32.partialorder %v4898, 0.0
    %vm5073 = vcmp.gt.f32.partialorder %v4900, 0.0
    %vm5074 = vcmp.gt.f32.partialorder %v5062, 0.0
    %vm5075 = vcmp.gt.f32.partialorder %v5064, 0.0
    %v5076 = vmul.f32 %v4570, 0.2
    %v5077 = vmul.f32 %v4572, 0.2
    %v5078 = vmul.f32 %v4734, 0.2
    %v5079 = vmul.f32 %v4736, 0.2
    %v5080 = vmul.f32 %v4898, 0.2
    %v5081 = vmul.f32 %v4900, 0.2
    %v5082 = vmul.f32 %v5062, 0.2
    %v5083 = vmul.f32 %v5064, 0.2
    %v5084 = vsel %vm5068, %v4570, %v5076
    %v5085 = vsel %vm5069, %v4572, %v5077
    %v5086 = vsel %vm5070, %v4734, %v5078
    %v5087 = vsel %vm5071, %v4736, %v5079
    %v5088 = vsel %vm5072, %v4898, %v5080
    %v5089 = vsel %vm5073, %v4900, %v5081
    %v5090 = vsel %vm5074, %v5062, %v5082
    %v5091 = vsel %vm5075, %v5064, %v5083
    %v5092 = vld [vmem:[#allocation16] sm:$0xff]
    %v5093 = vld [vmem:[#allocation17] sm:$0xff]
    %v5094 = vrot.slane %v5084, 4
    %v5095 = vadd.f32 %v5084, %v5094
    %v5096 = vrot.slane %v5095, 2
    %v5097 = vadd.f32 %v5095, %v5096
    %v5098 = vrot.slane %v5097, 1
    %v5099 = vadd.f32 %v5097, %v5098
    %v5100 = vrot.slane %v5085, 4
    %v5101 = vadd.f32 %v5085, %v5100
    %v5102 = vrot.slane %v5101, 2
    %v5103 = vadd.f32 %v5101, %v5102
    %v5104 = vrot.slane %v5103, 1
    %v5105 = vadd.f32 %v5103, %v5104
    %v5106 = vrot.slane %v5086, 4
    %v5107 = vadd.f32 %v5086, %v5106
    %v5108 = vrot.slane %v5107, 2
    %v5109 = vadd.f32 %v5107, %v5108
    %v5110 = vrot.slane %v5109, 1
    %v5111 = vadd.f32 %v5109, %v5110
    %v5112 = vrot.slane %v5087, 4
    %v5113 = vadd.f32 %v5087, %v5112
    %v5114 = vrot.slane %v5113, 2
    %v5115 = vadd.f32 %v5113, %v5114
    %v5116 = vrot.slane %v5115, 1
    %v5117 = vadd.f32 %v5115, %v5116
    %v5118 = vrot.slane %v5088, 4
    %v5119 = vadd.f32 %v5088, %v5118
    %v5120 = vrot.slane %v5119, 2
    %v5121 = vadd.f32 %v5119, %v5120
    %v5122 = vrot.slane %v5121, 1
    %v5123 = vadd.f32 %v5121, %v5122
    %v5124 = vrot.slane %v5089, 4
    %v5125 = vadd.f32 %v5089, %v5124
    %v5126 = vrot.slane %v5125, 2
    %v5127 = vadd.f32 %v5125, %v5126
    %v5128 = vrot.slane %v5127, 1
    %v5129 = vadd.f32 %v5127, %v5128
    %v5130 = vrot.slane %v5090, 4
    %v5131 = vadd.f32 %v5090, %v5130
    %v5132 = vrot.slane %v5131, 2
    %v5133 = vadd.f32 %v5131, %v5132
    %v5134 = vrot.slane %v5133, 1
    %v5135 = vadd.f32 %v5133, %v5134
    %v5136 = vrot.slane %v5091, 4
    %v5137 = vadd.f32 %v5091, %v5136
    %v5138 = vrot.slane %v5137, 2
    %v5139 = vadd.f32 %v5137, %v5138
    %v5140 = vrot.slane %v5139, 1
    %v5141 = vadd.f32 %v5139, %v5140
    %v5142 = vmul.f32 %v5099, %v953
    %v5143 = vmul.f32 %v5105, %v953
    %v5144 = vmul.f32 %v5111, %v953
    %v5145 = vmul.f32 %v5117, %v953
    %v5146 = vmul.f32 %v5123, %v953
    %v5147 = vmul.f32 %v5129, %v953
    %v5148 = vmul.f32 %v5135, %v953
    %v5149 = vmul.f32 %v5141, %v953
    %v5150 = vmul.f32 %v5084, %v5084
    %v5151 = vmul.f32 %v5085, %v5085
    %v5152 = vmul.f32 %v5086, %v5086
    %v5153 = vmul.f32 %v5087, %v5087
    %v5154 = vmul.f32 %v5088, %v5088
    %v5155 = vmul.f32 %v5089, %v5089
    %v5156 = vmul.f32 %v5090, %v5090
    %v5157 = vmul.f32 %v5091, %v5091
    %v5158 = vrot.slane %v5150, 4
    %v5159 = vadd.f32 %v5150, %v5158
    %v5160 = vrot.slane %v5159, 2
    %v5161 = vadd.f32 %v5159, %v5160
    %v5162 = vrot.slane %v5161, 1
    %v5163 = vadd.f32 %v5161, %v5162
    %v5164 = vrot.slane %v5151, 4
    %v5165 = vadd.f32 %v5151, %v5164
    %v5166 = vrot.slane %v5165, 2
    %v5167 = vadd.f32 %v5165, %v5166
    %v5168 = vrot.slane %v5167, 1
    %v5169 = vadd.f32 %v5167, %v5168
    %v5170 = vrot.slane %v5152, 4
    %v5171 = vadd.f32 %v5152, %v5170
    %v5172 = vrot.slane %v5171, 2
    %v5173 = vadd.f32 %v5171, %v5172
    %v5174 = vrot.slane %v5173, 1
    %v5175 = vadd.f32 %v5173, %v5174
    %v5176 = vrot.slane %v5153, 4
    %v5177 = vadd.f32 %v5153, %v5176
    %v5178 = vrot.slane %v5177, 2
    %v5179 = vadd.f32 %v5177, %v5178
    %v5180 = vrot.slane %v5179, 1
    %v5181 = vadd.f32 %v5179, %v5180
    %v5182 = vrot.slane %v5154, 4
    %v5183 = vadd.f32 %v5154, %v5182
    %v5184 = vrot.slane %v5183, 2
    %v5185 = vadd.f32 %v5183, %v5184
    %v5186 = vrot.slane %v5185, 1
    %v5187 = vadd.f32 %v5185, %v5186
    %v5188 = vrot.slane %v5155, 4
    %v5189 = vadd.f32 %v5155, %v5188
    %v5190 = vrot.slane %v5189, 2
    %v5191 = vadd.f32 %v5189, %v5190
    %v5192 = vrot.slane %v5191, 1
    %v5193 = vadd.f32 %v5191, %v5192
    %v5194 = vrot.slane %v5156, 4
    %v5195 = vadd.f32 %v5156, %v5194
    %v5196 = vrot.slane %v5195, 2
    %v5197 = vadd.f32 %v5195, %v5196
    %v5198 = vrot.slane %v5197, 1
    %v5199 = vadd.f32 %v5197, %v5198
    %v5200 = vrot.slane %v5157, 4
    %v5201 = vadd.f32 %v5157, %v5200
    %v5202 = vrot.slane %v5201, 2
    %v5203 = vadd.f32 %v5201, %v5202
    %v5204 = vrot.slane %v5203, 1
    %v5205 = vadd.f32 %v5203, %v5204
    %v5206 = vmul.f32 %v5163, %v953
    %v5207 = vmul.f32 %v5169, %v953
    %v5208 = vmul.f32 %v5175, %v953
    %v5209 = vmul.f32 %v5181, %v953
    %v5210 = vmul.f32 %v5187, %v953
    %v5211 = vmul.f32 %v5193, %v953
    %v5212 = vmul.f32 %v5199, %v953
    %v5213 = vmul.f32 %v5205, %v953
    %v5214 = vmul.f32 %v5142, %v5142
    %v5215 = vmul.f32 %v5143, %v5143
    %v5216 = vmul.f32 %v5144, %v5144
    %v5217 = vmul.f32 %v5145, %v5145
    %v5218 = vmul.f32 %v5146, %v5146
    %v5219 = vmul.f32 %v5147, %v5147
    %v5220 = vmul.f32 %v5148, %v5148
    %v5221 = vmul.f32 %v5149, %v5149
    %v5222 = vsub.f32 %v5206, %v5214
    %v5223 = vsub.f32 %v5207, %v5215
    %v5224 = vsub.f32 %v5208, %v5216
    %v5225 = vsub.f32 %v5209, %v5217
    %v5226 = vsub.f32 %v5210, %v5218
    %v5227 = vsub.f32 %v5211, %v5219
    %v5228 = vsub.f32 %v5212, %v5220
    %v5229 = vsub.f32 %v5213, %v5221
    %v5230 = vmax.f32 %v5222, 0.0
    %v5231 = vmax.f32 %v5223, 0.0
    %v5232 = vmax.f32 %v5224, 0.0
    %v5233 = vmax.f32 %v5225, 0.0
    %v5234 = vmax.f32 %v5226, 0.0
    %v5235 = vmax.f32 %v5227, 0.0
    %v5236 = vmax.f32 %v5228, 0.0
    %v5237 = vmax.f32 %v5229, 0.0
    %v5238 = vadd.f32 %v5230, 1e-05
    %v5239 = vadd.f32 %v5231, 1e-05
    %v5240 = vadd.f32 %v5232, 1e-05
    %v5241 = vadd.f32 %v5233, 1e-05
    %v5242 = vadd.f32 %v5234, 1e-05
    %v5243 = vadd.f32 %v5235, 1e-05
    %v5244 = vadd.f32 %v5236, 1e-05
    %v5245 = vadd.f32 %v5237, 1e-05
    %v5246 = vrsqrt.pop %v5238
    %v5247 = vrsqrt.pop %v5239
    %v5248 = vrsqrt.pop %v5240
    %v5249 = vrsqrt.pop %v5241
    %v5250 = vrsqrt.pop %v5242
    %v5251 = vrsqrt.pop %v5243
    %v5252 = vrsqrt.pop %v5244
    %v5253 = vrsqrt.pop %v5245
    %v5262 = vcombine.low %v5246, %v5247
    %v5263 = vcombine.low %v5248, %v5249
    %v5264 = vcombine.low %v5250, %v5251
    %v5265 = vcombine.low %v5252, %v5253
    %v5267 = vunpack.c.l.s4 1966171168
    %v5268 = vunpack.c.0.s8 %v5267
    %v5269 = vlaneseq
    %v5270 = vshrl.u32 %v5269, 7
    %v5271 = vsub.s32 %v5268, %v5270
    %v5272 = vrot.slane %v5262, %v5271
    %v5274 = vunpack.c.l.s4 1966171168
    %v5275 = vunpack.c.0.s8 %v5274
    %v5276 = vlaneseq
    %v5277 = vshrl.u32 %v5276, 7
    %v5278 = vsub.s32 %v5275, %v5277
    %v5279 = vrot.slane %v5263, %v5278
    %v5281 = vunpack.c.l.s4 1966171168
    %v5282 = vunpack.c.0.s8 %v5281
    %v5283 = vlaneseq
    %v5284 = vshrl.u32 %v5283, 7
    %v5285 = vsub.s32 %v5282, %v5284
    %v5286 = vrot.slane %v5264, %v5285
    %v5288 = vunpack.c.l.s4 1966171168
    %v5289 = vunpack.c.0.s8 %v5288
    %v5290 = vlaneseq
    %v5291 = vshrl.u32 %v5290, 7
    %v5292 = vsub.s32 %v5289, %v5291
    %v5293 = vrot.slane %v5265, %v5292
    %v5294 = vcombine.low %v5272, %v5279
    %v5295 = vcombine.low %v5286, %v5293
    %v5297 = vunpack.c.l.s4 1966171168
    %v5298 = vunpack.c.0.s8 %v5297
    %v5299 = vlaneseq
    %v5300 = vshrl.u32 %v5299, 7
    %v5301 = vsub.s32 %v5298, %v5300
    %v5302 = vrot.slane %v5294, %v5301
    %v5304 = vunpack.c.l.s4 1966171168
    %v5305 = vunpack.c.0.s8 %v5304
    %v5306 = vlaneseq
    %v5307 = vshrl.u32 %v5306, 7
    %v5308 = vsub.s32 %v5305, %v5307
    %v5309 = vrot.slane %v5295, %v5308
    %v5310 = vcombine.low %v5302, %v5309
    %v5312 = vmul.f32 %v5092, %v5310
    %v5314 = vlaneseq
    %v5315 = vshrl.u32 %v5314, 7
    %v5316 = vsub.s32 0, %v5315
    %v5317 = vrot.slane %v5312, %v5316
    %v5318 = vlaneseq
    %v5319 = vshrl.u32 %v5318, 7
    %v5320 = vsub.s32 1, %v5319
    %v5321 = vrot.slane %v5312, %v5320
    %v5322 = vlaneseq
    %v5323 = vshrl.u32 %v5322, 7
    %v5324 = vsub.s32 2, %v5323
    %v5325 = vrot.slane %v5312, %v5324
    %v5326 = vlaneseq
    %v5327 = vshrl.u32 %v5326, 7
    %v5328 = vsub.s32 3, %v5327
    %v5329 = vrot.slane %v5312, %v5328
    %v5330 = vlaneseq
    %v5331 = vshrl.u32 %v5330, 7
    %v5332 = vsub.s32 4, %v5331
    %v5333 = vrot.slane %v5312, %v5332
    %v5334 = vlaneseq
    %v5335 = vshrl.u32 %v5334, 7
    %v5336 = vsub.s32 5, %v5335
    %v5337 = vrot.slane %v5312, %v5336
    %v5338 = vlaneseq
    %v5339 = vshrl.u32 %v5338, 7
    %v5340 = vsub.s32 6, %v5339
    %v5341 = vrot.slane %v5312, %v5340
    %v5342 = vlaneseq
    %v5343 = vshrl.u32 %v5342, 7
    %v5344 = vsub.s32 7, %v5343
    %v5345 = vrot.slane %v5312, %v5344
    %v5354 = vmul.f32 %v5142, %v5317
    %v5355 = vmul.f32 %v5143, %v5321
    %v5356 = vmul.f32 %v5144, %v5325
    %v5357 = vmul.f32 %v5145, %v5329
    %v5358 = vmul.f32 %v5146, %v5333
    %v5359 = vmul.f32 %v5147, %v5337
    %v5360 = vmul.f32 %v5148, %v5341
    %v5361 = vmul.f32 %v5149, %v5345
    %v5370 = vcombine.low %v5354, %v5355
    %v5371 = vcombine.low %v5356, %v5357
    %v5372 = vcombine.low %v5358, %v5359
    %v5373 = vcombine.low %v5360, %v5361
    %v5375 = vunpack.c.l.s4 1966171168
    %v5376 = vunpack.c.0.s8 %v5375
    %v5377 = vlaneseq
    %v5378 = vshrl.u32 %v5377, 7
    %v5379 = vsub.s32 %v5376, %v5378
    %v5380 = vrot.slane %v5370, %v5379
    %v5382 = vunpack.c.l.s4 1966171168
    %v5383 = vunpack.c.0.s8 %v5382
    %v5384 = vlaneseq
    %v5385 = vshrl.u32 %v5384, 7
    %v5386 = vsub.s32 %v5383, %v5385
    %v5387 = vrot.slane %v5371, %v5386
    %v5389 = vunpack.c.l.s4 1966171168
    %v5390 = vunpack.c.0.s8 %v5389
    %v5391 = vlaneseq
    %v5392 = vshrl.u32 %v5391, 7
    %v5393 = vsub.s32 %v5390, %v5392
    %v5394 = vrot.slane %v5372, %v5393
    %v5396 = vunpack.c.l.s4 1966171168
    %v5397 = vunpack.c.0.s8 %v5396
    %v5398 = vlaneseq
    %v5399 = vshrl.u32 %v5398, 7
    %v5400 = vsub.s32 %v5397, %v5399
    %v5401 = vrot.slane %v5373, %v5400
    %v5402 = vcombine.low %v5380, %v5387
    %v5403 = vcombine.low %v5394, %v5401
    %v5405 = vunpack.c.l.s4 1966171168
    %v5406 = vunpack.c.0.s8 %v5405
    %v5407 = vlaneseq
    %v5408 = vshrl.u32 %v5407, 7
    %v5409 = vsub.s32 %v5406, %v5408
    %v5410 = vrot.slane %v5402, %v5409
    %v5412 = vunpack.c.l.s4 1966171168
    %v5413 = vunpack.c.0.s8 %v5412
    %v5414 = vlaneseq
    %v5415 = vshrl.u32 %v5414, 7
    %v5416 = vsub.s32 %v5413, %v5415
    %v5417 = vrot.slane %v5403, %v5416
    %v5418 = vcombine.low %v5410, %v5417
    %v5420 = vsub.f32 %v5093, %v5418
    %v5421 = vmul.f32 %v5084, %v5317
    %v5422 = vmul.f32 %v5085, %v5321
    %v5423 = vmul.f32 %v5086, %v5325
    %v5424 = vmul.f32 %v5087, %v5329
    %v5425 = vmul.f32 %v5088, %v5333
    %v5426 = vmul.f32 %v5089, %v5337
    %v5427 = vmul.f32 %v5090, %v5341
    %v5428 = vmul.f32 %v5091, %v5345
    %v5430 = vlaneseq
    %v5431 = vshrl.u32 %v5430, 7
    %v5432 = vsub.s32 0, %v5431
    %v5433 = vrot.slane %v5420, %v5432
    %v5434 = vlaneseq
    %v5435 = vshrl.u32 %v5434, 7
    %v5436 = vsub.s32 1, %v5435
    %v5437 = vrot.slane %v5420, %v5436
    %v5438 = vlaneseq
    %v5439 = vshrl.u32 %v5438, 7
    %v5440 = vsub.s32 2, %v5439
    %v5441 = vrot.slane %v5420, %v5440
    %v5442 = vlaneseq
    %v5443 = vshrl.u32 %v5442, 7
    %v5444 = vsub.s32 3, %v5443
    %v5445 = vrot.slane %v5420, %v5444
    %v5446 = vlaneseq
    %v5447 = vshrl.u32 %v5446, 7
    %v5448 = vsub.s32 4, %v5447
    %v5449 = vrot.slane %v5420, %v5448
    %v5450 = vlaneseq
    %v5451 = vshrl.u32 %v5450, 7
    %v5452 = vsub.s32 5, %v5451
    %v5453 = vrot.slane %v5420, %v5452
    %v5454 = vlaneseq
    %v5455 = vshrl.u32 %v5454, 7
    %v5456 = vsub.s32 6, %v5455
    %v5457 = vrot.slane %v5420, %v5456
    %v5458 = vlaneseq
    %v5459 = vshrl.u32 %v5458, 7
    %v5460 = vsub.s32 7, %v5459
    %v5461 = vrot.slane %v5420, %v5460
    %v5470 = vadd.f32 %v5421, %v5433
    %v5471 = vadd.f32 %v5422, %v5437
    %v5472 = vadd.f32 %v5423, %v5441
    %v5473 = vadd.f32 %v5424, %v5445
    %v5474 = vadd.f32 %v5425, %v5449
    %v5475 = vadd.f32 %v5426, %v5453
    %v5476 = vadd.f32 %v5427, %v5457
    %v5477 = vadd.f32 %v5428, %v5461
    %v5478 = vpack.c.bf16 %v5470, %v5470
    %v5479 = vpack.c.bf16 %v5471, %v5471
    %v5480 = vpack.c.bf16 %v5472, %v5472
    %v5481 = vpack.c.bf16 %v5473, %v5473
    %v5482 = vpack.c.bf16 %v5474, %v5474
    %v5483 = vpack.c.bf16 %v5475, %v5475
    %v5484 = vpack.c.bf16 %v5476, %v5476
    %v5485 = vpack.c.bf16 %v5477, %v5477
    %v5486 = vld [vmem:[#allocation19] sm:$0xff]
    %v5487 = vld [vmem:[#allocation19 + $0x8] sm:$0xff]
    %v5488 = vld [vmem:[#allocation19 + $0x10] sm:$0xff]
    %v5489 = vld [vmem:[#allocation19 + $0x18] sm:$0xff]
    %v5490 = vld [vmem:[#allocation19 + $0x20] sm:$0xff]
    %v5491 = vld [vmem:[#allocation19 + $0x28] sm:$0xff]
    %v5492 = vld [vmem:[#allocation19 + $0x30] sm:$0xff]
    %v5493 = vld [vmem:[#allocation19 + $0x38] sm:$0xff]
    %v5494 = vld [vmem:[#allocation19 + $0x40] sm:$0xff]
    %v5495 = vld [vmem:[#allocation19 + $0x48] sm:$0xff]
    %v5496 = vld [vmem:[#allocation19 + $0x50] sm:$0xff]
    %v5497 = vld [vmem:[#allocation19 + $0x58] sm:$0xff]
    %v5498 = vld [vmem:[#allocation19 + $0x60] sm:$0xff]
    %v5499 = vld [vmem:[#allocation19 + $0x68] sm:$0xff]
    %v5500 = vld [vmem:[#allocation19 + $0x70] sm:$0xff]
    %v5501 = vld [vmem:[#allocation19 + $0x78] sm:$0xff]
    %v5502 = vld [vmem:[#allocation19 + $0x80] sm:$0xff]
    %v5503 = vld [vmem:[#allocation19 + $0x88] sm:$0xff]
    %v5504 = vld [vmem:[#allocation19 + $0x90] sm:$0xff]
    %v5505 = vld [vmem:[#allocation19 + $0x98] sm:$0xff]
    %v5506 = vld [vmem:[#allocation19 + $0xa0] sm:$0xff]
    %v5507 = vld [vmem:[#allocation19 + $0xa8] sm:$0xff]
    %v5508 = vld [vmem:[#allocation19 + $0xb0] sm:$0xff]
    %v5509 = vld [vmem:[#allocation19 + $0xb8] sm:$0xff]
    %v5510 = vld [vmem:[#allocation19 + $0xc0] sm:$0xff]
    %v5511 = vld [vmem:[#allocation19 + $0xc8] sm:$0xff]
    %v5512 = vld [vmem:[#allocation19 + $0xd0] sm:$0xff]
    %v5513 = vld [vmem:[#allocation19 + $0xd8] sm:$0xff]
    %v5514 = vld [vmem:[#allocation19 + $0xe0] sm:$0xff]
    %v5515 = vld [vmem:[#allocation19 + $0xe8] sm:$0xff]
    %v5516 = vld [vmem:[#allocation19 + $0xf0] sm:$0xff]
    %v5517 = vld [vmem:[#allocation19 + $0xf8] sm:$0xff]
    %v5518 = vld [vmem:[#allocation19 + $0x100] sm:$0xff]
    %v5519 = vld [vmem:[#allocation19 + $0x108] sm:$0xff]
    %v5520 = vld [vmem:[#allocation19 + $0x110] sm:$0xff]
    %v5521 = vld [vmem:[#allocation19 + $0x118] sm:$0xff]
    %v5522 = vld [vmem:[#allocation19 + $0x120] sm:$0xff]
    %v5523 = vld [vmem:[#allocation19 + $0x128] sm:$0xff]
    %v5524 = vld [vmem:[#allocation19 + $0x130] sm:$0xff]
    %v5525 = vld [vmem:[#allocation19 + $0x138] sm:$0xff]
    %v5526 = vld [vmem:[#allocation19 + $0x140] sm:$0xff]
    %v5527 = vld [vmem:[#allocation19 + $0x148] sm:$0xff]
    %v5528 = vld [vmem:[#allocation19 + $0x150] sm:$0xff]
    %v5529 = vld [vmem:[#allocation19 + $0x158] sm:$0xff]
    %v5530 = vld [vmem:[#allocation19 + $0x160] sm:$0xff]
    %v5531 = vld [vmem:[#allocation19 + $0x168] sm:$0xff]
    %v5532 = vld [vmem:[#allocation19 + $0x170] sm:$0xff]
    %v5533 = vld [vmem:[#allocation19 + $0x178] sm:$0xff]
    %v5534 = vld [vmem:[#allocation19 + $0x180] sm:$0xff]
    %v5535 = vld [vmem:[#allocation19 + $0x188] sm:$0xff]
    %v5536 = vld [vmem:[#allocation19 + $0x190] sm:$0xff]
    %v5537 = vld [vmem:[#allocation19 + $0x198] sm:$0xff]
    %v5538 = vld [vmem:[#allocation19 + $0x1a0] sm:$0xff]
    %v5539 = vld [vmem:[#allocation19 + $0x1a8] sm:$0xff]
    %v5540 = vld [vmem:[#allocation19 + $0x1b0] sm:$0xff]
    %v5541 = vld [vmem:[#allocation19 + $0x1b8] sm:$0xff]
    %v5542 = vld [vmem:[#allocation19 + $0x1c0] sm:$0xff]
    %v5543 = vld [vmem:[#allocation19 + $0x1c8] sm:$0xff]
    %v5544 = vld [vmem:[#allocation19 + $0x1d0] sm:$0xff]
    %v5545 = vld [vmem:[#allocation19 + $0x1d8] sm:$0xff]
    %v5546 = vld [vmem:[#allocation19 + $0x1e0] sm:$0xff]
    %v5547 = vld [vmem:[#allocation19 + $0x1e8] sm:$0xff]
    %v5548 = vld [vmem:[#allocation19 + $0x1f0] sm:$0xff]
    %v5549 = vld [vmem:[#allocation19 + $0x1f8] sm:$0xff]
    %v5550 = vld [vmem:[#allocation19 + $0x200] sm:$0xff]
    %v5551 = vld [vmem:[#allocation19 + $0x208] sm:$0xff]
    %v5552 = vld [vmem:[#allocation19 + $0x210] sm:$0xff]
    %v5553 = vld [vmem:[#allocation19 + $0x218] sm:$0xff]
    %v5554 = vld [vmem:[#allocation19 + $0x220] sm:$0xff]
    %v5555 = vld [vmem:[#allocation19 + $0x228] sm:$0xff]
    %v5556 = vld [vmem:[#allocation19 + $0x230] sm:$0xff]
    %v5557 = vld [vmem:[#allocation19 + $0x238] sm:$0xff]
    %v5558 = vld [vmem:[#allocation19 + $0x240] sm:$0xff]
    %v5559 = vld [vmem:[#allocation19 + $0x248] sm:$0xff]
    %v5560 = vld [vmem:[#allocation19 + $0x250] sm:$0xff]
    %v5561 = vld [vmem:[#allocation19 + $0x258] sm:$0xff]
    %v5562 = vld [vmem:[#allocation19 + $0x260] sm:$0xff]
    %v5563 = vld [vmem:[#allocation19 + $0x268] sm:$0xff]
    %v5564 = vld [vmem:[#allocation19 + $0x270] sm:$0xff]
    %v5565 = vld [vmem:[#allocation19 + $0x278] sm:$0xff]
    %v5566 = vld [vmem:[#allocation19 + $0x280] sm:$0xff]
    %v5567 = vld [vmem:[#allocation19 + $0x288] sm:$0xff]
    %v5568 = vld [vmem:[#allocation19 + $0x290] sm:$0xff]
    %v5569 = vld [vmem:[#allocation19 + $0x298] sm:$0xff]
    %v5570 = vld [vmem:[#allocation19 + $0x2a0] sm:$0xff]
    %v5571 = vld [vmem:[#allocation19 + $0x2a8] sm:$0xff]
    %v5572 = vld [vmem:[#allocation19 + $0x2b0] sm:$0xff]
    %v5573 = vld [vmem:[#allocation19 + $0x2b8] sm:$0xff]
    %v5574 = vld [vmem:[#allocation19 + $0x2c0] sm:$0xff]
    %v5575 = vld [vmem:[#allocation19 + $0x2c8] sm:$0xff]
    %v5576 = vld [vmem:[#allocation19 + $0x2d0] sm:$0xff]
    %v5577 = vld [vmem:[#allocation19 + $0x2d8] sm:$0xff]
    %v5578 = vld [vmem:[#allocation19 + $0x2e0] sm:$0xff]
    %v5579 = vld [vmem:[#allocation19 + $0x2e8] sm:$0xff]
    %v5580 = vld [vmem:[#allocation19 + $0x2f0] sm:$0xff]
    %v5581 = vld [vmem:[#allocation19 + $0x2f8] sm:$0xff]
    %v5582 = vld [vmem:[#allocation19 + $0x300] sm:$0xff]
    %v5583 = vld [vmem:[#allocation19 + $0x308] sm:$0xff]
    %v5584 = vld [vmem:[#allocation19 + $0x310] sm:$0xff]
    %v5585 = vld [vmem:[#allocation19 + $0x318] sm:$0xff]
    %v5586 = vld [vmem:[#allocation19 + $0x320] sm:$0xff]
    %v5587 = vld [vmem:[#allocation19 + $0x328] sm:$0xff]
    %v5588 = vld [vmem:[#allocation19 + $0x330] sm:$0xff]
    %v5589 = vld [vmem:[#allocation19 + $0x338] sm:$0xff]
    %v5590 = vld [vmem:[#allocation19 + $0x340] sm:$0xff]
    %v5591 = vld [vmem:[#allocation19 + $0x348] sm:$0xff]
    %v5592 = vld [vmem:[#allocation19 + $0x350] sm:$0xff]
    %v5593 = vld [vmem:[#allocation19 + $0x358] sm:$0xff]
    %v5594 = vld [vmem:[#allocation19 + $0x360] sm:$0xff]
    %v5595 = vld [vmem:[#allocation19 + $0x368] sm:$0xff]
    %v5596 = vld [vmem:[#allocation19 + $0x370] sm:$0xff]
    %v5597 = vld [vmem:[#allocation19 + $0x378] sm:$0xff]
    %v5598 = vld [vmem:[#allocation19 + $0x380] sm:$0xff]
    %v5599 = vld [vmem:[#allocation19 + $0x388] sm:$0xff]
    %v5600 = vld [vmem:[#allocation19 + $0x390] sm:$0xff]
    %v5601 = vld [vmem:[#allocation19 + $0x398] sm:$0xff]
    %v5602 = vld [vmem:[#allocation19 + $0x3a0] sm:$0xff]
    %v5603 = vld [vmem:[#allocation19 + $0x3a8] sm:$0xff]
    %v5604 = vld [vmem:[#allocation19 + $0x3b0] sm:$0xff]
    %v5605 = vld [vmem:[#allocation19 + $0x3b8] sm:$0xff]
    %v5606 = vld [vmem:[#allocation19 + $0x3c0] sm:$0xff]
    %v5607 = vld [vmem:[#allocation19 + $0x3c8] sm:$0xff]
    %v5608 = vld [vmem:[#allocation19 + $0x3d0] sm:$0xff]
    %v5609 = vld [vmem:[#allocation19 + $0x3d8] sm:$0xff]
    %v5610 = vld [vmem:[#allocation19 + $0x3e0] sm:$0xff]
    %v5611 = vld [vmem:[#allocation19 + $0x3e8] sm:$0xff]
    %v5612 = vld [vmem:[#allocation19 + $0x3f0] sm:$0xff]
    %v5613 = vld [vmem:[#allocation19 + $0x3f8] sm:$0xff]
    %v5614 = vld [vmem:[#allocation19 + $0x400] sm:$0xff]
    %v5615 = vld [vmem:[#allocation19 + $0x408] sm:$0xff]
    %v5616 = vld [vmem:[#allocation19 + $0x410] sm:$0xff]
    %v5617 = vld [vmem:[#allocation19 + $0x418] sm:$0xff]
    %v5618 = vld [vmem:[#allocation19 + $0x420] sm:$0xff]
    %v5619 = vld [vmem:[#allocation19 + $0x428] sm:$0xff]
    %v5620 = vld [vmem:[#allocation19 + $0x430] sm:$0xff]
    %v5621 = vld [vmem:[#allocation19 + $0x438] sm:$0xff]
    %v5622 = vld [vmem:[#allocation19 + $0x440] sm:$0xff]
    %v5623 = vld [vmem:[#allocation19 + $0x448] sm:$0xff]
    %v5624 = vld [vmem:[#allocation19 + $0x450] sm:$0xff]
    %v5625 = vld [vmem:[#allocation19 + $0x458] sm:$0xff]
    %v5626 = vld [vmem:[#allocation19 + $0x460] sm:$0xff]
    %v5627 = vld [vmem:[#allocation19 + $0x468] sm:$0xff]
    %v5628 = vld [vmem:[#allocation19 + $0x470] sm:$0xff]
    %v5629 = vld [vmem:[#allocation19 + $0x478] sm:$0xff]
    %v5630 = vld [vmem:[#allocation19 + $0x480] sm:$0xff]
    %v5631 = vld [vmem:[#allocation19 + $0x488] sm:$0xff]
    %v5632 = vld [vmem:[#allocation19 + $0x490] sm:$0xff]
    %v5633 = vld [vmem:[#allocation19 + $0x498] sm:$0xff]
    %v5634 = vld [vmem:[#allocation19 + $0x4a0] sm:$0xff]
    %v5635 = vld [vmem:[#allocation19 + $0x4a8] sm:$0xff]
    %v5636 = vld [vmem:[#allocation19 + $0x4b0] sm:$0xff]
    %v5637 = vld [vmem:[#allocation19 + $0x4b8] sm:$0xff]
    %v5638 = vld [vmem:[#allocation19 + $0x4c0] sm:$0xff]
    %v5639 = vld [vmem:[#allocation19 + $0x4c8] sm:$0xff]
    %v5640 = vld [vmem:[#allocation19 + $0x4d0] sm:$0xff]
    %v5641 = vld [vmem:[#allocation19 + $0x4d8] sm:$0xff]
    %v5642 = vld [vmem:[#allocation19 + $0x4e0] sm:$0xff]
    %v5643 = vld [vmem:[#allocation19 + $0x4e8] sm:$0xff]
    %v5644 = vld [vmem:[#allocation19 + $0x4f0] sm:$0xff]
    %v5645 = vld [vmem:[#allocation19 + $0x4f8] sm:$0xff]
    %v5646 = vld [vmem:[#allocation19 + $0x500] sm:$0xff]
    %v5647 = vld [vmem:[#allocation19 + $0x508] sm:$0xff]
    %v5648 = vld [vmem:[#allocation19 + $0x510] sm:$0xff]
    %v5649 = vld [vmem:[#allocation19 + $0x518] sm:$0xff]
    %v5650 = vld [vmem:[#allocation19 + $0x520] sm:$0xff]
    %v5651 = vld [vmem:[#allocation19 + $0x528] sm:$0xff]
    %v5652 = vld [vmem:[#allocation19 + $0x530] sm:$0xff]
    %v5653 = vld [vmem:[#allocation19 + $0x538] sm:$0xff]
    %v5654 = vld [vmem:[#allocation19 + $0x540] sm:$0xff]
    %v5655 = vld [vmem:[#allocation19 + $0x548] sm:$0xff]
    %v5656 = vld [vmem:[#allocation19 + $0x550] sm:$0xff]
    %v5657 = vld [vmem:[#allocation19 + $0x558] sm:$0xff]
    %v5658 = vld [vmem:[#allocation19 + $0x560] sm:$0xff]
    %v5659 = vld [vmem:[#allocation19 + $0x568] sm:$0xff]
    %v5660 = vld [vmem:[#allocation19 + $0x570] sm:$0xff]
    %v5661 = vld [vmem:[#allocation19 + $0x578] sm:$0xff]
    %v5662 = vld [vmem:[#allocation19 + $0x580] sm:$0xff]
    %v5663 = vld [vmem:[#allocation19 + $0x588] sm:$0xff]
    %v5664 = vld [vmem:[#allocation19 + $0x590] sm:$0xff]
    %v5665 = vld [vmem:[#allocation19 + $0x598] sm:$0xff]
    %v5666 = vld [vmem:[#allocation19 + $0x5a0] sm:$0xff]
    %v5667 = vld [vmem:[#allocation19 + $0x5a8] sm:$0xff]
    %v5668 = vld [vmem:[#allocation19 + $0x5b0] sm:$0xff]
    %v5669 = vld [vmem:[#allocation19 + $0x5b8] sm:$0xff]
    %v5670 = vld [vmem:[#allocation19 + $0x5c0] sm:$0xff]
    %v5671 = vld [vmem:[#allocation19 + $0x5c8] sm:$0xff]
    %v5672 = vld [vmem:[#allocation19 + $0x5d0] sm:$0xff]
    %v5673 = vld [vmem:[#allocation19 + $0x5d8] sm:$0xff]
    %v5674 = vld [vmem:[#allocation19 + $0x5e0] sm:$0xff]
    %v5675 = vld [vmem:[#allocation19 + $0x5e8] sm:$0xff]
    %v5676 = vld [vmem:[#allocation19 + $0x5f0] sm:$0xff]
    %v5677 = vld [vmem:[#allocation19 + $0x5f8] sm:$0xff]
    %v5678 = vld [vmem:[#allocation19 + $0x600] sm:$0xff]
    %v5679 = vld [vmem:[#allocation19 + $0x608] sm:$0xff]
    %v5680 = vld [vmem:[#allocation19 + $0x610] sm:$0xff]
    %v5681 = vld [vmem:[#allocation19 + $0x618] sm:$0xff]
    %v5682 = vld [vmem:[#allocation19 + $0x620] sm:$0xff]
    %v5683 = vld [vmem:[#allocation19 + $0x628] sm:$0xff]
    %v5684 = vld [vmem:[#allocation19 + $0x630] sm:$0xff]
    %v5685 = vld [vmem:[#allocation19 + $0x638] sm:$0xff]
    %v5686 = vld [vmem:[#allocation19 + $0x640] sm:$0xff]
    %v5687 = vld [vmem:[#allocation19 + $0x648] sm:$0xff]
    %v5688 = vld [vmem:[#allocation19 + $0x650] sm:$0xff]
    %v5689 = vld [vmem:[#allocation19 + $0x658] sm:$0xff]
    %v5690 = vld [vmem:[#allocation19 + $0x660] sm:$0xff]
    %v5691 = vld [vmem:[#allocation19 + $0x668] sm:$0xff]
    %v5692 = vld [vmem:[#allocation19 + $0x670] sm:$0xff]
    %v5693 = vld [vmem:[#allocation19 + $0x678] sm:$0xff]
    %v5694 = vld [vmem:[#allocation19 + $0x680] sm:$0xff]
    %v5695 = vld [vmem:[#allocation19 + $0x688] sm:$0xff]
    %v5696 = vld [vmem:[#allocation19 + $0x690] sm:$0xff]
    %v5697 = vld [vmem:[#allocation19 + $0x698] sm:$0xff]
    %v5698 = vld [vmem:[#allocation19 + $0x6a0] sm:$0xff]
    %v5699 = vld [vmem:[#allocation19 + $0x6a8] sm:$0xff]
    %v5700 = vld [vmem:[#allocation19 + $0x6b0] sm:$0xff]
    %v5701 = vld [vmem:[#allocation19 + $0x6b8] sm:$0xff]
    %v5702 = vld [vmem:[#allocation19 + $0x6c0] sm:$0xff]
    %v5703 = vld [vmem:[#allocation19 + $0x6c8] sm:$0xff]
    %v5704 = vld [vmem:[#allocation19 + $0x6d0] sm:$0xff]
    %v5705 = vld [vmem:[#allocation19 + $0x6d8] sm:$0xff]
    %v5706 = vld [vmem:[#allocation19 + $0x6e0] sm:$0xff]
    %v5707 = vld [vmem:[#allocation19 + $0x6e8] sm:$0xff]
    %v5708 = vld [vmem:[#allocation19 + $0x6f0] sm:$0xff]
    %v5709 = vld [vmem:[#allocation19 + $0x6f8] sm:$0xff]
    %v5710 = vld [vmem:[#allocation19 + $0x700] sm:$0xff]
    %v5711 = vld [vmem:[#allocation19 + $0x708] sm:$0xff]
    %v5712 = vld [vmem:[#allocation19 + $0x710] sm:$0xff]
    %v5713 = vld [vmem:[#allocation19 + $0x718] sm:$0xff]
    %v5714 = vld [vmem:[#allocation19 + $0x720] sm:$0xff]
    %v5715 = vld [vmem:[#allocation19 + $0x728] sm:$0xff]
    %v5716 = vld [vmem:[#allocation19 + $0x730] sm:$0xff]
    %v5717 = vld [vmem:[#allocation19 + $0x738] sm:$0xff]
    %v5718 = vld [vmem:[#allocation19 + $0x740] sm:$0xff]
    %v5719 = vld [vmem:[#allocation19 + $0x748] sm:$0xff]
    %v5720 = vld [vmem:[#allocation19 + $0x750] sm:$0xff]
    %v5721 = vld [vmem:[#allocation19 + $0x758] sm:$0xff]
    %v5722 = vld [vmem:[#allocation19 + $0x760] sm:$0xff]
    %v5723 = vld [vmem:[#allocation19 + $0x768] sm:$0xff]
    %v5724 = vld [vmem:[#allocation19 + $0x770] sm:$0xff]
    %v5725 = vld [vmem:[#allocation19 + $0x778] sm:$0xff]
    %v5726 = vld [vmem:[#allocation19 + $0x780] sm:$0xff]
    %v5727 = vld [vmem:[#allocation19 + $0x788] sm:$0xff]
    %v5728 = vld [vmem:[#allocation19 + $0x790] sm:$0xff]
    %v5729 = vld [vmem:[#allocation19 + $0x798] sm:$0xff]
    %v5730 = vld [vmem:[#allocation19 + $0x7a0] sm:$0xff]
    %v5731 = vld [vmem:[#allocation19 + $0x7a8] sm:$0xff]
    %v5732 = vld [vmem:[#allocation19 + $0x7b0] sm:$0xff]
    %v5733 = vld [vmem:[#allocation19 + $0x7b8] sm:$0xff]
    %v5734 = vld [vmem:[#allocation19 + $0x7c0] sm:$0xff]
    %v5735 = vld [vmem:[#allocation19 + $0x7c8] sm:$0xff]
    %v5736 = vld [vmem:[#allocation19 + $0x7d0] sm:$0xff]
    %v5737 = vld [vmem:[#allocation19 + $0x7d8] sm:$0xff]
    %v5738 = vld [vmem:[#allocation19 + $0x7e0] sm:$0xff]
    %v5739 = vld [vmem:[#allocation19 + $0x7e8] sm:$0xff]
    %v5740 = vld [vmem:[#allocation19 + $0x7f0] sm:$0xff]
    %v5741 = vld [vmem:[#allocation19 + $0x7f8] sm:$0xff]
    %v5742 = vld [vmem:[#allocation20] sm:$0xf]
    %v5744 = vlaneseq
    %v5745 = vshrl.u32 %v5744, 7
    %v5746 = vsub.s32 0, %v5745
    %v5747 = vrot.slane %v5742, %v5746
    %v5748 = vlaneseq
    %v5749 = vshrl.u32 %v5748, 7
    %v5750 = vsub.s32 1, %v5749
    %v5751 = vrot.slane %v5742, %v5750
    %v5752 = vlaneseq
    %v5753 = vshrl.u32 %v5752, 7
    %v5754 = vsub.s32 2, %v5753
    %v5755 = vrot.slane %v5742, %v5754
    %v5756 = vlaneseq
    %v5757 = vshrl.u32 %v5756, 7
    %v5758 = vsub.s32 3, %v5757
    %v5759 = vrot.slane %v5742, %v5758
    %v6020 = vunpack.c.l.b16 %v5486
    %v6021 = vunpack.c.h.b16 %v5486
    %v6022 = vunpack.c.l.b16 %v5487
    %v6023 = vunpack.c.h.b16 %v5487
    %v6024 = vunpack.c.l.b16 %v5488
    %v6025 = vunpack.c.h.b16 %v5488
    %v6026 = vunpack.c.l.b16 %v5489
    %v6027 = vunpack.c.h.b16 %v5489
    %v6028 = vunpack.c.l.b16 %v5490
    %v6029 = vunpack.c.h.b16 %v5490
    %v6030 = vunpack.c.l.b16 %v5491
    %v6031 = vunpack.c.h.b16 %v5491
    %v6032 = vunpack.c.l.b16 %v5492
    %v6033 = vunpack.c.h.b16 %v5492
    %v6034 = vunpack.c.l.b16 %v5493
    %v6035 = vunpack.c.h.b16 %v5493
    %v6036 = vunpack.c.l.b16 %v5494
    %v6037 = vunpack.c.h.b16 %v5494
    %v6038 = vunpack.c.l.b16 %v5495
    %v6039 = vunpack.c.h.b16 %v5495
    %v6040 = vunpack.c.l.b16 %v5496
    %v6041 = vunpack.c.h.b16 %v5496
    %v6042 = vunpack.c.l.b16 %v5497
    %v6043 = vunpack.c.h.b16 %v5497
    %v6044 = vunpack.c.l.b16 %v5498
    %v6045 = vunpack.c.h.b16 %v5498
    %v6046 = vunpack.c.l.b16 %v5499
    %v6047 = vunpack.c.h.b16 %v5499
    %v6048 = vunpack.c.l.b16 %v5500
    %v6049 = vunpack.c.h.b16 %v5500
    %v6050 = vunpack.c.l.b16 %v5501
    %v6051 = vunpack.c.h.b16 %v5501
    %v6052 = vunpack.c.l.b16 %v5502
    %v6053 = vunpack.c.h.b16 %v5502
    %v6054 = vunpack.c.l.b16 %v5503
    %v6055 = vunpack.c.h.b16 %v5503
    %v6056 = vunpack.c.l.b16 %v5504
    %v6057 = vunpack.c.h.b16 %v5504
    %v6058 = vunpack.c.l.b16 %v5505
    %v6059 = vunpack.c.h.b16 %v5505
    %v6060 = vunpack.c.l.b16 %v5506
    %v6061 = vunpack.c.h.b16 %v5506
    %v6062 = vunpack.c.l.b16 %v5507
    %v6063 = vunpack.c.h.b16 %v5507
    %v6064 = vunpack.c.l.b16 %v5508
    %v6065 = vunpack.c.h.b16 %v5508
    %v6066 = vunpack.c.l.b16 %v5509
    %v6067 = vunpack.c.h.b16 %v5509
    %v6068 = vunpack.c.l.b16 %v5510
    %v6069 = vunpack.c.h.b16 %v5510
    %v6070 = vunpack.c.l.b16 %v5511
    %v6071 = vunpack.c.h.b16 %v5511
    %v6072 = vunpack.c.l.b16 %v5512
    %v6073 = vunpack.c.h.b16 %v5512
    %v6074 = vunpack.c.l.b16 %v5513
    %v6075 = vunpack.c.h.b16 %v5513
    %v6076 = vunpack.c.l.b16 %v5514
    %v6077 = vunpack.c.h.b16 %v5514
    %v6078 = vunpack.c.l.b16 %v5515
    %v6079 = vunpack.c.h.b16 %v5515
    %v6080 = vunpack.c.l.b16 %v5516
    %v6081 = vunpack.c.h.b16 %v5516
    %v6082 = vunpack.c.l.b16 %v5517
    %v6083 = vunpack.c.h.b16 %v5517
    %v6084 = vunpack.c.l.b16 %v5518
    %v6085 = vunpack.c.h.b16 %v5518
    %v6086 = vunpack.c.l.b16 %v5519
    %v6087 = vunpack.c.h.b16 %v5519
    %v6088 = vunpack.c.l.b16 %v5520
    %v6089 = vunpack.c.h.b16 %v5520
    %v6090 = vunpack.c.l.b16 %v5521
    %v6091 = vunpack.c.h.b16 %v5521
    %v6092 = vunpack.c.l.b16 %v5522
    %v6093 = vunpack.c.h.b16 %v5522
    %v6094 = vunpack.c.l.b16 %v5523
    %v6095 = vunpack.c.h.b16 %v5523
    %v6096 = vunpack.c.l.b16 %v5524
    %v6097 = vunpack.c.h.b16 %v5524
    %v6098 = vunpack.c.l.b16 %v5525
    %v6099 = vunpack.c.h.b16 %v5525
    %v6100 = vunpack.c.l.b16 %v5526
    %v6101 = vunpack.c.h.b16 %v5526
    %v6102 = vunpack.c.l.b16 %v5527
    %v6103 = vunpack.c.h.b16 %v5527
    %v6104 = vunpack.c.l.b16 %v5528
    %v6105 = vunpack.c.h.b16 %v5528
    %v6106 = vunpack.c.l.b16 %v5529
    %v6107 = vunpack.c.h.b16 %v5529
    %v6108 = vunpack.c.l.b16 %v5530
    %v6109 = vunpack.c.h.b16 %v5530
    %v6110 = vunpack.c.l.b16 %v5531
    %v6111 = vunpack.c.h.b16 %v5531
    %v6112 = vunpack.c.l.b16 %v5532
    %v6113 = vunpack.c.h.b16 %v5532
    %v6114 = vunpack.c.l.b16 %v5533
    %v6115 = vunpack.c.h.b16 %v5533
    %v6116 = vunpack.c.l.b16 %v5534
    %v6117 = vunpack.c.h.b16 %v5534
    %v6118 = vunpack.c.l.b16 %v5535
    %v6119 = vunpack.c.h.b16 %v5535
    %v6120 = vunpack.c.l.b16 %v5536
    %v6121 = vunpack.c.h.b16 %v5536
    %v6122 = vunpack.c.l.b16 %v5537
    %v6123 = vunpack.c.h.b16 %v5537
    %v6124 = vunpack.c.l.b16 %v5538
    %v6125 = vunpack.c.h.b16 %v5538
    %v6126 = vunpack.c.l.b16 %v5539
    %v6127 = vunpack.c.h.b16 %v5539
    %v6128 = vunpack.c.l.b16 %v5540
    %v6129 = vunpack.c.h.b16 %v5540
    %v6130 = vunpack.c.l.b16 %v5541
    %v6131 = vunpack.c.h.b16 %v5541
    %v6132 = vunpack.c.l.b16 %v5542
    %v6133 = vunpack.c.h.b16 %v5542
    %v6134 = vunpack.c.l.b16 %v5543
    %v6135 = vunpack.c.h.b16 %v5543
    %v6136 = vunpack.c.l.b16 %v5544
    %v6137 = vunpack.c.h.b16 %v5544
    %v6138 = vunpack.c.l.b16 %v5545
    %v6139 = vunpack.c.h.b16 %v5545
    %v6140 = vunpack.c.l.b16 %v5546
    %v6141 = vunpack.c.h.b16 %v5546
    %v6142 = vunpack.c.l.b16 %v5547
    %v6143 = vunpack.c.h.b16 %v5547
    %v6144 = vunpack.c.l.b16 %v5548
    %v6145 = vunpack.c.h.b16 %v5548
    %v6146 = vunpack.c.l.b16 %v5549
    %v6147 = vunpack.c.h.b16 %v5549
    %v6148 = vunpack.c.l.b16 %v5550
    %v6149 = vunpack.c.h.b16 %v5550
    %v6150 = vunpack.c.l.b16 %v5551
    %v6151 = vunpack.c.h.b16 %v5551
    %v6152 = vunpack.c.l.b16 %v5552
    %v6153 = vunpack.c.h.b16 %v5552
    %v6154 = vunpack.c.l.b16 %v5553
    %v6155 = vunpack.c.h.b16 %v5553
    %v6156 = vunpack.c.l.b16 %v5554
    %v6157 = vunpack.c.h.b16 %v5554
    %v6158 = vunpack.c.l.b16 %v5555
    %v6159 = vunpack.c.h.b16 %v5555
    %v6160 = vunpack.c.l.b16 %v5556
    %v6161 = vunpack.c.h.b16 %v5556
    %v6162 = vunpack.c.l.b16 %v5557
    %v6163 = vunpack.c.h.b16 %v5557
    %v6164 = vunpack.c.l.b16 %v5558
    %v6165 = vunpack.c.h.b16 %v5558
    %v6166 = vunpack.c.l.b16 %v5559
    %v6167 = vunpack.c.h.b16 %v5559
    %v6168 = vunpack.c.l.b16 %v5560
    %v6169 = vunpack.c.h.b16 %v5560
    %v6170 = vunpack.c.l.b16 %v5561
    %v6171 = vunpack.c.h.b16 %v5561
    %v6172 = vunpack.c.l.b16 %v5562
    %v6173 = vunpack.c.h.b16 %v5562
    %v6174 = vunpack.c.l.b16 %v5563
    %v6175 = vunpack.c.h.b16 %v5563
    %v6176 = vunpack.c.l.b16 %v5564
    %v6177 = vunpack.c.h.b16 %v5564
    %v6178 = vunpack.c.l.b16 %v5565
    %v6179 = vunpack.c.h.b16 %v5565
    %v6180 = vunpack.c.l.b16 %v5566
    %v6181 = vunpack.c.h.b16 %v5566
    %v6182 = vunpack.c.l.b16 %v5567
    %v6183 = vunpack.c.h.b16 %v5567
    %v6184 = vunpack.c.l.b16 %v5568
    %v6185 = vunpack.c.h.b16 %v5568
    %v6186 = vunpack.c.l.b16 %v5569
    %v6187 = vunpack.c.h.b16 %v5569
    %v6188 = vunpack.c.l.b16 %v5570
    %v6189 = vunpack.c.h.b16 %v5570
    %v6190 = vunpack.c.l.b16 %v5571
    %v6191 = vunpack.c.h.b16 %v5571
    %v6192 = vunpack.c.l.b16 %v5572
    %v6193 = vunpack.c.h.b16 %v5572
    %v6194 = vunpack.c.l.b16 %v5573
    %v6195 = vunpack.c.h.b16 %v5573
    %v6196 = vunpack.c.l.b16 %v5574
    %v6197 = vunpack.c.h.b16 %v5574
    %v6198 = vunpack.c.l.b16 %v5575
    %v6199 = vunpack.c.h.b16 %v5575
    %v6200 = vunpack.c.l.b16 %v5576
    %v6201 = vunpack.c.h.b16 %v5576
    %v6202 = vunpack.c.l.b16 %v5577
    %v6203 = vunpack.c.h.b16 %v5577
    %v6204 = vunpack.c.l.b16 %v5578
    %v6205 = vunpack.c.h.b16 %v5578
    %v6206 = vunpack.c.l.b16 %v5579
    %v6207 = vunpack.c.h.b16 %v5579
    %v6208 = vunpack.c.l.b16 %v5580
    %v6209 = vunpack.c.h.b16 %v5580
    %v6210 = vunpack.c.l.b16 %v5581
    %v6211 = vunpack.c.h.b16 %v5581
    %v6212 = vunpack.c.l.b16 %v5582
    %v6213 = vunpack.c.h.b16 %v5582
    %v6214 = vunpack.c.l.b16 %v5583
    %v6215 = vunpack.c.h.b16 %v5583
    %v6216 = vunpack.c.l.b16 %v5584
    %v6217 = vunpack.c.h.b16 %v5584
    %v6218 = vunpack.c.l.b16 %v5585
    %v6219 = vunpack.c.h.b16 %v5585
    %v6220 = vunpack.c.l.b16 %v5586
    %v6221 = vunpack.c.h.b16 %v5586
    %v6222 = vunpack.c.l.b16 %v5587
    %v6223 = vunpack.c.h.b16 %v5587
    %v6224 = vunpack.c.l.b16 %v5588
    %v6225 = vunpack.c.h.b16 %v5588
    %v6226 = vunpack.c.l.b16 %v5589
    %v6227 = vunpack.c.h.b16 %v5589
    %v6228 = vunpack.c.l.b16 %v5590
    %v6229 = vunpack.c.h.b16 %v5590
    %v6230 = vunpack.c.l.b16 %v5591
    %v6231 = vunpack.c.h.b16 %v5591
    %v6232 = vunpack.c.l.b16 %v5592
    %v6233 = vunpack.c.h.b16 %v5592
    %v6234 = vunpack.c.l.b16 %v5593
    %v6235 = vunpack.c.h.b16 %v5593
    %v6236 = vunpack.c.l.b16 %v5594
    %v6237 = vunpack.c.h.b16 %v5594
    %v6238 = vunpack.c.l.b16 %v5595
    %v6239 = vunpack.c.h.b16 %v5595
    %v6240 = vunpack.c.l.b16 %v5596
    %v6241 = vunpack.c.h.b16 %v5596
    %v6242 = vunpack.c.l.b16 %v5597
    %v6243 = vunpack.c.h.b16 %v5597
    %v6244 = vunpack.c.l.b16 %v5598
    %v6245 = vunpack.c.h.b16 %v5598
    %v6246 = vunpack.c.l.b16 %v5599
    %v6247 = vunpack.c.h.b16 %v5599
    %v6248 = vunpack.c.l.b16 %v5600
    %v6249 = vunpack.c.h.b16 %v5600
    %v6250 = vunpack.c.l.b16 %v5601
    %v6251 = vunpack.c.h.b16 %v5601
    %v6252 = vunpack.c.l.b16 %v5602
    %v6253 = vunpack.c.h.b16 %v5602
    %v6254 = vunpack.c.l.b16 %v5603
    %v6255 = vunpack.c.h.b16 %v5603
    %v6256 = vunpack.c.l.b16 %v5604
    %v6257 = vunpack.c.h.b16 %v5604
    %v6258 = vunpack.c.l.b16 %v5605
    %v6259 = vunpack.c.h.b16 %v5605
    %v6260 = vunpack.c.l.b16 %v5606
    %v6261 = vunpack.c.h.b16 %v5606
    %v6262 = vunpack.c.l.b16 %v5607
    %v6263 = vunpack.c.h.b16 %v5607
    %v6264 = vunpack.c.l.b16 %v5608
    %v6265 = vunpack.c.h.b16 %v5608
    %v6266 = vunpack.c.l.b16 %v5609
    %v6267 = vunpack.c.h.b16 %v5609
    %v6268 = vunpack.c.l.b16 %v5610
    %v6269 = vunpack.c.h.b16 %v5610
    %v6270 = vunpack.c.l.b16 %v5611
    %v6271 = vunpack.c.h.b16 %v5611
    %v6272 = vunpack.c.l.b16 %v5612
    %v6273 = vunpack.c.h.b16 %v5612
    %v6274 = vunpack.c.l.b16 %v5613
    %v6275 = vunpack.c.h.b16 %v5613
    %v6276 = vunpack.c.l.b16 %v5614
    %v6277 = vunpack.c.h.b16 %v5614
    %v6278 = vunpack.c.l.b16 %v5615
    %v6279 = vunpack.c.h.b16 %v5615
    %v6280 = vunpack.c.l.b16 %v5616
    %v6281 = vunpack.c.h.b16 %v5616
    %v6282 = vunpack.c.l.b16 %v5617
    %v6283 = vunpack.c.h.b16 %v5617
    %v6284 = vunpack.c.l.b16 %v5618
    %v6285 = vunpack.c.h.b16 %v5618
    %v6286 = vunpack.c.l.b16 %v5619
    %v6287 = vunpack.c.h.b16 %v5619
    %v6288 = vunpack.c.l.b16 %v5620
    %v6289 = vunpack.c.h.b16 %v5620
    %v6290 = vunpack.c.l.b16 %v5621
    %v6291 = vunpack.c.h.b16 %v5621
    %v6292 = vunpack.c.l.b16 %v5622
    %v6293 = vunpack.c.h.b16 %v5622
    %v6294 = vunpack.c.l.b16 %v5623
    %v6295 = vunpack.c.h.b16 %v5623
    %v6296 = vunpack.c.l.b16 %v5624
    %v6297 = vunpack.c.h.b16 %v5624
    %v6298 = vunpack.c.l.b16 %v5625
    %v6299 = vunpack.c.h.b16 %v5625
    %v6300 = vunpack.c.l.b16 %v5626
    %v6301 = vunpack.c.h.b16 %v5626
    %v6302 = vunpack.c.l.b16 %v5627
    %v6303 = vunpack.c.h.b16 %v5627
    %v6304 = vunpack.c.l.b16 %v5628
    %v6305 = vunpack.c.h.b16 %v5628
    %v6306 = vunpack.c.l.b16 %v5629
    %v6307 = vunpack.c.h.b16 %v5629
    %v6308 = vunpack.c.l.b16 %v5630
    %v6309 = vunpack.c.h.b16 %v5630
    %v6310 = vunpack.c.l.b16 %v5631
    %v6311 = vunpack.c.h.b16 %v5631
    %v6312 = vunpack.c.l.b16 %v5632
    %v6313 = vunpack.c.h.b16 %v5632
    %v6314 = vunpack.c.l.b16 %v5633
    %v6315 = vunpack.c.h.b16 %v5633
    %v6316 = vunpack.c.l.b16 %v5634
    %v6317 = vunpack.c.h.b16 %v5634
    %v6318 = vunpack.c.l.b16 %v5635
    %v6319 = vunpack.c.h.b16 %v5635
    %v6320 = vunpack.c.l.b16 %v5636
    %v6321 = vunpack.c.h.b16 %v5636
    %v6322 = vunpack.c.l.b16 %v5637
    %v6323 = vunpack.c.h.b16 %v5637
    %v6324 = vunpack.c.l.b16 %v5638
    %v6325 = vunpack.c.h.b16 %v5638
    %v6326 = vunpack.c.l.b16 %v5639
    %v6327 = vunpack.c.h.b16 %v5639
    %v6328 = vunpack.c.l.b16 %v5640
    %v6329 = vunpack.c.h.b16 %v5640
    %v6330 = vunpack.c.l.b16 %v5641
    %v6331 = vunpack.c.h.b16 %v5641
    %v6332 = vunpack.c.l.b16 %v5642
    %v6333 = vunpack.c.h.b16 %v5642
    %v6334 = vunpack.c.l.b16 %v5643
    %v6335 = vunpack.c.h.b16 %v5643
    %v6336 = vunpack.c.l.b16 %v5644
    %v6337 = vunpack.c.h.b16 %v5644
    %v6338 = vunpack.c.l.b16 %v5645
    %v6339 = vunpack.c.h.b16 %v5645
    %v6340 = vunpack.c.l.b16 %v5646
    %v6341 = vunpack.c.h.b16 %v5646
    %v6342 = vunpack.c.l.b16 %v5647
    %v6343 = vunpack.c.h.b16 %v5647
    %v6344 = vunpack.c.l.b16 %v5648
    %v6345 = vunpack.c.h.b16 %v5648
    %v6346 = vunpack.c.l.b16 %v5649
    %v6347 = vunpack.c.h.b16 %v5649
    %v6348 = vunpack.c.l.b16 %v5650
    %v6349 = vunpack.c.h.b16 %v5650
    %v6350 = vunpack.c.l.b16 %v5651
    %v6351 = vunpack.c.h.b16 %v5651
    %v6352 = vunpack.c.l.b16 %v5652
    %v6353 = vunpack.c.h.b16 %v5652
    %v6354 = vunpack.c.l.b16 %v5653
    %v6355 = vunpack.c.h.b16 %v5653
    %v6356 = vunpack.c.l.b16 %v5654
    %v6357 = vunpack.c.h.b16 %v5654
    %v6358 = vunpack.c.l.b16 %v5655
    %v6359 = vunpack.c.h.b16 %v5655
    %v6360 = vunpack.c.l.b16 %v5656
    %v6361 = vunpack.c.h.b16 %v5656
    %v6362 = vunpack.c.l.b16 %v5657
    %v6363 = vunpack.c.h.b16 %v5657
    %v6364 = vunpack.c.l.b16 %v5658
    %v6365 = vunpack.c.h.b16 %v5658
    %v6366 = vunpack.c.l.b16 %v5659
    %v6367 = vunpack.c.h.b16 %v5659
    %v6368 = vunpack.c.l.b16 %v5660
    %v6369 = vunpack.c.h.b16 %v5660
    %v6370 = vunpack.c.l.b16 %v5661
    %v6371 = vunpack.c.h.b16 %v5661
    %v6372 = vunpack.c.l.b16 %v5662
    %v6373 = vunpack.c.h.b16 %v5662
    %v6374 = vunpack.c.l.b16 %v5663
    %v6375 = vunpack.c.h.b16 %v5663
    %v6376 = vunpack.c.l.b16 %v5664
    %v6377 = vunpack.c.h.b16 %v5664
    %v6378 = vunpack.c.l.b16 %v5665
    %v6379 = vunpack.c.h.b16 %v5665
    %v6380 = vunpack.c.l.b16 %v5666
    %v6381 = vunpack.c.h.b16 %v5666
    %v6382 = vunpack.c.l.b16 %v5667
    %v6383 = vunpack.c.h.b16 %v5667
    %v6384 = vunpack.c.l.b16 %v5668
    %v6385 = vunpack.c.h.b16 %v5668
    %v6386 = vunpack.c.l.b16 %v5669
    %v6387 = vunpack.c.h.b16 %v5669
    %v6388 = vunpack.c.l.b16 %v5670
    %v6389 = vunpack.c.h.b16 %v5670
    %v6390 = vunpack.c.l.b16 %v5671
    %v6391 = vunpack.c.h.b16 %v5671
    %v6392 = vunpack.c.l.b16 %v5672
    %v6393 = vunpack.c.h.b16 %v5672
    %v6394 = vunpack.c.l.b16 %v5673
    %v6395 = vunpack.c.h.b16 %v5673
    %v6396 = vunpack.c.l.b16 %v5674
    %v6397 = vunpack.c.h.b16 %v5674
    %v6398 = vunpack.c.l.b16 %v5675
    %v6399 = vunpack.c.h.b16 %v5675
    %v6400 = vunpack.c.l.b16 %v5676
    %v6401 = vunpack.c.h.b16 %v5676
    %v6402 = vunpack.c.l.b16 %v5677
    %v6403 = vunpack.c.h.b16 %v5677
    %v6404 = vunpack.c.l.b16 %v5678
    %v6405 = vunpack.c.h.b16 %v5678
    %v6406 = vunpack.c.l.b16 %v5679
    %v6407 = vunpack.c.h.b16 %v5679
    %v6408 = vunpack.c.l.b16 %v5680
    %v6409 = vunpack.c.h.b16 %v5680
    %v6410 = vunpack.c.l.b16 %v5681
    %v6411 = vunpack.c.h.b16 %v5681
    %v6412 = vunpack.c.l.b16 %v5682
    %v6413 = vunpack.c.h.b16 %v5682
    %v6414 = vunpack.c.l.b16 %v5683
    %v6415 = vunpack.c.h.b16 %v5683
    %v6416 = vunpack.c.l.b16 %v5684
    %v6417 = vunpack.c.h.b16 %v5684
    %v6418 = vunpack.c.l.b16 %v5685
    %v6419 = vunpack.c.h.b16 %v5685
    %v6420 = vunpack.c.l.b16 %v5686
    %v6421 = vunpack.c.h.b16 %v5686
    %v6422 = vunpack.c.l.b16 %v5687
    %v6423 = vunpack.c.h.b16 %v5687
    %v6424 = vunpack.c.l.b16 %v5688
    %v6425 = vunpack.c.h.b16 %v5688
    %v6426 = vunpack.c.l.b16 %v5689
    %v6427 = vunpack.c.h.b16 %v5689
    %v6428 = vunpack.c.l.b16 %v5690
    %v6429 = vunpack.c.h.b16 %v5690
    %v6430 = vunpack.c.l.b16 %v5691
    %v6431 = vunpack.c.h.b16 %v5691
    %v6432 = vunpack.c.l.b16 %v5692
    %v6433 = vunpack.c.h.b16 %v5692
    %v6434 = vunpack.c.l.b16 %v5693
    %v6435 = vunpack.c.h.b16 %v5693
    %v6436 = vunpack.c.l.b16 %v5694
    %v6437 = vunpack.c.h.b16 %v5694
    %v6438 = vunpack.c.l.b16 %v5695
    %v6439 = vunpack.c.h.b16 %v5695
    %v6440 = vunpack.c.l.b16 %v5696
    %v6441 = vunpack.c.h.b16 %v5696
    %v6442 = vunpack.c.l.b16 %v5697
    %v6443 = vunpack.c.h.b16 %v5697
    %v6444 = vunpack.c.l.b16 %v5698
    %v6445 = vunpack.c.h.b16 %v5698
    %v6446 = vunpack.c.l.b16 %v5699
    %v6447 = vunpack.c.h.b16 %v5699
    %v6448 = vunpack.c.l.b16 %v5700
    %v6449 = vunpack.c.h.b16 %v5700
    %v6450 = vunpack.c.l.b16 %v5701
    %v6451 = vunpack.c.h.b16 %v5701
    %v6452 = vunpack.c.l.b16 %v5702
    %v6453 = vunpack.c.h.b16 %v5702
    %v6454 = vunpack.c.l.b16 %v5703
    %v6455 = vunpack.c.h.b16 %v5703
    %v6456 = vunpack.c.l.b16 %v5704
    %v6457 = vunpack.c.h.b16 %v5704
    %v6458 = vunpack.c.l.b16 %v5705
    %v6459 = vunpack.c.h.b16 %v5705
    %v6460 = vunpack.c.l.b16 %v5706
    %v6461 = vunpack.c.h.b16 %v5706
    %v6462 = vunpack.c.l.b16 %v5707
    %v6463 = vunpack.c.h.b16 %v5707
    %v6464 = vunpack.c.l.b16 %v5708
    %v6465 = vunpack.c.h.b16 %v5708
    %v6466 = vunpack.c.l.b16 %v5709
    %v6467 = vunpack.c.h.b16 %v5709
    %v6468 = vunpack.c.l.b16 %v5710
    %v6469 = vunpack.c.h.b16 %v5710
    %v6470 = vunpack.c.l.b16 %v5711
    %v6471 = vunpack.c.h.b16 %v5711
    %v6472 = vunpack.c.l.b16 %v5712
    %v6473 = vunpack.c.h.b16 %v5712
    %v6474 = vunpack.c.l.b16 %v5713
    %v6475 = vunpack.c.h.b16 %v5713
    %v6476 = vunpack.c.l.b16 %v5714
    %v6477 = vunpack.c.h.b16 %v5714
    %v6478 = vunpack.c.l.b16 %v5715
    %v6479 = vunpack.c.h.b16 %v5715
    %v6480 = vunpack.c.l.b16 %v5716
    %v6481 = vunpack.c.h.b16 %v5716
    %v6482 = vunpack.c.l.b16 %v5717
    %v6483 = vunpack.c.h.b16 %v5717
    %v6484 = vunpack.c.l.b16 %v5718
    %v6485 = vunpack.c.h.b16 %v5718
    %v6486 = vunpack.c.l.b16 %v5719
    %v6487 = vunpack.c.h.b16 %v5719
    %v6488 = vunpack.c.l.b16 %v5720
    %v6489 = vunpack.c.h.b16 %v5720
    %v6490 = vunpack.c.l.b16 %v5721
    %v6491 = vunpack.c.h.b16 %v5721
    %v6492 = vunpack.c.l.b16 %v5722
    %v6493 = vunpack.c.h.b16 %v5722
    %v6494 = vunpack.c.l.b16 %v5723
    %v6495 = vunpack.c.h.b16 %v5723
    %v6496 = vunpack.c.l.b16 %v5724
    %v6497 = vunpack.c.h.b16 %v5724
    %v6498 = vunpack.c.l.b16 %v5725
    %v6499 = vunpack.c.h.b16 %v5725
    %v6500 = vunpack.c.l.b16 %v5726
    %v6501 = vunpack.c.h.b16 %v5726
    %v6502 = vunpack.c.l.b16 %v5727
    %v6503 = vunpack.c.h.b16 %v5727
    %v6504 = vunpack.c.l.b16 %v5728
    %v6505 = vunpack.c.h.b16 %v5728
    %v6506 = vunpack.c.l.b16 %v5729
    %v6507 = vunpack.c.h.b16 %v5729
    %v6508 = vunpack.c.l.b16 %v5730
    %v6509 = vunpack.c.h.b16 %v5730
    %v6510 = vunpack.c.l.b16 %v5731
    %v6511 = vunpack.c.h.b16 %v5731
    %v6512 = vunpack.c.l.b16 %v5732
    %v6513 = vunpack.c.h.b16 %v5732
    %v6514 = vunpack.c.l.b16 %v5733
    %v6515 = vunpack.c.h.b16 %v5733
    %v6516 = vunpack.c.l.b16 %v5734
    %v6517 = vunpack.c.h.b16 %v5734
    %v6518 = vunpack.c.l.b16 %v5735
    %v6519 = vunpack.c.h.b16 %v5735
    %v6520 = vunpack.c.l.b16 %v5736
    %v6521 = vunpack.c.h.b16 %v5736
    %v6522 = vunpack.c.l.b16 %v5737
    %v6523 = vunpack.c.h.b16 %v5737
    %v6524 = vunpack.c.l.b16 %v5738
    %v6525 = vunpack.c.h.b16 %v5738
    %v6526 = vunpack.c.l.b16 %v5739
    %v6527 = vunpack.c.h.b16 %v5739
    %v6528 = vunpack.c.l.b16 %v5740
    %v6529 = vunpack.c.h.b16 %v5740
    %v6530 = vunpack.c.l.b16 %v5741
    %v6531 = vunpack.c.h.b16 %v5741
    %v6532 = vpack.c.b16 %v6024, %v6020
    %v6533 = vpack.c.b16 %v6025, %v6021
    %v6534 = vpack.c.b16 %v6026, %v6022
    %v6535 = vpack.c.b16 %v6027, %v6023
    %v6536 = vpack.c.b16 %v6032, %v6028
    %v6537 = vpack.c.b16 %v6033, %v6029
    %v6538 = vpack.c.b16 %v6034, %v6030
    %v6539 = vpack.c.b16 %v6035, %v6031
    %v6540 = vpack.c.b16 %v6040, %v6036
    %v6541 = vpack.c.b16 %v6041, %v6037
    %v6542 = vpack.c.b16 %v6042, %v6038
    %v6543 = vpack.c.b16 %v6043, %v6039
    %v6544 = vpack.c.b16 %v6048, %v6044
    %v6545 = vpack.c.b16 %v6049, %v6045
    %v6546 = vpack.c.b16 %v6050, %v6046
    %v6547 = vpack.c.b16 %v6051, %v6047
    %v6548 = vpack.c.b16 %v6056, %v6052
    %v6549 = vpack.c.b16 %v6057, %v6053
    %v6550 = vpack.c.b16 %v6058, %v6054
    %v6551 = vpack.c.b16 %v6059, %v6055
    %v6552 = vpack.c.b16 %v6064, %v6060
    %v6553 = vpack.c.b16 %v6065, %v6061
    %v6554 = vpack.c.b16 %v6066, %v6062
    %v6555 = vpack.c.b16 %v6067, %v6063
    %v6556 = vpack.c.b16 %v6072, %v6068
    %v6557 = vpack.c.b16 %v6073, %v6069
    %v6558 = vpack.c.b16 %v6074, %v6070
    %v6559 = vpack.c.b16 %v6075, %v6071
    %v6560 = vpack.c.b16 %v6080, %v6076
    %v6561 = vpack.c.b16 %v6081, %v6077
    %v6562 = vpack.c.b16 %v6082, %v6078
    %v6563 = vpack.c.b16 %v6083, %v6079
    %v6564 = vpack.c.b16 %v6088, %v6084
    %v6565 = vpack.c.b16 %v6089, %v6085
    %v6566 = vpack.c.b16 %v6090, %v6086
    %v6567 = vpack.c.b16 %v6091, %v6087
    %v6568 = vpack.c.b16 %v6096, %v6092
    %v6569 = vpack.c.b16 %v6097, %v6093
    %v6570 = vpack.c.b16 %v6098, %v6094
    %v6571 = vpack.c.b16 %v6099, %v6095
    %v6572 = vpack.c.b16 %v6104, %v6100
    %v6573 = vpack.c.b16 %v6105, %v6101
    %v6574 = vpack.c.b16 %v6106, %v6102
    %v6575 = vpack.c.b16 %v6107, %v6103
    %v6576 = vpack.c.b16 %v6112, %v6108
    %v6577 = vpack.c.b16 %v6113, %v6109
    %v6578 = vpack.c.b16 %v6114, %v6110
    %v6579 = vpack.c.b16 %v6115, %v6111
    %v6580 = vpack.c.b16 %v6120, %v6116
    %v6581 = vpack.c.b16 %v6121, %v6117
    %v6582 = vpack.c.b16 %v6122, %v6118
    %v6583 = vpack.c.b16 %v6123, %v6119
    %v6584 = vpack.c.b16 %v6128, %v6124
    %v6585 = vpack.c.b16 %v6129, %v6125
    %v6586 = vpack.c.b16 %v6130, %v6126
    %v6587 = vpack.c.b16 %v6131, %v6127
    %v6588 = vpack.c.b16 %v6136, %v6132
    %v6589 = vpack.c.b16 %v6137, %v6133
    %v6590 = vpack.c.b16 %v6138, %v6134
    %v6591 = vpack.c.b16 %v6139, %v6135
    %v6592 = vpack.c.b16 %v6144, %v6140
    %v6593 = vpack.c.b16 %v6145, %v6141
    %v6594 = vpack.c.b16 %v6146, %v6142
    %v6595 = vpack.c.b16 %v6147, %v6143
    %v6596 = vpack.c.b16 %v6152, %v6148
    %v6597 = vpack.c.b16 %v6153, %v6149
    %v6598 = vpack.c.b16 %v6154, %v6150
    %v6599 = vpack.c.b16 %v6155, %v6151
    %v6600 = vpack.c.b16 %v6160, %v6156
    %v6601 = vpack.c.b16 %v6161, %v6157
    %v6602 = vpack.c.b16 %v6162, %v6158
    %v6603 = vpack.c.b16 %v6163, %v6159
    %v6604 = vpack.c.b16 %v6168, %v6164
    %v6605 = vpack.c.b16 %v6169, %v6165
    %v6606 = vpack.c.b16 %v6170, %v6166
    %v6607 = vpack.c.b16 %v6171, %v6167
    %v6608 = vpack.c.b16 %v6176, %v6172
    %v6609 = vpack.c.b16 %v6177, %v6173
    %v6610 = vpack.c.b16 %v6178, %v6174
    %v6611 = vpack.c.b16 %v6179, %v6175
    %v6612 = vpack.c.b16 %v6184, %v6180
    %v6613 = vpack.c.b16 %v6185, %v6181
    %v6614 = vpack.c.b16 %v6186, %v6182
    %v6615 = vpack.c.b16 %v6187, %v6183
    %v6616 = vpack.c.b16 %v6192, %v6188
    %v6617 = vpack.c.b16 %v6193, %v6189
    %v6618 = vpack.c.b16 %v6194, %v6190
    %v6619 = vpack.c.b16 %v6195, %v6191
    %v6620 = vpack.c.b16 %v6200, %v6196
    %v6621 = vpack.c.b16 %v6201, %v6197
    %v6622 = vpack.c.b16 %v6202, %v6198
    %v6623 = vpack.c.b16 %v6203, %v6199
    %v6624 = vpack.c.b16 %v6208, %v6204
    %v6625 = vpack.c.b16 %v6209, %v6205
    %v6626 = vpack.c.b16 %v6210, %v6206
    %v6627 = vpack.c.b16 %v6211, %v6207
    %v6628 = vpack.c.b16 %v6216, %v6212
    %v6629 = vpack.c.b16 %v6217, %v6213
    %v6630 = vpack.c.b16 %v6218, %v6214
    %v6631 = vpack.c.b16 %v6219, %v6215
    %v6632 = vpack.c.b16 %v6224, %v6220
    %v6633 = vpack.c.b16 %v6225, %v6221
    %v6634 = vpack.c.b16 %v6226, %v6222
    %v6635 = vpack.c.b16 %v6227, %v6223
    %v6636 = vpack.c.b16 %v6232, %v6228
    %v6637 = vpack.c.b16 %v6233, %v6229
    %v6638 = vpack.c.b16 %v6234, %v6230
    %v6639 = vpack.c.b16 %v6235, %v6231
    %v6640 = vpack.c.b16 %v6240, %v6236
    %v6641 = vpack.c.b16 %v6241, %v6237
    %v6642 = vpack.c.b16 %v6242, %v6238
    %v6643 = vpack.c.b16 %v6243, %v6239
    %v6644 = vpack.c.b16 %v6248, %v6244
    %v6645 = vpack.c.b16 %v6249, %v6245
    %v6646 = vpack.c.b16 %v6250, %v6246
    %v6647 = vpack.c.b16 %v6251, %v6247
    %v6648 = vpack.c.b16 %v6256, %v6252
    %v6649 = vpack.c.b16 %v6257, %v6253
    %v6650 = vpack.c.b16 %v6258, %v6254
    %v6651 = vpack.c.b16 %v6259, %v6255
    %v6652 = vpack.c.b16 %v6264, %v6260
    %v6653 = vpack.c.b16 %v6265, %v6261
    %v6654 = vpack.c.b16 %v6266, %v6262
    %v6655 = vpack.c.b16 %v6267, %v6263
    %v6656 = vpack.c.b16 %v6272, %v6268
    %v6657 = vpack.c.b16 %v6273, %v6269
    %v6658 = vpack.c.b16 %v6274, %v6270
    %v6659 = vpack.c.b16 %v6275, %v6271
    %v6660 = vpack.c.b16 %v6280, %v6276
    %v6661 = vpack.c.b16 %v6281, %v6277
    %v6662 = vpack.c.b16 %v6282, %v6278
    %v6663 = vpack.c.b16 %v6283, %v6279
    %v6664 = vpack.c.b16 %v6288, %v6284
    %v6665 = vpack.c.b16 %v6289, %v6285
    %v6666 = vpack.c.b16 %v6290, %v6286
    %v6667 = vpack.c.b16 %v6291, %v6287
    %v6668 = vpack.c.b16 %v6296, %v6292
    %v6669 = vpack.c.b16 %v6297, %v6293
    %v6670 = vpack.c.b16 %v6298, %v6294
    %v6671 = vpack.c.b16 %v6299, %v6295
    %v6672 = vpack.c.b16 %v6304, %v6300
    %v6673 = vpack.c.b16 %v6305, %v6301
    %v6674 = vpack.c.b16 %v6306, %v6302
    %v6675 = vpack.c.b16 %v6307, %v6303
    %v6676 = vpack.c.b16 %v6312, %v6308
    %v6677 = vpack.c.b16 %v6313, %v6309
    %v6678 = vpack.c.b16 %v6314, %v6310
    %v6679 = vpack.c.b16 %v6315, %v6311
    %v6680 = vpack.c.b16 %v6320, %v6316
    %v6681 = vpack.c.b16 %v6321, %v6317
    %v6682 = vpack.c.b16 %v6322, %v6318
    %v6683 = vpack.c.b16 %v6323, %v6319
    %v6684 = vpack.c.b16 %v6328, %v6324
    %v6685 = vpack.c.b16 %v6329, %v6325
    %v6686 = vpack.c.b16 %v6330, %v6326
    %v6687 = vpack.c.b16 %v6331, %v6327
    %v6688 = vpack.c.b16 %v6336, %v6332
    %v6689 = vpack.c.b16 %v6337, %v6333
    %v6690 = vpack.c.b16 %v6338, %v6334
    %v6691 = vpack.c.b16 %v6339, %v6335
    %v6692 = vpack.c.b16 %v6344, %v6340
    %v6693 = vpack.c.b16 %v6345, %v6341
    %v6694 = vpack.c.b16 %v6346, %v6342
    %v6695 = vpack.c.b16 %v6347, %v6343
    %v6696 = vpack.c.b16 %v6352, %v6348
    %v6697 = vpack.c.b16 %v6353, %v6349
    %v6698 = vpack.c.b16 %v6354, %v6350
    %v6699 = vpack.c.b16 %v6355, %v6351
    %v6700 = vpack.c.b16 %v6360, %v6356
    %v6701 = vpack.c.b16 %v6361, %v6357
    %v6702 = vpack.c.b16 %v6362, %v6358
    %v6703 = vpack.c.b16 %v6363, %v6359
    %v6704 = vpack.c.b16 %v6368, %v6364
    %v6705 = vpack.c.b16 %v6369, %v6365
    %v6706 = vpack.c.b16 %v6370, %v6366
    %v6707 = vpack.c.b16 %v6371, %v6367
    %v6708 = vpack.c.b16 %v6376, %v6372
    %v6709 = vpack.c.b16 %v6377, %v6373
    %v6710 = vpack.c.b16 %v6378, %v6374
    %v6711 = vpack.c.b16 %v6379, %v6375
    %v6712 = vpack.c.b16 %v6384, %v6380
    %v6713 = vpack.c.b16 %v6385, %v6381
    %v6714 = vpack.c.b16 %v6386, %v6382
    %v6715 = vpack.c.b16 %v6387, %v6383
    %v6716 = vpack.c.b16 %v6392, %v6388
    %v6717 = vpack.c.b16 %v6393, %v6389
    %v6718 = vpack.c.b16 %v6394, %v6390
    %v6719 = vpack.c.b16 %v6395, %v6391
    %v6720 = vpack.c.b16 %v6400, %v6396
    %v6721 = vpack.c.b16 %v6401, %v6397
    %v6722 = vpack.c.b16 %v6402, %v6398
    %v6723 = vpack.c.b16 %v6403, %v6399
    %v6724 = vpack.c.b16 %v6408, %v6404
    %v6725 = vpack.c.b16 %v6409, %v6405
    %v6726 = vpack.c.b16 %v6410, %v6406
    %v6727 = vpack.c.b16 %v6411, %v6407
    %v6728 = vpack.c.b16 %v6416, %v6412
    %v6729 = vpack.c.b16 %v6417, %v6413
    %v6730 = vpack.c.b16 %v6418, %v6414
    %v6731 = vpack.c.b16 %v6419, %v6415
    %v6732 = vpack.c.b16 %v6424, %v6420
    %v6733 = vpack.c.b16 %v6425, %v6421
    %v6734 = vpack.c.b16 %v6426, %v6422
    %v6735 = vpack.c.b16 %v6427, %v6423
    %v6736 = vpack.c.b16 %v6432, %v6428
    %v6737 = vpack.c.b16 %v6433, %v6429
    %v6738 = vpack.c.b16 %v6434, %v6430
    %v6739 = vpack.c.b16 %v6435, %v6431
    %v6740 = vpack.c.b16 %v6440, %v6436
    %v6741 = vpack.c.b16 %v6441, %v6437
    %v6742 = vpack.c.b16 %v6442, %v6438
    %v6743 = vpack.c.b16 %v6443, %v6439
    %v6744 = vpack.c.b16 %v6448, %v6444
    %v6745 = vpack.c.b16 %v6449, %v6445
    %v6746 = vpack.c.b16 %v6450, %v6446
    %v6747 = vpack.c.b16 %v6451, %v6447
    %v6748 = vpack.c.b16 %v6456, %v6452
    %v6749 = vpack.c.b16 %v6457, %v6453
    %v6750 = vpack.c.b16 %v6458, %v6454
    %v6751 = vpack.c.b16 %v6459, %v6455
    %v6752 = vpack.c.b16 %v6464, %v6460
    %v6753 = vpack.c.b16 %v6465, %v6461
    %v6754 = vpack.c.b16 %v6466, %v6462
    %v6755 = vpack.c.b16 %v6467, %v6463
    %v6756 = vpack.c.b16 %v6472, %v6468
    %v6757 = vpack.c.b16 %v6473, %v6469
    %v6758 = vpack.c.b16 %v6474, %v6470
    %v6759 = vpack.c.b16 %v6475, %v6471
    %v6760 = vpack.c.b16 %v6480, %v6476
    %v6761 = vpack.c.b16 %v6481, %v6477
    %v6762 = vpack.c.b16 %v6482, %v6478
    %v6763 = vpack.c.b16 %v6483, %v6479
    %v6764 = vpack.c.b16 %v6488, %v6484
    %v6765 = vpack.c.b16 %v6489, %v6485
    %v6766 = vpack.c.b16 %v6490, %v6486
    %v6767 = vpack.c.b16 %v6491, %v6487
    %v6768 = vpack.c.b16 %v6496, %v6492
    %v6769 = vpack.c.b16 %v6497, %v6493
    %v6770 = vpack.c.b16 %v6498, %v6494
    %v6771 = vpack.c.b16 %v6499, %v6495
    %v6772 = vpack.c.b16 %v6504, %v6500
    %v6773 = vpack.c.b16 %v6505, %v6501
    %v6774 = vpack.c.b16 %v6506, %v6502
    %v6775 = vpack.c.b16 %v6507, %v6503
    %v6776 = vpack.c.b16 %v6512, %v6508
    %v6777 = vpack.c.b16 %v6513, %v6509
    %v6778 = vpack.c.b16 %v6514, %v6510
    %v6779 = vpack.c.b16 %v6515, %v6511
    %v6780 = vpack.c.b16 %v6520, %v6516
    %v6781 = vpack.c.b16 %v6521, %v6517
    %v6782 = vpack.c.b16 %v6522, %v6518
    %v6783 = vpack.c.b16 %v6523, %v6519
    %v6784 = vpack.c.b16 %v6528, %v6524
    %v6785 = vpack.c.b16 %v6529, %v6525
    %v6786 = vpack.c.b16 %v6530, %v6526
    %v6787 = vpack.c.b16 %v6531, %v6527
    %7044 = vmatprep.subr.bf16.mxu0 %v6533
    %7045 = vmatpush1.bf16.msra.mxu0 %v6532
    %7046 = vmatprep.subr.bf16.mxu0 %v6537
    %7047 = vmatpush1.bf16.msra.mxu0 %v6536
    %7048 = vmatprep.subr.bf16.mxu0 %v6541
    %7049 = vmatpush1.bf16.msra.mxu0 %v6540
    %7050 = vmatprep.subr.bf16.mxu0 %v6545
    %7051 = vmatpush1.bf16.msra.mxu0 %v6544
    %7052 = vmatprep.subr.bf16.mxu0 %v6549
    %7053 = vmatpush1.bf16.msra.mxu0 %v6548
    %7054 = vmatprep.subr.bf16.mxu0 %v6553
    %7055 = vmatpush1.bf16.msra.mxu0 %v6552
    %7056 = vmatprep.subr.bf16.mxu0 %v6557
    %7057 = vmatpush1.bf16.msra.mxu0 %v6556
    %7058 = vmatprep.subr.bf16.mxu0 %v6561
    %7059 = vmatpush1.bf16.msra.mxu0 %v6560
    %7060 = vmatprep.subr.bf16.mxu0 %v6565
    %7061 = vmatpush1.bf16.msra.mxu0 %v6564
    %7062 = vmatprep.subr.bf16.mxu0 %v6569
    %7063 = vmatpush1.bf16.msra.mxu0 %v6568
    %7064 = vmatprep.subr.bf16.mxu0 %v6573
    %7065 = vmatpush1.bf16.msra.mxu0 %v6572
    %7066 = vmatprep.subr.bf16.mxu0 %v6577
    %7067 = vmatpush1.bf16.msra.mxu0 %v6576
    %7068 = vmatprep.subr.bf16.mxu0 %v6581
    %7069 = vmatpush1.bf16.msra.mxu0 %v6580
    %7070 = vmatprep.subr.bf16.mxu0 %v6585
    %7071 = vmatpush1.bf16.msra.mxu0 %v6584
    %7072 = vmatprep.subr.bf16.mxu0 %v6589
    %7073 = vmatpush1.bf16.msra.mxu0 %v6588
    %7074 = vmatprep.subr.bf16.mxu0 %v6593
    %7075 = vmatpush1.bf16.msra.mxu0 %v6592
    %7076 = vmatprep.mubr.bf16.mxu0 %v5479
    %7077 = vmatmul.mubr.bf16.gmra.mrb[0].mxu0 %v5478
    %v7078 = vpop.f32.mrb[0].mxu0
    %v7079 = vadd.f32 %v5747, %v7078
    %v7080 = vpop.f32.mrb[0].mxu0
    %v7081 = vadd.f32 %v5751, %v7080
    %v7082 = vpop.f32.mrb[0].mxu0
    %v7083 = vpop.f32.mrb[0].mxu0
    %7084 = vdwg.mxu0
    %7085 = vmatprep.subr.bf16.mxu0 %v6597
    %7086 = vmatpush1.bf16.msra.mxu0 %v6596
    %7087 = vmatprep.subr.bf16.mxu0 %v6601
    %7088 = vmatpush1.bf16.msra.mxu0 %v6600
    %7089 = vmatprep.subr.bf16.mxu0 %v6605
    %7090 = vmatpush1.bf16.msra.mxu0 %v6604
    %7091 = vmatprep.subr.bf16.mxu0 %v6609
    %7092 = vmatpush1.bf16.msra.mxu0 %v6608
    %7093 = vmatprep.subr.bf16.mxu0 %v6613
    %7094 = vmatpush1.bf16.msra.mxu0 %v6612
    %7095 = vmatprep.subr.bf16.mxu0 %v6617
    %7096 = vmatpush1.bf16.msra.mxu0 %v6616
    %7097 = vmatprep.subr.bf16.mxu0 %v6621
    %7098 = vmatpush1.bf16.msra.mxu0 %v6620
    %7099 = vmatprep.subr.bf16.mxu0 %v6625
    %7100 = vmatpush1.bf16.msra.mxu0 %v6624
    %7101 = vmatprep.subr.bf16.mxu0 %v6629
    %7102 = vmatpush1.bf16.msra.mxu0 %v6628
    %7103 = vmatprep.subr.bf16.mxu0 %v6633
    %7104 = vmatpush1.bf16.msra.mxu0 %v6632
    %7105 = vmatprep.subr.bf16.mxu0 %v6637
    %7106 = vmatpush1.bf16.msra.mxu0 %v6636
    %7107 = vmatprep.subr.bf16.mxu0 %v6641
    %7108 = vmatpush1.bf16.msra.mxu0 %v6640
    %7109 = vmatprep.subr.bf16.mxu0 %v6645
    %7110 = vmatpush1.bf16.msra.mxu0 %v6644
    %7111 = vmatprep.subr.bf16.mxu0 %v6649
    %7112 = vmatpush1.bf16.msra.mxu0 %v6648
    %7113 = vmatprep.subr.bf16.mxu0 %v6653
    %7114 = vmatpush1.bf16.msra.mxu0 %v6652
    %7115 = vmatprep.subr.bf16.mxu0 %v6657
    %7116 = vmatpush1.bf16.msra.mxu0 %v6656
    %7117 = vmatprep.mubr.bf16.mxu0 %v5481
    %7118 = vmatmul.mubr.bf16.gmra.mrb[0].mxu0 %v5480
    %v7119 = vpop.f32.mrb[0].mxu0
    %v7120 = vadd.f32 %v7079, %v7119
    %v7121 = vpop.f32.mrb[0].mxu0
    %v7122 = vadd.f32 %v7081, %v7121
    %v7123 = vpop.f32.mrb[0].mxu0
    %v7124 = vpop.f32.mrb[0].mxu0
    %7125 = vdwg.mxu0
    %7126 = vmatprep.subr.bf16.mxu0 %v6661
    %7127 = vmatpush1.bf16.msra.mxu0 %v6660
    %7128 = vmatprep.subr.bf16.mxu0 %v6665
    %7129 = vmatpush1.bf16.msra.mxu0 %v6664
    %7130 = vmatprep.subr.bf16.mxu0 %v6669
    %7131 = vmatpush1.bf16.msra.mxu0 %v6668
    %7132 = vmatprep.subr.bf16.mxu0 %v6673
    %7133 = vmatpush1.bf16.msra.mxu0 %v6672
    %7134 = vmatprep.subr.bf16.mxu0 %v6677
    %7135 = vmatpush1.bf16.msra.mxu0 %v6676
    %7136 = vmatprep.subr.bf16.mxu0 %v6681
    %7137 = vmatpush1.bf16.msra.mxu0 %v6680
    %7138 = vmatprep.subr.bf16.mxu0 %v6685
    %7139 = vmatpush1.bf16.msra.mxu0 %v6684
    %7140 = vmatprep.subr.bf16.mxu0 %v6689
    %7141 = vmatpush1.bf16.msra.mxu0 %v6688
    %7142 = vmatprep.subr.bf16.mxu0 %v6693
    %7143 = vmatpush1.bf16.msra.mxu0 %v6692
    %7144 = vmatprep.subr.bf16.mxu0 %v6697
    %7145 = vmatpush1.bf16.msra.mxu0 %v6696
    %7146 = vmatprep.subr.bf16.mxu0 %v6701
    %7147 = vmatpush1.bf16.msra.mxu0 %v6700
    %7148 = vmatprep.subr.bf16.mxu0 %v6705
    %7149 = vmatpush1.bf16.msra.mxu0 %v6704
    %7150 = vmatprep.subr.bf16.mxu0 %v6709
    %7151 = vmatpush1.bf16.msra.mxu0 %v6708
    %7152 = vmatprep.subr.bf16.mxu0 %v6713
    %7153 = vmatpush1.bf16.msra.mxu0 %v6712
    %7154 = vmatprep.subr.bf16.mxu0 %v6717
    %7155 = vmatpush1.bf16.msra.mxu0 %v6716
    %7156 = vmatprep.subr.bf16.mxu0 %v6721
    %7157 = vmatpush1.bf16.msra.mxu0 %v6720
    %7158 = vmatprep.mubr.bf16.mxu0 %v5483
    %7159 = vmatmul.mubr.bf16.gmra.mrb[0].mxu0 %v5482
    %v7160 = vpop.f32.mrb[0].mxu0
    %v7161 = vadd.f32 %v7120, %v7160
    %v7162 = vpop.f32.mrb[0].mxu0
    %v7163 = vadd.f32 %v7122, %v7162
    %v7164 = vpop.f32.mrb[0].mxu0
    %v7165 = vpop.f32.mrb[0].mxu0
    %7166 = vdwg.mxu0
    %7167 = vmatprep.subr.bf16.mxu0 %v6725
    %7168 = vmatpush1.bf16.msra.mxu0 %v6724
    %7169 = vmatprep.subr.bf16.mxu0 %v6729
    %7170 = vmatpush1.bf16.msra.mxu0 %v6728
    %7171 = vmatprep.subr.bf16.mxu0 %v6733
    %7172 = vmatpush1.bf16.msra.mxu0 %v6732
    %7173 = vmatprep.subr.bf16.mxu0 %v6737
    %7174 = vmatpush1.bf16.msra.mxu0 %v6736
    %7175 = vmatprep.subr.bf16.mxu0 %v6741
    %7176 = vmatpush1.bf16.msra.mxu0 %v6740
    %7177 = vmatprep.subr.bf16.mxu0 %v6745
    %7178 = vmatpush1.bf16.msra.mxu0 %v6744
    %7179 = vmatprep.subr.bf16.mxu0 %v6749
    %7180 = vmatpush1.bf16.msra.mxu0 %v6748
    %7181 = vmatprep.subr.bf16.mxu0 %v6753
    %7182 = vmatpush1.bf16.msra.mxu0 %v6752
    %7183 = vmatprep.subr.bf16.mxu0 %v6757
    %7184 = vmatpush1.bf16.msra.mxu0 %v6756
    %7185 = vmatprep.subr.bf16.mxu0 %v6761
    %7186 = vmatpush1.bf16.msra.mxu0 %v6760
    %7187 = vmatprep.subr.bf16.mxu0 %v6765
    %7188 = vmatpush1.bf16.msra.mxu0 %v6764
    %7189 = vmatprep.subr.bf16.mxu0 %v6769
    %7190 = vmatpush1.bf16.msra.mxu0 %v6768
    %7191 = vmatprep.subr.bf16.mxu0 %v6773
    %7192 = vmatpush1.bf16.msra.mxu0 %v6772
    %7193 = vmatprep.subr.bf16.mxu0 %v6777
    %7194 = vmatpush1.bf16.msra.mxu0 %v6776
    %7195 = vmatprep.subr.bf16.mxu0 %v6781
    %7196 = vmatpush1.bf16.msra.mxu0 %v6780
    %7197 = vmatprep.subr.bf16.mxu0 %v6785
    %7198 = vmatpush1.bf16.msra.mxu0 %v6784
    %7199 = vmatprep.mubr.bf16.mxu0 %v5485
    %7200 = vmatmul.mubr.bf16.gmra.mrb[0].mxu0 %v5484
    %v7201 = vpop.f32.mrb[0].mxu0
    %v7202 = vadd.f32 %v7161, %v7201
    %v7203 = vpop.f32.mrb[0].mxu0
    %v7204 = vadd.f32 %v7163, %v7203
    %v7205 = vpop.f32.mrb[0].mxu0
    %v7206 = vpop.f32.mrb[0].mxu0
    %7207 = vdwg.mxu0
    %7208 = vmatprep.subr.bf16.mxu0 %v6535
    %7209 = vmatpush1.bf16.msra.mxu0 %v6534
    %7210 = vmatprep.subr.bf16.mxu0 %v6539
    %7211 = vmatpush1.bf16.msra.mxu0 %v6538
    %7212 = vmatprep.subr.bf16.mxu0 %v6543
    %7213 = vmatpush1.bf16.msra.mxu0 %v6542
    %7214 = vmatprep.subr.bf16.mxu0 %v6547
    %7215 = vmatpush1.bf16.msra.mxu0 %v6546
    %7216 = vmatprep.subr.bf16.mxu0 %v6551
    %7217 = vmatpush1.bf16.msra.mxu0 %v6550
    %7218 = vmatprep.subr.bf16.mxu0 %v6555
    %7219 = vmatpush1.bf16.msra.mxu0 %v6554
    %7220 = vmatprep.subr.bf16.mxu0 %v6559
    %7221 = vmatpush1.bf16.msra.mxu0 %v6558
    %7222 = vmatprep.subr.bf16.mxu0 %v6563
    %7223 = vmatpush1.bf16.msra.mxu0 %v6562
    %7224 = vmatprep.subr.bf16.mxu0 %v6567
    %7225 = vmatpush1.bf16.msra.mxu0 %v6566
    %7226 = vmatprep.subr.bf16.mxu0 %v6571
    %7227 = vmatpush1.bf16.msra.mxu0 %v6570
    %7228 = vmatprep.subr.bf16.mxu0 %v6575
    %7229 = vmatpush1.bf16.msra.mxu0 %v6574
    %7230 = vmatprep.subr.bf16.mxu0 %v6579
    %7231 = vmatpush1.bf16.msra.mxu0 %v6578
    %7232 = vmatprep.subr.bf16.mxu0 %v6583
    %7233 = vmatpush1.bf16.msra.mxu0 %v6582
    %7234 = vmatprep.subr.bf16.mxu0 %v6587
    %7235 = vmatpush1.bf16.msra.mxu0 %v6586
    %7236 = vmatprep.subr.bf16.mxu0 %v6591
    %7237 = vmatpush1.bf16.msra.mxu0 %v6590
    %7238 = vmatprep.subr.bf16.mxu0 %v6595
    %7239 = vmatpush1.bf16.msra.mxu0 %v6594
    %7240 = vmatprep.mubr.bf16.mxu0 %v5479
    %7241 = vmatmul.mubr.bf16.gmra.mrb[0].mxu0 %v5478
    %v7242 = vpop.f32.mrb[0].mxu0
    %v7243 = vadd.f32 %v5755, %v7242
    %v7244 = vpop.f32.mrb[0].mxu0
    %v7245 = vadd.f32 %v5759, %v7244
    %v7246 = vpop.f32.mrb[0].mxu0
    %v7247 = vpop.f32.mrb[0].mxu0
    %7248 = vdwg.mxu0
    %7249 = vmatprep.subr.bf16.mxu0 %v6599
    %7250 = vmatpush1.bf16.msra.mxu0 %v6598
    %7251 = vmatprep.subr.bf16.mxu0 %v6603
    %7252 = vmatpush1.bf16.msra.mxu0 %v6602
    %7253 = vmatprep.subr.bf16.mxu0 %v6607
    %7254 = vmatpush1.bf16.msra.mxu0 %v6606
    %7255 = vmatprep.subr.bf16.mxu0 %v6611
    %7256 = vmatpush1.bf16.msra.mxu0 %v6610
    %7257 = vmatprep.subr.bf16.mxu0 %v6615
    %7258 = vmatpush1.bf16.msra.mxu0 %v6614
    %7259 = vmatprep.subr.bf16.mxu0 %v6619
    %7260 = vmatpush1.bf16.msra.mxu0 %v6618
    %7261 = vmatprep.subr.bf16.mxu0 %v6623
    %7262 = vmatpush1.bf16.msra.mxu0 %v6622
    %7263 = vmatprep.subr.bf16.mxu0 %v6627
    %7264 = vmatpush1.bf16.msra.mxu0 %v6626
    %7265 = vmatprep.subr.bf16.mxu0 %v6631
    %7266 = vmatpush1.bf16.msra.mxu0 %v6630
    %7267 = vmatprep.subr.bf16.mxu0 %v6635
    %7268 = vmatpush1.bf16.msra.mxu0 %v6634
    %7269 = vmatprep.subr.bf16.mxu0 %v6639
    %7270 = vmatpush1.bf16.msra.mxu0 %v6638
    %7271 = vmatprep.subr.bf16.mxu0 %v6643
    %7272 = vmatpush1.bf16.msra.mxu0 %v6642
    %7273 = vmatprep.subr.bf16.mxu0 %v6647
    %7274 = vmatpush1.bf16.msra.mxu0 %v6646
    %7275 = vmatprep.subr.bf16.mxu0 %v6651
    %7276 = vmatpush1.bf16.msra.mxu0 %v6650
    %7277 = vmatprep.subr.bf16.mxu0 %v6655
    %7278 = vmatpush1.bf16.msra.mxu0 %v6654
    %7279 = vmatprep.subr.bf16.mxu0 %v6659
    %7280 = vmatpush1.bf16.msra.mxu0 %v6658
    %7281 = vmatprep.mubr.bf16.mxu0 %v5481
    %7282 = vmatmul.mubr.bf16.gmra.mrb[0].mxu0 %v5480
    %v7283 = vpop.f32.mrb[0].mxu0
    %v7284 = vadd.f32 %v7243, %v7283
    %v7285 = vpop.f32.mrb[0].mxu0
    %v7286 = vadd.f32 %v7245, %v7285
    %v7287 = vpop.f32.mrb[0].mxu0
    %v7288 = vpop.f32.mrb[0].mxu0
    %7289 = vdwg.mxu0
    %7290 = vmatprep.subr.bf16.mxu0 %v6663
    %7291 = vmatpush1.bf16.msra.mxu0 %v6662
    %7292 = vmatprep.subr.bf16.mxu0 %v6667
    %7293 = vmatpush1.bf16.msra.mxu0 %v6666
    %7294 = vmatprep.subr.bf16.mxu0 %v6671
    %7295 = vmatpush1.bf16.msra.mxu0 %v6670
    %7296 = vmatprep.subr.bf16.mxu0 %v6675
    %7297 = vmatpush1.bf16.msra.mxu0 %v6674
    %7298 = vmatprep.subr.bf16.mxu0 %v6679
    %7299 = vmatpush1.bf16.msra.mxu0 %v6678
    %7300 = vmatprep.subr.bf16.mxu0 %v6683
    %7301 = vmatpush1.bf16.msra.mxu0 %v6682
    %7302 = vmatprep.subr.bf16.mxu0 %v6687
    %7303 = vmatpush1.bf16.msra.mxu0 %v6686
    %7304 = vmatprep.subr.bf16.mxu0 %v6691
    %7305 = vmatpush1.bf16.msra.mxu0 %v6690
    %7306 = vmatprep.subr.bf16.mxu0 %v6695
    %7307 = vmatpush1.bf16.msra.mxu0 %v6694
    %7308 = vmatprep.subr.bf16.mxu0 %v6699
    %7309 = vmatpush1.bf16.msra.mxu0 %v6698
    %7310 = vmatprep.subr.bf16.mxu0 %v6703
    %7311 = vmatpush1.bf16.msra.mxu0 %v6702
    %7312 = vmatprep.subr.bf16.mxu0 %v6707
    %7313 = vmatpush1.bf16.msra.mxu0 %v6706
    %7314 = vmatprep.subr.bf16.mxu0 %v6711
    %7315 = vmatpush1.bf16.msra.mxu0 %v6710
    %7316 = vmatprep.subr.bf16.mxu0 %v6715
    %7317 = vmatpush1.bf16.msra.mxu0 %v6714
    %7318 = vmatprep.subr.bf16.mxu0 %v6719
    %7319 = vmatpush1.bf16.msra.mxu0 %v6718
    %7320 = vmatprep.subr.bf16.mxu0 %v6723
    %7321 = vmatpush1.bf16.msra.mxu0 %v6722
    %7322 = vmatprep.mubr.bf16.mxu0 %v5483
    %7323 = vmatmul.mubr.bf16.gmra.mrb[0].mxu0 %v5482
    %v7324 = vpop.f32.mrb[0].mxu0
    %v7325 = vadd.f32 %v7284, %v7324
    %v7326 = vpop.f32.mrb[0].mxu0
    %v7327 = vadd.f32 %v7286, %v7326
    %v7328 = vpop.f32.mrb[0].mxu0
    %v7329 = vpop.f32.mrb[0].mxu0
    %7330 = vdwg.mxu0
    %7331 = vmatprep.subr.bf16.mxu0 %v6727
    %7332 = vmatpush1.bf16.msra.mxu0 %v6726
    %7333 = vmatprep.subr.bf16.mxu0 %v6731
    %7334 = vmatpush1.bf16.msra.mxu0 %v6730
    %7335 = vmatprep.subr.bf16.mxu0 %v6735
    %7336 = vmatpush1.bf16.msra.mxu0 %v6734
    %7337 = vmatprep.subr.bf16.mxu0 %v6739
    %7338 = vmatpush1.bf16.msra.mxu0 %v6738
    %7339 = vmatprep.subr.bf16.mxu0 %v6743
    %7340 = vmatpush1.bf16.msra.mxu0 %v6742
    %7341 = vmatprep.subr.bf16.mxu0 %v6747
    %7342 = vmatpush1.bf16.msra.mxu0 %v6746
    %7343 = vmatprep.subr.bf16.mxu0 %v6751
    %7344 = vmatpush1.bf16.msra.mxu0 %v6750
    %7345 = vmatprep.subr.bf16.mxu0 %v6755
    %7346 = vmatpush1.bf16.msra.mxu0 %v6754
    %7347 = vmatprep.subr.bf16.mxu0 %v6759
    %7348 = vmatpush1.bf16.msra.mxu0 %v6758
    %7349 = vmatprep.subr.bf16.mxu0 %v6763
    %7350 = vmatpush1.bf16.msra.mxu0 %v6762
    %7351 = vmatprep.subr.bf16.mxu0 %v6767
    %7352 = vmatpush1.bf16.msra.mxu0 %v6766
    %7353 = vmatprep.subr.bf16.mxu0 %v6771
    %7354 = vmatpush1.bf16.msra.mxu0 %v6770
    %7355 = vmatprep.subr.bf16.mxu0 %v6775
    %7356 = vmatpush1.bf16.msra.mxu0 %v6774
    %7357 = vmatprep.subr.bf16.mxu0 %v6779
    %7358 = vmatpush1.bf16.msra.mxu0 %v6778
    %7359 = vmatprep.subr.bf16.mxu0 %v6783
    %7360 = vmatpush1.bf16.msra.mxu0 %v6782
    %7361 = vmatprep.subr.bf16.mxu0 %v6787
    %7362 = vmatpush1.bf16.msra.mxu0 %v6786
    %7363 = vmatprep.mubr.bf16.mxu0 %v5485
    %7364 = vmatmul.mubr.bf16.gmra.mrb[0].mxu0 %v5484
    %v7365 = vpop.f32.mrb[0].mxu0
    %v7366 = vadd.f32 %v7325, %v7365
    %v7367 = vpop.f32.mrb[0].mxu0
    %v7368 = vadd.f32 %v7327, %v7367
    %v7369 = vpop.f32.mrb[0].mxu0
    %v7370 = vpop.f32.mrb[0].mxu0
    %7371 = vdwg.mxu0
    %vm7372 = vcmp.gt.f32.partialorder %v7202, 0.0
    %vm7373 = vcmp.gt.f32.partialorder %v7204, 0.0
    %vm7374 = vcmp.gt.f32.partialorder %v7366, 0.0
    %vm7375 = vcmp.gt.f32.partialorder %v7368, 0.0
    %v7376 = vmul.f32 %v7202, 0.2
    %v7377 = vmul.f32 %v7204, 0.2
    %v7378 = vmul.f32 %v7366, 0.2
    %v7379 = vmul.f32 %v7368, 0.2
    %v7380 = vsel %vm7372, %v7202, %v7376
    %v7381 = vsel %vm7373, %v7204, %v7377
    %v7382 = vsel %vm7374, %v7366, %v7378
    %v7383 = vsel %vm7375, %v7368, %v7379
    %v7384 = vld [vmem:[#allocation22] sm:$0xf]
    %v7385 = vrot.slane %v7380, 4
    %v7386 = vadd.f32 %v7380, %v7385
    %v7387 = vrot.slane %v7386, 2
    %v7388 = vadd.f32 %v7386, %v7387
    %v7389 = vrot.slane %v7388, 1
    %v7390 = vadd.f32 %v7388, %v7389
    %v7391 = vrot.slane %v7381, 4
    %v7392 = vadd.f32 %v7381, %v7391
    %v7393 = vrot.slane %v7392, 2
    %v7394 = vadd.f32 %v7392, %v7393
    %v7395 = vrot.slane %v7394, 1
    %v7396 = vadd.f32 %v7394, %v7395
    %v7397 = vrot.slane %v7382, 4
    %v7398 = vadd.f32 %v7382, %v7397
    %v7399 = vrot.slane %v7398, 2
    %v7400 = vadd.f32 %v7398, %v7399
    %v7401 = vrot.slane %v7400, 1
    %v7402 = vadd.f32 %v7400, %v7401
    %v7403 = vrot.slane %v7383, 4
    %v7404 = vadd.f32 %v7383, %v7403
    %v7405 = vrot.slane %v7404, 2
    %v7406 = vadd.f32 %v7404, %v7405
    %v7407 = vrot.slane %v7406, 1
    %v7408 = vadd.f32 %v7406, %v7407
    %v7409 = vmul.f32 %v7390, %v953
    %v7410 = vmul.f32 %v7396, %v953
    %v7411 = vmul.f32 %v7402, %v953
    %v7412 = vmul.f32 %v7408, %v953
    %v7413 = vmul.f32 %v7380, %v7380
    %v7414 = vmul.f32 %v7381, %v7381
    %v7415 = vmul.f32 %v7382, %v7382
    %v7416 = vmul.f32 %v7383, %v7383
    %v7417 = vrot.slane %v7413, 4
    %v7418 = vadd.f32 %v7413, %v7417
    %v7419 = vrot.slane %v7418, 2
    %v7420 = vadd.f32 %v7418, %v7419
    %v7421 = vrot.slane %v7420, 1
    %v7422 = vadd.f32 %v7420, %v7421
    %v7423 = vrot.slane %v7414, 4
    %v7424 = vadd.f32 %v7414, %v7423
    %v7425 = vrot.slane %v7424, 2
    %v7426 = vadd.f32 %v7424, %v7425
    %v7427 = vrot.slane %v7426, 1
    %v7428 = vadd.f32 %v7426, %v7427
    %v7429 = vrot.slane %v7415, 4
    %v7430 = vadd.f32 %v7415, %v7429
    %v7431 = vrot.slane %v7430, 2
    %v7432 = vadd.f32 %v7430, %v7431
    %v7433 = vrot.slane %v7432, 1
    %v7434 = vadd.f32 %v7432, %v7433
    %v7435 = vrot.slane %v7416, 4
    %v7436 = vadd.f32 %v7416, %v7435
    %v7437 = vrot.slane %v7436, 2
    %v7438 = vadd.f32 %v7436, %v7437
    %v7439 = vrot.slane %v7438, 1
    %v7440 = vadd.f32 %v7438, %v7439
    %v7441 = vmul.f32 %v7422, %v953
    %v7442 = vmul.f32 %v7428, %v953
    %v7443 = vmul.f32 %v7434, %v953
    %v7444 = vmul.f32 %v7440, %v953
    %v7445 = vmul.f32 %v7409, %v7409
    %v7446 = vmul.f32 %v7410, %v7410
    %v7447 = vmul.f32 %v7411, %v7411
    %v7448 = vmul.f32 %v7412, %v7412
    %v7449 = vsub.f32 %v7441, %v7445
    %v7450 = vsub.f32 %v7442, %v7446
    %v7451 = vsub.f32 %v7443, %v7447
    %v7452 = vsub.f32 %v7444, %v7448
    %v7453 = vmax.f32 %v7449, 0.0
    %v7454 = vmax.f32 %v7450, 0.0
    %v7455 = vmax.f32 %v7451, 0.0
    %v7456 = vmax.f32 %v7452, 0.0
    %v7457 = vadd.f32 %v7453, 1e-05
    %v7458 = vadd.f32 %v7454, 1e-05
    %v7459 = vadd.f32 %v7455, 1e-05
    %v7460 = vadd.f32 %v7456, 1e-05
    %v7461 = vrsqrt.pop %v7457
    %v7462 = vrsqrt.pop %v7458
    %v7463 = vrsqrt.pop %v7459
    %v7464 = vrsqrt.pop %v7460
    %v7469 = vcombine.low %v7461, %v7462
    %v7470 = vcombine.low %v7463, %v7464
    %v7472 = vunpack.c.l.s4 1966171168
    %v7473 = vunpack.c.0.s8 %v7472
    %v7474 = vlaneseq
    %v7475 = vshrl.u32 %v7474, 7
    %v7476 = vsub.s32 %v7473, %v7475
    %v7477 = vrot.slane %v7469, %v7476
    %v7479 = vunpack.c.l.s4 1966171168
    %v7480 = vunpack.c.0.s8 %v7479
    %v7481 = vlaneseq
    %v7482 = vshrl.u32 %v7481, 7
    %v7483 = vsub.s32 %v7480, %v7482
    %v7484 = vrot.slane %v7470, %v7483
    %v7485 = vcombine.low %v7477, %v7484
    %v7487 = vunpack.c.l.s4 1966171168
    %v7488 = vunpack.c.0.s8 %v7487
    %v7489 = vlaneseq
    %v7490 = vshrl.u32 %v7489, 7
    %v7491 = vsub.s32 %v7488, %v7490
    %v7492 = vrot.slane %v7485, %v7491
    %v7494 = vmul.f32 %v7384, %v7492
    %v7495 = vld [vmem:[#allocation25] sm:$0xf]
    %v7496 = vmul.f32 %v7494, %v7495
    %v7497 = vld [vmem:[#allocation23] sm:$0xf]
    %v7499 = vlaneseq
    %v7500 = vshrl.u32 %v7499, 7
    %v7501 = vsub.s32 0, %v7500
    %v7502 = vrot.slane %v7494, %v7501
    %v7503 = vlaneseq
    %v7504 = vshrl.u32 %v7503, 7
    %v7505 = vsub.s32 1, %v7504
    %v7506 = vrot.slane %v7494, %v7505
    %v7507 = vlaneseq
    %v7508 = vshrl.u32 %v7507, 7
    %v7509 = vsub.s32 2, %v7508
    %v7510 = vrot.slane %v7494, %v7509
    %v7511 = vlaneseq
    %v7512 = vshrl.u32 %v7511, 7
    %v7513 = vsub.s32 3, %v7512
    %v7514 = vrot.slane %v7494, %v7513
    %v7519 = vmul.f32 %v7409, %v7502
    %v7520 = vmul.f32 %v7410, %v7506
    %v7521 = vmul.f32 %v7411, %v7510
    %v7522 = vmul.f32 %v7412, %v7514
    %v7527 = vcombine.low %v7519, %v7520
    %v7528 = vcombine.low %v7521, %v7522
    %v7530 = vunpack.c.l.s4 1966171168
    %v7531 = vunpack.c.0.s8 %v7530
    %v7532 = vlaneseq
    %v7533 = vshrl.u32 %v7532, 7
    %v7534 = vsub.s32 %v7531, %v7533
    %v7535 = vrot.slane %v7527, %v7534
    %v7537 = vunpack.c.l.s4 1966171168
    %v7538 = vunpack.c.0.s8 %v7537
    %v7539 = vlaneseq
    %v7540 = vshrl.u32 %v7539, 7
    %v7541 = vsub.s32 %v7538, %v7540
    %v7542 = vrot.slane %v7528, %v7541
    %v7543 = vcombine.low %v7535, %v7542
    %v7545 = vunpack.c.l.s4 1966171168
    %v7546 = vunpack.c.0.s8 %v7545
    %v7547 = vlaneseq
    %v7548 = vshrl.u32 %v7547, 7
    %v7549 = vsub.s32 %v7546, %v7548
    %v7550 = vrot.slane %v7543, %v7549
    %v7552 = vsub.f32 %v7497, %v7550
    %v7553 = vmul.f32 %v7552, %v7495
    %v7555 = vlaneseq
    %v7556 = vshrl.u32 %v7555, 7
    %v7557 = vsub.s32 0, %v7556
    %v7558 = vrot.slane %v7553, %v7557
    %v7559 = vlaneseq
    %v7560 = vshrl.u32 %v7559, 7
    %v7561 = vsub.s32 1, %v7560
    %v7562 = vrot.slane %v7553, %v7561
    %v7563 = vlaneseq
    %v7564 = vshrl.u32 %v7563, 7
    %v7565 = vsub.s32 2, %v7564
    %v7566 = vrot.slane %v7553, %v7565
    %v7567 = vlaneseq
    %v7568 = vshrl.u32 %v7567, 7
    %v7569 = vsub.s32 3, %v7568
    %v7570 = vrot.slane %v7553, %v7569
    %vm7575 = vcmask 1040384
    %v7576 = vsel %vm7575, %v7558, 0.0
    %v7577 = vsel %vm7575, %v7562, 0.0
    %v7578 = vadd.f32 %v7576, %v7577
    %v7579 = vsel %vm7575, %v7566, 0.0
    %v7580 = vadd.f32 %v7578, %v7579
    %v7581 = vsel %vm7575, %v7570, 0.0
    %v7582 = vadd.f32 %v7580, %v7581
    %7583 = vadd.xlane.f32.xlu0 %v7582
    %v7584 = vpop.xlane.xlu0 %7583
    %v7585 = vrot.slane %v7584, 4
    %v7586 = vadd.f32 %v7584, %v7585
    %v7587 = vrot.slane %v7586, 2
    %v7588 = vadd.f32 %v7586, %v7587
    %v7589 = vrot.slane %v7588, 1
    %v7590 = vadd.f32 %v7588, %v7589
    %s7591 = vtos %v7590
    %s7592 = sld [smem:[#allocation2]]
    %s7593 = sadd.f32 %s7591, %s7592
    %v7595 = vlaneseq
    %v7596 = vshrl.u32 %v7595, 7
    %v7597 = vsub.s32 0, %v7596
    %v7598 = vrot.slane %v7496, %v7597
    %v7599 = vlaneseq
    %v7600 = vshrl.u32 %v7599, 7
    %v7601 = vsub.s32 1, %v7600
    %v7602 = vrot.slane %v7496, %v7601
    %v7603 = vlaneseq
    %v7604 = vshrl.u32 %v7603, 7
    %v7605 = vsub.s32 2, %v7604
    %v7606 = vrot.slane %v7496, %v7605
    %v7607 = vlaneseq
    %v7608 = vshrl.u32 %v7607, 7
    %v7609 = vsub.s32 3, %v7608
    %v7610 = vrot.slane %v7496, %v7609
    %v7615 = vmul.f32 %v7380, %v7598
    %v7616 = vmul.f32 %v7381, %v7602
    %v7617 = vmul.f32 %v7382, %v7606
    %v7618 = vmul.f32 %v7383, %v7610
    %v7619 = vadd.f32 %v7615, %v7616
    %v7620 = vadd.f32 %v7619, %v7617
    %v7621 = vadd.f32 %v7620, %v7618
    %7622 = vadd.xlane.f32.xlu0 %v7621
    %v7623 = vpop.xlane.xlu0 %7622
    %v7624 = vstv %s7593
    %v7625 = vadd.f32 %v7623, %v7624
    %v7626 = vxor.u32 %v7625, 2147483648
    %v7627 = vmul.f32 %v7626, 1.442695
    %v7628 = vpow.pop %v7627
    %v7629 = vadd.f32 %v7628, 1.0
    %v7630 = vrcp.pop %v7629
    %v7631 = vmul.f32 1.0, %v7630
    %vm7632 = vcmask 7168
    %7633 = vst.msk [vmem:[%s17] sm:$0xff] %vm7632, %v7631
    // Predicated region
    $region130: #{dis_forward.1} parent=1 // pred_check
      _
    $region131: #{dis_forward.1} parent=1 // pred_check_branch
      %7635 = sbr.rel (0) target = $region133
    $region132: #{dis_forward.1} parent=1 // pred_region
      _
    $region133: #{dis_forward.1} parent=1 // pred_fallthru
      _
    // Predicated region
    $region134: #{dis_forward.1} parent=1 // pred_check
      _
    $region135: #{dis_forward.1} parent=1 // pred_check_branch
      %7637 = sbr.rel (0) target = $region137
    $region136: #{dis_forward.1} parent=1 // pred_region
      _
    $region137: #{dis_forward.1} parent=1 // pred_fallthru
      _
    %7638 = vsyncpa [#allocation4], 1
    %7639 = vsyncpa [#allocation6], 1
    %7640 = vsyncpa [#allocation9], 1
    %7641 = vsyncpa [#allocation12], 1
    %7642 = vsyncpa [#allocation15], 1
    %7643 = vsyncpa [#allocation18], 1
    %7644 = vsyncpa [#allocation21], 1
    %7645 = vsyncpa [#allocation24], 1

</llo_original>
